<compile_context>
chip_gen: v7x
topology: tpu7x:2x2x1
jax: 0.10.0
libtpu: 0.0.40
codegen_flags: <defaults>
</compile_context>

<pallas_src>
import functools

import numpy as np

import jax
import jax.numpy as jnp
from jax.experimental import pallas as pl
from jax.experimental.pallas import tpu as pltpu

LRELU_SLOPE = 0.1        # nn.LeakyReLU(0.1) in the reference SFNet
_CONVS_PER_BLOCK = 6     # [fpre, process1.0, process1.2, process2.0, process2.2, cat]


def _lrelu(x):
    return jnp.where(x >= 0, x, LRELU_SLOPE * x)


# --------------------------- DFT-as-matmul tables ---------------------------

@functools.lru_cache(maxsize=None)
def _dft_mats(h, w):
    """rfft2 / irfft2 (norm='backward') as dense f32 matmul tables.

    Probed numerically from np.fft so the convention (including the implicit
    drop of the imaginary part at the self-conjugate bins in irfft2) matches
    torch.fft exactly.  With pixels flattened row-major over (h, w):

        re = y @ frt ,  im = y @ fit        y     : (_, H*W)
        y' = re @ irt + im @ iit            re/im : (_, Fp)

    The frequency axis F = H*(W//2+1) is padded to a multiple of 128 lanes.
    Forward pads replicate a generic column (so sqrt/arctan2 never see an
    artificial (0, 0)); inverse pads are zero rows (padded columns never reach
    the output).
    """
    hw = h * w
    wr = w // 2 + 1
    f = h * wr
    fp = -(-f // 128) * 128

    eye_p = np.eye(hw, dtype=np.float64).reshape(hw, h, w)
    fwd = np.fft.rfft2(eye_p, axes=(-2, -1)).reshape(hw, f)
    frt = np.zeros((hw, fp), np.float32)
    fit = np.zeros((hw, fp), np.float32)
    frt[:, :f] = fwd.real
    fit[:, :f] = fwd.imag
    if fp > f:
        pad_col = min(1, f - 1)
        frt[:, f:] = frt[:, pad_col:pad_col + 1]
        fit[:, f:] = fit[:, pad_col:pad_col + 1]

    eye_f = np.eye(f, dtype=np.float64).reshape(f, h, wr)
    inv_re = np.fft.irfft2(eye_f, s=(h, w), axes=(-2, -1)).reshape(f, hw)
    inv_im = np.fft.irfft2(1j * eye_f, s=(h, w), axes=(-2, -1)).reshape(f, hw)
    irt = np.zeros((fp, hw), np.float32)
    iit = np.zeros((fp, hw), np.float32)
    irt[:f] = inv_re
    iit[:f] = inv_im
    return frt, fit, irt, iit


# ------------------------------- the kernel ---------------------------------

def _sfnet_kernel(x_ref, w_ref, b_ref, frt_ref, fit_ref, irt_ref, iit_ref,
                  out_ref, *, rows, n_blocks):
    """Whole SFNet forward on one (rows, H*W) slab, rows = N*C.

    x_ref/out_ref : (rows, H*W)              activations, pixels lane-dense
    w_ref         : (n_blocks*6, rows, rows) block-diag-expanded 1x1 weights
    b_ref         : (n_blocks*6, rows, 1)    matching biases
    frt/fit       : (H*W, Fp)                rfft2:  re = y @ frt ; im = y @ fit
    irt/iit       : (Fp, H*W)                irfft2: y' = re @ irt + im @ iit
    """

    def conv1x1(k, v):
        # Tiny channel mix: unrolled VPU broadcast-FMAs (an MXU matmul would be
        # >95% idle on a <=8-wide contraction); bias folded into the first FMA.
        wm = w_ref[k]
        bm = b_ref[k]
        acc = wm[:, 0:1] * v[0:1, :] + bm
        for i in range(1, rows):
            acc = acc + wm[:, i:i + 1] * v[i:i + 1, :]
        return acc

    x0 = x_ref[...]
    xb = x0
    for blk in range(n_blocks):
        k = blk * _CONVS_PER_BLOCK
        # -- FreBlock: fpre -> rfft2 -> mag/pha convs -> cos/sin -> irfft2 -> +x
        y = conv1x1(k + 0, xb)
        re = jnp.dot(y, frt_ref[...], preferred_element_type=jnp.float32)
        im = jnp.dot(y, fit_ref[...], preferred_element_type=jnp.float32)
        mag = jnp.sqrt(re * re + im * im)     # torch.abs(complex)
        pha = jnp.arctan2(im, re)             # torch.angle(complex)
        m = conv1x1(k + 2, _lrelu(conv1x1(k + 1, mag)))   # process1
        p = conv1x1(k + 4, _lrelu(conv1x1(k + 3, pha)))   # process2
        re2 = m * jnp.cos(p)
        im2 = m * jnp.sin(p)
        ir = (jnp.dot(re2, irt_ref[...], preferred_element_type=jnp.float32)
              + jnp.dot(im2, iit_ref[...], preferred_element_type=jnp.float32))
        # -- ProcessBlock: cat conv on (irfft + x) plus the block residual.
        xb = conv1x1(k + 5, ir + xb) + xb
    out_ref[...] = xb + x0                    # final SFNet skip: x_ori + x5


# ------------------------------ forward wrapper ------------------------------

def sfnet_forward(x_nchw, params):
    n, c, h, w = x_nchw.shape
    hw = h * w
    rows = n * c
    w_all = params["w"]                     # (n_blocks*6, c, c)
    b_all = params["b"]                     # (n_blocks*6, c, 1)
    n_blocks = w_all.shape[0] // _CONVS_PER_BLOCK

    frt, fit, irt, iit = (jnp.asarray(a) for a in _dft_mats(h, w))

    # Block-diagonal expansion over the batch so the kernel works on a single
    # sublane-full (N*C, H*W) slab:  W_bd[s*C+o, t*C+i] = (s == t) * W[o, i].
    eye_n = jnp.eye(n, dtype=w_all.dtype)
    w_bd = jnp.einsum("st,koi->ksoti", eye_n, w_all).reshape(-1, rows, rows)
    b_bd = jnp.tile(b_all, (1, n, 1))       # (n_blocks*6, N*C, 1)

    # Plain reshape (no transpose): rows = (sample, channel), pixels on lanes.
    x_slab = x_nchw.reshape(rows, hw).astype(jnp.float32)

    vmem = functools.partial(pl.BlockSpec, memory_space=pltpu.MemorySpace.VMEM)
    out_slab = pl.pallas_call(
        functools.partial(_sfnet_kernel, rows=rows, n_blocks=n_blocks),
        out_shape=jax.ShapeDtypeStruct((rows, hw), jnp.float32),
        in_specs=[vmem() for _ in range(7)],
        out_specs=vmem(),
    )(x_slab, w_bd, b_bd, frt, fit, irt, iit)
    return out_slab.reshape(n, c, h, w)


# ----------------------------- plain-JAX reference ---------------------------

def sfnet_reference(x, params):
    """Reference using jnp.fft (for a numerical sanity check only)."""
    w_all = params["w"]
    b_all = params["b"]
    n, c, h, w = x.shape
    n_blocks = w_all.shape[0] // _CONVS_PER_BLOCK

    def conv(k, v):
        return (jnp.einsum("oc,nchw->nohw", w_all[k], v)
                + b_all[k][:, 0][None, :, None, None])

    xb = x
    for blk in range(n_blocks):
        k = blk * _CONVS_PER_BLOCK
        f = jnp.fft.rfft2(conv(k + 0, xb), axes=(-2, -1))
        mag = jnp.abs(f)
        pha = jnp.angle(f)
        m = conv(k + 2, _lrelu(conv(k + 1, mag)))
        p = conv(k + 4, _lrelu(conv(k + 3, pha)))
        fr = m * jnp.cos(p)
        fi = m * jnp.sin(p)
        ir = jnp.fft.irfft2(jax.lax.complex(fr, fi), s=(h, w), axes=(-2, -1))
        xb = conv(k + 5, ir + xb) + xb
    return x + xb


# ---------------------------------- params -----------------------------------

def init_params(key, nc, n_blocks=5):
    """Packed params: w (n_blocks*6, nc, nc), b (n_blocks*6, nc, 1).

    Per-block slot order: [fpre, p1a, p1b, p2a, p2b, cat].  Values follow the
    PyTorch Conv2d(nc, nc, 1) default init U(-1/sqrt(nc), 1/sqrt(nc)).
    """
    bound = 1.0 / float(np.sqrt(nc))
    kw, kb = jax.random.split(key)
    w = jax.random.uniform(kw, (n_blocks * _CONVS_PER_BLOCK, nc, nc),
                           jnp.float32, -bound, bound)
    b = jax.random.uniform(kb, (n_blocks * _CONVS_PER_BLOCK, nc, 1),
                           jnp.float32, -bound, bound)
    return {"w": w, "b": b}


# ----------------------------------- main -------------------------------------

if __name__ == "__main__":
    key = jax.random.PRNGKey(0)
    k_x, k_p = jax.random.split(key)

    N, C, H, W = 2, 4, 16, 16
    x = jax.random.normal(k_x, (N, C, H, W), dtype=jnp.float32)
    params = init_params(k_p, C, n_blocks=5)

    fwd = jax.jit(sfnet_forward)
    out = jax.block_until_ready(fwd(x, params))

    assert out.shape == (N, C, H, W), out.shape
    assert out.dtype == jnp.float32, out.dtype
    assert bool(jnp.all(jnp.isfinite(out)))

    # Loose, scale-aware sanity check against the XLA-FFT reference: wide
    # enough to be insensitive to MXU f32 pass-count / EUP polynomial details,
    # tight enough to catch any semantic bug (those produce O(1) errors).
    ref = jax.block_until_ready(jax.jit(sfnet_reference)(x, params))
    max_err = float(jnp.max(jnp.abs(out - ref)))
    scale = float(jnp.max(jnp.abs(ref)))
    assert max_err <= 0.02 * scale + 1e-3, (max_err, scale)

    print("KERNEL_OK")
</pallas_src>

<mosaic_0001>
module attributes {stable_mosaic.version = 11 : i64} {
  func.func @_sfnet_kernel(%arg0: memref<8x256xf32, #tpu.memory_space<vmem>>, %arg1: memref<30x8x8xf32, #tpu.memory_space<vmem>>, %arg2: memref<30x8x1xf32, #tpu.memory_space<vmem>>, %arg3: memref<256x256xf32, #tpu.memory_space<vmem>>, %arg4: memref<256x256xf32, #tpu.memory_space<vmem>>, %arg5: memref<256x256xf32, #tpu.memory_space<vmem>>, %arg6: memref<256x256xf32, #tpu.memory_space<vmem>>, %arg7: memref<8x256xf32, #tpu.memory_space<vmem>>) attributes {dimension_semantics = [], scalar_prefetch = 0 : i64, scratch_operands = 0 : i64, tpu.core_type = #tpu.core_type<tc>} {
    %c0 = arith.constant 0 : index
    %c0_0 = arith.constant 0 : index
    %0 = vector.load %arg0[%c0, %c0_0] : memref<8x256xf32, #tpu.memory_space<vmem>>, vector<8x256xf32>
    %c0_1 = arith.constant 0 : index
    %c0_2 = arith.constant 0 : index
    %c0_3 = arith.constant 0 : index
    %1 = vector.load %arg1[%c0_1, %c0_2, %c0_3] : memref<30x8x8xf32, #tpu.memory_space<vmem>>, vector<1x8x8xf32>
    %2 = vector.shape_cast %1 : vector<1x8x8xf32> to vector<8x8xf32>
    %c0_4 = arith.constant 0 : index
    %c0_5 = arith.constant 0 : index
    %c0_6 = arith.constant 0 : index
    %3 = vector.load %arg2[%c0_4, %c0_5, %c0_6] : memref<30x8x1xf32, #tpu.memory_space<vmem>>, vector<1x8x1xf32>
    %4 = vector.shape_cast %3 : vector<1x8x1xf32> to vector<8x1xf32>
    %5 = vector.extract_strided_slice %2 {offsets = [0, 0], sizes = [8, 1], strides = [1, 1]} : vector<8x8xf32> to vector<8x1xf32>
    %6 = vector.extract_strided_slice %0 {offsets = [0, 0], sizes = [1, 256], strides = [1, 1]} : vector<8x256xf32> to vector<1x256xf32>
    %7 = vector.broadcast %5 : vector<8x1xf32> to vector<8x256xf32>
    %8 = vector.broadcast %6 : vector<1x256xf32> to vector<8x256xf32>
    %9 = arith.mulf %7, %8 : vector<8x256xf32>
    %10 = vector.broadcast %4 : vector<8x1xf32> to vector<8x256xf32>
    %11 = arith.addf %9, %10 : vector<8x256xf32>
    %12 = vector.extract_strided_slice %2 {offsets = [0, 1], sizes = [8, 1], strides = [1, 1]} : vector<8x8xf32> to vector<8x1xf32>
    %13 = vector.extract_strided_slice %0 {offsets = [1, 0], sizes = [1, 256], strides = [1, 1]} : vector<8x256xf32> to vector<1x256xf32>
    %14 = vector.broadcast %12 : vector<8x1xf32> to vector<8x256xf32>
    %15 = vector.broadcast %13 : vector<1x256xf32> to vector<8x256xf32>
    %16 = arith.mulf %14, %15 : vector<8x256xf32>
    %17 = arith.addf %11, %16 : vector<8x256xf32>
    %18 = vector.extract_strided_slice %2 {offsets = [0, 2], sizes = [8, 1], strides = [1, 1]} : vector<8x8xf32> to vector<8x1xf32>
    %19 = vector.extract_strided_slice %0 {offsets = [2, 0], sizes = [1, 256], strides = [1, 1]} : vector<8x256xf32> to vector<1x256xf32>
    %20 = vector.broadcast %18 : vector<8x1xf32> to vector<8x256xf32>
    %21 = vector.broadcast %19 : vector<1x256xf32> to vector<8x256xf32>
    %22 = arith.mulf %20, %21 : vector<8x256xf32>
    %23 = arith.addf %17, %22 : vector<8x256xf32>
    %24 = vector.extract_strided_slice %2 {offsets = [0, 3], sizes = [8, 1], strides = [1, 1]} : vector<8x8xf32> to vector<8x1xf32>
    %25 = vector.extract_strided_slice %0 {offsets = [3, 0], sizes = [1, 256], strides = [1, 1]} : vector<8x256xf32> to vector<1x256xf32>
    %26 = vector.broadcast %24 : vector<8x1xf32> to vector<8x256xf32>
    %27 = vector.broadcast %25 : vector<1x256xf32> to vector<8x256xf32>
    %28 = arith.mulf %26, %27 : vector<8x256xf32>
    %29 = arith.addf %23, %28 : vector<8x256xf32>
    %30 = vector.extract_strided_slice %2 {offsets = [0, 4], sizes = [8, 1], strides = [1, 1]} : vector<8x8xf32> to vector<8x1xf32>
    %31 = vector.extract_strided_slice %0 {offsets = [4, 0], sizes = [1, 256], strides = [1, 1]} : vector<8x256xf32> to vector<1x256xf32>
    %32 = vector.broadcast %30 : vector<8x1xf32> to vector<8x256xf32>
    %33 = vector.broadcast %31 : vector<1x256xf32> to vector<8x256xf32>
    %34 = arith.mulf %32, %33 : vector<8x256xf32>
    %35 = arith.addf %29, %34 : vector<8x256xf32>
    %36 = vector.extract_strided_slice %2 {offsets = [0, 5], sizes = [8, 1], strides = [1, 1]} : vector<8x8xf32> to vector<8x1xf32>
    %37 = vector.extract_strided_slice %0 {offsets = [5, 0], sizes = [1, 256], strides = [1, 1]} : vector<8x256xf32> to vector<1x256xf32>
    %38 = vector.broadcast %36 : vector<8x1xf32> to vector<8x256xf32>
    %39 = vector.broadcast %37 : vector<1x256xf32> to vector<8x256xf32>
    %40 = arith.mulf %38, %39 : vector<8x256xf32>
    %41 = arith.addf %35, %40 : vector<8x256xf32>
    %42 = vector.extract_strided_slice %2 {offsets = [0, 6], sizes = [8, 1], strides = [1, 1]} : vector<8x8xf32> to vector<8x1xf32>
    %43 = vector.extract_strided_slice %0 {offsets = [6, 0], sizes = [1, 256], strides = [1, 1]} : vector<8x256xf32> to vector<1x256xf32>
    %44 = vector.broadcast %42 : vector<8x1xf32> to vector<8x256xf32>
    %45 = vector.broadcast %43 : vector<1x256xf32> to vector<8x256xf32>
    %46 = arith.mulf %44, %45 : vector<8x256xf32>
    %47 = arith.addf %41, %46 : vector<8x256xf32>
    %48 = vector.extract_strided_slice %2 {offsets = [0, 7], sizes = [8, 1], strides = [1, 1]} : vector<8x8xf32> to vector<8x1xf32>
    %49 = vector.extract_strided_slice %0 {offsets = [7, 0], sizes = [1, 256], strides = [1, 1]} : vector<8x256xf32> to vector<1x256xf32>
    %50 = vector.broadcast %48 : vector<8x1xf32> to vector<8x256xf32>
    %51 = vector.broadcast %49 : vector<1x256xf32> to vector<8x256xf32>
    %52 = arith.mulf %50, %51 : vector<8x256xf32>
    %53 = arith.addf %47, %52 : vector<8x256xf32>
    %c0_7 = arith.constant 0 : index
    %c0_8 = arith.constant 0 : index
    %54 = vector.load %arg3[%c0_7, %c0_8] : memref<256x256xf32, #tpu.memory_space<vmem>>, vector<256x256xf32>
    %cst = arith.constant dense<0.000000e+00> : vector<8x256xf32>
    %55 = tpu.matmul %53, %54, %cst {dimension_numbers = #tpu.dot_dimension_numbers<[1], [0], [0], [1], [0, 0, 1, 1], [], []>} : vector<8x256xf32>, vector<256x256xf32>, vector<8x256xf32> -> vector<8x256xf32>
    %c0_9 = arith.constant 0 : index
    %c0_10 = arith.constant 0 : index
    %56 = vector.load %arg4[%c0_9, %c0_10] : memref<256x256xf32, #tpu.memory_space<vmem>>, vector<256x256xf32>
    %cst_11 = arith.constant dense<0.000000e+00> : vector<8x256xf32>
    %57 = tpu.matmul %53, %56, %cst_11 {dimension_numbers = #tpu.dot_dimension_numbers<[1], [0], [0], [1], [0, 0, 1, 1], [], []>} : vector<8x256xf32>, vector<256x256xf32>, vector<8x256xf32> -> vector<8x256xf32>
    %58 = arith.mulf %55, %55 : vector<8x256xf32>
    %59 = arith.mulf %57, %57 : vector<8x256xf32>
    %60 = arith.addf %58, %59 : vector<8x256xf32>
    %61 = math.sqrt %60 : vector<8x256xf32>
    %62 = math.atan2 %57, %55 : vector<8x256xf32>
    %c1 = arith.constant 1 : index
    %c0_12 = arith.constant 0 : index
    %c0_13 = arith.constant 0 : index
    %63 = vector.load %arg1[%c1, %c0_12, %c0_13] : memref<30x8x8xf32, #tpu.memory_space<vmem>>, vector<1x8x8xf32>
    %64 = vector.shape_cast %63 : vector<1x8x8xf32> to vector<8x8xf32>
    %c1_14 = arith.constant 1 : index
    %c0_15 = arith.constant 0 : index
    %c0_16 = arith.constant 0 : index
    %65 = vector.load %arg2[%c1_14, %c0_15, %c0_16] : memref<30x8x1xf32, #tpu.memory_space<vmem>>, vector<1x8x1xf32>
    %66 = vector.shape_cast %65 : vector<1x8x1xf32> to vector<8x1xf32>
    %67 = vector.extract_strided_slice %64 {offsets = [0, 0], sizes = [8, 1], strides = [1, 1]} : vector<8x8xf32> to vector<8x1xf32>
    %68 = vector.extract_strided_slice %61 {offsets = [0, 0], sizes = [1, 256], strides = [1, 1]} : vector<8x256xf32> to vector<1x256xf32>
    %69 = vector.broadcast %67 : vector<8x1xf32> to vector<8x256xf32>
    %70 = vector.broadcast %68 : vector<1x256xf32> to vector<8x256xf32>
    %71 = arith.mulf %69, %70 : vector<8x256xf32>
    %72 = vector.broadcast %66 : vector<8x1xf32> to vector<8x256xf32>
    %73 = arith.addf %71, %72 : vector<8x256xf32>
    %74 = vector.extract_strided_slice %64 {offsets = [0, 1], sizes = [8, 1], strides = [1, 1]} : vector<8x8xf32> to vector<8x1xf32>
    %75 = vector.extract_strided_slice %61 {offsets = [1, 0], sizes = [1, 256], strides = [1, 1]} : vector<8x256xf32> to vector<1x256xf32>
    %76 = vector.broadcast %74 : vector<8x1xf32> to vector<8x256xf32>
    %77 = vector.broadcast %75 : vector<1x256xf32> to vector<8x256xf32>
    %78 = arith.mulf %76, %77 : vector<8x256xf32>
    %79 = arith.addf %73, %78 : vector<8x256xf32>
    %80 = vector.extract_strided_slice %64 {offsets = [0, 2], sizes = [8, 1], strides = [1, 1]} : vector<8x8xf32> to vector<8x1xf32>
    %81 = vector.extract_strided_slice %61 {offsets = [2, 0], sizes = [1, 256], strides = [1, 1]} : vector<8x256xf32> to vector<1x256xf32>
    %82 = vector.broadcast %80 : vector<8x1xf32> to vector<8x256xf32>
    %83 = vector.broadcast %81 : vector<1x256xf32> to vector<8x256xf32>
    %84 = arith.mulf %82, %83 : vector<8x256xf32>
    %85 = arith.addf %79, %84 : vector<8x256xf32>
    %86 = vector.extract_strided_slice %64 {offsets = [0, 3], sizes = [8, 1], strides = [1, 1]} : vector<8x8xf32> to vector<8x1xf32>
    %87 = vector.extract_strided_slice %61 {offsets = [3, 0], sizes = [1, 256], strides = [1, 1]} : vector<8x256xf32> to vector<1x256xf32>
    %88 = vector.broadcast %86 : vector<8x1xf32> to vector<8x256xf32>
    %89 = vector.broadcast %87 : vector<1x256xf32> to vector<8x256xf32>
    %90 = arith.mulf %88, %89 : vector<8x256xf32>
    %91 = arith.addf %85, %90 : vector<8x256xf32>
    %92 = vector.extract_strided_slice %64 {offsets = [0, 4], sizes = [8, 1], strides = [1, 1]} : vector<8x8xf32> to vector<8x1xf32>
    %93 = vector.extract_strided_slice %61 {offsets = [4, 0], sizes = [1, 256], strides = [1, 1]} : vector<8x256xf32> to vector<1x256xf32>
    %94 = vector.broadcast %92 : vector<8x1xf32> to vector<8x256xf32>
    %95 = vector.broadcast %93 : vector<1x256xf32> to vector<8x256xf32>
    %96 = arith.mulf %94, %95 : vector<8x256xf32>
    %97 = arith.addf %91, %96 : vector<8x256xf32>
    %98 = vector.extract_strided_slice %64 {offsets = [0, 5], sizes = [8, 1], strides = [1, 1]} : vector<8x8xf32> to vector<8x1xf32>
    %99 = vector.extract_strided_slice %61 {offsets = [5, 0], sizes = [1, 256], strides = [1, 1]} : vector<8x256xf32> to vector<1x256xf32>
    %100 = vector.broadcast %98 : vector<8x1xf32> to vector<8x256xf32>
    %101 = vector.broadcast %99 : vector<1x256xf32> to vector<8x256xf32>
    %102 = arith.mulf %100, %101 : vector<8x256xf32>
    %103 = arith.addf %97, %102 : vector<8x256xf32>
    %104 = vector.extract_strided_slice %64 {offsets = [0, 6], sizes = [8, 1], strides = [1, 1]} : vector<8x8xf32> to vector<8x1xf32>
    %105 = vector.extract_strided_slice %61 {offsets = [6, 0], sizes = [1, 256], strides = [1, 1]} : vector<8x256xf32> to vector<1x256xf32>
    %106 = vector.broadcast %104 : vector<8x1xf32> to vector<8x256xf32>
    %107 = vector.broadcast %105 : vector<1x256xf32> to vector<8x256xf32>
    %108 = arith.mulf %106, %107 : vector<8x256xf32>
    %109 = arith.addf %103, %108 : vector<8x256xf32>
    %110 = vector.extract_strided_slice %64 {offsets = [0, 7], sizes = [8, 1], strides = [1, 1]} : vector<8x8xf32> to vector<8x1xf32>
    %111 = vector.extract_strided_slice %61 {offsets = [7, 0], sizes = [1, 256], strides = [1, 1]} : vector<8x256xf32> to vector<1x256xf32>
    %112 = vector.broadcast %110 : vector<8x1xf32> to vector<8x256xf32>
    %113 = vector.broadcast %111 : vector<1x256xf32> to vector<8x256xf32>
    %114 = arith.mulf %112, %113 : vector<8x256xf32>
    %115 = arith.addf %109, %114 : vector<8x256xf32>
    %cst_17 = arith.constant 0.000000e+00 : f32
    %116 = vector.broadcast %cst_17 : f32 to vector<8x256xf32>
    %117 = arith.cmpf oge, %115, %116 : vector<8x256xf32>
    %cst_18 = arith.constant 1.000000e-01 : f32
    %118 = vector.broadcast %cst_18 : f32 to vector<8x256xf32>
    %119 = arith.mulf %118, %115 : vector<8x256xf32>
    %120 = arith.select %117, %115, %119 : vector<8x256xi1>, vector<8x256xf32>
    %c2 = arith.constant 2 : index
    %c0_19 = arith.constant 0 : index
    %c0_20 = arith.constant 0 : index
    %121 = vector.load %arg1[%c2, %c0_19, %c0_20] : memref<30x8x8xf32, #tpu.memory_space<vmem>>, vector<1x8x8xf32>
    %122 = vector.shape_cast %121 : vector<1x8x8xf32> to vector<8x8xf32>
    %c2_21 = arith.constant 2 : index
    %c0_22 = arith.constant 0 : index
    %c0_23 = arith.constant 0 : index
    %123 = vector.load %arg2[%c2_21, %c0_22, %c0_23] : memref<30x8x1xf32, #tpu.memory_space<vmem>>, vector<1x8x1xf32>
    %124 = vector.shape_cast %123 : vector<1x8x1xf32> to vector<8x1xf32>
    %125 = vector.extract_strided_slice %122 {offsets = [0, 0], sizes = [8, 1], strides = [1, 1]} : vector<8x8xf32> to vector<8x1xf32>
    %126 = vector.extract_strided_slice %120 {offsets = [0, 0], sizes = [1, 256], strides = [1, 1]} : vector<8x256xf32> to vector<1x256xf32>
    %127 = vector.broadcast %125 : vector<8x1xf32> to vector<8x256xf32>
    %128 = vector.broadcast %126 : vector<1x256xf32> to vector<8x256xf32>
    %129 = arith.mulf %127, %128 : vector<8x256xf32>
    %130 = vector.broadcast %124 : vector<8x1xf32> to vector<8x256xf32>
    %131 = arith.addf %129, %130 : vector<8x256xf32>
    %132 = vector.extract_strided_slice %122 {offsets = [0, 1], sizes = [8, 1], strides = [1, 1]} : vector<8x8xf32> to vector<8x1xf32>
    %133 = vector.extract_strided_slice %120 {offsets = [1, 0], sizes = [1, 256], strides = [1, 1]} : vector<8x256xf32> to vector<1x256xf32>
    %134 = vector.broadcast %132 : vector<8x1xf32> to vector<8x256xf32>
    %135 = vector.broadcast %133 : vector<1x256xf32> to vector<8x256xf32>
    %136 = arith.mulf %134, %135 : vector<8x256xf32>
    %137 = arith.addf %131, %136 : vector<8x256xf32>
    %138 = vector.extract_strided_slice %122 {offsets = [0, 2], sizes = [8, 1], strides = [1, 1]} : vector<8x8xf32> to vector<8x1xf32>
    %139 = vector.extract_strided_slice %120 {offsets = [2, 0], sizes = [1, 256], strides = [1, 1]} : vector<8x256xf32> to vector<1x256xf32>
    %140 = vector.broadcast %138 : vector<8x1xf32> to vector<8x256xf32>
    %141 = vector.broadcast %139 : vector<1x256xf32> to vector<8x256xf32>
    %142 = arith.mulf %140, %141 : vector<8x256xf32>
    %143 = arith.addf %137, %142 : vector<8x256xf32>
    %144 = vector.extract_strided_slice %122 {offsets = [0, 3], sizes = [8, 1], strides = [1, 1]} : vector<8x8xf32> to vector<8x1xf32>
    %145 = vector.extract_strided_slice %120 {offsets = [3, 0], sizes = [1, 256], strides = [1, 1]} : vector<8x256xf32> to vector<1x256xf32>
    %146 = vector.broadcast %144 : vector<8x1xf32> to vector<8x256xf32>
    %147 = vector.broadcast %145 : vector<1x256xf32> to vector<8x256xf32>
    %148 = arith.mulf %146, %147 : vector<8x256xf32>
    %149 = arith.addf %143, %148 : vector<8x256xf32>
    %150 = vector.extract_strided_slice %122 {offsets = [0, 4], sizes = [8, 1], strides = [1, 1]} : vector<8x8xf32> to vector<8x1xf32>
    %151 = vector.extract_strided_slice %120 {offsets = [4, 0], sizes = [1, 256], strides = [1, 1]} : vector<8x256xf32> to vector<1x256xf32>
    %152 = vector.broadcast %150 : vector<8x1xf32> to vector<8x256xf32>
    %153 = vector.broadcast %151 : vector<1x256xf32> to vector<8x256xf32>
    %154 = arith.mulf %152, %153 : vector<8x256xf32>
    %155 = arith.addf %149, %154 : vector<8x256xf32>
    %156 = vector.extract_strided_slice %122 {offsets = [0, 5], sizes = [8, 1], strides = [1, 1]} : vector<8x8xf32> to vector<8x1xf32>
    %157 = vector.extract_strided_slice %120 {offsets = [5, 0], sizes = [1, 256], strides = [1, 1]} : vector<8x256xf32> to vector<1x256xf32>
    %158 = vector.broadcast %156 : vector<8x1xf32> to vector<8x256xf32>
    %159 = vector.broadcast %157 : vector<1x256xf32> to vector<8x256xf32>
    %160 = arith.mulf %158, %159 : vector<8x256xf32>
    %161 = arith.addf %155, %160 : vector<8x256xf32>
    %162 = vector.extract_strided_slice %122 {offsets = [0, 6], sizes = [8, 1], strides = [1, 1]} : vector<8x8xf32> to vector<8x1xf32>
    %163 = vector.extract_strided_slice %120 {offsets = [6, 0], sizes = [1, 256], strides = [1, 1]} : vector<8x256xf32> to vector<1x256xf32>
    %164 = vector.broadcast %162 : vector<8x1xf32> to vector<8x256xf32>
    %165 = vector.broadcast %163 : vector<1x256xf32> to vector<8x256xf32>
    %166 = arith.mulf %164, %165 : vector<8x256xf32>
    %167 = arith.addf %161, %166 : vector<8x256xf32>
    %168 = vector.extract_strided_slice %122 {offsets = [0, 7], sizes = [8, 1], strides = [1, 1]} : vector<8x8xf32> to vector<8x1xf32>
    %169 = vector.extract_strided_slice %120 {offsets = [7, 0], sizes = [1, 256], strides = [1, 1]} : vector<8x256xf32> to vector<1x256xf32>
    %170 = vector.broadcast %168 : vector<8x1xf32> to vector<8x256xf32>
    %171 = vector.broadcast %169 : vector<1x256xf32> to vector<8x256xf32>
    %172 = arith.mulf %170, %171 : vector<8x256xf32>
    %173 = arith.addf %167, %172 : vector<8x256xf32>
    %c3 = arith.constant 3 : index
    %c0_24 = arith.constant 0 : index
    %c0_25 = arith.constant 0 : index
    %174 = vector.load %arg1[%c3, %c0_24, %c0_25] : memref<30x8x8xf32, #tpu.memory_space<vmem>>, vector<1x8x8xf32>
    %175 = vector.shape_cast %174 : vector<1x8x8xf32> to vector<8x8xf32>
    %c3_26 = arith.constant 3 : index
    %c0_27 = arith.constant 0 : index
    %c0_28 = arith.constant 0 : index
    %176 = vector.load %arg2[%c3_26, %c0_27, %c0_28] : memref<30x8x1xf32, #tpu.memory_space<vmem>>, vector<1x8x1xf32>
    %177 = vector.shape_cast %176 : vector<1x8x1xf32> to vector<8x1xf32>
    %178 = vector.extract_strided_slice %175 {offsets = [0, 0], sizes = [8, 1], strides = [1, 1]} : vector<8x8xf32> to vector<8x1xf32>
    %179 = vector.extract_strided_slice %62 {offsets = [0, 0], sizes = [1, 256], strides = [1, 1]} : vector<8x256xf32> to vector<1x256xf32>
    %180 = vector.broadcast %178 : vector<8x1xf32> to vector<8x256xf32>
    %181 = vector.broadcast %179 : vector<1x256xf32> to vector<8x256xf32>
    %182 = arith.mulf %180, %181 : vector<8x256xf32>
    %183 = vector.broadcast %177 : vector<8x1xf32> to vector<8x256xf32>
    %184 = arith.addf %182, %183 : vector<8x256xf32>
    %185 = vector.extract_strided_slice %175 {offsets = [0, 1], sizes = [8, 1], strides = [1, 1]} : vector<8x8xf32> to vector<8x1xf32>
    %186 = vector.extract_strided_slice %62 {offsets = [1, 0], sizes = [1, 256], strides = [1, 1]} : vector<8x256xf32> to vector<1x256xf32>
    %187 = vector.broadcast %185 : vector<8x1xf32> to vector<8x256xf32>
    %188 = vector.broadcast %186 : vector<1x256xf32> to vector<8x256xf32>
    %189 = arith.mulf %187, %188 : vector<8x256xf32>
    %190 = arith.addf %184, %189 : vector<8x256xf32>
    %191 = vector.extract_strided_slice %175 {offsets = [0, 2], sizes = [8, 1], strides = [1, 1]} : vector<8x8xf32> to vector<8x1xf32>
    %192 = vector.extract_strided_slice %62 {offsets = [2, 0], sizes = [1, 256], strides = [1, 1]} : vector<8x256xf32> to vector<1x256xf32>
    %193 = vector.broadcast %191 : vector<8x1xf32> to vector<8x256xf32>
    %194 = vector.broadcast %192 : vector<1x256xf32> to vector<8x256xf32>
    %195 = arith.mulf %193, %194 : vector<8x256xf32>
    %196 = arith.addf %190, %195 : vector<8x256xf32>
    %197 = vector.extract_strided_slice %175 {offsets = [0, 3], sizes = [8, 1], strides = [1, 1]} : vector<8x8xf32> to vector<8x1xf32>
    %198 = vector.extract_strided_slice %62 {offsets = [3, 0], sizes = [1, 256], strides = [1, 1]} : vector<8x256xf32> to vector<1x256xf32>
    %199 = vector.broadcast %197 : vector<8x1xf32> to vector<8x256xf32>
    %200 = vector.broadcast %198 : vector<1x256xf32> to vector<8x256xf32>
    %201 = arith.mulf %199, %200 : vector<8x256xf32>
    %202 = arith.addf %196, %201 : vector<8x256xf32>
    %203 = vector.extract_strided_slice %175 {offsets = [0, 4], sizes = [8, 1], strides = [1, 1]} : vector<8x8xf32> to vector<8x1xf32>
    %204 = vector.extract_strided_slice %62 {offsets = [4, 0], sizes = [1, 256], strides = [1, 1]} : vector<8x256xf32> to vector<1x256xf32>
    %205 = vector.broadcast %203 : vector<8x1xf32> to vector<8x256xf32>
    %206 = vector.broadcast %204 : vector<1x256xf32> to vector<8x256xf32>
    %207 = arith.mulf %205, %206 : vector<8x256xf32>
    %208 = arith.addf %202, %207 : vector<8x256xf32>
    %209 = vector.extract_strided_slice %175 {offsets = [0, 5], sizes = [8, 1], strides = [1, 1]} : vector<8x8xf32> to vector<8x1xf32>
    %210 = vector.extract_strided_slice %62 {offsets = [5, 0], sizes = [1, 256], strides = [1, 1]} : vector<8x256xf32> to vector<1x256xf32>
    %211 = vector.broadcast %209 : vector<8x1xf32> to vector<8x256xf32>
    %212 = vector.broadcast %210 : vector<1x256xf32> to vector<8x256xf32>
    %213 = arith.mulf %211, %212 : vector<8x256xf32>
    %214 = arith.addf %208, %213 : vector<8x256xf32>
    %215 = vector.extract_strided_slice %175 {offsets = [0, 6], sizes = [8, 1], strides = [1, 1]} : vector<8x8xf32> to vector<8x1xf32>
    %216 = vector.extract_strided_slice %62 {offsets = [6, 0], sizes = [1, 256], strides = [1, 1]} : vector<8x256xf32> to vector<1x256xf32>
    %217 = vector.broadcast %215 : vector<8x1xf32> to vector<8x256xf32>
    %218 = vector.broadcast %216 : vector<1x256xf32> to vector<8x256xf32>
    %219 = arith.mulf %217, %218 : vector<8x256xf32>
    %220 = arith.addf %214, %219 : vector<8x256xf32>
    %221 = vector.extract_strided_slice %175 {offsets = [0, 7], sizes = [8, 1], strides = [1, 1]} : vector<8x8xf32> to vector<8x1xf32>
    %222 = vector.extract_strided_slice %62 {offsets = [7, 0], sizes = [1, 256], strides = [1, 1]} : vector<8x256xf32> to vector<1x256xf32>
    %223 = vector.broadcast %221 : vector<8x1xf32> to vector<8x256xf32>
    %224 = vector.broadcast %222 : vector<1x256xf32> to vector<8x256xf32>
    %225 = arith.mulf %223, %224 : vector<8x256xf32>
    %226 = arith.addf %220, %225 : vector<8x256xf32>
    %cst_29 = arith.constant 0.000000e+00 : f32
    %227 = vector.broadcast %cst_29 : f32 to vector<8x256xf32>
    %228 = arith.cmpf oge, %226, %227 : vector<8x256xf32>
    %cst_30 = arith.constant 1.000000e-01 : f32
    %229 = vector.broadcast %cst_30 : f32 to vector<8x256xf32>
    %230 = arith.mulf %229, %226 : vector<8x256xf32>
    %231 = arith.select %228, %226, %230 : vector<8x256xi1>, vector<8x256xf32>
    %c4 = arith.constant 4 : index
    %c0_31 = arith.constant 0 : index
    %c0_32 = arith.constant 0 : index
    %232 = vector.load %arg1[%c4, %c0_31, %c0_32] : memref<30x8x8xf32, #tpu.memory_space<vmem>>, vector<1x8x8xf32>
    %233 = vector.shape_cast %232 : vector<1x8x8xf32> to vector<8x8xf32>
    %c4_33 = arith.constant 4 : index
    %c0_34 = arith.constant 0 : index
    %c0_35 = arith.constant 0 : index
    %234 = vector.load %arg2[%c4_33, %c0_34, %c0_35] : memref<30x8x1xf32, #tpu.memory_space<vmem>>, vector<1x8x1xf32>
    %235 = vector.shape_cast %234 : vector<1x8x1xf32> to vector<8x1xf32>
    %236 = vector.extract_strided_slice %233 {offsets = [0, 0], sizes = [8, 1], strides = [1, 1]} : vector<8x8xf32> to vector<8x1xf32>
    %237 = vector.extract_strided_slice %231 {offsets = [0, 0], sizes = [1, 256], strides = [1, 1]} : vector<8x256xf32> to vector<1x256xf32>
    %238 = vector.broadcast %236 : vector<8x1xf32> to vector<8x256xf32>
    %239 = vector.broadcast %237 : vector<1x256xf32> to vector<8x256xf32>
    %240 = arith.mulf %238, %239 : vector<8x256xf32>
    %241 = vector.broadcast %235 : vector<8x1xf32> to vector<8x256xf32>
    %242 = arith.addf %240, %241 : vector<8x256xf32>
    %243 = vector.extract_strided_slice %233 {offsets = [0, 1], sizes = [8, 1], strides = [1, 1]} : vector<8x8xf32> to vector<8x1xf32>
    %244 = vector.extract_strided_slice %231 {offsets = [1, 0], sizes = [1, 256], strides = [1, 1]} : vector<8x256xf32> to vector<1x256xf32>
    %245 = vector.broadcast %243 : vector<8x1xf32> to vector<8x256xf32>
    %246 = vector.broadcast %244 : vector<1x256xf32> to vector<8x256xf32>
    %247 = arith.mulf %245, %246 : vector<8x256xf32>
    %248 = arith.addf %242, %247 : vector<8x256xf32>
    %249 = vector.extract_strided_slice %233 {offsets = [0, 2], sizes = [8, 1], strides = [1, 1]} : vector<8x8xf32> to vector<8x1xf32>
    %250 = vector.extract_strided_slice %231 {offsets = [2, 0], sizes = [1, 256], strides = [1, 1]} : vector<8x256xf32> to vector<1x256xf32>
    %251 = vector.broadcast %249 : vector<8x1xf32> to vector<8x256xf32>
    %252 = vector.broadcast %250 : vector<1x256xf32> to vector<8x256xf32>
    %253 = arith.mulf %251, %252 : vector<8x256xf32>
    %254 = arith.addf %248, %253 : vector<8x256xf32>
    %255 = vector.extract_strided_slice %233 {offsets = [0, 3], sizes = [8, 1], strides = [1, 1]} : vector<8x8xf32> to vector<8x1xf32>
    %256 = vector.extract_strided_slice %231 {offsets = [3, 0], sizes = [1, 256], strides = [1, 1]} : vector<8x256xf32> to vector<1x256xf32>
    %257 = vector.broadcast %255 : vector<8x1xf32> to vector<8x256xf32>
    %258 = vector.broadcast %256 : vector<1x256xf32> to vector<8x256xf32>
    %259 = arith.mulf %257, %258 : vector<8x256xf32>
    %260 = arith.addf %254, %259 : vector<8x256xf32>
    %261 = vector.extract_strided_slice %233 {offsets = [0, 4], sizes = [8, 1], strides = [1, 1]} : vector<8x8xf32> to vector<8x1xf32>
    %262 = vector.extract_strided_slice %231 {offsets = [4, 0], sizes = [1, 256], strides = [1, 1]} : vector<8x256xf32> to vector<1x256xf32>
    %263 = vector.broadcast %261 : vector<8x1xf32> to vector<8x256xf32>
    %264 = vector.broadcast %262 : vector<1x256xf32> to vector<8x256xf32>
    %265 = arith.mulf %263, %264 : vector<8x256xf32>
    %266 = arith.addf %260, %265 : vector<8x256xf32>
    %267 = vector.extract_strided_slice %233 {offsets = [0, 5], sizes = [8, 1], strides = [1, 1]} : vector<8x8xf32> to vector<8x1xf32>
    %268 = vector.extract_strided_slice %231 {offsets = [5, 0], sizes = [1, 256], strides = [1, 1]} : vector<8x256xf32> to vector<1x256xf32>
    %269 = vector.broadcast %267 : vector<8x1xf32> to vector<8x256xf32>
    %270 = vector.broadcast %268 : vector<1x256xf32> to vector<8x256xf32>
    %271 = arith.mulf %269, %270 : vector<8x256xf32>
    %272 = arith.addf %266, %271 : vector<8x256xf32>
    %273 = vector.extract_strided_slice %233 {offsets = [0, 6], sizes = [8, 1], strides = [1, 1]} : vector<8x8xf32> to vector<8x1xf32>
    %274 = vector.extract_strided_slice %231 {offsets = [6, 0], sizes = [1, 256], strides = [1, 1]} : vector<8x256xf32> to vector<1x256xf32>
    %275 = vector.broadcast %273 : vector<8x1xf32> to vector<8x256xf32>
    %276 = vector.broadcast %274 : vector<1x256xf32> to vector<8x256xf32>
    %277 = arith.mulf %275, %276 : vector<8x256xf32>
    %278 = arith.addf %272, %277 : vector<8x256xf32>
    %279 = vector.extract_strided_slice %233 {offsets = [0, 7], sizes = [8, 1], strides = [1, 1]} : vector<8x8xf32> to vector<8x1xf32>
    %280 = vector.extract_strided_slice %231 {offsets = [7, 0], sizes = [1, 256], strides = [1, 1]} : vector<8x256xf32> to vector<1x256xf32>
    %281 = vector.broadcast %279 : vector<8x1xf32> to vector<8x256xf32>
    %282 = vector.broadcast %280 : vector<1x256xf32> to vector<8x256xf32>
    %283 = arith.mulf %281, %282 : vector<8x256xf32>
    %284 = arith.addf %278, %283 : vector<8x256xf32>
    %285 = math.cos %284 : vector<8x256xf32>
    %286 = arith.mulf %173, %285 : vector<8x256xf32>
    %287 = math.sin %284 : vector<8x256xf32>
    %288 = arith.mulf %173, %287 : vector<8x256xf32>
    %c0_36 = arith.constant 0 : index
    %c0_37 = arith.constant 0 : index
    %289 = vector.load %arg5[%c0_36, %c0_37] : memref<256x256xf32, #tpu.memory_space<vmem>>, vector<256x256xf32>
    %cst_38 = arith.constant dense<0.000000e+00> : vector<8x256xf32>
    %290 = tpu.matmul %286, %289, %cst_38 {dimension_numbers = #tpu.dot_dimension_numbers<[1], [0], [0], [1], [0, 0, 1, 1], [], []>} : vector<8x256xf32>, vector<256x256xf32>, vector<8x256xf32> -> vector<8x256xf32>
    %c0_39 = arith.constant 0 : index
    %c0_40 = arith.constant 0 : index
    %291 = vector.load %arg6[%c0_39, %c0_40] : memref<256x256xf32, #tpu.memory_space<vmem>>, vector<256x256xf32>
    %cst_41 = arith.constant dense<0.000000e+00> : vector<8x256xf32>
    %292 = tpu.matmul %288, %291, %cst_41 {dimension_numbers = #tpu.dot_dimension_numbers<[1], [0], [0], [1], [0, 0, 1, 1], [], []>} : vector<8x256xf32>, vector<256x256xf32>, vector<8x256xf32> -> vector<8x256xf32>
    %293 = arith.addf %290, %292 : vector<8x256xf32>
    %294 = arith.addf %293, %0 : vector<8x256xf32>
    %c5 = arith.constant 5 : index
    %c0_42 = arith.constant 0 : index
    %c0_43 = arith.constant 0 : index
    %295 = vector.load %arg1[%c5, %c0_42, %c0_43] : memref<30x8x8xf32, #tpu.memory_space<vmem>>, vector<1x8x8xf32>
    %296 = vector.shape_cast %295 : vector<1x8x8xf32> to vector<8x8xf32>
    %c5_44 = arith.constant 5 : index
    %c0_45 = arith.constant 0 : index
    %c0_46 = arith.constant 0 : index
    %297 = vector.load %arg2[%c5_44, %c0_45, %c0_46] : memref<30x8x1xf32, #tpu.memory_space<vmem>>, vector<1x8x1xf32>
    %298 = vector.shape_cast %297 : vector<1x8x1xf32> to vector<8x1xf32>
    %299 = vector.extract_strided_slice %296 {offsets = [0, 0], sizes = [8, 1], strides = [1, 1]} : vector<8x8xf32> to vector<8x1xf32>
    %300 = vector.extract_strided_slice %294 {offsets = [0, 0], sizes = [1, 256], strides = [1, 1]} : vector<8x256xf32> to vector<1x256xf32>
    %301 = vector.broadcast %299 : vector<8x1xf32> to vector<8x256xf32>
    %302 = vector.broadcast %300 : vector<1x256xf32> to vector<8x256xf32>
    %303 = arith.mulf %301, %302 : vector<8x256xf32>
    %304 = vector.broadcast %298 : vector<8x1xf32> to vector<8x256xf32>
    %305 = arith.addf %303, %304 : vector<8x256xf32>
    %306 = vector.extract_strided_slice %296 {offsets = [0, 1], sizes = [8, 1], strides = [1, 1]} : vector<8x8xf32> to vector<8x1xf32>
    %307 = vector.extract_strided_slice %294 {offsets = [1, 0], sizes = [1, 256], strides = [1, 1]} : vector<8x256xf32> to vector<1x256xf32>
    %308 = vector.broadcast %306 : vector<8x1xf32> to vector<8x256xf32>
    %309 = vector.broadcast %307 : vector<1x256xf32> to vector<8x256xf32>
    %310 = arith.mulf %308, %309 : vector<8x256xf32>
    %311 = arith.addf %305, %310 : vector<8x256xf32>
    %312 = vector.extract_strided_slice %296 {offsets = [0, 2], sizes = [8, 1], strides = [1, 1]} : vector<8x8xf32> to vector<8x1xf32>
    %313 = vector.extract_strided_slice %294 {offsets = [2, 0], sizes = [1, 256], strides = [1, 1]} : vector<8x256xf32> to vector<1x256xf32>
    %314 = vector.broadcast %312 : vector<8x1xf32> to vector<8x256xf32>
    %315 = vector.broadcast %313 : vector<1x256xf32> to vector<8x256xf32>
    %316 = arith.mulf %314, %315 : vector<8x256xf32>
    %317 = arith.addf %311, %316 : vector<8x256xf32>
    %318 = vector.extract_strided_slice %296 {offsets = [0, 3], sizes = [8, 1], strides = [1, 1]} : vector<8x8xf32> to vector<8x1xf32>
    %319 = vector.extract_strided_slice %294 {offsets = [3, 0], sizes = [1, 256], strides = [1, 1]} : vector<8x256xf32> to vector<1x256xf32>
    %320 = vector.broadcast %318 : vector<8x1xf32> to vector<8x256xf32>
    %321 = vector.broadcast %319 : vector<1x256xf32> to vector<8x256xf32>
    %322 = arith.mulf %320, %321 : vector<8x256xf32>
    %323 = arith.addf %317, %322 : vector<8x256xf32>
    %324 = vector.extract_strided_slice %296 {offsets = [0, 4], sizes = [8, 1], strides = [1, 1]} : vector<8x8xf32> to vector<8x1xf32>
    %325 = vector.extract_strided_slice %294 {offsets = [4, 0], sizes = [1, 256], strides = [1, 1]} : vector<8x256xf32> to vector<1x256xf32>
    %326 = vector.broadcast %324 : vector<8x1xf32> to vector<8x256xf32>
    %327 = vector.broadcast %325 : vector<1x256xf32> to vector<8x256xf32>
    %328 = arith.mulf %326, %327 : vector<8x256xf32>
    %329 = arith.addf %323, %328 : vector<8x256xf32>
    %330 = vector.extract_strided_slice %296 {offsets = [0, 5], sizes = [8, 1], strides = [1, 1]} : vector<8x8xf32> to vector<8x1xf32>
    %331 = vector.extract_strided_slice %294 {offsets = [5, 0], sizes = [1, 256], strides = [1, 1]} : vector<8x256xf32> to vector<1x256xf32>
    %332 = vector.broadcast %330 : vector<8x1xf32> to vector<8x256xf32>
    %333 = vector.broadcast %331 : vector<1x256xf32> to vector<8x256xf32>
    %334 = arith.mulf %332, %333 : vector<8x256xf32>
    %335 = arith.addf %329, %334 : vector<8x256xf32>
    %336 = vector.extract_strided_slice %296 {offsets = [0, 6], sizes = [8, 1], strides = [1, 1]} : vector<8x8xf32> to vector<8x1xf32>
    %337 = vector.extract_strided_slice %294 {offsets = [6, 0], sizes = [1, 256], strides = [1, 1]} : vector<8x256xf32> to vector<1x256xf32>
    %338 = vector.broadcast %336 : vector<8x1xf32> to vector<8x256xf32>
    %339 = vector.broadcast %337 : vector<1x256xf32> to vector<8x256xf32>
    %340 = arith.mulf %338, %339 : vector<8x256xf32>
    %341 = arith.addf %335, %340 : vector<8x256xf32>
    %342 = vector.extract_strided_slice %296 {offsets = [0, 7], sizes = [8, 1], strides = [1, 1]} : vector<8x8xf32> to vector<8x1xf32>
    %343 = vector.extract_strided_slice %294 {offsets = [7, 0], sizes = [1, 256], strides = [1, 1]} : vector<8x256xf32> to vector<1x256xf32>
    %344 = vector.broadcast %342 : vector<8x1xf32> to vector<8x256xf32>
    %345 = vector.broadcast %343 : vector<1x256xf32> to vector<8x256xf32>
    %346 = arith.mulf %344, %345 : vector<8x256xf32>
    %347 = arith.addf %341, %346 : vector<8x256xf32>
    %348 = arith.addf %347, %0 : vector<8x256xf32>
    %c6 = arith.constant 6 : index
    %c0_47 = arith.constant 0 : index
    %c0_48 = arith.constant 0 : index
    %349 = vector.load %arg1[%c6, %c0_47, %c0_48] : memref<30x8x8xf32, #tpu.memory_space<vmem>>, vector<1x8x8xf32>
    %350 = vector.shape_cast %349 : vector<1x8x8xf32> to vector<8x8xf32>
    %c6_49 = arith.constant 6 : index
    %c0_50 = arith.constant 0 : index
    %c0_51 = arith.constant 0 : index
    %351 = vector.load %arg2[%c6_49, %c0_50, %c0_51] : memref<30x8x1xf32, #tpu.memory_space<vmem>>, vector<1x8x1xf32>
    %352 = vector.shape_cast %351 : vector<1x8x1xf32> to vector<8x1xf32>
    %353 = vector.extract_strided_slice %350 {offsets = [0, 0], sizes = [8, 1], strides = [1, 1]} : vector<8x8xf32> to vector<8x1xf32>
    %354 = vector.extract_strided_slice %348 {offsets = [0, 0], sizes = [1, 256], strides = [1, 1]} : vector<8x256xf32> to vector<1x256xf32>
    %355 = vector.broadcast %353 : vector<8x1xf32> to vector<8x256xf32>
    %356 = vector.broadcast %354 : vector<1x256xf32> to vector<8x256xf32>
    %357 = arith.mulf %355, %356 : vector<8x256xf32>
    %358 = vector.broadcast %352 : vector<8x1xf32> to vector<8x256xf32>
    %359 = arith.addf %357, %358 : vector<8x256xf32>
    %360 = vector.extract_strided_slice %350 {offsets = [0, 1], sizes = [8, 1], strides = [1, 1]} : vector<8x8xf32> to vector<8x1xf32>
    %361 = vector.extract_strided_slice %348 {offsets = [1, 0], sizes = [1, 256], strides = [1, 1]} : vector<8x256xf32> to vector<1x256xf32>
    %362 = vector.broadcast %360 : vector<8x1xf32> to vector<8x256xf32>
    %363 = vector.broadcast %361 : vector<1x256xf32> to vector<8x256xf32>
    %364 = arith.mulf %362, %363 : vector<8x256xf32>
    %365 = arith.addf %359, %364 : vector<8x256xf32>
    %366 = vector.extract_strided_slice %350 {offsets = [0, 2], sizes = [8, 1], strides = [1, 1]} : vector<8x8xf32> to vector<8x1xf32>
    %367 = vector.extract_strided_slice %348 {offsets = [2, 0], sizes = [1, 256], strides = [1, 1]} : vector<8x256xf32> to vector<1x256xf32>
    %368 = vector.broadcast %366 : vector<8x1xf32> to vector<8x256xf32>
    %369 = vector.broadcast %367 : vector<1x256xf32> to vector<8x256xf32>
    %370 = arith.mulf %368, %369 : vector<8x256xf32>
    %371 = arith.addf %365, %370 : vector<8x256xf32>
    %372 = vector.extract_strided_slice %350 {offsets = [0, 3], sizes = [8, 1], strides = [1, 1]} : vector<8x8xf32> to vector<8x1xf32>
    %373 = vector.extract_strided_slice %348 {offsets = [3, 0], sizes = [1, 256], strides = [1, 1]} : vector<8x256xf32> to vector<1x256xf32>
    %374 = vector.broadcast %372 : vector<8x1xf32> to vector<8x256xf32>
    %375 = vector.broadcast %373 : vector<1x256xf32> to vector<8x256xf32>
    %376 = arith.mulf %374, %375 : vector<8x256xf32>
    %377 = arith.addf %371, %376 : vector<8x256xf32>
    %378 = vector.extract_strided_slice %350 {offsets = [0, 4], sizes = [8, 1], strides = [1, 1]} : vector<8x8xf32> to vector<8x1xf32>
    %379 = vector.extract_strided_slice %348 {offsets = [4, 0], sizes = [1, 256], strides = [1, 1]} : vector<8x256xf32> to vector<1x256xf32>
    %380 = vector.broadcast %378 : vector<8x1xf32> to vector<8x256xf32>
    %381 = vector.broadcast %379 : vector<1x256xf32> to vector<8x256xf32>
    %382 = arith.mulf %380, %381 : vector<8x256xf32>
    %383 = arith.addf %377, %382 : vector<8x256xf32>
    %384 = vector.extract_strided_slice %350 {offsets = [0, 5], sizes = [8, 1], strides = [1, 1]} : vector<8x8xf32> to vector<8x1xf32>
    %385 = vector.extract_strided_slice %348 {offsets = [5, 0], sizes = [1, 256], strides = [1, 1]} : vector<8x256xf32> to vector<1x256xf32>
    %386 = vector.broadcast %384 : vector<8x1xf32> to vector<8x256xf32>
    %387 = vector.broadcast %385 : vector<1x256xf32> to vector<8x256xf32>
    %388 = arith.mulf %386, %387 : vector<8x256xf32>
    %389 = arith.addf %383, %388 : vector<8x256xf32>
    %390 = vector.extract_strided_slice %350 {offsets = [0, 6], sizes = [8, 1], strides = [1, 1]} : vector<8x8xf32> to vector<8x1xf32>
    %391 = vector.extract_strided_slice %348 {offsets = [6, 0], sizes = [1, 256], strides = [1, 1]} : vector<8x256xf32> to vector<1x256xf32>
    %392 = vector.broadcast %390 : vector<8x1xf32> to vector<8x256xf32>
    %393 = vector.broadcast %391 : vector<1x256xf32> to vector<8x256xf32>
    %394 = arith.mulf %392, %393 : vector<8x256xf32>
    %395 = arith.addf %389, %394 : vector<8x256xf32>
    %396 = vector.extract_strided_slice %350 {offsets = [0, 7], sizes = [8, 1], strides = [1, 1]} : vector<8x8xf32> to vector<8x1xf32>
    %397 = vector.extract_strided_slice %348 {offsets = [7, 0], sizes = [1, 256], strides = [1, 1]} : vector<8x256xf32> to vector<1x256xf32>
    %398 = vector.broadcast %396 : vector<8x1xf32> to vector<8x256xf32>
    %399 = vector.broadcast %397 : vector<1x256xf32> to vector<8x256xf32>
    %400 = arith.mulf %398, %399 : vector<8x256xf32>
    %401 = arith.addf %395, %400 : vector<8x256xf32>
    %c0_52 = arith.constant 0 : index
    %c0_53 = arith.constant 0 : index
    %402 = vector.load %arg3[%c0_52, %c0_53] : memref<256x256xf32, #tpu.memory_space<vmem>>, vector<256x256xf32>
    %cst_54 = arith.constant dense<0.000000e+00> : vector<8x256xf32>
    %403 = tpu.matmul %401, %402, %cst_54 {dimension_numbers = #tpu.dot_dimension_numbers<[1], [0], [0], [1], [0, 0, 1, 1], [], []>} : vector<8x256xf32>, vector<256x256xf32>, vector<8x256xf32> -> vector<8x256xf32>
    %c0_55 = arith.constant 0 : index
    %c0_56 = arith.constant 0 : index
    %404 = vector.load %arg4[%c0_55, %c0_56] : memref<256x256xf32, #tpu.memory_space<vmem>>, vector<256x256xf32>
    %cst_57 = arith.constant dense<0.000000e+00> : vector<8x256xf32>
    %405 = tpu.matmul %401, %404, %cst_57 {dimension_numbers = #tpu.dot_dimension_numbers<[1], [0], [0], [1], [0, 0, 1, 1], [], []>} : vector<8x256xf32>, vector<256x256xf32>, vector<8x256xf32> -> vector<8x256xf32>
    %406 = arith.mulf %403, %403 : vector<8x256xf32>
    %407 = arith.mulf %405, %405 : vector<8x256xf32>
    %408 = arith.addf %406, %407 : vector<8x256xf32>
    %409 = math.sqrt %408 : vector<8x256xf32>
    %410 = math.atan2 %405, %403 : vector<8x256xf32>
    %c7 = arith.constant 7 : index
    %c0_58 = arith.constant 0 : index
    %c0_59 = arith.constant 0 : index
    %411 = vector.load %arg1[%c7, %c0_58, %c0_59] : memref<30x8x8xf32, #tpu.memory_space<vmem>>, vector<1x8x8xf32>
    %412 = vector.shape_cast %411 : vector<1x8x8xf32> to vector<8x8xf32>
    %c7_60 = arith.constant 7 : index
    %c0_61 = arith.constant 0 : index
    %c0_62 = arith.constant 0 : index
    %413 = vector.load %arg2[%c7_60, %c0_61, %c0_62] : memref<30x8x1xf32, #tpu.memory_space<vmem>>, vector<1x8x1xf32>
    %414 = vector.shape_cast %413 : vector<1x8x1xf32> to vector<8x1xf32>
    %415 = vector.extract_strided_slice %412 {offsets = [0, 0], sizes = [8, 1], strides = [1, 1]} : vector<8x8xf32> to vector<8x1xf32>
    %416 = vector.extract_strided_slice %409 {offsets = [0, 0], sizes = [1, 256], strides = [1, 1]} : vector<8x256xf32> to vector<1x256xf32>
    %417 = vector.broadcast %415 : vector<8x1xf32> to vector<8x256xf32>
    %418 = vector.broadcast %416 : vector<1x256xf32> to vector<8x256xf32>
    %419 = arith.mulf %417, %418 : vector<8x256xf32>
    %420 = vector.broadcast %414 : vector<8x1xf32> to vector<8x256xf32>
    %421 = arith.addf %419, %420 : vector<8x256xf32>
    %422 = vector.extract_strided_slice %412 {offsets = [0, 1], sizes = [8, 1], strides = [1, 1]} : vector<8x8xf32> to vector<8x1xf32>
    %423 = vector.extract_strided_slice %409 {offsets = [1, 0], sizes = [1, 256], strides = [1, 1]} : vector<8x256xf32> to vector<1x256xf32>
    %424 = vector.broadcast %422 : vector<8x1xf32> to vector<8x256xf32>
    %425 = vector.broadcast %423 : vector<1x256xf32> to vector<8x256xf32>
    %426 = arith.mulf %424, %425 : vector<8x256xf32>
    %427 = arith.addf %421, %426 : vector<8x256xf32>
    %428 = vector.extract_strided_slice %412 {offsets = [0, 2], sizes = [8, 1], strides = [1, 1]} : vector<8x8xf32> to vector<8x1xf32>
    %429 = vector.extract_strided_slice %409 {offsets = [2, 0], sizes = [1, 256], strides = [1, 1]} : vector<8x256xf32> to vector<1x256xf32>
    %430 = vector.broadcast %428 : vector<8x1xf32> to vector<8x256xf32>
    %431 = vector.broadcast %429 : vector<1x256xf32> to vector<8x256xf32>
    %432 = arith.mulf %430, %431 : vector<8x256xf32>
    %433 = arith.addf %427, %432 : vector<8x256xf32>
    %434 = vector.extract_strided_slice %412 {offsets = [0, 3], sizes = [8, 1], strides = [1, 1]} : vector<8x8xf32> to vector<8x1xf32>
    %435 = vector.extract_strided_slice %409 {offsets = [3, 0], sizes = [1, 256], strides = [1, 1]} : vector<8x256xf32> to vector<1x256xf32>
    %436 = vector.broadcast %434 : vector<8x1xf32> to vector<8x256xf32>
    %437 = vector.broadcast %435 : vector<1x256xf32> to vector<8x256xf32>
    %438 = arith.mulf %436, %437 : vector<8x256xf32>
    %439 = arith.addf %433, %438 : vector<8x256xf32>
    %440 = vector.extract_strided_slice %412 {offsets = [0, 4], sizes = [8, 1], strides = [1, 1]} : vector<8x8xf32> to vector<8x1xf32>
    %441 = vector.extract_strided_slice %409 {offsets = [4, 0], sizes = [1, 256], strides = [1, 1]} : vector<8x256xf32> to vector<1x256xf32>
    %442 = vector.broadcast %440 : vector<8x1xf32> to vector<8x256xf32>
    %443 = vector.broadcast %441 : vector<1x256xf32> to vector<8x256xf32>
    %444 = arith.mulf %442, %443 : vector<8x256xf32>
    %445 = arith.addf %439, %444 : vector<8x256xf32>
    %446 = vector.extract_strided_slice %412 {offsets = [0, 5], sizes = [8, 1], strides = [1, 1]} : vector<8x8xf32> to vector<8x1xf32>
    %447 = vector.extract_strided_slice %409 {offsets = [5, 0], sizes = [1, 256], strides = [1, 1]} : vector<8x256xf32> to vector<1x256xf32>
    %448 = vector.broadcast %446 : vector<8x1xf32> to vector<8x256xf32>
    %449 = vector.broadcast %447 : vector<1x256xf32> to vector<8x256xf32>
    %450 = arith.mulf %448, %449 : vector<8x256xf32>
    %451 = arith.addf %445, %450 : vector<8x256xf32>
    %452 = vector.extract_strided_slice %412 {offsets = [0, 6], sizes = [8, 1], strides = [1, 1]} : vector<8x8xf32> to vector<8x1xf32>
    %453 = vector.extract_strided_slice %409 {offsets = [6, 0], sizes = [1, 256], strides = [1, 1]} : vector<8x256xf32> to vector<1x256xf32>
    %454 = vector.broadcast %452 : vector<8x1xf32> to vector<8x256xf32>
    %455 = vector.broadcast %453 : vector<1x256xf32> to vector<8x256xf32>
    %456 = arith.mulf %454, %455 : vector<8x256xf32>
    %457 = arith.addf %451, %456 : vector<8x256xf32>
    %458 = vector.extract_strided_slice %412 {offsets = [0, 7], sizes = [8, 1], strides = [1, 1]} : vector<8x8xf32> to vector<8x1xf32>
    %459 = vector.extract_strided_slice %409 {offsets = [7, 0], sizes = [1, 256], strides = [1, 1]} : vector<8x256xf32> to vector<1x256xf32>
    %460 = vector.broadcast %458 : vector<8x1xf32> to vector<8x256xf32>
    %461 = vector.broadcast %459 : vector<1x256xf32> to vector<8x256xf32>
    %462 = arith.mulf %460, %461 : vector<8x256xf32>
    %463 = arith.addf %457, %462 : vector<8x256xf32>
    %cst_63 = arith.constant 0.000000e+00 : f32
    %464 = vector.broadcast %cst_63 : f32 to vector<8x256xf32>
    %465 = arith.cmpf oge, %463, %464 : vector<8x256xf32>
    %cst_64 = arith.constant 1.000000e-01 : f32
    %466 = vector.broadcast %cst_64 : f32 to vector<8x256xf32>
    %467 = arith.mulf %466, %463 : vector<8x256xf32>
    %468 = arith.select %465, %463, %467 : vector<8x256xi1>, vector<8x256xf32>
    %c8 = arith.constant 8 : index
    %c0_65 = arith.constant 0 : index
    %c0_66 = arith.constant 0 : index
    %469 = vector.load %arg1[%c8, %c0_65, %c0_66] : memref<30x8x8xf32, #tpu.memory_space<vmem>>, vector<1x8x8xf32>
    %470 = vector.shape_cast %469 : vector<1x8x8xf32> to vector<8x8xf32>
    %c8_67 = arith.constant 8 : index
    %c0_68 = arith.constant 0 : index
    %c0_69 = arith.constant 0 : index
    %471 = vector.load %arg2[%c8_67, %c0_68, %c0_69] : memref<30x8x1xf32, #tpu.memory_space<vmem>>, vector<1x8x1xf32>
    %472 = vector.shape_cast %471 : vector<1x8x1xf32> to vector<8x1xf32>
    %473 = vector.extract_strided_slice %470 {offsets = [0, 0], sizes = [8, 1], strides = [1, 1]} : vector<8x8xf32> to vector<8x1xf32>
    %474 = vector.extract_strided_slice %468 {offsets = [0, 0], sizes = [1, 256], strides = [1, 1]} : vector<8x256xf32> to vector<1x256xf32>
    %475 = vector.broadcast %473 : vector<8x1xf32> to vector<8x256xf32>
    %476 = vector.broadcast %474 : vector<1x256xf32> to vector<8x256xf32>
    %477 = arith.mulf %475, %476 : vector<8x256xf32>
    %478 = vector.broadcast %472 : vector<8x1xf32> to vector<8x256xf32>
    %479 = arith.addf %477, %478 : vector<8x256xf32>
    %480 = vector.extract_strided_slice %470 {offsets = [0, 1], sizes = [8, 1], strides = [1, 1]} : vector<8x8xf32> to vector<8x1xf32>
    %481 = vector.extract_strided_slice %468 {offsets = [1, 0], sizes = [1, 256], strides = [1, 1]} : vector<8x256xf32> to vector<1x256xf32>
    %482 = vector.broadcast %480 : vector<8x1xf32> to vector<8x256xf32>
    %483 = vector.broadcast %481 : vector<1x256xf32> to vector<8x256xf32>
    %484 = arith.mulf %482, %483 : vector<8x256xf32>
    %485 = arith.addf %479, %484 : vector<8x256xf32>
    %486 = vector.extract_strided_slice %470 {offsets = [0, 2], sizes = [8, 1], strides = [1, 1]} : vector<8x8xf32> to vector<8x1xf32>
    %487 = vector.extract_strided_slice %468 {offsets = [2, 0], sizes = [1, 256], strides = [1, 1]} : vector<8x256xf32> to vector<1x256xf32>
    %488 = vector.broadcast %486 : vector<8x1xf32> to vector<8x256xf32>
    %489 = vector.broadcast %487 : vector<1x256xf32> to vector<8x256xf32>
    %490 = arith.mulf %488, %489 : vector<8x256xf32>
    %491 = arith.addf %485, %490 : vector<8x256xf32>
    %492 = vector.extract_strided_slice %470 {offsets = [0, 3], sizes = [8, 1], strides = [1, 1]} : vector<8x8xf32> to vector<8x1xf32>
    %493 = vector.extract_strided_slice %468 {offsets = [3, 0], sizes = [1, 256], strides = [1, 1]} : vector<8x256xf32> to vector<1x256xf32>
    %494 = vector.broadcast %492 : vector<8x1xf32> to vector<8x256xf32>
    %495 = vector.broadcast %493 : vector<1x256xf32> to vector<8x256xf32>
    %496 = arith.mulf %494, %495 : vector<8x256xf32>
    %497 = arith.addf %491, %496 : vector<8x256xf32>
    %498 = vector.extract_strided_slice %470 {offsets = [0, 4], sizes = [8, 1], strides = [1, 1]} : vector<8x8xf32> to vector<8x1xf32>
    %499 = vector.extract_strided_slice %468 {offsets = [4, 0], sizes = [1, 256], strides = [1, 1]} : vector<8x256xf32> to vector<1x256xf32>
    %500 = vector.broadcast %498 : vector<8x1xf32> to vector<8x256xf32>
    %501 = vector.broadcast %499 : vector<1x256xf32> to vector<8x256xf32>
    %502 = arith.mulf %500, %501 : vector<8x256xf32>
    %503 = arith.addf %497, %502 : vector<8x256xf32>
    %504 = vector.extract_strided_slice %470 {offsets = [0, 5], sizes = [8, 1], strides = [1, 1]} : vector<8x8xf32> to vector<8x1xf32>
    %505 = vector.extract_strided_slice %468 {offsets = [5, 0], sizes = [1, 256], strides = [1, 1]} : vector<8x256xf32> to vector<1x256xf32>
    %506 = vector.broadcast %504 : vector<8x1xf32> to vector<8x256xf32>
    %507 = vector.broadcast %505 : vector<1x256xf32> to vector<8x256xf32>
    %508 = arith.mulf %506, %507 : vector<8x256xf32>
    %509 = arith.addf %503, %508 : vector<8x256xf32>
    %510 = vector.extract_strided_slice %470 {offsets = [0, 6], sizes = [8, 1], strides = [1, 1]} : vector<8x8xf32> to vector<8x1xf32>
    %511 = vector.extract_strided_slice %468 {offsets = [6, 0], sizes = [1, 256], strides = [1, 1]} : vector<8x256xf32> to vector<1x256xf32>
    %512 = vector.broadcast %510 : vector<8x1xf32> to vector<8x256xf32>
    %513 = vector.broadcast %511 : vector<1x256xf32> to vector<8x256xf32>
    %514 = arith.mulf %512, %513 : vector<8x256xf32>
    %515 = arith.addf %509, %514 : vector<8x256xf32>
    %516 = vector.extract_strided_slice %470 {offsets = [0, 7], sizes = [8, 1], strides = [1, 1]} : vector<8x8xf32> to vector<8x1xf32>
    %517 = vector.extract_strided_slice %468 {offsets = [7, 0], sizes = [1, 256], strides = [1, 1]} : vector<8x256xf32> to vector<1x256xf32>
    %518 = vector.broadcast %516 : vector<8x1xf32> to vector<8x256xf32>
    %519 = vector.broadcast %517 : vector<1x256xf32> to vector<8x256xf32>
    %520 = arith.mulf %518, %519 : vector<8x256xf32>
    %521 = arith.addf %515, %520 : vector<8x256xf32>
    %c9 = arith.constant 9 : index
    %c0_70 = arith.constant 0 : index
    %c0_71 = arith.constant 0 : index
    %522 = vector.load %arg1[%c9, %c0_70, %c0_71] : memref<30x8x8xf32, #tpu.memory_space<vmem>>, vector<1x8x8xf32>
    %523 = vector.shape_cast %522 : vector<1x8x8xf32> to vector<8x8xf32>
    %c9_72 = arith.constant 9 : index
    %c0_73 = arith.constant 0 : index
    %c0_74 = arith.constant 0 : index
    %524 = vector.load %arg2[%c9_72, %c0_73, %c0_74] : memref<30x8x1xf32, #tpu.memory_space<vmem>>, vector<1x8x1xf32>
    %525 = vector.shape_cast %524 : vector<1x8x1xf32> to vector<8x1xf32>
    %526 = vector.extract_strided_slice %523 {offsets = [0, 0], sizes = [8, 1], strides = [1, 1]} : vector<8x8xf32> to vector<8x1xf32>
    %527 = vector.extract_strided_slice %410 {offsets = [0, 0], sizes = [1, 256], strides = [1, 1]} : vector<8x256xf32> to vector<1x256xf32>
    %528 = vector.broadcast %526 : vector<8x1xf32> to vector<8x256xf32>
    %529 = vector.broadcast %527 : vector<1x256xf32> to vector<8x256xf32>
    %530 = arith.mulf %528, %529 : vector<8x256xf32>
    %531 = vector.broadcast %525 : vector<8x1xf32> to vector<8x256xf32>
    %532 = arith.addf %530, %531 : vector<8x256xf32>
    %533 = vector.extract_strided_slice %523 {offsets = [0, 1], sizes = [8, 1], strides = [1, 1]} : vector<8x8xf32> to vector<8x1xf32>
    %534 = vector.extract_strided_slice %410 {offsets = [1, 0], sizes = [1, 256], strides = [1, 1]} : vector<8x256xf32> to vector<1x256xf32>
    %535 = vector.broadcast %533 : vector<8x1xf32> to vector<8x256xf32>
    %536 = vector.broadcast %534 : vector<1x256xf32> to vector<8x256xf32>
    %537 = arith.mulf %535, %536 : vector<8x256xf32>
    %538 = arith.addf %532, %537 : vector<8x256xf32>
    %539 = vector.extract_strided_slice %523 {offsets = [0, 2], sizes = [8, 1], strides = [1, 1]} : vector<8x8xf32> to vector<8x1xf32>
    %540 = vector.extract_strided_slice %410 {offsets = [2, 0], sizes = [1, 256], strides = [1, 1]} : vector<8x256xf32> to vector<1x256xf32>
    %541 = vector.broadcast %539 : vector<8x1xf32> to vector<8x256xf32>
    %542 = vector.broadcast %540 : vector<1x256xf32> to vector<8x256xf32>
    %543 = arith.mulf %541, %542 : vector<8x256xf32>
    %544 = arith.addf %538, %543 : vector<8x256xf32>
    %545 = vector.extract_strided_slice %523 {offsets = [0, 3], sizes = [8, 1], strides = [1, 1]} : vector<8x8xf32> to vector<8x1xf32>
    %546 = vector.extract_strided_slice %410 {offsets = [3, 0], sizes = [1, 256], strides = [1, 1]} : vector<8x256xf32> to vector<1x256xf32>
    %547 = vector.broadcast %545 : vector<8x1xf32> to vector<8x256xf32>
    %548 = vector.broadcast %546 : vector<1x256xf32> to vector<8x256xf32>
    %549 = arith.mulf %547, %548 : vector<8x256xf32>
    %550 = arith.addf %544, %549 : vector<8x256xf32>
    %551 = vector.extract_strided_slice %523 {offsets = [0, 4], sizes = [8, 1], strides = [1, 1]} : vector<8x8xf32> to vector<8x1xf32>
    %552 = vector.extract_strided_slice %410 {offsets = [4, 0], sizes = [1, 256], strides = [1, 1]} : vector<8x256xf32> to vector<1x256xf32>
    %553 = vector.broadcast %551 : vector<8x1xf32> to vector<8x256xf32>
    %554 = vector.broadcast %552 : vector<1x256xf32> to vector<8x256xf32>
    %555 = arith.mulf %553, %554 : vector<8x256xf32>
    %556 = arith.addf %550, %555 : vector<8x256xf32>
    %557 = vector.extract_strided_slice %523 {offsets = [0, 5], sizes = [8, 1], strides = [1, 1]} : vector<8x8xf32> to vector<8x1xf32>
    %558 = vector.extract_strided_slice %410 {offsets = [5, 0], sizes = [1, 256], strides = [1, 1]} : vector<8x256xf32> to vector<1x256xf32>
    %559 = vector.broadcast %557 : vector<8x1xf32> to vector<8x256xf32>
    %560 = vector.broadcast %558 : vector<1x256xf32> to vector<8x256xf32>
    %561 = arith.mulf %559, %560 : vector<8x256xf32>
    %562 = arith.addf %556, %561 : vector<8x256xf32>
    %563 = vector.extract_strided_slice %523 {offsets = [0, 6], sizes = [8, 1], strides = [1, 1]} : vector<8x8xf32> to vector<8x1xf32>
    %564 = vector.extract_strided_slice %410 {offsets = [6, 0], sizes = [1, 256], strides = [1, 1]} : vector<8x256xf32> to vector<1x256xf32>
    %565 = vector.broadcast %563 : vector<8x1xf32> to vector<8x256xf32>
    %566 = vector.broadcast %564 : vector<1x256xf32> to vector<8x256xf32>
    %567 = arith.mulf %565, %566 : vector<8x256xf32>
    %568 = arith.addf %562, %567 : vector<8x256xf32>
    %569 = vector.extract_strided_slice %523 {offsets = [0, 7], sizes = [8, 1], strides = [1, 1]} : vector<8x8xf32> to vector<8x1xf32>
    %570 = vector.extract_strided_slice %410 {offsets = [7, 0], sizes = [1, 256], strides = [1, 1]} : vector<8x256xf32> to vector<1x256xf32>
    %571 = vector.broadcast %569 : vector<8x1xf32> to vector<8x256xf32>
    %572 = vector.broadcast %570 : vector<1x256xf32> to vector<8x256xf32>
    %573 = arith.mulf %571, %572 : vector<8x256xf32>
    %574 = arith.addf %568, %573 : vector<8x256xf32>
    %cst_75 = arith.constant 0.000000e+00 : f32
    %575 = vector.broadcast %cst_75 : f32 to vector<8x256xf32>
    %576 = arith.cmpf oge, %574, %575 : vector<8x256xf32>
    %cst_76 = arith.constant 1.000000e-01 : f32
    %577 = vector.broadcast %cst_76 : f32 to vector<8x256xf32>
    %578 = arith.mulf %577, %574 : vector<8x256xf32>
    %579 = arith.select %576, %574, %578 : vector<8x256xi1>, vector<8x256xf32>
    %c10 = arith.constant 10 : index
    %c0_77 = arith.constant 0 : index
    %c0_78 = arith.constant 0 : index
    %580 = vector.load %arg1[%c10, %c0_77, %c0_78] : memref<30x8x8xf32, #tpu.memory_space<vmem>>, vector<1x8x8xf32>
    %581 = vector.shape_cast %580 : vector<1x8x8xf32> to vector<8x8xf32>
    %c10_79 = arith.constant 10 : index
    %c0_80 = arith.constant 0 : index
    %c0_81 = arith.constant 0 : index
    %582 = vector.load %arg2[%c10_79, %c0_80, %c0_81] : memref<30x8x1xf32, #tpu.memory_space<vmem>>, vector<1x8x1xf32>
    %583 = vector.shape_cast %582 : vector<1x8x1xf32> to vector<8x1xf32>
    %584 = vector.extract_strided_slice %581 {offsets = [0, 0], sizes = [8, 1], strides = [1, 1]} : vector<8x8xf32> to vector<8x1xf32>
    %585 = vector.extract_strided_slice %579 {offsets = [0, 0], sizes = [1, 256], strides = [1, 1]} : vector<8x256xf32> to vector<1x256xf32>
    %586 = vector.broadcast %584 : vector<8x1xf32> to vector<8x256xf32>
    %587 = vector.broadcast %585 : vector<1x256xf32> to vector<8x256xf32>
    %588 = arith.mulf %586, %587 : vector<8x256xf32>
    %589 = vector.broadcast %583 : vector<8x1xf32> to vector<8x256xf32>
    %590 = arith.addf %588, %589 : vector<8x256xf32>
    %591 = vector.extract_strided_slice %581 {offsets = [0, 1], sizes = [8, 1], strides = [1, 1]} : vector<8x8xf32> to vector<8x1xf32>
    %592 = vector.extract_strided_slice %579 {offsets = [1, 0], sizes = [1, 256], strides = [1, 1]} : vector<8x256xf32> to vector<1x256xf32>
    %593 = vector.broadcast %591 : vector<8x1xf32> to vector<8x256xf32>
    %594 = vector.broadcast %592 : vector<1x256xf32> to vector<8x256xf32>
    %595 = arith.mulf %593, %594 : vector<8x256xf32>
    %596 = arith.addf %590, %595 : vector<8x256xf32>
    %597 = vector.extract_strided_slice %581 {offsets = [0, 2], sizes = [8, 1], strides = [1, 1]} : vector<8x8xf32> to vector<8x1xf32>
    %598 = vector.extract_strided_slice %579 {offsets = [2, 0], sizes = [1, 256], strides = [1, 1]} : vector<8x256xf32> to vector<1x256xf32>
    %599 = vector.broadcast %597 : vector<8x1xf32> to vector<8x256xf32>
    %600 = vector.broadcast %598 : vector<1x256xf32> to vector<8x256xf32>
    %601 = arith.mulf %599, %600 : vector<8x256xf32>
    %602 = arith.addf %596, %601 : vector<8x256xf32>
    %603 = vector.extract_strided_slice %581 {offsets = [0, 3], sizes = [8, 1], strides = [1, 1]} : vector<8x8xf32> to vector<8x1xf32>
    %604 = vector.extract_strided_slice %579 {offsets = [3, 0], sizes = [1, 256], strides = [1, 1]} : vector<8x256xf32> to vector<1x256xf32>
    %605 = vector.broadcast %603 : vector<8x1xf32> to vector<8x256xf32>
    %606 = vector.broadcast %604 : vector<1x256xf32> to vector<8x256xf32>
    %607 = arith.mulf %605, %606 : vector<8x256xf32>
    %608 = arith.addf %602, %607 : vector<8x256xf32>
    %609 = vector.extract_strided_slice %581 {offsets = [0, 4], sizes = [8, 1], strides = [1, 1]} : vector<8x8xf32> to vector<8x1xf32>
    %610 = vector.extract_strided_slice %579 {offsets = [4, 0], sizes = [1, 256], strides = [1, 1]} : vector<8x256xf32> to vector<1x256xf32>
    %611 = vector.broadcast %609 : vector<8x1xf32> to vector<8x256xf32>
    %612 = vector.broadcast %610 : vector<1x256xf32> to vector<8x256xf32>
    %613 = arith.mulf %611, %612 : vector<8x256xf32>
    %614 = arith.addf %608, %613 : vector<8x256xf32>
    %615 = vector.extract_strided_slice %581 {offsets = [0, 5], sizes = [8, 1], strides = [1, 1]} : vector<8x8xf32> to vector<8x1xf32>
    %616 = vector.extract_strided_slice %579 {offsets = [5, 0], sizes = [1, 256], strides = [1, 1]} : vector<8x256xf32> to vector<1x256xf32>
    %617 = vector.broadcast %615 : vector<8x1xf32> to vector<8x256xf32>
    %618 = vector.broadcast %616 : vector<1x256xf32> to vector<8x256xf32>
    %619 = arith.mulf %617, %618 : vector<8x256xf32>
    %620 = arith.addf %614, %619 : vector<8x256xf32>
    %621 = vector.extract_strided_slice %581 {offsets = [0, 6], sizes = [8, 1], strides = [1, 1]} : vector<8x8xf32> to vector<8x1xf32>
    %622 = vector.extract_strided_slice %579 {offsets = [6, 0], sizes = [1, 256], strides = [1, 1]} : vector<8x256xf32> to vector<1x256xf32>
    %623 = vector.broadcast %621 : vector<8x1xf32> to vector<8x256xf32>
    %624 = vector.broadcast %622 : vector<1x256xf32> to vector<8x256xf32>
    %625 = arith.mulf %623, %624 : vector<8x256xf32>
    %626 = arith.addf %620, %625 : vector<8x256xf32>
    %627 = vector.extract_strided_slice %581 {offsets = [0, 7], sizes = [8, 1], strides = [1, 1]} : vector<8x8xf32> to vector<8x1xf32>
    %628 = vector.extract_strided_slice %579 {offsets = [7, 0], sizes = [1, 256], strides = [1, 1]} : vector<8x256xf32> to vector<1x256xf32>
    %629 = vector.broadcast %627 : vector<8x1xf32> to vector<8x256xf32>
    %630 = vector.broadcast %628 : vector<1x256xf32> to vector<8x256xf32>
    %631 = arith.mulf %629, %630 : vector<8x256xf32>
    %632 = arith.addf %626, %631 : vector<8x256xf32>
    %633 = math.cos %632 : vector<8x256xf32>
    %634 = arith.mulf %521, %633 : vector<8x256xf32>
    %635 = math.sin %632 : vector<8x256xf32>
    %636 = arith.mulf %521, %635 : vector<8x256xf32>
    %c0_82 = arith.constant 0 : index
    %c0_83 = arith.constant 0 : index
    %637 = vector.load %arg5[%c0_82, %c0_83] : memref<256x256xf32, #tpu.memory_space<vmem>>, vector<256x256xf32>
    %cst_84 = arith.constant dense<0.000000e+00> : vector<8x256xf32>
    %638 = tpu.matmul %634, %637, %cst_84 {dimension_numbers = #tpu.dot_dimension_numbers<[1], [0], [0], [1], [0, 0, 1, 1], [], []>} : vector<8x256xf32>, vector<256x256xf32>, vector<8x256xf32> -> vector<8x256xf32>
    %c0_85 = arith.constant 0 : index
    %c0_86 = arith.constant 0 : index
    %639 = vector.load %arg6[%c0_85, %c0_86] : memref<256x256xf32, #tpu.memory_space<vmem>>, vector<256x256xf32>
    %cst_87 = arith.constant dense<0.000000e+00> : vector<8x256xf32>
    %640 = tpu.matmul %636, %639, %cst_87 {dimension_numbers = #tpu.dot_dimension_numbers<[1], [0], [0], [1], [0, 0, 1, 1], [], []>} : vector<8x256xf32>, vector<256x256xf32>, vector<8x256xf32> -> vector<8x256xf32>
    %641 = arith.addf %638, %640 : vector<8x256xf32>
    %642 = arith.addf %641, %348 : vector<8x256xf32>
    %c11 = arith.constant 11 : index
    %c0_88 = arith.constant 0 : index
    %c0_89 = arith.constant 0 : index
    %643 = vector.load %arg1[%c11, %c0_88, %c0_89] : memref<30x8x8xf32, #tpu.memory_space<vmem>>, vector<1x8x8xf32>
    %644 = vector.shape_cast %643 : vector<1x8x8xf32> to vector<8x8xf32>
    %c11_90 = arith.constant 11 : index
    %c0_91 = arith.constant 0 : index
    %c0_92 = arith.constant 0 : index
    %645 = vector.load %arg2[%c11_90, %c0_91, %c0_92] : memref<30x8x1xf32, #tpu.memory_space<vmem>>, vector<1x8x1xf32>
    %646 = vector.shape_cast %645 : vector<1x8x1xf32> to vector<8x1xf32>
    %647 = vector.extract_strided_slice %644 {offsets = [0, 0], sizes = [8, 1], strides = [1, 1]} : vector<8x8xf32> to vector<8x1xf32>
    %648 = vector.extract_strided_slice %642 {offsets = [0, 0], sizes = [1, 256], strides = [1, 1]} : vector<8x256xf32> to vector<1x256xf32>
    %649 = vector.broadcast %647 : vector<8x1xf32> to vector<8x256xf32>
    %650 = vector.broadcast %648 : vector<1x256xf32> to vector<8x256xf32>
    %651 = arith.mulf %649, %650 : vector<8x256xf32>
    %652 = vector.broadcast %646 : vector<8x1xf32> to vector<8x256xf32>
    %653 = arith.addf %651, %652 : vector<8x256xf32>
    %654 = vector.extract_strided_slice %644 {offsets = [0, 1], sizes = [8, 1], strides = [1, 1]} : vector<8x8xf32> to vector<8x1xf32>
    %655 = vector.extract_strided_slice %642 {offsets = [1, 0], sizes = [1, 256], strides = [1, 1]} : vector<8x256xf32> to vector<1x256xf32>
    %656 = vector.broadcast %654 : vector<8x1xf32> to vector<8x256xf32>
    %657 = vector.broadcast %655 : vector<1x256xf32> to vector<8x256xf32>
    %658 = arith.mulf %656, %657 : vector<8x256xf32>
    %659 = arith.addf %653, %658 : vector<8x256xf32>
    %660 = vector.extract_strided_slice %644 {offsets = [0, 2], sizes = [8, 1], strides = [1, 1]} : vector<8x8xf32> to vector<8x1xf32>
    %661 = vector.extract_strided_slice %642 {offsets = [2, 0], sizes = [1, 256], strides = [1, 1]} : vector<8x256xf32> to vector<1x256xf32>
    %662 = vector.broadcast %660 : vector<8x1xf32> to vector<8x256xf32>
    %663 = vector.broadcast %661 : vector<1x256xf32> to vector<8x256xf32>
    %664 = arith.mulf %662, %663 : vector<8x256xf32>
    %665 = arith.addf %659, %664 : vector<8x256xf32>
    %666 = vector.extract_strided_slice %644 {offsets = [0, 3], sizes = [8, 1], strides = [1, 1]} : vector<8x8xf32> to vector<8x1xf32>
    %667 = vector.extract_strided_slice %642 {offsets = [3, 0], sizes = [1, 256], strides = [1, 1]} : vector<8x256xf32> to vector<1x256xf32>
    %668 = vector.broadcast %666 : vector<8x1xf32> to vector<8x256xf32>
    %669 = vector.broadcast %667 : vector<1x256xf32> to vector<8x256xf32>
    %670 = arith.mulf %668, %669 : vector<8x256xf32>
    %671 = arith.addf %665, %670 : vector<8x256xf32>
    %672 = vector.extract_strided_slice %644 {offsets = [0, 4], sizes = [8, 1], strides = [1, 1]} : vector<8x8xf32> to vector<8x1xf32>
    %673 = vector.extract_strided_slice %642 {offsets = [4, 0], sizes = [1, 256], strides = [1, 1]} : vector<8x256xf32> to vector<1x256xf32>
    %674 = vector.broadcast %672 : vector<8x1xf32> to vector<8x256xf32>
    %675 = vector.broadcast %673 : vector<1x256xf32> to vector<8x256xf32>
    %676 = arith.mulf %674, %675 : vector<8x256xf32>
    %677 = arith.addf %671, %676 : vector<8x256xf32>
    %678 = vector.extract_strided_slice %644 {offsets = [0, 5], sizes = [8, 1], strides = [1, 1]} : vector<8x8xf32> to vector<8x1xf32>
    %679 = vector.extract_strided_slice %642 {offsets = [5, 0], sizes = [1, 256], strides = [1, 1]} : vector<8x256xf32> to vector<1x256xf32>
    %680 = vector.broadcast %678 : vector<8x1xf32> to vector<8x256xf32>
    %681 = vector.broadcast %679 : vector<1x256xf32> to vector<8x256xf32>
    %682 = arith.mulf %680, %681 : vector<8x256xf32>
    %683 = arith.addf %677, %682 : vector<8x256xf32>
    %684 = vector.extract_strided_slice %644 {offsets = [0, 6], sizes = [8, 1], strides = [1, 1]} : vector<8x8xf32> to vector<8x1xf32>
    %685 = vector.extract_strided_slice %642 {offsets = [6, 0], sizes = [1, 256], strides = [1, 1]} : vector<8x256xf32> to vector<1x256xf32>
    %686 = vector.broadcast %684 : vector<8x1xf32> to vector<8x256xf32>
    %687 = vector.broadcast %685 : vector<1x256xf32> to vector<8x256xf32>
    %688 = arith.mulf %686, %687 : vector<8x256xf32>
    %689 = arith.addf %683, %688 : vector<8x256xf32>
    %690 = vector.extract_strided_slice %644 {offsets = [0, 7], sizes = [8, 1], strides = [1, 1]} : vector<8x8xf32> to vector<8x1xf32>
    %691 = vector.extract_strided_slice %642 {offsets = [7, 0], sizes = [1, 256], strides = [1, 1]} : vector<8x256xf32> to vector<1x256xf32>
    %692 = vector.broadcast %690 : vector<8x1xf32> to vector<8x256xf32>
    %693 = vector.broadcast %691 : vector<1x256xf32> to vector<8x256xf32>
    %694 = arith.mulf %692, %693 : vector<8x256xf32>
    %695 = arith.addf %689, %694 : vector<8x256xf32>
    %696 = arith.addf %695, %348 : vector<8x256xf32>
    %c12 = arith.constant 12 : index
    %c0_93 = arith.constant 0 : index
    %c0_94 = arith.constant 0 : index
    %697 = vector.load %arg1[%c12, %c0_93, %c0_94] : memref<30x8x8xf32, #tpu.memory_space<vmem>>, vector<1x8x8xf32>
    %698 = vector.shape_cast %697 : vector<1x8x8xf32> to vector<8x8xf32>
    %c12_95 = arith.constant 12 : index
    %c0_96 = arith.constant 0 : index
    %c0_97 = arith.constant 0 : index
    %699 = vector.load %arg2[%c12_95, %c0_96, %c0_97] : memref<30x8x1xf32, #tpu.memory_space<vmem>>, vector<1x8x1xf32>
    %700 = vector.shape_cast %699 : vector<1x8x1xf32> to vector<8x1xf32>
    %701 = vector.extract_strided_slice %698 {offsets = [0, 0], sizes = [8, 1], strides = [1, 1]} : vector<8x8xf32> to vector<8x1xf32>
    %702 = vector.extract_strided_slice %696 {offsets = [0, 0], sizes = [1, 256], strides = [1, 1]} : vector<8x256xf32> to vector<1x256xf32>
    %703 = vector.broadcast %701 : vector<8x1xf32> to vector<8x256xf32>
    %704 = vector.broadcast %702 : vector<1x256xf32> to vector<8x256xf32>
    %705 = arith.mulf %703, %704 : vector<8x256xf32>
    %706 = vector.broadcast %700 : vector<8x1xf32> to vector<8x256xf32>
    %707 = arith.addf %705, %706 : vector<8x256xf32>
    %708 = vector.extract_strided_slice %698 {offsets = [0, 1], sizes = [8, 1], strides = [1, 1]} : vector<8x8xf32> to vector<8x1xf32>
    %709 = vector.extract_strided_slice %696 {offsets = [1, 0], sizes = [1, 256], strides = [1, 1]} : vector<8x256xf32> to vector<1x256xf32>
    %710 = vector.broadcast %708 : vector<8x1xf32> to vector<8x256xf32>
    %711 = vector.broadcast %709 : vector<1x256xf32> to vector<8x256xf32>
    %712 = arith.mulf %710, %711 : vector<8x256xf32>
    %713 = arith.addf %707, %712 : vector<8x256xf32>
    %714 = vector.extract_strided_slice %698 {offsets = [0, 2], sizes = [8, 1], strides = [1, 1]} : vector<8x8xf32> to vector<8x1xf32>
    %715 = vector.extract_strided_slice %696 {offsets = [2, 0], sizes = [1, 256], strides = [1, 1]} : vector<8x256xf32> to vector<1x256xf32>
    %716 = vector.broadcast %714 : vector<8x1xf32> to vector<8x256xf32>
    %717 = vector.broadcast %715 : vector<1x256xf32> to vector<8x256xf32>
    %718 = arith.mulf %716, %717 : vector<8x256xf32>
    %719 = arith.addf %713, %718 : vector<8x256xf32>
    %720 = vector.extract_strided_slice %698 {offsets = [0, 3], sizes = [8, 1], strides = [1, 1]} : vector<8x8xf32> to vector<8x1xf32>
    %721 = vector.extract_strided_slice %696 {offsets = [3, 0], sizes = [1, 256], strides = [1, 1]} : vector<8x256xf32> to vector<1x256xf32>
    %722 = vector.broadcast %720 : vector<8x1xf32> to vector<8x256xf32>
    %723 = vector.broadcast %721 : vector<1x256xf32> to vector<8x256xf32>
    %724 = arith.mulf %722, %723 : vector<8x256xf32>
    %725 = arith.addf %719, %724 : vector<8x256xf32>
    %726 = vector.extract_strided_slice %698 {offsets = [0, 4], sizes = [8, 1], strides = [1, 1]} : vector<8x8xf32> to vector<8x1xf32>
    %727 = vector.extract_strided_slice %696 {offsets = [4, 0], sizes = [1, 256], strides = [1, 1]} : vector<8x256xf32> to vector<1x256xf32>
    %728 = vector.broadcast %726 : vector<8x1xf32> to vector<8x256xf32>
    %729 = vector.broadcast %727 : vector<1x256xf32> to vector<8x256xf32>
    %730 = arith.mulf %728, %729 : vector<8x256xf32>
    %731 = arith.addf %725, %730 : vector<8x256xf32>
    %732 = vector.extract_strided_slice %698 {offsets = [0, 5], sizes = [8, 1], strides = [1, 1]} : vector<8x8xf32> to vector<8x1xf32>
    %733 = vector.extract_strided_slice %696 {offsets = [5, 0], sizes = [1, 256], strides = [1, 1]} : vector<8x256xf32> to vector<1x256xf32>
    %734 = vector.broadcast %732 : vector<8x1xf32> to vector<8x256xf32>
    %735 = vector.broadcast %733 : vector<1x256xf32> to vector<8x256xf32>
    %736 = arith.mulf %734, %735 : vector<8x256xf32>
    %737 = arith.addf %731, %736 : vector<8x256xf32>
    %738 = vector.extract_strided_slice %698 {offsets = [0, 6], sizes = [8, 1], strides = [1, 1]} : vector<8x8xf32> to vector<8x1xf32>
    %739 = vector.extract_strided_slice %696 {offsets = [6, 0], sizes = [1, 256], strides = [1, 1]} : vector<8x256xf32> to vector<1x256xf32>
    %740 = vector.broadcast %738 : vector<8x1xf32> to vector<8x256xf32>
    %741 = vector.broadcast %739 : vector<1x256xf32> to vector<8x256xf32>
    %742 = arith.mulf %740, %741 : vector<8x256xf32>
    %743 = arith.addf %737, %742 : vector<8x256xf32>
    %744 = vector.extract_strided_slice %698 {offsets = [0, 7], sizes = [8, 1], strides = [1, 1]} : vector<8x8xf32> to vector<8x1xf32>
    %745 = vector.extract_strided_slice %696 {offsets = [7, 0], sizes = [1, 256], strides = [1, 1]} : vector<8x256xf32> to vector<1x256xf32>
    %746 = vector.broadcast %744 : vector<8x1xf32> to vector<8x256xf32>
    %747 = vector.broadcast %745 : vector<1x256xf32> to vector<8x256xf32>
    %748 = arith.mulf %746, %747 : vector<8x256xf32>
    %749 = arith.addf %743, %748 : vector<8x256xf32>
    %c0_98 = arith.constant 0 : index
    %c0_99 = arith.constant 0 : index
    %750 = vector.load %arg3[%c0_98, %c0_99] : memref<256x256xf32, #tpu.memory_space<vmem>>, vector<256x256xf32>
    %cst_100 = arith.constant dense<0.000000e+00> : vector<8x256xf32>
    %751 = tpu.matmul %749, %750, %cst_100 {dimension_numbers = #tpu.dot_dimension_numbers<[1], [0], [0], [1], [0, 0, 1, 1], [], []>} : vector<8x256xf32>, vector<256x256xf32>, vector<8x256xf32> -> vector<8x256xf32>
    %c0_101 = arith.constant 0 : index
    %c0_102 = arith.constant 0 : index
    %752 = vector.load %arg4[%c0_101, %c0_102] : memref<256x256xf32, #tpu.memory_space<vmem>>, vector<256x256xf32>
    %cst_103 = arith.constant dense<0.000000e+00> : vector<8x256xf32>
    %753 = tpu.matmul %749, %752, %cst_103 {dimension_numbers = #tpu.dot_dimension_numbers<[1], [0], [0], [1], [0, 0, 1, 1], [], []>} : vector<8x256xf32>, vector<256x256xf32>, vector<8x256xf32> -> vector<8x256xf32>
    %754 = arith.mulf %751, %751 : vector<8x256xf32>
    %755 = arith.mulf %753, %753 : vector<8x256xf32>
    %756 = arith.addf %754, %755 : vector<8x256xf32>
    %757 = math.sqrt %756 : vector<8x256xf32>
    %758 = math.atan2 %753, %751 : vector<8x256xf32>
    %c13 = arith.constant 13 : index
    %c0_104 = arith.constant 0 : index
    %c0_105 = arith.constant 0 : index
    %759 = vector.load %arg1[%c13, %c0_104, %c0_105] : memref<30x8x8xf32, #tpu.memory_space<vmem>>, vector<1x8x8xf32>
    %760 = vector.shape_cast %759 : vector<1x8x8xf32> to vector<8x8xf32>
    %c13_106 = arith.constant 13 : index
    %c0_107 = arith.constant 0 : index
    %c0_108 = arith.constant 0 : index
    %761 = vector.load %arg2[%c13_106, %c0_107, %c0_108] : memref<30x8x1xf32, #tpu.memory_space<vmem>>, vector<1x8x1xf32>
    %762 = vector.shape_cast %761 : vector<1x8x1xf32> to vector<8x1xf32>
    %763 = vector.extract_strided_slice %760 {offsets = [0, 0], sizes = [8, 1], strides = [1, 1]} : vector<8x8xf32> to vector<8x1xf32>
    %764 = vector.extract_strided_slice %757 {offsets = [0, 0], sizes = [1, 256], strides = [1, 1]} : vector<8x256xf32> to vector<1x256xf32>
    %765 = vector.broadcast %763 : vector<8x1xf32> to vector<8x256xf32>
    %766 = vector.broadcast %764 : vector<1x256xf32> to vector<8x256xf32>
    %767 = arith.mulf %765, %766 : vector<8x256xf32>
    %768 = vector.broadcast %762 : vector<8x1xf32> to vector<8x256xf32>
    %769 = arith.addf %767, %768 : vector<8x256xf32>
    %770 = vector.extract_strided_slice %760 {offsets = [0, 1], sizes = [8, 1], strides = [1, 1]} : vector<8x8xf32> to vector<8x1xf32>
    %771 = vector.extract_strided_slice %757 {offsets = [1, 0], sizes = [1, 256], strides = [1, 1]} : vector<8x256xf32> to vector<1x256xf32>
    %772 = vector.broadcast %770 : vector<8x1xf32> to vector<8x256xf32>
    %773 = vector.broadcast %771 : vector<1x256xf32> to vector<8x256xf32>
    %774 = arith.mulf %772, %773 : vector<8x256xf32>
    %775 = arith.addf %769, %774 : vector<8x256xf32>
    %776 = vector.extract_strided_slice %760 {offsets = [0, 2], sizes = [8, 1], strides = [1, 1]} : vector<8x8xf32> to vector<8x1xf32>
    %777 = vector.extract_strided_slice %757 {offsets = [2, 0], sizes = [1, 256], strides = [1, 1]} : vector<8x256xf32> to vector<1x256xf32>
    %778 = vector.broadcast %776 : vector<8x1xf32> to vector<8x256xf32>
    %779 = vector.broadcast %777 : vector<1x256xf32> to vector<8x256xf32>
    %780 = arith.mulf %778, %779 : vector<8x256xf32>
    %781 = arith.addf %775, %780 : vector<8x256xf32>
    %782 = vector.extract_strided_slice %760 {offsets = [0, 3], sizes = [8, 1], strides = [1, 1]} : vector<8x8xf32> to vector<8x1xf32>
    %783 = vector.extract_strided_slice %757 {offsets = [3, 0], sizes = [1, 256], strides = [1, 1]} : vector<8x256xf32> to vector<1x256xf32>
    %784 = vector.broadcast %782 : vector<8x1xf32> to vector<8x256xf32>
    %785 = vector.broadcast %783 : vector<1x256xf32> to vector<8x256xf32>
    %786 = arith.mulf %784, %785 : vector<8x256xf32>
    %787 = arith.addf %781, %786 : vector<8x256xf32>
    %788 = vector.extract_strided_slice %760 {offsets = [0, 4], sizes = [8, 1], strides = [1, 1]} : vector<8x8xf32> to vector<8x1xf32>
    %789 = vector.extract_strided_slice %757 {offsets = [4, 0], sizes = [1, 256], strides = [1, 1]} : vector<8x256xf32> to vector<1x256xf32>
    %790 = vector.broadcast %788 : vector<8x1xf32> to vector<8x256xf32>
    %791 = vector.broadcast %789 : vector<1x256xf32> to vector<8x256xf32>
    %792 = arith.mulf %790, %791 : vector<8x256xf32>
    %793 = arith.addf %787, %792 : vector<8x256xf32>
    %794 = vector.extract_strided_slice %760 {offsets = [0, 5], sizes = [8, 1], strides = [1, 1]} : vector<8x8xf32> to vector<8x1xf32>
    %795 = vector.extract_strided_slice %757 {offsets = [5, 0], sizes = [1, 256], strides = [1, 1]} : vector<8x256xf32> to vector<1x256xf32>
    %796 = vector.broadcast %794 : vector<8x1xf32> to vector<8x256xf32>
    %797 = vector.broadcast %795 : vector<1x256xf32> to vector<8x256xf32>
    %798 = arith.mulf %796, %797 : vector<8x256xf32>
    %799 = arith.addf %793, %798 : vector<8x256xf32>
    %800 = vector.extract_strided_slice %760 {offsets = [0, 6], sizes = [8, 1], strides = [1, 1]} : vector<8x8xf32> to vector<8x1xf32>
    %801 = vector.extract_strided_slice %757 {offsets = [6, 0], sizes = [1, 256], strides = [1, 1]} : vector<8x256xf32> to vector<1x256xf32>
    %802 = vector.broadcast %800 : vector<8x1xf32> to vector<8x256xf32>
    %803 = vector.broadcast %801 : vector<1x256xf32> to vector<8x256xf32>
    %804 = arith.mulf %802, %803 : vector<8x256xf32>
    %805 = arith.addf %799, %804 : vector<8x256xf32>
    %806 = vector.extract_strided_slice %760 {offsets = [0, 7], sizes = [8, 1], strides = [1, 1]} : vector<8x8xf32> to vector<8x1xf32>
    %807 = vector.extract_strided_slice %757 {offsets = [7, 0], sizes = [1, 256], strides = [1, 1]} : vector<8x256xf32> to vector<1x256xf32>
    %808 = vector.broadcast %806 : vector<8x1xf32> to vector<8x256xf32>
    %809 = vector.broadcast %807 : vector<1x256xf32> to vector<8x256xf32>
    %810 = arith.mulf %808, %809 : vector<8x256xf32>
    %811 = arith.addf %805, %810 : vector<8x256xf32>
    %cst_109 = arith.constant 0.000000e+00 : f32
    %812 = vector.broadcast %cst_109 : f32 to vector<8x256xf32>
    %813 = arith.cmpf oge, %811, %812 : vector<8x256xf32>
    %cst_110 = arith.constant 1.000000e-01 : f32
    %814 = vector.broadcast %cst_110 : f32 to vector<8x256xf32>
    %815 = arith.mulf %814, %811 : vector<8x256xf32>
    %816 = arith.select %813, %811, %815 : vector<8x256xi1>, vector<8x256xf32>
    %c14 = arith.constant 14 : index
    %c0_111 = arith.constant 0 : index
    %c0_112 = arith.constant 0 : index
    %817 = vector.load %arg1[%c14, %c0_111, %c0_112] : memref<30x8x8xf32, #tpu.memory_space<vmem>>, vector<1x8x8xf32>
    %818 = vector.shape_cast %817 : vector<1x8x8xf32> to vector<8x8xf32>
    %c14_113 = arith.constant 14 : index
    %c0_114 = arith.constant 0 : index
    %c0_115 = arith.constant 0 : index
    %819 = vector.load %arg2[%c14_113, %c0_114, %c0_115] : memref<30x8x1xf32, #tpu.memory_space<vmem>>, vector<1x8x1xf32>
    %820 = vector.shape_cast %819 : vector<1x8x1xf32> to vector<8x1xf32>
    %821 = vector.extract_strided_slice %818 {offsets = [0, 0], sizes = [8, 1], strides = [1, 1]} : vector<8x8xf32> to vector<8x1xf32>
    %822 = vector.extract_strided_slice %816 {offsets = [0, 0], sizes = [1, 256], strides = [1, 1]} : vector<8x256xf32> to vector<1x256xf32>
    %823 = vector.broadcast %821 : vector<8x1xf32> to vector<8x256xf32>
    %824 = vector.broadcast %822 : vector<1x256xf32> to vector<8x256xf32>
    %825 = arith.mulf %823, %824 : vector<8x256xf32>
    %826 = vector.broadcast %820 : vector<8x1xf32> to vector<8x256xf32>
    %827 = arith.addf %825, %826 : vector<8x256xf32>
    %828 = vector.extract_strided_slice %818 {offsets = [0, 1], sizes = [8, 1], strides = [1, 1]} : vector<8x8xf32> to vector<8x1xf32>
    %829 = vector.extract_strided_slice %816 {offsets = [1, 0], sizes = [1, 256], strides = [1, 1]} : vector<8x256xf32> to vector<1x256xf32>
    %830 = vector.broadcast %828 : vector<8x1xf32> to vector<8x256xf32>
    %831 = vector.broadcast %829 : vector<1x256xf32> to vector<8x256xf32>
    %832 = arith.mulf %830, %831 : vector<8x256xf32>
    %833 = arith.addf %827, %832 : vector<8x256xf32>
    %834 = vector.extract_strided_slice %818 {offsets = [0, 2], sizes = [8, 1], strides = [1, 1]} : vector<8x8xf32> to vector<8x1xf32>
    %835 = vector.extract_strided_slice %816 {offsets = [2, 0], sizes = [1, 256], strides = [1, 1]} : vector<8x256xf32> to vector<1x256xf32>
    %836 = vector.broadcast %834 : vector<8x1xf32> to vector<8x256xf32>
    %837 = vector.broadcast %835 : vector<1x256xf32> to vector<8x256xf32>
    %838 = arith.mulf %836, %837 : vector<8x256xf32>
    %839 = arith.addf %833, %838 : vector<8x256xf32>
    %840 = vector.extract_strided_slice %818 {offsets = [0, 3], sizes = [8, 1], strides = [1, 1]} : vector<8x8xf32> to vector<8x1xf32>
    %841 = vector.extract_strided_slice %816 {offsets = [3, 0], sizes = [1, 256], strides = [1, 1]} : vector<8x256xf32> to vector<1x256xf32>
    %842 = vector.broadcast %840 : vector<8x1xf32> to vector<8x256xf32>
    %843 = vector.broadcast %841 : vector<1x256xf32> to vector<8x256xf32>
    %844 = arith.mulf %842, %843 : vector<8x256xf32>
    %845 = arith.addf %839, %844 : vector<8x256xf32>
    %846 = vector.extract_strided_slice %818 {offsets = [0, 4], sizes = [8, 1], strides = [1, 1]} : vector<8x8xf32> to vector<8x1xf32>
    %847 = vector.extract_strided_slice %816 {offsets = [4, 0], sizes = [1, 256], strides = [1, 1]} : vector<8x256xf32> to vector<1x256xf32>
    %848 = vector.broadcast %846 : vector<8x1xf32> to vector<8x256xf32>
    %849 = vector.broadcast %847 : vector<1x256xf32> to vector<8x256xf32>
    %850 = arith.mulf %848, %849 : vector<8x256xf32>
    %851 = arith.addf %845, %850 : vector<8x256xf32>
    %852 = vector.extract_strided_slice %818 {offsets = [0, 5], sizes = [8, 1], strides = [1, 1]} : vector<8x8xf32> to vector<8x1xf32>
    %853 = vector.extract_strided_slice %816 {offsets = [5, 0], sizes = [1, 256], strides = [1, 1]} : vector<8x256xf32> to vector<1x256xf32>
    %854 = vector.broadcast %852 : vector<8x1xf32> to vector<8x256xf32>
    %855 = vector.broadcast %853 : vector<1x256xf32> to vector<8x256xf32>
    %856 = arith.mulf %854, %855 : vector<8x256xf32>
    %857 = arith.addf %851, %856 : vector<8x256xf32>
    %858 = vector.extract_strided_slice %818 {offsets = [0, 6], sizes = [8, 1], strides = [1, 1]} : vector<8x8xf32> to vector<8x1xf32>
    %859 = vector.extract_strided_slice %816 {offsets = [6, 0], sizes = [1, 256], strides = [1, 1]} : vector<8x256xf32> to vector<1x256xf32>
    %860 = vector.broadcast %858 : vector<8x1xf32> to vector<8x256xf32>
    %861 = vector.broadcast %859 : vector<1x256xf32> to vector<8x256xf32>
    %862 = arith.mulf %860, %861 : vector<8x256xf32>
    %863 = arith.addf %857, %862 : vector<8x256xf32>
    %864 = vector.extract_strided_slice %818 {offsets = [0, 7], sizes = [8, 1], strides = [1, 1]} : vector<8x8xf32> to vector<8x1xf32>
    %865 = vector.extract_strided_slice %816 {offsets = [7, 0], sizes = [1, 256], strides = [1, 1]} : vector<8x256xf32> to vector<1x256xf32>
    %866 = vector.broadcast %864 : vector<8x1xf32> to vector<8x256xf32>
    %867 = vector.broadcast %865 : vector<1x256xf32> to vector<8x256xf32>
    %868 = arith.mulf %866, %867 : vector<8x256xf32>
    %869 = arith.addf %863, %868 : vector<8x256xf32>
    %c15 = arith.constant 15 : index
    %c0_116 = arith.constant 0 : index
    %c0_117 = arith.constant 0 : index
    %870 = vector.load %arg1[%c15, %c0_116, %c0_117] : memref<30x8x8xf32, #tpu.memory_space<vmem>>, vector<1x8x8xf32>
    %871 = vector.shape_cast %870 : vector<1x8x8xf32> to vector<8x8xf32>
    %c15_118 = arith.constant 15 : index
    %c0_119 = arith.constant 0 : index
    %c0_120 = arith.constant 0 : index
    %872 = vector.load %arg2[%c15_118, %c0_119, %c0_120] : memref<30x8x1xf32, #tpu.memory_space<vmem>>, vector<1x8x1xf32>
    %873 = vector.shape_cast %872 : vector<1x8x1xf32> to vector<8x1xf32>
    %874 = vector.extract_strided_slice %871 {offsets = [0, 0], sizes = [8, 1], strides = [1, 1]} : vector<8x8xf32> to vector<8x1xf32>
    %875 = vector.extract_strided_slice %758 {offsets = [0, 0], sizes = [1, 256], strides = [1, 1]} : vector<8x256xf32> to vector<1x256xf32>
    %876 = vector.broadcast %874 : vector<8x1xf32> to vector<8x256xf32>
    %877 = vector.broadcast %875 : vector<1x256xf32> to vector<8x256xf32>
    %878 = arith.mulf %876, %877 : vector<8x256xf32>
    %879 = vector.broadcast %873 : vector<8x1xf32> to vector<8x256xf32>
    %880 = arith.addf %878, %879 : vector<8x256xf32>
    %881 = vector.extract_strided_slice %871 {offsets = [0, 1], sizes = [8, 1], strides = [1, 1]} : vector<8x8xf32> to vector<8x1xf32>
    %882 = vector.extract_strided_slice %758 {offsets = [1, 0], sizes = [1, 256], strides = [1, 1]} : vector<8x256xf32> to vector<1x256xf32>
    %883 = vector.broadcast %881 : vector<8x1xf32> to vector<8x256xf32>
    %884 = vector.broadcast %882 : vector<1x256xf32> to vector<8x256xf32>
    %885 = arith.mulf %883, %884 : vector<8x256xf32>
    %886 = arith.addf %880, %885 : vector<8x256xf32>
    %887 = vector.extract_strided_slice %871 {offsets = [0, 2], sizes = [8, 1], strides = [1, 1]} : vector<8x8xf32> to vector<8x1xf32>
    %888 = vector.extract_strided_slice %758 {offsets = [2, 0], sizes = [1, 256], strides = [1, 1]} : vector<8x256xf32> to vector<1x256xf32>
    %889 = vector.broadcast %887 : vector<8x1xf32> to vector<8x256xf32>
    %890 = vector.broadcast %888 : vector<1x256xf32> to vector<8x256xf32>
    %891 = arith.mulf %889, %890 : vector<8x256xf32>
    %892 = arith.addf %886, %891 : vector<8x256xf32>
    %893 = vector.extract_strided_slice %871 {offsets = [0, 3], sizes = [8, 1], strides = [1, 1]} : vector<8x8xf32> to vector<8x1xf32>
    %894 = vector.extract_strided_slice %758 {offsets = [3, 0], sizes = [1, 256], strides = [1, 1]} : vector<8x256xf32> to vector<1x256xf32>
    %895 = vector.broadcast %893 : vector<8x1xf32> to vector<8x256xf32>
    %896 = vector.broadcast %894 : vector<1x256xf32> to vector<8x256xf32>
    %897 = arith.mulf %895, %896 : vector<8x256xf32>
    %898 = arith.addf %892, %897 : vector<8x256xf32>
    %899 = vector.extract_strided_slice %871 {offsets = [0, 4], sizes = [8, 1], strides = [1, 1]} : vector<8x8xf32> to vector<8x1xf32>
    %900 = vector.extract_strided_slice %758 {offsets = [4, 0], sizes = [1, 256], strides = [1, 1]} : vector<8x256xf32> to vector<1x256xf32>
    %901 = vector.broadcast %899 : vector<8x1xf32> to vector<8x256xf32>
    %902 = vector.broadcast %900 : vector<1x256xf32> to vector<8x256xf32>
    %903 = arith.mulf %901, %902 : vector<8x256xf32>
    %904 = arith.addf %898, %903 : vector<8x256xf32>
    %905 = vector.extract_strided_slice %871 {offsets = [0, 5], sizes = [8, 1], strides = [1, 1]} : vector<8x8xf32> to vector<8x1xf32>
    %906 = vector.extract_strided_slice %758 {offsets = [5, 0], sizes = [1, 256], strides = [1, 1]} : vector<8x256xf32> to vector<1x256xf32>
    %907 = vector.broadcast %905 : vector<8x1xf32> to vector<8x256xf32>
    %908 = vector.broadcast %906 : vector<1x256xf32> to vector<8x256xf32>
    %909 = arith.mulf %907, %908 : vector<8x256xf32>
    %910 = arith.addf %904, %909 : vector<8x256xf32>
    %911 = vector.extract_strided_slice %871 {offsets = [0, 6], sizes = [8, 1], strides = [1, 1]} : vector<8x8xf32> to vector<8x1xf32>
    %912 = vector.extract_strided_slice %758 {offsets = [6, 0], sizes = [1, 256], strides = [1, 1]} : vector<8x256xf32> to vector<1x256xf32>
    %913 = vector.broadcast %911 : vector<8x1xf32> to vector<8x256xf32>
    %914 = vector.broadcast %912 : vector<1x256xf32> to vector<8x256xf32>
    %915 = arith.mulf %913, %914 : vector<8x256xf32>
    %916 = arith.addf %910, %915 : vector<8x256xf32>
    %917 = vector.extract_strided_slice %871 {offsets = [0, 7], sizes = [8, 1], strides = [1, 1]} : vector<8x8xf32> to vector<8x1xf32>
    %918 = vector.extract_strided_slice %758 {offsets = [7, 0], sizes = [1, 256], strides = [1, 1]} : vector<8x256xf32> to vector<1x256xf32>
    %919 = vector.broadcast %917 : vector<8x1xf32> to vector<8x256xf32>
    %920 = vector.broadcast %918 : vector<1x256xf32> to vector<8x256xf32>
    %921 = arith.mulf %919, %920 : vector<8x256xf32>
    %922 = arith.addf %916, %921 : vector<8x256xf32>
    %cst_121 = arith.constant 0.000000e+00 : f32
    %923 = vector.broadcast %cst_121 : f32 to vector<8x256xf32>
    %924 = arith.cmpf oge, %922, %923 : vector<8x256xf32>
    %cst_122 = arith.constant 1.000000e-01 : f32
    %925 = vector.broadcast %cst_122 : f32 to vector<8x256xf32>
    %926 = arith.mulf %925, %922 : vector<8x256xf32>
    %927 = arith.select %924, %922, %926 : vector<8x256xi1>, vector<8x256xf32>
    %c16 = arith.constant 16 : index
    %c0_123 = arith.constant 0 : index
    %c0_124 = arith.constant 0 : index
    %928 = vector.load %arg1[%c16, %c0_123, %c0_124] : memref<30x8x8xf32, #tpu.memory_space<vmem>>, vector<1x8x8xf32>
    %929 = vector.shape_cast %928 : vector<1x8x8xf32> to vector<8x8xf32>
    %c16_125 = arith.constant 16 : index
    %c0_126 = arith.constant 0 : index
    %c0_127 = arith.constant 0 : index
    %930 = vector.load %arg2[%c16_125, %c0_126, %c0_127] : memref<30x8x1xf32, #tpu.memory_space<vmem>>, vector<1x8x1xf32>
    %931 = vector.shape_cast %930 : vector<1x8x1xf32> to vector<8x1xf32>
    %932 = vector.extract_strided_slice %929 {offsets = [0, 0], sizes = [8, 1], strides = [1, 1]} : vector<8x8xf32> to vector<8x1xf32>
    %933 = vector.extract_strided_slice %927 {offsets = [0, 0], sizes = [1, 256], strides = [1, 1]} : vector<8x256xf32> to vector<1x256xf32>
    %934 = vector.broadcast %932 : vector<8x1xf32> to vector<8x256xf32>
    %935 = vector.broadcast %933 : vector<1x256xf32> to vector<8x256xf32>
    %936 = arith.mulf %934, %935 : vector<8x256xf32>
    %937 = vector.broadcast %931 : vector<8x1xf32> to vector<8x256xf32>
    %938 = arith.addf %936, %937 : vector<8x256xf32>
    %939 = vector.extract_strided_slice %929 {offsets = [0, 1], sizes = [8, 1], strides = [1, 1]} : vector<8x8xf32> to vector<8x1xf32>
    %940 = vector.extract_strided_slice %927 {offsets = [1, 0], sizes = [1, 256], strides = [1, 1]} : vector<8x256xf32> to vector<1x256xf32>
    %941 = vector.broadcast %939 : vector<8x1xf32> to vector<8x256xf32>
    %942 = vector.broadcast %940 : vector<1x256xf32> to vector<8x256xf32>
    %943 = arith.mulf %941, %942 : vector<8x256xf32>
    %944 = arith.addf %938, %943 : vector<8x256xf32>
    %945 = vector.extract_strided_slice %929 {offsets = [0, 2], sizes = [8, 1], strides = [1, 1]} : vector<8x8xf32> to vector<8x1xf32>
    %946 = vector.extract_strided_slice %927 {offsets = [2, 0], sizes = [1, 256], strides = [1, 1]} : vector<8x256xf32> to vector<1x256xf32>
    %947 = vector.broadcast %945 : vector<8x1xf32> to vector<8x256xf32>
    %948 = vector.broadcast %946 : vector<1x256xf32> to vector<8x256xf32>
    %949 = arith.mulf %947, %948 : vector<8x256xf32>
    %950 = arith.addf %944, %949 : vector<8x256xf32>
    %951 = vector.extract_strided_slice %929 {offsets = [0, 3], sizes = [8, 1], strides = [1, 1]} : vector<8x8xf32> to vector<8x1xf32>
    %952 = vector.extract_strided_slice %927 {offsets = [3, 0], sizes = [1, 256], strides = [1, 1]} : vector<8x256xf32> to vector<1x256xf32>
    %953 = vector.broadcast %951 : vector<8x1xf32> to vector<8x256xf32>
    %954 = vector.broadcast %952 : vector<1x256xf32> to vector<8x256xf32>
    %955 = arith.mulf %953, %954 : vector<8x256xf32>
    %956 = arith.addf %950, %955 : vector<8x256xf32>
    %957 = vector.extract_strided_slice %929 {offsets = [0, 4], sizes = [8, 1], strides = [1, 1]} : vector<8x8xf32> to vector<8x1xf32>
    %958 = vector.extract_strided_slice %927 {offsets = [4, 0], sizes = [1, 256], strides = [1, 1]} : vector<8x256xf32> to vector<1x256xf32>
    %959 = vector.broadcast %957 : vector<8x1xf32> to vector<8x256xf32>
    %960 = vector.broadcast %958 : vector<1x256xf32> to vector<8x256xf32>
    %961 = arith.mulf %959, %960 : vector<8x256xf32>
    %962 = arith.addf %956, %961 : vector<8x256xf32>
    %963 = vector.extract_strided_slice %929 {offsets = [0, 5], sizes = [8, 1], strides = [1, 1]} : vector<8x8xf32> to vector<8x1xf32>
    %964 = vector.extract_strided_slice %927 {offsets = [5, 0], sizes = [1, 256], strides = [1, 1]} : vector<8x256xf32> to vector<1x256xf32>
    %965 = vector.broadcast %963 : vector<8x1xf32> to vector<8x256xf32>
    %966 = vector.broadcast %964 : vector<1x256xf32> to vector<8x256xf32>
    %967 = arith.mulf %965, %966 : vector<8x256xf32>
    %968 = arith.addf %962, %967 : vector<8x256xf32>
    %969 = vector.extract_strided_slice %929 {offsets = [0, 6], sizes = [8, 1], strides = [1, 1]} : vector<8x8xf32> to vector<8x1xf32>
    %970 = vector.extract_strided_slice %927 {offsets = [6, 0], sizes = [1, 256], strides = [1, 1]} : vector<8x256xf32> to vector<1x256xf32>
    %971 = vector.broadcast %969 : vector<8x1xf32> to vector<8x256xf32>
    %972 = vector.broadcast %970 : vector<1x256xf32> to vector<8x256xf32>
    %973 = arith.mulf %971, %972 : vector<8x256xf32>
    %974 = arith.addf %968, %973 : vector<8x256xf32>
    %975 = vector.extract_strided_slice %929 {offsets = [0, 7], sizes = [8, 1], strides = [1, 1]} : vector<8x8xf32> to vector<8x1xf32>
    %976 = vector.extract_strided_slice %927 {offsets = [7, 0], sizes = [1, 256], strides = [1, 1]} : vector<8x256xf32> to vector<1x256xf32>
    %977 = vector.broadcast %975 : vector<8x1xf32> to vector<8x256xf32>
    %978 = vector.broadcast %976 : vector<1x256xf32> to vector<8x256xf32>
    %979 = arith.mulf %977, %978 : vector<8x256xf32>
    %980 = arith.addf %974, %979 : vector<8x256xf32>
    %981 = math.cos %980 : vector<8x256xf32>
    %982 = arith.mulf %869, %981 : vector<8x256xf32>
    %983 = math.sin %980 : vector<8x256xf32>
    %984 = arith.mulf %869, %983 : vector<8x256xf32>
    %c0_128 = arith.constant 0 : index
    %c0_129 = arith.constant 0 : index
    %985 = vector.load %arg5[%c0_128, %c0_129] : memref<256x256xf32, #tpu.memory_space<vmem>>, vector<256x256xf32>
    %cst_130 = arith.constant dense<0.000000e+00> : vector<8x256xf32>
    %986 = tpu.matmul %982, %985, %cst_130 {dimension_numbers = #tpu.dot_dimension_numbers<[1], [0], [0], [1], [0, 0, 1, 1], [], []>} : vector<8x256xf32>, vector<256x256xf32>, vector<8x256xf32> -> vector<8x256xf32>
    %c0_131 = arith.constant 0 : index
    %c0_132 = arith.constant 0 : index
    %987 = vector.load %arg6[%c0_131, %c0_132] : memref<256x256xf32, #tpu.memory_space<vmem>>, vector<256x256xf32>
    %cst_133 = arith.constant dense<0.000000e+00> : vector<8x256xf32>
    %988 = tpu.matmul %984, %987, %cst_133 {dimension_numbers = #tpu.dot_dimension_numbers<[1], [0], [0], [1], [0, 0, 1, 1], [], []>} : vector<8x256xf32>, vector<256x256xf32>, vector<8x256xf32> -> vector<8x256xf32>
    %989 = arith.addf %986, %988 : vector<8x256xf32>
    %990 = arith.addf %989, %696 : vector<8x256xf32>
    %c17 = arith.constant 17 : index
    %c0_134 = arith.constant 0 : index
    %c0_135 = arith.constant 0 : index
    %991 = vector.load %arg1[%c17, %c0_134, %c0_135] : memref<30x8x8xf32, #tpu.memory_space<vmem>>, vector<1x8x8xf32>
    %992 = vector.shape_cast %991 : vector<1x8x8xf32> to vector<8x8xf32>
    %c17_136 = arith.constant 17 : index
    %c0_137 = arith.constant 0 : index
    %c0_138 = arith.constant 0 : index
    %993 = vector.load %arg2[%c17_136, %c0_137, %c0_138] : memref<30x8x1xf32, #tpu.memory_space<vmem>>, vector<1x8x1xf32>
    %994 = vector.shape_cast %993 : vector<1x8x1xf32> to vector<8x1xf32>
    %995 = vector.extract_strided_slice %992 {offsets = [0, 0], sizes = [8, 1], strides = [1, 1]} : vector<8x8xf32> to vector<8x1xf32>
    %996 = vector.extract_strided_slice %990 {offsets = [0, 0], sizes = [1, 256], strides = [1, 1]} : vector<8x256xf32> to vector<1x256xf32>
    %997 = vector.broadcast %995 : vector<8x1xf32> to vector<8x256xf32>
    %998 = vector.broadcast %996 : vector<1x256xf32> to vector<8x256xf32>
    %999 = arith.mulf %997, %998 : vector<8x256xf32>
    %1000 = vector.broadcast %994 : vector<8x1xf32> to vector<8x256xf32>
    %1001 = arith.addf %999, %1000 : vector<8x256xf32>
    %1002 = vector.extract_strided_slice %992 {offsets = [0, 1], sizes = [8, 1], strides = [1, 1]} : vector<8x8xf32> to vector<8x1xf32>
    %1003 = vector.extract_strided_slice %990 {offsets = [1, 0], sizes = [1, 256], strides = [1, 1]} : vector<8x256xf32> to vector<1x256xf32>
    %1004 = vector.broadcast %1002 : vector<8x1xf32> to vector<8x256xf32>
    %1005 = vector.broadcast %1003 : vector<1x256xf32> to vector<8x256xf32>
    %1006 = arith.mulf %1004, %1005 : vector<8x256xf32>
    %1007 = arith.addf %1001, %1006 : vector<8x256xf32>
    %1008 = vector.extract_strided_slice %992 {offsets = [0, 2], sizes = [8, 1], strides = [1, 1]} : vector<8x8xf32> to vector<8x1xf32>
    %1009 = vector.extract_strided_slice %990 {offsets = [2, 0], sizes = [1, 256], strides = [1, 1]} : vector<8x256xf32> to vector<1x256xf32>
    %1010 = vector.broadcast %1008 : vector<8x1xf32> to vector<8x256xf32>
    %1011 = vector.broadcast %1009 : vector<1x256xf32> to vector<8x256xf32>
    %1012 = arith.mulf %1010, %1011 : vector<8x256xf32>
    %1013 = arith.addf %1007, %1012 : vector<8x256xf32>
    %1014 = vector.extract_strided_slice %992 {offsets = [0, 3], sizes = [8, 1], strides = [1, 1]} : vector<8x8xf32> to vector<8x1xf32>
    %1015 = vector.extract_strided_slice %990 {offsets = [3, 0], sizes = [1, 256], strides = [1, 1]} : vector<8x256xf32> to vector<1x256xf32>
    %1016 = vector.broadcast %1014 : vector<8x1xf32> to vector<8x256xf32>
    %1017 = vector.broadcast %1015 : vector<1x256xf32> to vector<8x256xf32>
    %1018 = arith.mulf %1016, %1017 : vector<8x256xf32>
    %1019 = arith.addf %1013, %1018 : vector<8x256xf32>
    %1020 = vector.extract_strided_slice %992 {offsets = [0, 4], sizes = [8, 1], strides = [1, 1]} : vector<8x8xf32> to vector<8x1xf32>
    %1021 = vector.extract_strided_slice %990 {offsets = [4, 0], sizes = [1, 256], strides = [1, 1]} : vector<8x256xf32> to vector<1x256xf32>
    %1022 = vector.broadcast %1020 : vector<8x1xf32> to vector<8x256xf32>
    %1023 = vector.broadcast %1021 : vector<1x256xf32> to vector<8x256xf32>
    %1024 = arith.mulf %1022, %1023 : vector<8x256xf32>
    %1025 = arith.addf %1019, %1024 : vector<8x256xf32>
    %1026 = vector.extract_strided_slice %992 {offsets = [0, 5], sizes = [8, 1], strides = [1, 1]} : vector<8x8xf32> to vector<8x1xf32>
    %1027 = vector.extract_strided_slice %990 {offsets = [5, 0], sizes = [1, 256], strides = [1, 1]} : vector<8x256xf32> to vector<1x256xf32>
    %1028 = vector.broadcast %1026 : vector<8x1xf32> to vector<8x256xf32>
    %1029 = vector.broadcast %1027 : vector<1x256xf32> to vector<8x256xf32>
    %1030 = arith.mulf %1028, %1029 : vector<8x256xf32>
    %1031 = arith.addf %1025, %1030 : vector<8x256xf32>
    %1032 = vector.extract_strided_slice %992 {offsets = [0, 6], sizes = [8, 1], strides = [1, 1]} : vector<8x8xf32> to vector<8x1xf32>
    %1033 = vector.extract_strided_slice %990 {offsets = [6, 0], sizes = [1, 256], strides = [1, 1]} : vector<8x256xf32> to vector<1x256xf32>
    %1034 = vector.broadcast %1032 : vector<8x1xf32> to vector<8x256xf32>
    %1035 = vector.broadcast %1033 : vector<1x256xf32> to vector<8x256xf32>
    %1036 = arith.mulf %1034, %1035 : vector<8x256xf32>
    %1037 = arith.addf %1031, %1036 : vector<8x256xf32>
    %1038 = vector.extract_strided_slice %992 {offsets = [0, 7], sizes = [8, 1], strides = [1, 1]} : vector<8x8xf32> to vector<8x1xf32>
    %1039 = vector.extract_strided_slice %990 {offsets = [7, 0], sizes = [1, 256], strides = [1, 1]} : vector<8x256xf32> to vector<1x256xf32>
    %1040 = vector.broadcast %1038 : vector<8x1xf32> to vector<8x256xf32>
    %1041 = vector.broadcast %1039 : vector<1x256xf32> to vector<8x256xf32>
    %1042 = arith.mulf %1040, %1041 : vector<8x256xf32>
    %1043 = arith.addf %1037, %1042 : vector<8x256xf32>
    %1044 = arith.addf %1043, %696 : vector<8x256xf32>
    %c18 = arith.constant 18 : index
    %c0_139 = arith.constant 0 : index
    %c0_140 = arith.constant 0 : index
    %1045 = vector.load %arg1[%c18, %c0_139, %c0_140] : memref<30x8x8xf32, #tpu.memory_space<vmem>>, vector<1x8x8xf32>
    %1046 = vector.shape_cast %1045 : vector<1x8x8xf32> to vector<8x8xf32>
    %c18_141 = arith.constant 18 : index
    %c0_142 = arith.constant 0 : index
    %c0_143 = arith.constant 0 : index
    %1047 = vector.load %arg2[%c18_141, %c0_142, %c0_143] : memref<30x8x1xf32, #tpu.memory_space<vmem>>, vector<1x8x1xf32>
    %1048 = vector.shape_cast %1047 : vector<1x8x1xf32> to vector<8x1xf32>
    %1049 = vector.extract_strided_slice %1046 {offsets = [0, 0], sizes = [8, 1], strides = [1, 1]} : vector<8x8xf32> to vector<8x1xf32>
    %1050 = vector.extract_strided_slice %1044 {offsets = [0, 0], sizes = [1, 256], strides = [1, 1]} : vector<8x256xf32> to vector<1x256xf32>
    %1051 = vector.broadcast %1049 : vector<8x1xf32> to vector<8x256xf32>
    %1052 = vector.broadcast %1050 : vector<1x256xf32> to vector<8x256xf32>
    %1053 = arith.mulf %1051, %1052 : vector<8x256xf32>
    %1054 = vector.broadcast %1048 : vector<8x1xf32> to vector<8x256xf32>
    %1055 = arith.addf %1053, %1054 : vector<8x256xf32>
    %1056 = vector.extract_strided_slice %1046 {offsets = [0, 1], sizes = [8, 1], strides = [1, 1]} : vector<8x8xf32> to vector<8x1xf32>
    %1057 = vector.extract_strided_slice %1044 {offsets = [1, 0], sizes = [1, 256], strides = [1, 1]} : vector<8x256xf32> to vector<1x256xf32>
    %1058 = vector.broadcast %1056 : vector<8x1xf32> to vector<8x256xf32>
    %1059 = vector.broadcast %1057 : vector<1x256xf32> to vector<8x256xf32>
    %1060 = arith.mulf %1058, %1059 : vector<8x256xf32>
    %1061 = arith.addf %1055, %1060 : vector<8x256xf32>
    %1062 = vector.extract_strided_slice %1046 {offsets = [0, 2], sizes = [8, 1], strides = [1, 1]} : vector<8x8xf32> to vector<8x1xf32>
    %1063 = vector.extract_strided_slice %1044 {offsets = [2, 0], sizes = [1, 256], strides = [1, 1]} : vector<8x256xf32> to vector<1x256xf32>
    %1064 = vector.broadcast %1062 : vector<8x1xf32> to vector<8x256xf32>
    %1065 = vector.broadcast %1063 : vector<1x256xf32> to vector<8x256xf32>
    %1066 = arith.mulf %1064, %1065 : vector<8x256xf32>
    %1067 = arith.addf %1061, %1066 : vector<8x256xf32>
    %1068 = vector.extract_strided_slice %1046 {offsets = [0, 3], sizes = [8, 1], strides = [1, 1]} : vector<8x8xf32> to vector<8x1xf32>
    %1069 = vector.extract_strided_slice %1044 {offsets = [3, 0], sizes = [1, 256], strides = [1, 1]} : vector<8x256xf32> to vector<1x256xf32>
    %1070 = vector.broadcast %1068 : vector<8x1xf32> to vector<8x256xf32>
    %1071 = vector.broadcast %1069 : vector<1x256xf32> to vector<8x256xf32>
    %1072 = arith.mulf %1070, %1071 : vector<8x256xf32>
    %1073 = arith.addf %1067, %1072 : vector<8x256xf32>
    %1074 = vector.extract_strided_slice %1046 {offsets = [0, 4], sizes = [8, 1], strides = [1, 1]} : vector<8x8xf32> to vector<8x1xf32>
    %1075 = vector.extract_strided_slice %1044 {offsets = [4, 0], sizes = [1, 256], strides = [1, 1]} : vector<8x256xf32> to vector<1x256xf32>
    %1076 = vector.broadcast %1074 : vector<8x1xf32> to vector<8x256xf32>
    %1077 = vector.broadcast %1075 : vector<1x256xf32> to vector<8x256xf32>
    %1078 = arith.mulf %1076, %1077 : vector<8x256xf32>
    %1079 = arith.addf %1073, %1078 : vector<8x256xf32>
    %1080 = vector.extract_strided_slice %1046 {offsets = [0, 5], sizes = [8, 1], strides = [1, 1]} : vector<8x8xf32> to vector<8x1xf32>
    %1081 = vector.extract_strided_slice %1044 {offsets = [5, 0], sizes = [1, 256], strides = [1, 1]} : vector<8x256xf32> to vector<1x256xf32>
    %1082 = vector.broadcast %1080 : vector<8x1xf32> to vector<8x256xf32>
    %1083 = vector.broadcast %1081 : vector<1x256xf32> to vector<8x256xf32>
    %1084 = arith.mulf %1082, %1083 : vector<8x256xf32>
    %1085 = arith.addf %1079, %1084 : vector<8x256xf32>
    %1086 = vector.extract_strided_slice %1046 {offsets = [0, 6], sizes = [8, 1], strides = [1, 1]} : vector<8x8xf32> to vector<8x1xf32>
    %1087 = vector.extract_strided_slice %1044 {offsets = [6, 0], sizes = [1, 256], strides = [1, 1]} : vector<8x256xf32> to vector<1x256xf32>
    %1088 = vector.broadcast %1086 : vector<8x1xf32> to vector<8x256xf32>
    %1089 = vector.broadcast %1087 : vector<1x256xf32> to vector<8x256xf32>
    %1090 = arith.mulf %1088, %1089 : vector<8x256xf32>
    %1091 = arith.addf %1085, %1090 : vector<8x256xf32>
    %1092 = vector.extract_strided_slice %1046 {offsets = [0, 7], sizes = [8, 1], strides = [1, 1]} : vector<8x8xf32> to vector<8x1xf32>
    %1093 = vector.extract_strided_slice %1044 {offsets = [7, 0], sizes = [1, 256], strides = [1, 1]} : vector<8x256xf32> to vector<1x256xf32>
    %1094 = vector.broadcast %1092 : vector<8x1xf32> to vector<8x256xf32>
    %1095 = vector.broadcast %1093 : vector<1x256xf32> to vector<8x256xf32>
    %1096 = arith.mulf %1094, %1095 : vector<8x256xf32>
    %1097 = arith.addf %1091, %1096 : vector<8x256xf32>
    %c0_144 = arith.constant 0 : index
    %c0_145 = arith.constant 0 : index
    %1098 = vector.load %arg3[%c0_144, %c0_145] : memref<256x256xf32, #tpu.memory_space<vmem>>, vector<256x256xf32>
    %cst_146 = arith.constant dense<0.000000e+00> : vector<8x256xf32>
    %1099 = tpu.matmul %1097, %1098, %cst_146 {dimension_numbers = #tpu.dot_dimension_numbers<[1], [0], [0], [1], [0, 0, 1, 1], [], []>} : vector<8x256xf32>, vector<256x256xf32>, vector<8x256xf32> -> vector<8x256xf32>
    %c0_147 = arith.constant 0 : index
    %c0_148 = arith.constant 0 : index
    %1100 = vector.load %arg4[%c0_147, %c0_148] : memref<256x256xf32, #tpu.memory_space<vmem>>, vector<256x256xf32>
    %cst_149 = arith.constant dense<0.000000e+00> : vector<8x256xf32>
    %1101 = tpu.matmul %1097, %1100, %cst_149 {dimension_numbers = #tpu.dot_dimension_numbers<[1], [0], [0], [1], [0, 0, 1, 1], [], []>} : vector<8x256xf32>, vector<256x256xf32>, vector<8x256xf32> -> vector<8x256xf32>
    %1102 = arith.mulf %1099, %1099 : vector<8x256xf32>
    %1103 = arith.mulf %1101, %1101 : vector<8x256xf32>
    %1104 = arith.addf %1102, %1103 : vector<8x256xf32>
    %1105 = math.sqrt %1104 : vector<8x256xf32>
    %1106 = math.atan2 %1101, %1099 : vector<8x256xf32>
    %c19 = arith.constant 19 : index
    %c0_150 = arith.constant 0 : index
    %c0_151 = arith.constant 0 : index
    %1107 = vector.load %arg1[%c19, %c0_150, %c0_151] : memref<30x8x8xf32, #tpu.memory_space<vmem>>, vector<1x8x8xf32>
    %1108 = vector.shape_cast %1107 : vector<1x8x8xf32> to vector<8x8xf32>
    %c19_152 = arith.constant 19 : index
    %c0_153 = arith.constant 0 : index
    %c0_154 = arith.constant 0 : index
    %1109 = vector.load %arg2[%c19_152, %c0_153, %c0_154] : memref<30x8x1xf32, #tpu.memory_space<vmem>>, vector<1x8x1xf32>
    %1110 = vector.shape_cast %1109 : vector<1x8x1xf32> to vector<8x1xf32>
    %1111 = vector.extract_strided_slice %1108 {offsets = [0, 0], sizes = [8, 1], strides = [1, 1]} : vector<8x8xf32> to vector<8x1xf32>
    %1112 = vector.extract_strided_slice %1105 {offsets = [0, 0], sizes = [1, 256], strides = [1, 1]} : vector<8x256xf32> to vector<1x256xf32>
    %1113 = vector.broadcast %1111 : vector<8x1xf32> to vector<8x256xf32>
    %1114 = vector.broadcast %1112 : vector<1x256xf32> to vector<8x256xf32>
    %1115 = arith.mulf %1113, %1114 : vector<8x256xf32>
    %1116 = vector.broadcast %1110 : vector<8x1xf32> to vector<8x256xf32>
    %1117 = arith.addf %1115, %1116 : vector<8x256xf32>
    %1118 = vector.extract_strided_slice %1108 {offsets = [0, 1], sizes = [8, 1], strides = [1, 1]} : vector<8x8xf32> to vector<8x1xf32>
    %1119 = vector.extract_strided_slice %1105 {offsets = [1, 0], sizes = [1, 256], strides = [1, 1]} : vector<8x256xf32> to vector<1x256xf32>
    %1120 = vector.broadcast %1118 : vector<8x1xf32> to vector<8x256xf32>
    %1121 = vector.broadcast %1119 : vector<1x256xf32> to vector<8x256xf32>
    %1122 = arith.mulf %1120, %1121 : vector<8x256xf32>
    %1123 = arith.addf %1117, %1122 : vector<8x256xf32>
    %1124 = vector.extract_strided_slice %1108 {offsets = [0, 2], sizes = [8, 1], strides = [1, 1]} : vector<8x8xf32> to vector<8x1xf32>
    %1125 = vector.extract_strided_slice %1105 {offsets = [2, 0], sizes = [1, 256], strides = [1, 1]} : vector<8x256xf32> to vector<1x256xf32>
    %1126 = vector.broadcast %1124 : vector<8x1xf32> to vector<8x256xf32>
    %1127 = vector.broadcast %1125 : vector<1x256xf32> to vector<8x256xf32>
    %1128 = arith.mulf %1126, %1127 : vector<8x256xf32>
    %1129 = arith.addf %1123, %1128 : vector<8x256xf32>
    %1130 = vector.extract_strided_slice %1108 {offsets = [0, 3], sizes = [8, 1], strides = [1, 1]} : vector<8x8xf32> to vector<8x1xf32>
    %1131 = vector.extract_strided_slice %1105 {offsets = [3, 0], sizes = [1, 256], strides = [1, 1]} : vector<8x256xf32> to vector<1x256xf32>
    %1132 = vector.broadcast %1130 : vector<8x1xf32> to vector<8x256xf32>
    %1133 = vector.broadcast %1131 : vector<1x256xf32> to vector<8x256xf32>
    %1134 = arith.mulf %1132, %1133 : vector<8x256xf32>
    %1135 = arith.addf %1129, %1134 : vector<8x256xf32>
    %1136 = vector.extract_strided_slice %1108 {offsets = [0, 4], sizes = [8, 1], strides = [1, 1]} : vector<8x8xf32> to vector<8x1xf32>
    %1137 = vector.extract_strided_slice %1105 {offsets = [4, 0], sizes = [1, 256], strides = [1, 1]} : vector<8x256xf32> to vector<1x256xf32>
    %1138 = vector.broadcast %1136 : vector<8x1xf32> to vector<8x256xf32>
    %1139 = vector.broadcast %1137 : vector<1x256xf32> to vector<8x256xf32>
    %1140 = arith.mulf %1138, %1139 : vector<8x256xf32>
    %1141 = arith.addf %1135, %1140 : vector<8x256xf32>
    %1142 = vector.extract_strided_slice %1108 {offsets = [0, 5], sizes = [8, 1], strides = [1, 1]} : vector<8x8xf32> to vector<8x1xf32>
    %1143 = vector.extract_strided_slice %1105 {offsets = [5, 0], sizes = [1, 256], strides = [1, 1]} : vector<8x256xf32> to vector<1x256xf32>
    %1144 = vector.broadcast %1142 : vector<8x1xf32> to vector<8x256xf32>
    %1145 = vector.broadcast %1143 : vector<1x256xf32> to vector<8x256xf32>
    %1146 = arith.mulf %1144, %1145 : vector<8x256xf32>
    %1147 = arith.addf %1141, %1146 : vector<8x256xf32>
    %1148 = vector.extract_strided_slice %1108 {offsets = [0, 6], sizes = [8, 1], strides = [1, 1]} : vector<8x8xf32> to vector<8x1xf32>
    %1149 = vector.extract_strided_slice %1105 {offsets = [6, 0], sizes = [1, 256], strides = [1, 1]} : vector<8x256xf32> to vector<1x256xf32>
    %1150 = vector.broadcast %1148 : vector<8x1xf32> to vector<8x256xf32>
    %1151 = vector.broadcast %1149 : vector<1x256xf32> to vector<8x256xf32>
    %1152 = arith.mulf %1150, %1151 : vector<8x256xf32>
    %1153 = arith.addf %1147, %1152 : vector<8x256xf32>
    %1154 = vector.extract_strided_slice %1108 {offsets = [0, 7], sizes = [8, 1], strides = [1, 1]} : vector<8x8xf32> to vector<8x1xf32>
    %1155 = vector.extract_strided_slice %1105 {offsets = [7, 0], sizes = [1, 256], strides = [1, 1]} : vector<8x256xf32> to vector<1x256xf32>
    %1156 = vector.broadcast %1154 : vector<8x1xf32> to vector<8x256xf32>
    %1157 = vector.broadcast %1155 : vector<1x256xf32> to vector<8x256xf32>
    %1158 = arith.mulf %1156, %1157 : vector<8x256xf32>
    %1159 = arith.addf %1153, %1158 : vector<8x256xf32>
    %cst_155 = arith.constant 0.000000e+00 : f32
    %1160 = vector.broadcast %cst_155 : f32 to vector<8x256xf32>
    %1161 = arith.cmpf oge, %1159, %1160 : vector<8x256xf32>
    %cst_156 = arith.constant 1.000000e-01 : f32
    %1162 = vector.broadcast %cst_156 : f32 to vector<8x256xf32>
    %1163 = arith.mulf %1162, %1159 : vector<8x256xf32>
    %1164 = arith.select %1161, %1159, %1163 : vector<8x256xi1>, vector<8x256xf32>
    %c20 = arith.constant 20 : index
    %c0_157 = arith.constant 0 : index
    %c0_158 = arith.constant 0 : index
    %1165 = vector.load %arg1[%c20, %c0_157, %c0_158] : memref<30x8x8xf32, #tpu.memory_space<vmem>>, vector<1x8x8xf32>
    %1166 = vector.shape_cast %1165 : vector<1x8x8xf32> to vector<8x8xf32>
    %c20_159 = arith.constant 20 : index
    %c0_160 = arith.constant 0 : index
    %c0_161 = arith.constant 0 : index
    %1167 = vector.load %arg2[%c20_159, %c0_160, %c0_161] : memref<30x8x1xf32, #tpu.memory_space<vmem>>, vector<1x8x1xf32>
    %1168 = vector.shape_cast %1167 : vector<1x8x1xf32> to vector<8x1xf32>
    %1169 = vector.extract_strided_slice %1166 {offsets = [0, 0], sizes = [8, 1], strides = [1, 1]} : vector<8x8xf32> to vector<8x1xf32>
    %1170 = vector.extract_strided_slice %1164 {offsets = [0, 0], sizes = [1, 256], strides = [1, 1]} : vector<8x256xf32> to vector<1x256xf32>
    %1171 = vector.broadcast %1169 : vector<8x1xf32> to vector<8x256xf32>
    %1172 = vector.broadcast %1170 : vector<1x256xf32> to vector<8x256xf32>
    %1173 = arith.mulf %1171, %1172 : vector<8x256xf32>
    %1174 = vector.broadcast %1168 : vector<8x1xf32> to vector<8x256xf32>
    %1175 = arith.addf %1173, %1174 : vector<8x256xf32>
    %1176 = vector.extract_strided_slice %1166 {offsets = [0, 1], sizes = [8, 1], strides = [1, 1]} : vector<8x8xf32> to vector<8x1xf32>
    %1177 = vector.extract_strided_slice %1164 {offsets = [1, 0], sizes = [1, 256], strides = [1, 1]} : vector<8x256xf32> to vector<1x256xf32>
    %1178 = vector.broadcast %1176 : vector<8x1xf32> to vector<8x256xf32>
    %1179 = vector.broadcast %1177 : vector<1x256xf32> to vector<8x256xf32>
    %1180 = arith.mulf %1178, %1179 : vector<8x256xf32>
    %1181 = arith.addf %1175, %1180 : vector<8x256xf32>
    %1182 = vector.extract_strided_slice %1166 {offsets = [0, 2], sizes = [8, 1], strides = [1, 1]} : vector<8x8xf32> to vector<8x1xf32>
    %1183 = vector.extract_strided_slice %1164 {offsets = [2, 0], sizes = [1, 256], strides = [1, 1]} : vector<8x256xf32> to vector<1x256xf32>
    %1184 = vector.broadcast %1182 : vector<8x1xf32> to vector<8x256xf32>
    %1185 = vector.broadcast %1183 : vector<1x256xf32> to vector<8x256xf32>
    %1186 = arith.mulf %1184, %1185 : vector<8x256xf32>
    %1187 = arith.addf %1181, %1186 : vector<8x256xf32>
    %1188 = vector.extract_strided_slice %1166 {offsets = [0, 3], sizes = [8, 1], strides = [1, 1]} : vector<8x8xf32> to vector<8x1xf32>
    %1189 = vector.extract_strided_slice %1164 {offsets = [3, 0], sizes = [1, 256], strides = [1, 1]} : vector<8x256xf32> to vector<1x256xf32>
    %1190 = vector.broadcast %1188 : vector<8x1xf32> to vector<8x256xf32>
    %1191 = vector.broadcast %1189 : vector<1x256xf32> to vector<8x256xf32>
    %1192 = arith.mulf %1190, %1191 : vector<8x256xf32>
    %1193 = arith.addf %1187, %1192 : vector<8x256xf32>
    %1194 = vector.extract_strided_slice %1166 {offsets = [0, 4], sizes = [8, 1], strides = [1, 1]} : vector<8x8xf32> to vector<8x1xf32>
    %1195 = vector.extract_strided_slice %1164 {offsets = [4, 0], sizes = [1, 256], strides = [1, 1]} : vector<8x256xf32> to vector<1x256xf32>
    %1196 = vector.broadcast %1194 : vector<8x1xf32> to vector<8x256xf32>
    %1197 = vector.broadcast %1195 : vector<1x256xf32> to vector<8x256xf32>
    %1198 = arith.mulf %1196, %1197 : vector<8x256xf32>
    %1199 = arith.addf %1193, %1198 : vector<8x256xf32>
    %1200 = vector.extract_strided_slice %1166 {offsets = [0, 5], sizes = [8, 1], strides = [1, 1]} : vector<8x8xf32> to vector<8x1xf32>
    %1201 = vector.extract_strided_slice %1164 {offsets = [5, 0], sizes = [1, 256], strides = [1, 1]} : vector<8x256xf32> to vector<1x256xf32>
    %1202 = vector.broadcast %1200 : vector<8x1xf32> to vector<8x256xf32>
    %1203 = vector.broadcast %1201 : vector<1x256xf32> to vector<8x256xf32>
    %1204 = arith.mulf %1202, %1203 : vector<8x256xf32>
    %1205 = arith.addf %1199, %1204 : vector<8x256xf32>
    %1206 = vector.extract_strided_slice %1166 {offsets = [0, 6], sizes = [8, 1], strides = [1, 1]} : vector<8x8xf32> to vector<8x1xf32>
    %1207 = vector.extract_strided_slice %1164 {offsets = [6, 0], sizes = [1, 256], strides = [1, 1]} : vector<8x256xf32> to vector<1x256xf32>
    %1208 = vector.broadcast %1206 : vector<8x1xf32> to vector<8x256xf32>
    %1209 = vector.broadcast %1207 : vector<1x256xf32> to vector<8x256xf32>
    %1210 = arith.mulf %1208, %1209 : vector<8x256xf32>
    %1211 = arith.addf %1205, %1210 : vector<8x256xf32>
    %1212 = vector.extract_strided_slice %1166 {offsets = [0, 7], sizes = [8, 1], strides = [1, 1]} : vector<8x8xf32> to vector<8x1xf32>
    %1213 = vector.extract_strided_slice %1164 {offsets = [7, 0], sizes = [1, 256], strides = [1, 1]} : vector<8x256xf32> to vector<1x256xf32>
    %1214 = vector.broadcast %1212 : vector<8x1xf32> to vector<8x256xf32>
    %1215 = vector.broadcast %1213 : vector<1x256xf32> to vector<8x256xf32>
    %1216 = arith.mulf %1214, %1215 : vector<8x256xf32>
    %1217 = arith.addf %1211, %1216 : vector<8x256xf32>
    %c21 = arith.constant 21 : index
    %c0_162 = arith.constant 0 : index
    %c0_163 = arith.constant 0 : index
    %1218 = vector.load %arg1[%c21, %c0_162, %c0_163] : memref<30x8x8xf32, #tpu.memory_space<vmem>>, vector<1x8x8xf32>
    %1219 = vector.shape_cast %1218 : vector<1x8x8xf32> to vector<8x8xf32>
    %c21_164 = arith.constant 21 : index
    %c0_165 = arith.constant 0 : index
    %c0_166 = arith.constant 0 : index
    %1220 = vector.load %arg2[%c21_164, %c0_165, %c0_166] : memref<30x8x1xf32, #tpu.memory_space<vmem>>, vector<1x8x1xf32>
    %1221 = vector.shape_cast %1220 : vector<1x8x1xf32> to vector<8x1xf32>
    %1222 = vector.extract_strided_slice %1219 {offsets = [0, 0], sizes = [8, 1], strides = [1, 1]} : vector<8x8xf32> to vector<8x1xf32>
    %1223 = vector.extract_strided_slice %1106 {offsets = [0, 0], sizes = [1, 256], strides = [1, 1]} : vector<8x256xf32> to vector<1x256xf32>
    %1224 = vector.broadcast %1222 : vector<8x1xf32> to vector<8x256xf32>
    %1225 = vector.broadcast %1223 : vector<1x256xf32> to vector<8x256xf32>
    %1226 = arith.mulf %1224, %1225 : vector<8x256xf32>
    %1227 = vector.broadcast %1221 : vector<8x1xf32> to vector<8x256xf32>
    %1228 = arith.addf %1226, %1227 : vector<8x256xf32>
    %1229 = vector.extract_strided_slice %1219 {offsets = [0, 1], sizes = [8, 1], strides = [1, 1]} : vector<8x8xf32> to vector<8x1xf32>
    %1230 = vector.extract_strided_slice %1106 {offsets = [1, 0], sizes = [1, 256], strides = [1, 1]} : vector<8x256xf32> to vector<1x256xf32>
    %1231 = vector.broadcast %1229 : vector<8x1xf32> to vector<8x256xf32>
    %1232 = vector.broadcast %1230 : vector<1x256xf32> to vector<8x256xf32>
    %1233 = arith.mulf %1231, %1232 : vector<8x256xf32>
    %1234 = arith.addf %1228, %1233 : vector<8x256xf32>
    %1235 = vector.extract_strided_slice %1219 {offsets = [0, 2], sizes = [8, 1], strides = [1, 1]} : vector<8x8xf32> to vector<8x1xf32>
    %1236 = vector.extract_strided_slice %1106 {offsets = [2, 0], sizes = [1, 256], strides = [1, 1]} : vector<8x256xf32> to vector<1x256xf32>
    %1237 = vector.broadcast %1235 : vector<8x1xf32> to vector<8x256xf32>
    %1238 = vector.broadcast %1236 : vector<1x256xf32> to vector<8x256xf32>
    %1239 = arith.mulf %1237, %1238 : vector<8x256xf32>
    %1240 = arith.addf %1234, %1239 : vector<8x256xf32>
    %1241 = vector.extract_strided_slice %1219 {offsets = [0, 3], sizes = [8, 1], strides = [1, 1]} : vector<8x8xf32> to vector<8x1xf32>
    %1242 = vector.extract_strided_slice %1106 {offsets = [3, 0], sizes = [1, 256], strides = [1, 1]} : vector<8x256xf32> to vector<1x256xf32>
    %1243 = vector.broadcast %1241 : vector<8x1xf32> to vector<8x256xf32>
    %1244 = vector.broadcast %1242 : vector<1x256xf32> to vector<8x256xf32>
    %1245 = arith.mulf %1243, %1244 : vector<8x256xf32>
    %1246 = arith.addf %1240, %1245 : vector<8x256xf32>
    %1247 = vector.extract_strided_slice %1219 {offsets = [0, 4], sizes = [8, 1], strides = [1, 1]} : vector<8x8xf32> to vector<8x1xf32>
    %1248 = vector.extract_strided_slice %1106 {offsets = [4, 0], sizes = [1, 256], strides = [1, 1]} : vector<8x256xf32> to vector<1x256xf32>
    %1249 = vector.broadcast %1247 : vector<8x1xf32> to vector<8x256xf32>
    %1250 = vector.broadcast %1248 : vector<1x256xf32> to vector<8x256xf32>
    %1251 = arith.mulf %1249, %1250 : vector<8x256xf32>
    %1252 = arith.addf %1246, %1251 : vector<8x256xf32>
    %1253 = vector.extract_strided_slice %1219 {offsets = [0, 5], sizes = [8, 1], strides = [1, 1]} : vector<8x8xf32> to vector<8x1xf32>
    %1254 = vector.extract_strided_slice %1106 {offsets = [5, 0], sizes = [1, 256], strides = [1, 1]} : vector<8x256xf32> to vector<1x256xf32>
    %1255 = vector.broadcast %1253 : vector<8x1xf32> to vector<8x256xf32>
    %1256 = vector.broadcast %1254 : vector<1x256xf32> to vector<8x256xf32>
    %1257 = arith.mulf %1255, %1256 : vector<8x256xf32>
    %1258 = arith.addf %1252, %1257 : vector<8x256xf32>
    %1259 = vector.extract_strided_slice %1219 {offsets = [0, 6], sizes = [8, 1], strides = [1, 1]} : vector<8x8xf32> to vector<8x1xf32>
    %1260 = vector.extract_strided_slice %1106 {offsets = [6, 0], sizes = [1, 256], strides = [1, 1]} : vector<8x256xf32> to vector<1x256xf32>
    %1261 = vector.broadcast %1259 : vector<8x1xf32> to vector<8x256xf32>
    %1262 = vector.broadcast %1260 : vector<1x256xf32> to vector<8x256xf32>
    %1263 = arith.mulf %1261, %1262 : vector<8x256xf32>
    %1264 = arith.addf %1258, %1263 : vector<8x256xf32>
    %1265 = vector.extract_strided_slice %1219 {offsets = [0, 7], sizes = [8, 1], strides = [1, 1]} : vector<8x8xf32> to vector<8x1xf32>
    %1266 = vector.extract_strided_slice %1106 {offsets = [7, 0], sizes = [1, 256], strides = [1, 1]} : vector<8x256xf32> to vector<1x256xf32>
    %1267 = vector.broadcast %1265 : vector<8x1xf32> to vector<8x256xf32>
    %1268 = vector.broadcast %1266 : vector<1x256xf32> to vector<8x256xf32>
    %1269 = arith.mulf %1267, %1268 : vector<8x256xf32>
    %1270 = arith.addf %1264, %1269 : vector<8x256xf32>
    %cst_167 = arith.constant 0.000000e+00 : f32
    %1271 = vector.broadcast %cst_167 : f32 to vector<8x256xf32>
    %1272 = arith.cmpf oge, %1270, %1271 : vector<8x256xf32>
    %cst_168 = arith.constant 1.000000e-01 : f32
    %1273 = vector.broadcast %cst_168 : f32 to vector<8x256xf32>
    %1274 = arith.mulf %1273, %1270 : vector<8x256xf32>
    %1275 = arith.select %1272, %1270, %1274 : vector<8x256xi1>, vector<8x256xf32>
    %c22 = arith.constant 22 : index
    %c0_169 = arith.constant 0 : index
    %c0_170 = arith.constant 0 : index
    %1276 = vector.load %arg1[%c22, %c0_169, %c0_170] : memref<30x8x8xf32, #tpu.memory_space<vmem>>, vector<1x8x8xf32>
    %1277 = vector.shape_cast %1276 : vector<1x8x8xf32> to vector<8x8xf32>
    %c22_171 = arith.constant 22 : index
    %c0_172 = arith.constant 0 : index
    %c0_173 = arith.constant 0 : index
    %1278 = vector.load %arg2[%c22_171, %c0_172, %c0_173] : memref<30x8x1xf32, #tpu.memory_space<vmem>>, vector<1x8x1xf32>
    %1279 = vector.shape_cast %1278 : vector<1x8x1xf32> to vector<8x1xf32>
    %1280 = vector.extract_strided_slice %1277 {offsets = [0, 0], sizes = [8, 1], strides = [1, 1]} : vector<8x8xf32> to vector<8x1xf32>
    %1281 = vector.extract_strided_slice %1275 {offsets = [0, 0], sizes = [1, 256], strides = [1, 1]} : vector<8x256xf32> to vector<1x256xf32>
    %1282 = vector.broadcast %1280 : vector<8x1xf32> to vector<8x256xf32>
    %1283 = vector.broadcast %1281 : vector<1x256xf32> to vector<8x256xf32>
    %1284 = arith.mulf %1282, %1283 : vector<8x256xf32>
    %1285 = vector.broadcast %1279 : vector<8x1xf32> to vector<8x256xf32>
    %1286 = arith.addf %1284, %1285 : vector<8x256xf32>
    %1287 = vector.extract_strided_slice %1277 {offsets = [0, 1], sizes = [8, 1], strides = [1, 1]} : vector<8x8xf32> to vector<8x1xf32>
    %1288 = vector.extract_strided_slice %1275 {offsets = [1, 0], sizes = [1, 256], strides = [1, 1]} : vector<8x256xf32> to vector<1x256xf32>
    %1289 = vector.broadcast %1287 : vector<8x1xf32> to vector<8x256xf32>
    %1290 = vector.broadcast %1288 : vector<1x256xf32> to vector<8x256xf32>
    %1291 = arith.mulf %1289, %1290 : vector<8x256xf32>
    %1292 = arith.addf %1286, %1291 : vector<8x256xf32>
    %1293 = vector.extract_strided_slice %1277 {offsets = [0, 2], sizes = [8, 1], strides = [1, 1]} : vector<8x8xf32> to vector<8x1xf32>
    %1294 = vector.extract_strided_slice %1275 {offsets = [2, 0], sizes = [1, 256], strides = [1, 1]} : vector<8x256xf32> to vector<1x256xf32>
    %1295 = vector.broadcast %1293 : vector<8x1xf32> to vector<8x256xf32>
    %1296 = vector.broadcast %1294 : vector<1x256xf32> to vector<8x256xf32>
    %1297 = arith.mulf %1295, %1296 : vector<8x256xf32>
    %1298 = arith.addf %1292, %1297 : vector<8x256xf32>
    %1299 = vector.extract_strided_slice %1277 {offsets = [0, 3], sizes = [8, 1], strides = [1, 1]} : vector<8x8xf32> to vector<8x1xf32>
    %1300 = vector.extract_strided_slice %1275 {offsets = [3, 0], sizes = [1, 256], strides = [1, 1]} : vector<8x256xf32> to vector<1x256xf32>
    %1301 = vector.broadcast %1299 : vector<8x1xf32> to vector<8x256xf32>
    %1302 = vector.broadcast %1300 : vector<1x256xf32> to vector<8x256xf32>
    %1303 = arith.mulf %1301, %1302 : vector<8x256xf32>
    %1304 = arith.addf %1298, %1303 : vector<8x256xf32>
    %1305 = vector.extract_strided_slice %1277 {offsets = [0, 4], sizes = [8, 1], strides = [1, 1]} : vector<8x8xf32> to vector<8x1xf32>
    %1306 = vector.extract_strided_slice %1275 {offsets = [4, 0], sizes = [1, 256], strides = [1, 1]} : vector<8x256xf32> to vector<1x256xf32>
    %1307 = vector.broadcast %1305 : vector<8x1xf32> to vector<8x256xf32>
    %1308 = vector.broadcast %1306 : vector<1x256xf32> to vector<8x256xf32>
    %1309 = arith.mulf %1307, %1308 : vector<8x256xf32>
    %1310 = arith.addf %1304, %1309 : vector<8x256xf32>
    %1311 = vector.extract_strided_slice %1277 {offsets = [0, 5], sizes = [8, 1], strides = [1, 1]} : vector<8x8xf32> to vector<8x1xf32>
    %1312 = vector.extract_strided_slice %1275 {offsets = [5, 0], sizes = [1, 256], strides = [1, 1]} : vector<8x256xf32> to vector<1x256xf32>
    %1313 = vector.broadcast %1311 : vector<8x1xf32> to vector<8x256xf32>
    %1314 = vector.broadcast %1312 : vector<1x256xf32> to vector<8x256xf32>
    %1315 = arith.mulf %1313, %1314 : vector<8x256xf32>
    %1316 = arith.addf %1310, %1315 : vector<8x256xf32>
    %1317 = vector.extract_strided_slice %1277 {offsets = [0, 6], sizes = [8, 1], strides = [1, 1]} : vector<8x8xf32> to vector<8x1xf32>
    %1318 = vector.extract_strided_slice %1275 {offsets = [6, 0], sizes = [1, 256], strides = [1, 1]} : vector<8x256xf32> to vector<1x256xf32>
    %1319 = vector.broadcast %1317 : vector<8x1xf32> to vector<8x256xf32>
    %1320 = vector.broadcast %1318 : vector<1x256xf32> to vector<8x256xf32>
    %1321 = arith.mulf %1319, %1320 : vector<8x256xf32>
    %1322 = arith.addf %1316, %1321 : vector<8x256xf32>
    %1323 = vector.extract_strided_slice %1277 {offsets = [0, 7], sizes = [8, 1], strides = [1, 1]} : vector<8x8xf32> to vector<8x1xf32>
    %1324 = vector.extract_strided_slice %1275 {offsets = [7, 0], sizes = [1, 256], strides = [1, 1]} : vector<8x256xf32> to vector<1x256xf32>
    %1325 = vector.broadcast %1323 : vector<8x1xf32> to vector<8x256xf32>
    %1326 = vector.broadcast %1324 : vector<1x256xf32> to vector<8x256xf32>
    %1327 = arith.mulf %1325, %1326 : vector<8x256xf32>
    %1328 = arith.addf %1322, %1327 : vector<8x256xf32>
    %1329 = math.cos %1328 : vector<8x256xf32>
    %1330 = arith.mulf %1217, %1329 : vector<8x256xf32>
    %1331 = math.sin %1328 : vector<8x256xf32>
    %1332 = arith.mulf %1217, %1331 : vector<8x256xf32>
    %c0_174 = arith.constant 0 : index
    %c0_175 = arith.constant 0 : index
    %1333 = vector.load %arg5[%c0_174, %c0_175] : memref<256x256xf32, #tpu.memory_space<vmem>>, vector<256x256xf32>
    %cst_176 = arith.constant dense<0.000000e+00> : vector<8x256xf32>
    %1334 = tpu.matmul %1330, %1333, %cst_176 {dimension_numbers = #tpu.dot_dimension_numbers<[1], [0], [0], [1], [0, 0, 1, 1], [], []>} : vector<8x256xf32>, vector<256x256xf32>, vector<8x256xf32> -> vector<8x256xf32>
    %c0_177 = arith.constant 0 : index
    %c0_178 = arith.constant 0 : index
    %1335 = vector.load %arg6[%c0_177, %c0_178] : memref<256x256xf32, #tpu.memory_space<vmem>>, vector<256x256xf32>
    %cst_179 = arith.constant dense<0.000000e+00> : vector<8x256xf32>
    %1336 = tpu.matmul %1332, %1335, %cst_179 {dimension_numbers = #tpu.dot_dimension_numbers<[1], [0], [0], [1], [0, 0, 1, 1], [], []>} : vector<8x256xf32>, vector<256x256xf32>, vector<8x256xf32> -> vector<8x256xf32>
    %1337 = arith.addf %1334, %1336 : vector<8x256xf32>
    %1338 = arith.addf %1337, %1044 : vector<8x256xf32>
    %c23 = arith.constant 23 : index
    %c0_180 = arith.constant 0 : index
    %c0_181 = arith.constant 0 : index
    %1339 = vector.load %arg1[%c23, %c0_180, %c0_181] : memref<30x8x8xf32, #tpu.memory_space<vmem>>, vector<1x8x8xf32>
    %1340 = vector.shape_cast %1339 : vector<1x8x8xf32> to vector<8x8xf32>
    %c23_182 = arith.constant 23 : index
    %c0_183 = arith.constant 0 : index
    %c0_184 = arith.constant 0 : index
    %1341 = vector.load %arg2[%c23_182, %c0_183, %c0_184] : memref<30x8x1xf32, #tpu.memory_space<vmem>>, vector<1x8x1xf32>
    %1342 = vector.shape_cast %1341 : vector<1x8x1xf32> to vector<8x1xf32>
    %1343 = vector.extract_strided_slice %1340 {offsets = [0, 0], sizes = [8, 1], strides = [1, 1]} : vector<8x8xf32> to vector<8x1xf32>
    %1344 = vector.extract_strided_slice %1338 {offsets = [0, 0], sizes = [1, 256], strides = [1, 1]} : vector<8x256xf32> to vector<1x256xf32>
    %1345 = vector.broadcast %1343 : vector<8x1xf32> to vector<8x256xf32>
    %1346 = vector.broadcast %1344 : vector<1x256xf32> to vector<8x256xf32>
    %1347 = arith.mulf %1345, %1346 : vector<8x256xf32>
    %1348 = vector.broadcast %1342 : vector<8x1xf32> to vector<8x256xf32>
    %1349 = arith.addf %1347, %1348 : vector<8x256xf32>
    %1350 = vector.extract_strided_slice %1340 {offsets = [0, 1], sizes = [8, 1], strides = [1, 1]} : vector<8x8xf32> to vector<8x1xf32>
    %1351 = vector.extract_strided_slice %1338 {offsets = [1, 0], sizes = [1, 256], strides = [1, 1]} : vector<8x256xf32> to vector<1x256xf32>
    %1352 = vector.broadcast %1350 : vector<8x1xf32> to vector<8x256xf32>
    %1353 = vector.broadcast %1351 : vector<1x256xf32> to vector<8x256xf32>
    %1354 = arith.mulf %1352, %1353 : vector<8x256xf32>
    %1355 = arith.addf %1349, %1354 : vector<8x256xf32>
    %1356 = vector.extract_strided_slice %1340 {offsets = [0, 2], sizes = [8, 1], strides = [1, 1]} : vector<8x8xf32> to vector<8x1xf32>
    %1357 = vector.extract_strided_slice %1338 {offsets = [2, 0], sizes = [1, 256], strides = [1, 1]} : vector<8x256xf32> to vector<1x256xf32>
    %1358 = vector.broadcast %1356 : vector<8x1xf32> to vector<8x256xf32>
    %1359 = vector.broadcast %1357 : vector<1x256xf32> to vector<8x256xf32>
    %1360 = arith.mulf %1358, %1359 : vector<8x256xf32>
    %1361 = arith.addf %1355, %1360 : vector<8x256xf32>
    %1362 = vector.extract_strided_slice %1340 {offsets = [0, 3], sizes = [8, 1], strides = [1, 1]} : vector<8x8xf32> to vector<8x1xf32>
    %1363 = vector.extract_strided_slice %1338 {offsets = [3, 0], sizes = [1, 256], strides = [1, 1]} : vector<8x256xf32> to vector<1x256xf32>
    %1364 = vector.broadcast %1362 : vector<8x1xf32> to vector<8x256xf32>
    %1365 = vector.broadcast %1363 : vector<1x256xf32> to vector<8x256xf32>
    %1366 = arith.mulf %1364, %1365 : vector<8x256xf32>
    %1367 = arith.addf %1361, %1366 : vector<8x256xf32>
    %1368 = vector.extract_strided_slice %1340 {offsets = [0, 4], sizes = [8, 1], strides = [1, 1]} : vector<8x8xf32> to vector<8x1xf32>
    %1369 = vector.extract_strided_slice %1338 {offsets = [4, 0], sizes = [1, 256], strides = [1, 1]} : vector<8x256xf32> to vector<1x256xf32>
    %1370 = vector.broadcast %1368 : vector<8x1xf32> to vector<8x256xf32>
    %1371 = vector.broadcast %1369 : vector<1x256xf32> to vector<8x256xf32>
    %1372 = arith.mulf %1370, %1371 : vector<8x256xf32>
    %1373 = arith.addf %1367, %1372 : vector<8x256xf32>
    %1374 = vector.extract_strided_slice %1340 {offsets = [0, 5], sizes = [8, 1], strides = [1, 1]} : vector<8x8xf32> to vector<8x1xf32>
    %1375 = vector.extract_strided_slice %1338 {offsets = [5, 0], sizes = [1, 256], strides = [1, 1]} : vector<8x256xf32> to vector<1x256xf32>
    %1376 = vector.broadcast %1374 : vector<8x1xf32> to vector<8x256xf32>
    %1377 = vector.broadcast %1375 : vector<1x256xf32> to vector<8x256xf32>
    %1378 = arith.mulf %1376, %1377 : vector<8x256xf32>
    %1379 = arith.addf %1373, %1378 : vector<8x256xf32>
    %1380 = vector.extract_strided_slice %1340 {offsets = [0, 6], sizes = [8, 1], strides = [1, 1]} : vector<8x8xf32> to vector<8x1xf32>
    %1381 = vector.extract_strided_slice %1338 {offsets = [6, 0], sizes = [1, 256], strides = [1, 1]} : vector<8x256xf32> to vector<1x256xf32>
    %1382 = vector.broadcast %1380 : vector<8x1xf32> to vector<8x256xf32>
    %1383 = vector.broadcast %1381 : vector<1x256xf32> to vector<8x256xf32>
    %1384 = arith.mulf %1382, %1383 : vector<8x256xf32>
    %1385 = arith.addf %1379, %1384 : vector<8x256xf32>
    %1386 = vector.extract_strided_slice %1340 {offsets = [0, 7], sizes = [8, 1], strides = [1, 1]} : vector<8x8xf32> to vector<8x1xf32>
    %1387 = vector.extract_strided_slice %1338 {offsets = [7, 0], sizes = [1, 256], strides = [1, 1]} : vector<8x256xf32> to vector<1x256xf32>
    %1388 = vector.broadcast %1386 : vector<8x1xf32> to vector<8x256xf32>
    %1389 = vector.broadcast %1387 : vector<1x256xf32> to vector<8x256xf32>
    %1390 = arith.mulf %1388, %1389 : vector<8x256xf32>
    %1391 = arith.addf %1385, %1390 : vector<8x256xf32>
    %1392 = arith.addf %1391, %1044 : vector<8x256xf32>
    %c24 = arith.constant 24 : index
    %c0_185 = arith.constant 0 : index
    %c0_186 = arith.constant 0 : index
    %1393 = vector.load %arg1[%c24, %c0_185, %c0_186] : memref<30x8x8xf32, #tpu.memory_space<vmem>>, vector<1x8x8xf32>
    %1394 = vector.shape_cast %1393 : vector<1x8x8xf32> to vector<8x8xf32>
    %c24_187 = arith.constant 24 : index
    %c0_188 = arith.constant 0 : index
    %c0_189 = arith.constant 0 : index
    %1395 = vector.load %arg2[%c24_187, %c0_188, %c0_189] : memref<30x8x1xf32, #tpu.memory_space<vmem>>, vector<1x8x1xf32>
    %1396 = vector.shape_cast %1395 : vector<1x8x1xf32> to vector<8x1xf32>
    %1397 = vector.extract_strided_slice %1394 {offsets = [0, 0], sizes = [8, 1], strides = [1, 1]} : vector<8x8xf32> to vector<8x1xf32>
    %1398 = vector.extract_strided_slice %1392 {offsets = [0, 0], sizes = [1, 256], strides = [1, 1]} : vector<8x256xf32> to vector<1x256xf32>
    %1399 = vector.broadcast %1397 : vector<8x1xf32> to vector<8x256xf32>
    %1400 = vector.broadcast %1398 : vector<1x256xf32> to vector<8x256xf32>
    %1401 = arith.mulf %1399, %1400 : vector<8x256xf32>
    %1402 = vector.broadcast %1396 : vector<8x1xf32> to vector<8x256xf32>
    %1403 = arith.addf %1401, %1402 : vector<8x256xf32>
    %1404 = vector.extract_strided_slice %1394 {offsets = [0, 1], sizes = [8, 1], strides = [1, 1]} : vector<8x8xf32> to vector<8x1xf32>
    %1405 = vector.extract_strided_slice %1392 {offsets = [1, 0], sizes = [1, 256], strides = [1, 1]} : vector<8x256xf32> to vector<1x256xf32>
    %1406 = vector.broadcast %1404 : vector<8x1xf32> to vector<8x256xf32>
    %1407 = vector.broadcast %1405 : vector<1x256xf32> to vector<8x256xf32>
    %1408 = arith.mulf %1406, %1407 : vector<8x256xf32>
    %1409 = arith.addf %1403, %1408 : vector<8x256xf32>
    %1410 = vector.extract_strided_slice %1394 {offsets = [0, 2], sizes = [8, 1], strides = [1, 1]} : vector<8x8xf32> to vector<8x1xf32>
    %1411 = vector.extract_strided_slice %1392 {offsets = [2, 0], sizes = [1, 256], strides = [1, 1]} : vector<8x256xf32> to vector<1x256xf32>
    %1412 = vector.broadcast %1410 : vector<8x1xf32> to vector<8x256xf32>
    %1413 = vector.broadcast %1411 : vector<1x256xf32> to vector<8x256xf32>
    %1414 = arith.mulf %1412, %1413 : vector<8x256xf32>
    %1415 = arith.addf %1409, %1414 : vector<8x256xf32>
    %1416 = vector.extract_strided_slice %1394 {offsets = [0, 3], sizes = [8, 1], strides = [1, 1]} : vector<8x8xf32> to vector<8x1xf32>
    %1417 = vector.extract_strided_slice %1392 {offsets = [3, 0], sizes = [1, 256], strides = [1, 1]} : vector<8x256xf32> to vector<1x256xf32>
    %1418 = vector.broadcast %1416 : vector<8x1xf32> to vector<8x256xf32>
    %1419 = vector.broadcast %1417 : vector<1x256xf32> to vector<8x256xf32>
    %1420 = arith.mulf %1418, %1419 : vector<8x256xf32>
    %1421 = arith.addf %1415, %1420 : vector<8x256xf32>
    %1422 = vector.extract_strided_slice %1394 {offsets = [0, 4], sizes = [8, 1], strides = [1, 1]} : vector<8x8xf32> to vector<8x1xf32>
    %1423 = vector.extract_strided_slice %1392 {offsets = [4, 0], sizes = [1, 256], strides = [1, 1]} : vector<8x256xf32> to vector<1x256xf32>
    %1424 = vector.broadcast %1422 : vector<8x1xf32> to vector<8x256xf32>
    %1425 = vector.broadcast %1423 : vector<1x256xf32> to vector<8x256xf32>
    %1426 = arith.mulf %1424, %1425 : vector<8x256xf32>
    %1427 = arith.addf %1421, %1426 : vector<8x256xf32>
    %1428 = vector.extract_strided_slice %1394 {offsets = [0, 5], sizes = [8, 1], strides = [1, 1]} : vector<8x8xf32> to vector<8x1xf32>
    %1429 = vector.extract_strided_slice %1392 {offsets = [5, 0], sizes = [1, 256], strides = [1, 1]} : vector<8x256xf32> to vector<1x256xf32>
    %1430 = vector.broadcast %1428 : vector<8x1xf32> to vector<8x256xf32>
    %1431 = vector.broadcast %1429 : vector<1x256xf32> to vector<8x256xf32>
    %1432 = arith.mulf %1430, %1431 : vector<8x256xf32>
    %1433 = arith.addf %1427, %1432 : vector<8x256xf32>
    %1434 = vector.extract_strided_slice %1394 {offsets = [0, 6], sizes = [8, 1], strides = [1, 1]} : vector<8x8xf32> to vector<8x1xf32>
    %1435 = vector.extract_strided_slice %1392 {offsets = [6, 0], sizes = [1, 256], strides = [1, 1]} : vector<8x256xf32> to vector<1x256xf32>
    %1436 = vector.broadcast %1434 : vector<8x1xf32> to vector<8x256xf32>
    %1437 = vector.broadcast %1435 : vector<1x256xf32> to vector<8x256xf32>
    %1438 = arith.mulf %1436, %1437 : vector<8x256xf32>
    %1439 = arith.addf %1433, %1438 : vector<8x256xf32>
    %1440 = vector.extract_strided_slice %1394 {offsets = [0, 7], sizes = [8, 1], strides = [1, 1]} : vector<8x8xf32> to vector<8x1xf32>
    %1441 = vector.extract_strided_slice %1392 {offsets = [7, 0], sizes = [1, 256], strides = [1, 1]} : vector<8x256xf32> to vector<1x256xf32>
    %1442 = vector.broadcast %1440 : vector<8x1xf32> to vector<8x256xf32>
    %1443 = vector.broadcast %1441 : vector<1x256xf32> to vector<8x256xf32>
    %1444 = arith.mulf %1442, %1443 : vector<8x256xf32>
    %1445 = arith.addf %1439, %1444 : vector<8x256xf32>
    %c0_190 = arith.constant 0 : index
    %c0_191 = arith.constant 0 : index
    %1446 = vector.load %arg3[%c0_190, %c0_191] : memref<256x256xf32, #tpu.memory_space<vmem>>, vector<256x256xf32>
    %cst_192 = arith.constant dense<0.000000e+00> : vector<8x256xf32>
    %1447 = tpu.matmul %1445, %1446, %cst_192 {dimension_numbers = #tpu.dot_dimension_numbers<[1], [0], [0], [1], [0, 0, 1, 1], [], []>} : vector<8x256xf32>, vector<256x256xf32>, vector<8x256xf32> -> vector<8x256xf32>
    %c0_193 = arith.constant 0 : index
    %c0_194 = arith.constant 0 : index
    %1448 = vector.load %arg4[%c0_193, %c0_194] : memref<256x256xf32, #tpu.memory_space<vmem>>, vector<256x256xf32>
    %cst_195 = arith.constant dense<0.000000e+00> : vector<8x256xf32>
    %1449 = tpu.matmul %1445, %1448, %cst_195 {dimension_numbers = #tpu.dot_dimension_numbers<[1], [0], [0], [1], [0, 0, 1, 1], [], []>} : vector<8x256xf32>, vector<256x256xf32>, vector<8x256xf32> -> vector<8x256xf32>
    %1450 = arith.mulf %1447, %1447 : vector<8x256xf32>
    %1451 = arith.mulf %1449, %1449 : vector<8x256xf32>
    %1452 = arith.addf %1450, %1451 : vector<8x256xf32>
    %1453 = math.sqrt %1452 : vector<8x256xf32>
    %1454 = math.atan2 %1449, %1447 : vector<8x256xf32>
    %c25 = arith.constant 25 : index
    %c0_196 = arith.constant 0 : index
    %c0_197 = arith.constant 0 : index
    %1455 = vector.load %arg1[%c25, %c0_196, %c0_197] : memref<30x8x8xf32, #tpu.memory_space<vmem>>, vector<1x8x8xf32>
    %1456 = vector.shape_cast %1455 : vector<1x8x8xf32> to vector<8x8xf32>
    %c25_198 = arith.constant 25 : index
    %c0_199 = arith.constant 0 : index
    %c0_200 = arith.constant 0 : index
    %1457 = vector.load %arg2[%c25_198, %c0_199, %c0_200] : memref<30x8x1xf32, #tpu.memory_space<vmem>>, vector<1x8x1xf32>
    %1458 = vector.shape_cast %1457 : vector<1x8x1xf32> to vector<8x1xf32>
    %1459 = vector.extract_strided_slice %1456 {offsets = [0, 0], sizes = [8, 1], strides = [1, 1]} : vector<8x8xf32> to vector<8x1xf32>
    %1460 = vector.extract_strided_slice %1453 {offsets = [0, 0], sizes = [1, 256], strides = [1, 1]} : vector<8x256xf32> to vector<1x256xf32>
    %1461 = vector.broadcast %1459 : vector<8x1xf32> to vector<8x256xf32>
    %1462 = vector.broadcast %1460 : vector<1x256xf32> to vector<8x256xf32>
    %1463 = arith.mulf %1461, %1462 : vector<8x256xf32>
    %1464 = vector.broadcast %1458 : vector<8x1xf32> to vector<8x256xf32>
    %1465 = arith.addf %1463, %1464 : vector<8x256xf32>
    %1466 = vector.extract_strided_slice %1456 {offsets = [0, 1], sizes = [8, 1], strides = [1, 1]} : vector<8x8xf32> to vector<8x1xf32>
    %1467 = vector.extract_strided_slice %1453 {offsets = [1, 0], sizes = [1, 256], strides = [1, 1]} : vector<8x256xf32> to vector<1x256xf32>
    %1468 = vector.broadcast %1466 : vector<8x1xf32> to vector<8x256xf32>
    %1469 = vector.broadcast %1467 : vector<1x256xf32> to vector<8x256xf32>
    %1470 = arith.mulf %1468, %1469 : vector<8x256xf32>
    %1471 = arith.addf %1465, %1470 : vector<8x256xf32>
    %1472 = vector.extract_strided_slice %1456 {offsets = [0, 2], sizes = [8, 1], strides = [1, 1]} : vector<8x8xf32> to vector<8x1xf32>
    %1473 = vector.extract_strided_slice %1453 {offsets = [2, 0], sizes = [1, 256], strides = [1, 1]} : vector<8x256xf32> to vector<1x256xf32>
    %1474 = vector.broadcast %1472 : vector<8x1xf32> to vector<8x256xf32>
    %1475 = vector.broadcast %1473 : vector<1x256xf32> to vector<8x256xf32>
    %1476 = arith.mulf %1474, %1475 : vector<8x256xf32>
    %1477 = arith.addf %1471, %1476 : vector<8x256xf32>
    %1478 = vector.extract_strided_slice %1456 {offsets = [0, 3], sizes = [8, 1], strides = [1, 1]} : vector<8x8xf32> to vector<8x1xf32>
    %1479 = vector.extract_strided_slice %1453 {offsets = [3, 0], sizes = [1, 256], strides = [1, 1]} : vector<8x256xf32> to vector<1x256xf32>
    %1480 = vector.broadcast %1478 : vector<8x1xf32> to vector<8x256xf32>
    %1481 = vector.broadcast %1479 : vector<1x256xf32> to vector<8x256xf32>
    %1482 = arith.mulf %1480, %1481 : vector<8x256xf32>
    %1483 = arith.addf %1477, %1482 : vector<8x256xf32>
    %1484 = vector.extract_strided_slice %1456 {offsets = [0, 4], sizes = [8, 1], strides = [1, 1]} : vector<8x8xf32> to vector<8x1xf32>
    %1485 = vector.extract_strided_slice %1453 {offsets = [4, 0], sizes = [1, 256], strides = [1, 1]} : vector<8x256xf32> to vector<1x256xf32>
    %1486 = vector.broadcast %1484 : vector<8x1xf32> to vector<8x256xf32>
    %1487 = vector.broadcast %1485 : vector<1x256xf32> to vector<8x256xf32>
    %1488 = arith.mulf %1486, %1487 : vector<8x256xf32>
    %1489 = arith.addf %1483, %1488 : vector<8x256xf32>
    %1490 = vector.extract_strided_slice %1456 {offsets = [0, 5], sizes = [8, 1], strides = [1, 1]} : vector<8x8xf32> to vector<8x1xf32>
    %1491 = vector.extract_strided_slice %1453 {offsets = [5, 0], sizes = [1, 256], strides = [1, 1]} : vector<8x256xf32> to vector<1x256xf32>
    %1492 = vector.broadcast %1490 : vector<8x1xf32> to vector<8x256xf32>
    %1493 = vector.broadcast %1491 : vector<1x256xf32> to vector<8x256xf32>
    %1494 = arith.mulf %1492, %1493 : vector<8x256xf32>
    %1495 = arith.addf %1489, %1494 : vector<8x256xf32>
    %1496 = vector.extract_strided_slice %1456 {offsets = [0, 6], sizes = [8, 1], strides = [1, 1]} : vector<8x8xf32> to vector<8x1xf32>
    %1497 = vector.extract_strided_slice %1453 {offsets = [6, 0], sizes = [1, 256], strides = [1, 1]} : vector<8x256xf32> to vector<1x256xf32>
    %1498 = vector.broadcast %1496 : vector<8x1xf32> to vector<8x256xf32>
    %1499 = vector.broadcast %1497 : vector<1x256xf32> to vector<8x256xf32>
    %1500 = arith.mulf %1498, %1499 : vector<8x256xf32>
    %1501 = arith.addf %1495, %1500 : vector<8x256xf32>
    %1502 = vector.extract_strided_slice %1456 {offsets = [0, 7], sizes = [8, 1], strides = [1, 1]} : vector<8x8xf32> to vector<8x1xf32>
    %1503 = vector.extract_strided_slice %1453 {offsets = [7, 0], sizes = [1, 256], strides = [1, 1]} : vector<8x256xf32> to vector<1x256xf32>
    %1504 = vector.broadcast %1502 : vector<8x1xf32> to vector<8x256xf32>
    %1505 = vector.broadcast %1503 : vector<1x256xf32> to vector<8x256xf32>
    %1506 = arith.mulf %1504, %1505 : vector<8x256xf32>
    %1507 = arith.addf %1501, %1506 : vector<8x256xf32>
    %cst_201 = arith.constant 0.000000e+00 : f32
    %1508 = vector.broadcast %cst_201 : f32 to vector<8x256xf32>
    %1509 = arith.cmpf oge, %1507, %1508 : vector<8x256xf32>
    %cst_202 = arith.constant 1.000000e-01 : f32
    %1510 = vector.broadcast %cst_202 : f32 to vector<8x256xf32>
    %1511 = arith.mulf %1510, %1507 : vector<8x256xf32>
    %1512 = arith.select %1509, %1507, %1511 : vector<8x256xi1>, vector<8x256xf32>
    %c26 = arith.constant 26 : index
    %c0_203 = arith.constant 0 : index
    %c0_204 = arith.constant 0 : index
    %1513 = vector.load %arg1[%c26, %c0_203, %c0_204] : memref<30x8x8xf32, #tpu.memory_space<vmem>>, vector<1x8x8xf32>
    %1514 = vector.shape_cast %1513 : vector<1x8x8xf32> to vector<8x8xf32>
    %c26_205 = arith.constant 26 : index
    %c0_206 = arith.constant 0 : index
    %c0_207 = arith.constant 0 : index
    %1515 = vector.load %arg2[%c26_205, %c0_206, %c0_207] : memref<30x8x1xf32, #tpu.memory_space<vmem>>, vector<1x8x1xf32>
    %1516 = vector.shape_cast %1515 : vector<1x8x1xf32> to vector<8x1xf32>
    %1517 = vector.extract_strided_slice %1514 {offsets = [0, 0], sizes = [8, 1], strides = [1, 1]} : vector<8x8xf32> to vector<8x1xf32>
    %1518 = vector.extract_strided_slice %1512 {offsets = [0, 0], sizes = [1, 256], strides = [1, 1]} : vector<8x256xf32> to vector<1x256xf32>
    %1519 = vector.broadcast %1517 : vector<8x1xf32> to vector<8x256xf32>
    %1520 = vector.broadcast %1518 : vector<1x256xf32> to vector<8x256xf32>
    %1521 = arith.mulf %1519, %1520 : vector<8x256xf32>
    %1522 = vector.broadcast %1516 : vector<8x1xf32> to vector<8x256xf32>
    %1523 = arith.addf %1521, %1522 : vector<8x256xf32>
    %1524 = vector.extract_strided_slice %1514 {offsets = [0, 1], sizes = [8, 1], strides = [1, 1]} : vector<8x8xf32> to vector<8x1xf32>
    %1525 = vector.extract_strided_slice %1512 {offsets = [1, 0], sizes = [1, 256], strides = [1, 1]} : vector<8x256xf32> to vector<1x256xf32>
    %1526 = vector.broadcast %1524 : vector<8x1xf32> to vector<8x256xf32>
    %1527 = vector.broadcast %1525 : vector<1x256xf32> to vector<8x256xf32>
    %1528 = arith.mulf %1526, %1527 : vector<8x256xf32>
    %1529 = arith.addf %1523, %1528 : vector<8x256xf32>
    %1530 = vector.extract_strided_slice %1514 {offsets = [0, 2], sizes = [8, 1], strides = [1, 1]} : vector<8x8xf32> to vector<8x1xf32>
    %1531 = vector.extract_strided_slice %1512 {offsets = [2, 0], sizes = [1, 256], strides = [1, 1]} : vector<8x256xf32> to vector<1x256xf32>
    %1532 = vector.broadcast %1530 : vector<8x1xf32> to vector<8x256xf32>
    %1533 = vector.broadcast %1531 : vector<1x256xf32> to vector<8x256xf32>
    %1534 = arith.mulf %1532, %1533 : vector<8x256xf32>
    %1535 = arith.addf %1529, %1534 : vector<8x256xf32>
    %1536 = vector.extract_strided_slice %1514 {offsets = [0, 3], sizes = [8, 1], strides = [1, 1]} : vector<8x8xf32> to vector<8x1xf32>
    %1537 = vector.extract_strided_slice %1512 {offsets = [3, 0], sizes = [1, 256], strides = [1, 1]} : vector<8x256xf32> to vector<1x256xf32>
    %1538 = vector.broadcast %1536 : vector<8x1xf32> to vector<8x256xf32>
    %1539 = vector.broadcast %1537 : vector<1x256xf32> to vector<8x256xf32>
    %1540 = arith.mulf %1538, %1539 : vector<8x256xf32>
    %1541 = arith.addf %1535, %1540 : vector<8x256xf32>
    %1542 = vector.extract_strided_slice %1514 {offsets = [0, 4], sizes = [8, 1], strides = [1, 1]} : vector<8x8xf32> to vector<8x1xf32>
    %1543 = vector.extract_strided_slice %1512 {offsets = [4, 0], sizes = [1, 256], strides = [1, 1]} : vector<8x256xf32> to vector<1x256xf32>
    %1544 = vector.broadcast %1542 : vector<8x1xf32> to vector<8x256xf32>
    %1545 = vector.broadcast %1543 : vector<1x256xf32> to vector<8x256xf32>
    %1546 = arith.mulf %1544, %1545 : vector<8x256xf32>
    %1547 = arith.addf %1541, %1546 : vector<8x256xf32>
    %1548 = vector.extract_strided_slice %1514 {offsets = [0, 5], sizes = [8, 1], strides = [1, 1]} : vector<8x8xf32> to vector<8x1xf32>
    %1549 = vector.extract_strided_slice %1512 {offsets = [5, 0], sizes = [1, 256], strides = [1, 1]} : vector<8x256xf32> to vector<1x256xf32>
    %1550 = vector.broadcast %1548 : vector<8x1xf32> to vector<8x256xf32>
    %1551 = vector.broadcast %1549 : vector<1x256xf32> to vector<8x256xf32>
    %1552 = arith.mulf %1550, %1551 : vector<8x256xf32>
    %1553 = arith.addf %1547, %1552 : vector<8x256xf32>
    %1554 = vector.extract_strided_slice %1514 {offsets = [0, 6], sizes = [8, 1], strides = [1, 1]} : vector<8x8xf32> to vector<8x1xf32>
    %1555 = vector.extract_strided_slice %1512 {offsets = [6, 0], sizes = [1, 256], strides = [1, 1]} : vector<8x256xf32> to vector<1x256xf32>
    %1556 = vector.broadcast %1554 : vector<8x1xf32> to vector<8x256xf32>
    %1557 = vector.broadcast %1555 : vector<1x256xf32> to vector<8x256xf32>
    %1558 = arith.mulf %1556, %1557 : vector<8x256xf32>
    %1559 = arith.addf %1553, %1558 : vector<8x256xf32>
    %1560 = vector.extract_strided_slice %1514 {offsets = [0, 7], sizes = [8, 1], strides = [1, 1]} : vector<8x8xf32> to vector<8x1xf32>
    %1561 = vector.extract_strided_slice %1512 {offsets = [7, 0], sizes = [1, 256], strides = [1, 1]} : vector<8x256xf32> to vector<1x256xf32>
    %1562 = vector.broadcast %1560 : vector<8x1xf32> to vector<8x256xf32>
    %1563 = vector.broadcast %1561 : vector<1x256xf32> to vector<8x256xf32>
    %1564 = arith.mulf %1562, %1563 : vector<8x256xf32>
    %1565 = arith.addf %1559, %1564 : vector<8x256xf32>
    %c27 = arith.constant 27 : index
    %c0_208 = arith.constant 0 : index
    %c0_209 = arith.constant 0 : index
    %1566 = vector.load %arg1[%c27, %c0_208, %c0_209] : memref<30x8x8xf32, #tpu.memory_space<vmem>>, vector<1x8x8xf32>
    %1567 = vector.shape_cast %1566 : vector<1x8x8xf32> to vector<8x8xf32>
    %c27_210 = arith.constant 27 : index
    %c0_211 = arith.constant 0 : index
    %c0_212 = arith.constant 0 : index
    %1568 = vector.load %arg2[%c27_210, %c0_211, %c0_212] : memref<30x8x1xf32, #tpu.memory_space<vmem>>, vector<1x8x1xf32>
    %1569 = vector.shape_cast %1568 : vector<1x8x1xf32> to vector<8x1xf32>
    %1570 = vector.extract_strided_slice %1567 {offsets = [0, 0], sizes = [8, 1], strides = [1, 1]} : vector<8x8xf32> to vector<8x1xf32>
    %1571 = vector.extract_strided_slice %1454 {offsets = [0, 0], sizes = [1, 256], strides = [1, 1]} : vector<8x256xf32> to vector<1x256xf32>
    %1572 = vector.broadcast %1570 : vector<8x1xf32> to vector<8x256xf32>
    %1573 = vector.broadcast %1571 : vector<1x256xf32> to vector<8x256xf32>
    %1574 = arith.mulf %1572, %1573 : vector<8x256xf32>
    %1575 = vector.broadcast %1569 : vector<8x1xf32> to vector<8x256xf32>
    %1576 = arith.addf %1574, %1575 : vector<8x256xf32>
    %1577 = vector.extract_strided_slice %1567 {offsets = [0, 1], sizes = [8, 1], strides = [1, 1]} : vector<8x8xf32> to vector<8x1xf32>
    %1578 = vector.extract_strided_slice %1454 {offsets = [1, 0], sizes = [1, 256], strides = [1, 1]} : vector<8x256xf32> to vector<1x256xf32>
    %1579 = vector.broadcast %1577 : vector<8x1xf32> to vector<8x256xf32>
    %1580 = vector.broadcast %1578 : vector<1x256xf32> to vector<8x256xf32>
    %1581 = arith.mulf %1579, %1580 : vector<8x256xf32>
    %1582 = arith.addf %1576, %1581 : vector<8x256xf32>
    %1583 = vector.extract_strided_slice %1567 {offsets = [0, 2], sizes = [8, 1], strides = [1, 1]} : vector<8x8xf32> to vector<8x1xf32>
    %1584 = vector.extract_strided_slice %1454 {offsets = [2, 0], sizes = [1, 256], strides = [1, 1]} : vector<8x256xf32> to vector<1x256xf32>
    %1585 = vector.broadcast %1583 : vector<8x1xf32> to vector<8x256xf32>
    %1586 = vector.broadcast %1584 : vector<1x256xf32> to vector<8x256xf32>
    %1587 = arith.mulf %1585, %1586 : vector<8x256xf32>
    %1588 = arith.addf %1582, %1587 : vector<8x256xf32>
    %1589 = vector.extract_strided_slice %1567 {offsets = [0, 3], sizes = [8, 1], strides = [1, 1]} : vector<8x8xf32> to vector<8x1xf32>
    %1590 = vector.extract_strided_slice %1454 {offsets = [3, 0], sizes = [1, 256], strides = [1, 1]} : vector<8x256xf32> to vector<1x256xf32>
    %1591 = vector.broadcast %1589 : vector<8x1xf32> to vector<8x256xf32>
    %1592 = vector.broadcast %1590 : vector<1x256xf32> to vector<8x256xf32>
    %1593 = arith.mulf %1591, %1592 : vector<8x256xf32>
    %1594 = arith.addf %1588, %1593 : vector<8x256xf32>
    %1595 = vector.extract_strided_slice %1567 {offsets = [0, 4], sizes = [8, 1], strides = [1, 1]} : vector<8x8xf32> to vector<8x1xf32>
    %1596 = vector.extract_strided_slice %1454 {offsets = [4, 0], sizes = [1, 256], strides = [1, 1]} : vector<8x256xf32> to vector<1x256xf32>
    %1597 = vector.broadcast %1595 : vector<8x1xf32> to vector<8x256xf32>
    %1598 = vector.broadcast %1596 : vector<1x256xf32> to vector<8x256xf32>
    %1599 = arith.mulf %1597, %1598 : vector<8x256xf32>
    %1600 = arith.addf %1594, %1599 : vector<8x256xf32>
    %1601 = vector.extract_strided_slice %1567 {offsets = [0, 5], sizes = [8, 1], strides = [1, 1]} : vector<8x8xf32> to vector<8x1xf32>
    %1602 = vector.extract_strided_slice %1454 {offsets = [5, 0], sizes = [1, 256], strides = [1, 1]} : vector<8x256xf32> to vector<1x256xf32>
    %1603 = vector.broadcast %1601 : vector<8x1xf32> to vector<8x256xf32>
    %1604 = vector.broadcast %1602 : vector<1x256xf32> to vector<8x256xf32>
    %1605 = arith.mulf %1603, %1604 : vector<8x256xf32>
    %1606 = arith.addf %1600, %1605 : vector<8x256xf32>
    %1607 = vector.extract_strided_slice %1567 {offsets = [0, 6], sizes = [8, 1], strides = [1, 1]} : vector<8x8xf32> to vector<8x1xf32>
    %1608 = vector.extract_strided_slice %1454 {offsets = [6, 0], sizes = [1, 256], strides = [1, 1]} : vector<8x256xf32> to vector<1x256xf32>
    %1609 = vector.broadcast %1607 : vector<8x1xf32> to vector<8x256xf32>
    %1610 = vector.broadcast %1608 : vector<1x256xf32> to vector<8x256xf32>
    %1611 = arith.mulf %1609, %1610 : vector<8x256xf32>
    %1612 = arith.addf %1606, %1611 : vector<8x256xf32>
    %1613 = vector.extract_strided_slice %1567 {offsets = [0, 7], sizes = [8, 1], strides = [1, 1]} : vector<8x8xf32> to vector<8x1xf32>
    %1614 = vector.extract_strided_slice %1454 {offsets = [7, 0], sizes = [1, 256], strides = [1, 1]} : vector<8x256xf32> to vector<1x256xf32>
    %1615 = vector.broadcast %1613 : vector<8x1xf32> to vector<8x256xf32>
    %1616 = vector.broadcast %1614 : vector<1x256xf32> to vector<8x256xf32>
    %1617 = arith.mulf %1615, %1616 : vector<8x256xf32>
    %1618 = arith.addf %1612, %1617 : vector<8x256xf32>
    %cst_213 = arith.constant 0.000000e+00 : f32
    %1619 = vector.broadcast %cst_213 : f32 to vector<8x256xf32>
    %1620 = arith.cmpf oge, %1618, %1619 : vector<8x256xf32>
    %cst_214 = arith.constant 1.000000e-01 : f32
    %1621 = vector.broadcast %cst_214 : f32 to vector<8x256xf32>
    %1622 = arith.mulf %1621, %1618 : vector<8x256xf32>
    %1623 = arith.select %1620, %1618, %1622 : vector<8x256xi1>, vector<8x256xf32>
    %c28 = arith.constant 28 : index
    %c0_215 = arith.constant 0 : index
    %c0_216 = arith.constant 0 : index
    %1624 = vector.load %arg1[%c28, %c0_215, %c0_216] : memref<30x8x8xf32, #tpu.memory_space<vmem>>, vector<1x8x8xf32>
    %1625 = vector.shape_cast %1624 : vector<1x8x8xf32> to vector<8x8xf32>
    %c28_217 = arith.constant 28 : index
    %c0_218 = arith.constant 0 : index
    %c0_219 = arith.constant 0 : index
    %1626 = vector.load %arg2[%c28_217, %c0_218, %c0_219] : memref<30x8x1xf32, #tpu.memory_space<vmem>>, vector<1x8x1xf32>
    %1627 = vector.shape_cast %1626 : vector<1x8x1xf32> to vector<8x1xf32>
    %1628 = vector.extract_strided_slice %1625 {offsets = [0, 0], sizes = [8, 1], strides = [1, 1]} : vector<8x8xf32> to vector<8x1xf32>
    %1629 = vector.extract_strided_slice %1623 {offsets = [0, 0], sizes = [1, 256], strides = [1, 1]} : vector<8x256xf32> to vector<1x256xf32>
    %1630 = vector.broadcast %1628 : vector<8x1xf32> to vector<8x256xf32>
    %1631 = vector.broadcast %1629 : vector<1x256xf32> to vector<8x256xf32>
    %1632 = arith.mulf %1630, %1631 : vector<8x256xf32>
    %1633 = vector.broadcast %1627 : vector<8x1xf32> to vector<8x256xf32>
    %1634 = arith.addf %1632, %1633 : vector<8x256xf32>
    %1635 = vector.extract_strided_slice %1625 {offsets = [0, 1], sizes = [8, 1], strides = [1, 1]} : vector<8x8xf32> to vector<8x1xf32>
    %1636 = vector.extract_strided_slice %1623 {offsets = [1, 0], sizes = [1, 256], strides = [1, 1]} : vector<8x256xf32> to vector<1x256xf32>
    %1637 = vector.broadcast %1635 : vector<8x1xf32> to vector<8x256xf32>
    %1638 = vector.broadcast %1636 : vector<1x256xf32> to vector<8x256xf32>
    %1639 = arith.mulf %1637, %1638 : vector<8x256xf32>
    %1640 = arith.addf %1634, %1639 : vector<8x256xf32>
    %1641 = vector.extract_strided_slice %1625 {offsets = [0, 2], sizes = [8, 1], strides = [1, 1]} : vector<8x8xf32> to vector<8x1xf32>
    %1642 = vector.extract_strided_slice %1623 {offsets = [2, 0], sizes = [1, 256], strides = [1, 1]} : vector<8x256xf32> to vector<1x256xf32>
    %1643 = vector.broadcast %1641 : vector<8x1xf32> to vector<8x256xf32>
    %1644 = vector.broadcast %1642 : vector<1x256xf32> to vector<8x256xf32>
    %1645 = arith.mulf %1643, %1644 : vector<8x256xf32>
    %1646 = arith.addf %1640, %1645 : vector<8x256xf32>
    %1647 = vector.extract_strided_slice %1625 {offsets = [0, 3], sizes = [8, 1], strides = [1, 1]} : vector<8x8xf32> to vector<8x1xf32>
    %1648 = vector.extract_strided_slice %1623 {offsets = [3, 0], sizes = [1, 256], strides = [1, 1]} : vector<8x256xf32> to vector<1x256xf32>
    %1649 = vector.broadcast %1647 : vector<8x1xf32> to vector<8x256xf32>
    %1650 = vector.broadcast %1648 : vector<1x256xf32> to vector<8x256xf32>
    %1651 = arith.mulf %1649, %1650 : vector<8x256xf32>
    %1652 = arith.addf %1646, %1651 : vector<8x256xf32>
    %1653 = vector.extract_strided_slice %1625 {offsets = [0, 4], sizes = [8, 1], strides = [1, 1]} : vector<8x8xf32> to vector<8x1xf32>
    %1654 = vector.extract_strided_slice %1623 {offsets = [4, 0], sizes = [1, 256], strides = [1, 1]} : vector<8x256xf32> to vector<1x256xf32>
    %1655 = vector.broadcast %1653 : vector<8x1xf32> to vector<8x256xf32>
    %1656 = vector.broadcast %1654 : vector<1x256xf32> to vector<8x256xf32>
    %1657 = arith.mulf %1655, %1656 : vector<8x256xf32>
    %1658 = arith.addf %1652, %1657 : vector<8x256xf32>
    %1659 = vector.extract_strided_slice %1625 {offsets = [0, 5], sizes = [8, 1], strides = [1, 1]} : vector<8x8xf32> to vector<8x1xf32>
    %1660 = vector.extract_strided_slice %1623 {offsets = [5, 0], sizes = [1, 256], strides = [1, 1]} : vector<8x256xf32> to vector<1x256xf32>
    %1661 = vector.broadcast %1659 : vector<8x1xf32> to vector<8x256xf32>
    %1662 = vector.broadcast %1660 : vector<1x256xf32> to vector<8x256xf32>
    %1663 = arith.mulf %1661, %1662 : vector<8x256xf32>
    %1664 = arith.addf %1658, %1663 : vector<8x256xf32>
    %1665 = vector.extract_strided_slice %1625 {offsets = [0, 6], sizes = [8, 1], strides = [1, 1]} : vector<8x8xf32> to vector<8x1xf32>
    %1666 = vector.extract_strided_slice %1623 {offsets = [6, 0], sizes = [1, 256], strides = [1, 1]} : vector<8x256xf32> to vector<1x256xf32>
    %1667 = vector.broadcast %1665 : vector<8x1xf32> to vector<8x256xf32>
    %1668 = vector.broadcast %1666 : vector<1x256xf32> to vector<8x256xf32>
    %1669 = arith.mulf %1667, %1668 : vector<8x256xf32>
    %1670 = arith.addf %1664, %1669 : vector<8x256xf32>
    %1671 = vector.extract_strided_slice %1625 {offsets = [0, 7], sizes = [8, 1], strides = [1, 1]} : vector<8x8xf32> to vector<8x1xf32>
    %1672 = vector.extract_strided_slice %1623 {offsets = [7, 0], sizes = [1, 256], strides = [1, 1]} : vector<8x256xf32> to vector<1x256xf32>
    %1673 = vector.broadcast %1671 : vector<8x1xf32> to vector<8x256xf32>
    %1674 = vector.broadcast %1672 : vector<1x256xf32> to vector<8x256xf32>
    %1675 = arith.mulf %1673, %1674 : vector<8x256xf32>
    %1676 = arith.addf %1670, %1675 : vector<8x256xf32>
    %1677 = math.cos %1676 : vector<8x256xf32>
    %1678 = arith.mulf %1565, %1677 : vector<8x256xf32>
    %1679 = math.sin %1676 : vector<8x256xf32>
    %1680 = arith.mulf %1565, %1679 : vector<8x256xf32>
    %c0_220 = arith.constant 0 : index
    %c0_221 = arith.constant 0 : index
    %1681 = vector.load %arg5[%c0_220, %c0_221] : memref<256x256xf32, #tpu.memory_space<vmem>>, vector<256x256xf32>
    %cst_222 = arith.constant dense<0.000000e+00> : vector<8x256xf32>
    %1682 = tpu.matmul %1678, %1681, %cst_222 {dimension_numbers = #tpu.dot_dimension_numbers<[1], [0], [0], [1], [0, 0, 1, 1], [], []>} : vector<8x256xf32>, vector<256x256xf32>, vector<8x256xf32> -> vector<8x256xf32>
    %c0_223 = arith.constant 0 : index
    %c0_224 = arith.constant 0 : index
    %1683 = vector.load %arg6[%c0_223, %c0_224] : memref<256x256xf32, #tpu.memory_space<vmem>>, vector<256x256xf32>
    %cst_225 = arith.constant dense<0.000000e+00> : vector<8x256xf32>
    %1684 = tpu.matmul %1680, %1683, %cst_225 {dimension_numbers = #tpu.dot_dimension_numbers<[1], [0], [0], [1], [0, 0, 1, 1], [], []>} : vector<8x256xf32>, vector<256x256xf32>, vector<8x256xf32> -> vector<8x256xf32>
    %1685 = arith.addf %1682, %1684 : vector<8x256xf32>
    %1686 = arith.addf %1685, %1392 : vector<8x256xf32>
    %c29 = arith.constant 29 : index
    %c0_226 = arith.constant 0 : index
    %c0_227 = arith.constant 0 : index
    %1687 = vector.load %arg1[%c29, %c0_226, %c0_227] : memref<30x8x8xf32, #tpu.memory_space<vmem>>, vector<1x8x8xf32>
    %1688 = vector.shape_cast %1687 : vector<1x8x8xf32> to vector<8x8xf32>
    %c29_228 = arith.constant 29 : index
    %c0_229 = arith.constant 0 : index
    %c0_230 = arith.constant 0 : index
    %1689 = vector.load %arg2[%c29_228, %c0_229, %c0_230] : memref<30x8x1xf32, #tpu.memory_space<vmem>>, vector<1x8x1xf32>
    %1690 = vector.shape_cast %1689 : vector<1x8x1xf32> to vector<8x1xf32>
    %1691 = vector.extract_strided_slice %1688 {offsets = [0, 0], sizes = [8, 1], strides = [1, 1]} : vector<8x8xf32> to vector<8x1xf32>
    %1692 = vector.extract_strided_slice %1686 {offsets = [0, 0], sizes = [1, 256], strides = [1, 1]} : vector<8x256xf32> to vector<1x256xf32>
    %1693 = vector.broadcast %1691 : vector<8x1xf32> to vector<8x256xf32>
    %1694 = vector.broadcast %1692 : vector<1x256xf32> to vector<8x256xf32>
    %1695 = arith.mulf %1693, %1694 : vector<8x256xf32>
    %1696 = vector.broadcast %1690 : vector<8x1xf32> to vector<8x256xf32>
    %1697 = arith.addf %1695, %1696 : vector<8x256xf32>
    %1698 = vector.extract_strided_slice %1688 {offsets = [0, 1], sizes = [8, 1], strides = [1, 1]} : vector<8x8xf32> to vector<8x1xf32>
    %1699 = vector.extract_strided_slice %1686 {offsets = [1, 0], sizes = [1, 256], strides = [1, 1]} : vector<8x256xf32> to vector<1x256xf32>
    %1700 = vector.broadcast %1698 : vector<8x1xf32> to vector<8x256xf32>
    %1701 = vector.broadcast %1699 : vector<1x256xf32> to vector<8x256xf32>
    %1702 = arith.mulf %1700, %1701 : vector<8x256xf32>
    %1703 = arith.addf %1697, %1702 : vector<8x256xf32>
    %1704 = vector.extract_strided_slice %1688 {offsets = [0, 2], sizes = [8, 1], strides = [1, 1]} : vector<8x8xf32> to vector<8x1xf32>
    %1705 = vector.extract_strided_slice %1686 {offsets = [2, 0], sizes = [1, 256], strides = [1, 1]} : vector<8x256xf32> to vector<1x256xf32>
    %1706 = vector.broadcast %1704 : vector<8x1xf32> to vector<8x256xf32>
    %1707 = vector.broadcast %1705 : vector<1x256xf32> to vector<8x256xf32>
    %1708 = arith.mulf %1706, %1707 : vector<8x256xf32>
    %1709 = arith.addf %1703, %1708 : vector<8x256xf32>
    %1710 = vector.extract_strided_slice %1688 {offsets = [0, 3], sizes = [8, 1], strides = [1, 1]} : vector<8x8xf32> to vector<8x1xf32>
    %1711 = vector.extract_strided_slice %1686 {offsets = [3, 0], sizes = [1, 256], strides = [1, 1]} : vector<8x256xf32> to vector<1x256xf32>
    %1712 = vector.broadcast %1710 : vector<8x1xf32> to vector<8x256xf32>
    %1713 = vector.broadcast %1711 : vector<1x256xf32> to vector<8x256xf32>
    %1714 = arith.mulf %1712, %1713 : vector<8x256xf32>
    %1715 = arith.addf %1709, %1714 : vector<8x256xf32>
    %1716 = vector.extract_strided_slice %1688 {offsets = [0, 4], sizes = [8, 1], strides = [1, 1]} : vector<8x8xf32> to vector<8x1xf32>
    %1717 = vector.extract_strided_slice %1686 {offsets = [4, 0], sizes = [1, 256], strides = [1, 1]} : vector<8x256xf32> to vector<1x256xf32>
    %1718 = vector.broadcast %1716 : vector<8x1xf32> to vector<8x256xf32>
    %1719 = vector.broadcast %1717 : vector<1x256xf32> to vector<8x256xf32>
    %1720 = arith.mulf %1718, %1719 : vector<8x256xf32>
    %1721 = arith.addf %1715, %1720 : vector<8x256xf32>
    %1722 = vector.extract_strided_slice %1688 {offsets = [0, 5], sizes = [8, 1], strides = [1, 1]} : vector<8x8xf32> to vector<8x1xf32>
    %1723 = vector.extract_strided_slice %1686 {offsets = [5, 0], sizes = [1, 256], strides = [1, 1]} : vector<8x256xf32> to vector<1x256xf32>
    %1724 = vector.broadcast %1722 : vector<8x1xf32> to vector<8x256xf32>
    %1725 = vector.broadcast %1723 : vector<1x256xf32> to vector<8x256xf32>
    %1726 = arith.mulf %1724, %1725 : vector<8x256xf32>
    %1727 = arith.addf %1721, %1726 : vector<8x256xf32>
    %1728 = vector.extract_strided_slice %1688 {offsets = [0, 6], sizes = [8, 1], strides = [1, 1]} : vector<8x8xf32> to vector<8x1xf32>
    %1729 = vector.extract_strided_slice %1686 {offsets = [6, 0], sizes = [1, 256], strides = [1, 1]} : vector<8x256xf32> to vector<1x256xf32>
    %1730 = vector.broadcast %1728 : vector<8x1xf32> to vector<8x256xf32>
    %1731 = vector.broadcast %1729 : vector<1x256xf32> to vector<8x256xf32>
    %1732 = arith.mulf %1730, %1731 : vector<8x256xf32>
    %1733 = arith.addf %1727, %1732 : vector<8x256xf32>
    %1734 = vector.extract_strided_slice %1688 {offsets = [0, 7], sizes = [8, 1], strides = [1, 1]} : vector<8x8xf32> to vector<8x1xf32>
    %1735 = vector.extract_strided_slice %1686 {offsets = [7, 0], sizes = [1, 256], strides = [1, 1]} : vector<8x256xf32> to vector<1x256xf32>
    %1736 = vector.broadcast %1734 : vector<8x1xf32> to vector<8x256xf32>
    %1737 = vector.broadcast %1735 : vector<1x256xf32> to vector<8x256xf32>
    %1738 = arith.mulf %1736, %1737 : vector<8x256xf32>
    %1739 = arith.addf %1733, %1738 : vector<8x256xf32>
    %1740 = arith.addf %1739, %1392 : vector<8x256xf32>
    %1741 = arith.addf %1740, %0 : vector<8x256xf32>
    %c0_231 = arith.constant 0 : index
    %c0_232 = arith.constant 0 : index
    %1742 = vector.load %arg7[%c0_231, %c0_232] : memref<8x256xf32, #tpu.memory_space<vmem>>, vector<8x256xf32>
    tpu.vector_store %arg7[%c0_231, %c0_232], %1741 {strides = array<i32>} : memref<8x256xf32, #tpu.memory_space<vmem>>, vector<8x256xf32>,
    return
  }
}

</mosaic_0001>

<llo_original>
// kernel: sfnet_forward.1
$region0: #{sfnet_forward.1}
  #allocation0 [shape = 'u32[]', space=smem, size = 0x4, offset = 0x4, fixed_abs, tag = 'smem constant byte address 0x4 - core index']
  #allocation1 [shape = 'u32[144,128]{1,0:T(1,128)}', space=vmem, size = 0x12000, scoped, tag = 'internal scratch']
  %s0 = inlined_call_operand.vmem [shape: f32[8,256], index: 0, kind: input, shape index: {}]
  %s1 = inlined_call_operand.vmem [shape: f32[30,8,8], index: 1, kind: input, shape index: {}]
  %s2 = inlined_call_operand.vmem [shape: f32[30,8,1], index: 2, kind: input, shape index: {}]
  %s3 = inlined_call_operand.hbm [shape: f32[256,256], index: 3, kind: input, shape index: {}]
  %s4 = inlined_call_operand.hbm [shape: f32[256,256], index: 4, kind: input, shape index: {}]
  %s5 = inlined_call_operand.hbm [shape: f32[256,256], index: 5, kind: input, shape index: {}]
  %s6 = inlined_call_operand.vmem [shape: f32[256,256], index: 6, kind: input, shape index: {}]
  %s7 = inlined_call_operand.vmem [shape: f32[8,256], index: 7, kind: output, shape index: {}]
  %s8 = sld [smem:[#allocation0]]
  $region50: #{sfnet_forward.1} parent=0
    _
  %s10 = ssub.s32 1, %s8
  %s11 = scalar_select 0, %s10, %s8
  $region1: #{sfnet_forward.1} parent=0
    #allocation2 [shape = 'u8[262144]{0}', space=vmem, size = 0x40000, scoped, tag = 'input window, operand 3, single buffered']
    #allocation3 [shape = 's32[1]{0}', space=sflag, size = 0x4, scoped, tag = 'scoped memory for sfnet_forward.1']
    #allocation4 [shape = 'u8[262144]{0}', space=vmem, size = 0x40000, scoped, tag = 'input window, operand 4, single buffered']
    #allocation5 [shape = 's32[1]{0}', space=sflag, size = 0x4, scoped, tag = 'scoped memory for sfnet_forward.1']
    #allocation6 [shape = 'u8[262144]{0}', space=vmem, size = 0x40000, scoped, tag = 'input window, operand 5, single buffered']
    %12 = vsyncpa [#allocation3], 0
    %13 = vsyncpa [#allocation5], 0
    // Predicated region
    $region2: #{sfnet_forward.1} parent=1 // pred_check
      _
    $region3: #{sfnet_forward.1} parent=1 // pred_check_branch
      %15 = sbr.rel (0) target = $region5
    $region4: #{sfnet_forward.1} parent=1 // pred_region
      _
    $region5: #{sfnet_forward.1} parent=1 // pred_fallthru
      _
    // Predicated region
    $region6: #{sfnet_forward.1} parent=1 // pred_check
      _
    $region7: #{sfnet_forward.1} parent=1 // pred_check_branch
      %17 = sbr.rel (0) target = $region9
    $region8: #{sfnet_forward.1} parent=1 // pred_region
      _
    $region9: #{sfnet_forward.1} parent=1 // pred_fallthru
      _
    // Predicated region
    $region10: #{sfnet_forward.1} parent=1 // pred_check
      _
    $region11: #{sfnet_forward.1} parent=1 // pred_check_branch
      %19 = sbr.rel (0) target = $region13
    $region12: #{sfnet_forward.1} parent=1 // pred_region
      _
    $region13: #{sfnet_forward.1} parent=1 // pred_fallthru
      _
    // Predicated region
    $region14: #{sfnet_forward.1} parent=1 // pred_check
      _
    $region15: #{sfnet_forward.1} parent=1 // pred_check_branch
      %21 = sbr.rel (0) target = $region17
    $region16: #{sfnet_forward.1} parent=1 // pred_region
      %s23 = ssub.s32 8192, 8192
      %24 = vsyncadd [#allocation3], %s23
      %s25 = sshll.u32 [#allocation2], 4
      %s26 = int_to_ptr.vmem [resolvable:$true] %s25
      %31 = dma.hbm_to_vmem [thread:$0]  %s3, 8192, %s26, [#allocation3], 256, 256, 16
    $region17: #{sfnet_forward.1} parent=1 // pred_fallthru
      _
    // Predicated region
    $region18: #{sfnet_forward.1} parent=1 // pred_check
      _
    $region19: #{sfnet_forward.1} parent=1 // pred_check_branch
      %33 = sbr.rel (0) target = $region21
    $region20: #{sfnet_forward.1} parent=1 // pred_region
      %s35 = ssub.s32 8192, 8192
      %36 = vsyncadd [#allocation5], %s35
      %s37 = sshll.u32 [#allocation4], 4
      %s38 = int_to_ptr.vmem [resolvable:$true] %s37
      %43 = dma.hbm_to_vmem [thread:$0]  %s4, 8192, %s38, [#allocation5], 256, 256, 16
    $region21: #{sfnet_forward.1} parent=1 // pred_fallthru
      _
    // Predicated region
    $region22: #{sfnet_forward.1} parent=1 // pred_check
      _
    $region23: #{sfnet_forward.1} parent=1 // pred_check_branch
      %45 = sbr.rel (0) target = $region25
    $region24: #{sfnet_forward.1} parent=1 // pred_region
      %s47 = ssub.s32 8192, 8192
      %48 = vsyncadd [#allocation5], %s47
      %s49 = sshll.u32 [#allocation6], 4
      %s50 = int_to_ptr.vmem [resolvable:$true] %s49
      %55 = dma.hbm_to_vmem [thread:$0]  %s5, 8192, %s50, [#allocation5], 256, 256, 16
    $region25: #{sfnet_forward.1} parent=1 // pred_fallthru
      _
    // Predicated region
    $region26: #{sfnet_forward.1} parent=1 // pred_check
      _
    $region27: #{sfnet_forward.1} parent=1 // pred_check_branch
      %57 = sbr.rel (0) target = $region29
    $region28: #{sfnet_forward.1} parent=1 // pred_region
      _
    $region29: #{sfnet_forward.1} parent=1 // pred_fallthru
      _
    // Predicated region
    $region30: #{sfnet_forward.1} parent=1 // pred_check
      _
    $region31: #{sfnet_forward.1} parent=1 // pred_check_branch
      %59 = sbr.rel (0) target = $region33
    $region32: #{sfnet_forward.1} parent=1 // pred_region
      %60 = dma.done [#allocation3], 8192
    $region33: #{sfnet_forward.1} parent=1 // pred_fallthru
      _
    // Predicated region
    $region34: #{sfnet_forward.1} parent=1 // pred_check
      _
    $region35: #{sfnet_forward.1} parent=1 // pred_check_branch
      %62 = sbr.rel (0) target = $region37
    $region36: #{sfnet_forward.1} parent=1 // pred_region
      %63 = dma.done [#allocation5], 8192
    $region37: #{sfnet_forward.1} parent=1 // pred_fallthru
      _
    // Predicated region
    $region38: #{sfnet_forward.1} parent=1 // pred_check
      _
    $region39: #{sfnet_forward.1} parent=1 // pred_check_branch
      %65 = sbr.rel (0) target = $region41
    $region40: #{sfnet_forward.1} parent=1 // pred_region
      %66 = dma.done [#allocation5], 8192
    $region41: #{sfnet_forward.1} parent=1 // pred_fallthru
      _
    %v67 = vld [vmem:[%s0] sm:$0xff]
    %v68 = vld [vmem:[%s0 + $0x8] sm:$0xff]
    %v69 = vld [vmem:[%s1] sm:$0xff]
    %v70 = vld [vmem:[%s2] sm:$0xff]
    %72 = vset.pattern.permute.xlu0 0
    %73 = vperm.xlu0 %72, %v69
    %v74 = vpop.permute.xlu0 %73
    %v76 = vlaneseq
    %v77 = vshrl.u32 %v76, 7
    %v78 = vsub.s32 0, %v77
    %v79 = vrot.slane %v67, %v78
    %v80 = vlaneseq
    %v81 = vshrl.u32 %v80, 7
    %v82 = vsub.s32 0, %v81
    %v83 = vrot.slane %v68, %v82
    %v84 = vmul.f32 %v74, %v79
    %v85 = vmul.f32 %v74, %v83
    %87 = vset.pattern.permute.xlu0 0
    %88 = vperm.xlu0 %87, %v70
    %v89 = vpop.permute.xlu0 %88
    %v91 = vadd.f32 %v84, %v89
    %v92 = vadd.f32 %v85, %v89
    %93 = vset.pattern.permute.xlu0 1
    %94 = vperm.xlu0 %93, %v69
    %v95 = vpop.permute.xlu0 %94
    %v97 = vlaneseq
    %v98 = vshrl.u32 %v97, 7
    %v99 = vsub.s32 1, %v98
    %v100 = vrot.slane %v67, %v99
    %v101 = vlaneseq
    %v102 = vshrl.u32 %v101, 7
    %v103 = vsub.s32 1, %v102
    %v104 = vrot.slane %v68, %v103
    %v105 = vmul.f32 %v95, %v100
    %v106 = vmul.f32 %v95, %v104
    %v107 = vadd.f32 %v91, %v105
    %v108 = vadd.f32 %v92, %v106
    %109 = vset.pattern.permute.xlu0 2
    %110 = vperm.xlu0 %109, %v69
    %v111 = vpop.permute.xlu0 %110
    %v113 = vlaneseq
    %v114 = vshrl.u32 %v113, 7
    %v115 = vsub.s32 2, %v114
    %v116 = vrot.slane %v67, %v115
    %v117 = vlaneseq
    %v118 = vshrl.u32 %v117, 7
    %v119 = vsub.s32 2, %v118
    %v120 = vrot.slane %v68, %v119
    %v121 = vmul.f32 %v111, %v116
    %v122 = vmul.f32 %v111, %v120
    %v123 = vadd.f32 %v107, %v121
    %v124 = vadd.f32 %v108, %v122
    %125 = vset.pattern.permute.xlu0 3
    %126 = vperm.xlu0 %125, %v69
    %v127 = vpop.permute.xlu0 %126
    %v129 = vlaneseq
    %v130 = vshrl.u32 %v129, 7
    %v131 = vsub.s32 3, %v130
    %v132 = vrot.slane %v67, %v131
    %v133 = vlaneseq
    %v134 = vshrl.u32 %v133, 7
    %v135 = vsub.s32 3, %v134
    %v136 = vrot.slane %v68, %v135
    %v137 = vmul.f32 %v127, %v132
    %v138 = vmul.f32 %v127, %v136
    %v139 = vadd.f32 %v123, %v137
    %v140 = vadd.f32 %v124, %v138
    %141 = vset.pattern.permute.xlu0 4
    %142 = vperm.xlu0 %141, %v69
    %v143 = vpop.permute.xlu0 %142
    %v145 = vlaneseq
    %v146 = vshrl.u32 %v145, 7
    %v147 = vsub.s32 4, %v146
    %v148 = vrot.slane %v67, %v147
    %v149 = vlaneseq
    %v150 = vshrl.u32 %v149, 7
    %v151 = vsub.s32 4, %v150
    %v152 = vrot.slane %v68, %v151
    %v153 = vmul.f32 %v143, %v148
    %v154 = vmul.f32 %v143, %v152
    %v155 = vadd.f32 %v139, %v153
    %v156 = vadd.f32 %v140, %v154
    %157 = vset.pattern.permute.xlu0 5
    %158 = vperm.xlu0 %157, %v69
    %v159 = vpop.permute.xlu0 %158
    %v161 = vlaneseq
    %v162 = vshrl.u32 %v161, 7
    %v163 = vsub.s32 5, %v162
    %v164 = vrot.slane %v67, %v163
    %v165 = vlaneseq
    %v166 = vshrl.u32 %v165, 7
    %v167 = vsub.s32 5, %v166
    %v168 = vrot.slane %v68, %v167
    %v169 = vmul.f32 %v159, %v164
    %v170 = vmul.f32 %v159, %v168
    %v171 = vadd.f32 %v155, %v169
    %v172 = vadd.f32 %v156, %v170
    %173 = vset.pattern.permute.xlu0 6
    %174 = vperm.xlu0 %173, %v69
    %v175 = vpop.permute.xlu0 %174
    %v177 = vlaneseq
    %v178 = vshrl.u32 %v177, 7
    %v179 = vsub.s32 6, %v178
    %v180 = vrot.slane %v67, %v179
    %v181 = vlaneseq
    %v182 = vshrl.u32 %v181, 7
    %v183 = vsub.s32 6, %v182
    %v184 = vrot.slane %v68, %v183
    %v185 = vmul.f32 %v175, %v180
    %v186 = vmul.f32 %v175, %v184
    %v187 = vadd.f32 %v171, %v185
    %v188 = vadd.f32 %v172, %v186
    %189 = vset.pattern.permute.xlu0 7
    %190 = vperm.xlu0 %189, %v69
    %v191 = vpop.permute.xlu0 %190
    %v193 = vlaneseq
    %v194 = vshrl.u32 %v193, 7
    %v195 = vsub.s32 7, %v194
    %v196 = vrot.slane %v67, %v195
    %v197 = vlaneseq
    %v198 = vshrl.u32 %v197, 7
    %v199 = vsub.s32 7, %v198
    %v200 = vrot.slane %v68, %v199
    %v201 = vmul.f32 %v191, %v196
    %v202 = vmul.f32 %v191, %v200
    %v203 = vadd.f32 %v187, %v201
    %v204 = vadd.f32 %v188, %v202
    %v205 = vld [vmem:[#allocation2] sm:$0xff]
    %v206 = vld [vmem:[#allocation2 + $0x8] sm:$0xff]
    %v207 = vld [vmem:[#allocation2 + $0x10] sm:$0xff]
    %v208 = vld [vmem:[#allocation2 + $0x18] sm:$0xff]
    %v209 = vld [vmem:[#allocation2 + $0x20] sm:$0xff]
    %v210 = vld [vmem:[#allocation2 + $0x28] sm:$0xff]
    %v211 = vld [vmem:[#allocation2 + $0x30] sm:$0xff]
    %v212 = vld [vmem:[#allocation2 + $0x38] sm:$0xff]
    %v213 = vld [vmem:[#allocation2 + $0x40] sm:$0xff]
    %v214 = vld [vmem:[#allocation2 + $0x48] sm:$0xff]
    %v215 = vld [vmem:[#allocation2 + $0x50] sm:$0xff]
    %v216 = vld [vmem:[#allocation2 + $0x58] sm:$0xff]
    %v217 = vld [vmem:[#allocation2 + $0x60] sm:$0xff]
    %v218 = vld [vmem:[#allocation2 + $0x68] sm:$0xff]
    %v219 = vld [vmem:[#allocation2 + $0x70] sm:$0xff]
    %v220 = vld [vmem:[#allocation2 + $0x78] sm:$0xff]
    %v221 = vld [vmem:[#allocation2 + $0x80] sm:$0xff]
    %v222 = vld [vmem:[#allocation2 + $0x88] sm:$0xff]
    %v223 = vld [vmem:[#allocation2 + $0x90] sm:$0xff]
    %v224 = vld [vmem:[#allocation2 + $0x98] sm:$0xff]
    %v225 = vld [vmem:[#allocation2 + $0xa0] sm:$0xff]
    %v226 = vld [vmem:[#allocation2 + $0xa8] sm:$0xff]
    %v227 = vld [vmem:[#allocation2 + $0xb0] sm:$0xff]
    %v228 = vld [vmem:[#allocation2 + $0xb8] sm:$0xff]
    %v229 = vld [vmem:[#allocation2 + $0xc0] sm:$0xff]
    %v230 = vld [vmem:[#allocation2 + $0xc8] sm:$0xff]
    %v231 = vld [vmem:[#allocation2 + $0xd0] sm:$0xff]
    %v232 = vld [vmem:[#allocation2 + $0xd8] sm:$0xff]
    %v233 = vld [vmem:[#allocation2 + $0xe0] sm:$0xff]
    %v234 = vld [vmem:[#allocation2 + $0xe8] sm:$0xff]
    %v235 = vld [vmem:[#allocation2 + $0xf0] sm:$0xff]
    %v236 = vld [vmem:[#allocation2 + $0xf8] sm:$0xff]
    %v237 = vld [vmem:[#allocation2 + $0x100] sm:$0xff]
    %v238 = vld [vmem:[#allocation2 + $0x108] sm:$0xff]
    %v239 = vld [vmem:[#allocation2 + $0x110] sm:$0xff]
    %v240 = vld [vmem:[#allocation2 + $0x118] sm:$0xff]
    %v241 = vld [vmem:[#allocation2 + $0x120] sm:$0xff]
    %v242 = vld [vmem:[#allocation2 + $0x128] sm:$0xff]
    %v243 = vld [vmem:[#allocation2 + $0x130] sm:$0xff]
    %v244 = vld [vmem:[#allocation2 + $0x138] sm:$0xff]
    %v245 = vld [vmem:[#allocation2 + $0x140] sm:$0xff]
    %v246 = vld [vmem:[#allocation2 + $0x148] sm:$0xff]
    %v247 = vld [vmem:[#allocation2 + $0x150] sm:$0xff]
    %v248 = vld [vmem:[#allocation2 + $0x158] sm:$0xff]
    %v249 = vld [vmem:[#allocation2 + $0x160] sm:$0xff]
    %v250 = vld [vmem:[#allocation2 + $0x168] sm:$0xff]
    %v251 = vld [vmem:[#allocation2 + $0x170] sm:$0xff]
    %v252 = vld [vmem:[#allocation2 + $0x178] sm:$0xff]
    %v253 = vld [vmem:[#allocation2 + $0x180] sm:$0xff]
    %v254 = vld [vmem:[#allocation2 + $0x188] sm:$0xff]
    %v255 = vld [vmem:[#allocation2 + $0x190] sm:$0xff]
    %v256 = vld [vmem:[#allocation2 + $0x198] sm:$0xff]
    %v257 = vld [vmem:[#allocation2 + $0x1a0] sm:$0xff]
    %v258 = vld [vmem:[#allocation2 + $0x1a8] sm:$0xff]
    %v259 = vld [vmem:[#allocation2 + $0x1b0] sm:$0xff]
    %v260 = vld [vmem:[#allocation2 + $0x1b8] sm:$0xff]
    %v261 = vld [vmem:[#allocation2 + $0x1c0] sm:$0xff]
    %v262 = vld [vmem:[#allocation2 + $0x1c8] sm:$0xff]
    %v263 = vld [vmem:[#allocation2 + $0x1d0] sm:$0xff]
    %v264 = vld [vmem:[#allocation2 + $0x1d8] sm:$0xff]
    %v265 = vld [vmem:[#allocation2 + $0x1e0] sm:$0xff]
    %v266 = vld [vmem:[#allocation2 + $0x1e8] sm:$0xff]
    %v267 = vld [vmem:[#allocation2 + $0x1f0] sm:$0xff]
    %v268 = vld [vmem:[#allocation2 + $0x1f8] sm:$0xff]
    %269 = vmatprep.subr.mxu0 %v206
    %270 = vmatpush1.msra.mxu0 %v205
    %271 = vmatprep.subr.mxu0 %v208
    %272 = vmatpush1.msra.mxu0 %v207
    %273 = vmatprep.subr.mxu0 %v210
    %274 = vmatpush1.msra.mxu0 %v209
    %275 = vmatprep.subr.mxu0 %v212
    %276 = vmatpush1.msra.mxu0 %v211
    %277 = vmatprep.subr.mxu0 %v214
    %278 = vmatpush1.msra.mxu0 %v213
    %279 = vmatprep.subr.mxu0 %v216
    %280 = vmatpush1.msra.mxu0 %v215
    %281 = vmatprep.subr.mxu0 %v218
    %282 = vmatpush1.msra.mxu0 %v217
    %283 = vmatprep.subr.mxu0 %v220
    %284 = vmatpush1.msra.mxu0 %v219
    %285 = vmatprep.subr.mxu0 %v222
    %286 = vmatpush1.msra.mxu0 %v221
    %287 = vmatprep.subr.mxu0 %v224
    %288 = vmatpush1.msra.mxu0 %v223
    %289 = vmatprep.subr.mxu0 %v226
    %290 = vmatpush1.msra.mxu0 %v225
    %291 = vmatprep.subr.mxu0 %v228
    %292 = vmatpush1.msra.mxu0 %v227
    %293 = vmatprep.subr.mxu0 %v230
    %294 = vmatpush1.msra.mxu0 %v229
    %295 = vmatprep.subr.mxu0 %v232
    %296 = vmatpush1.msra.mxu0 %v231
    %297 = vmatprep.subr.mxu0 %v234
    %298 = vmatpush1.msra.mxu0 %v233
    %299 = vmatprep.subr.mxu0 %v236
    %300 = vmatpush1.msra.mxu0 %v235
    %301 = vmatprep.subr.mxu0 %v238
    %302 = vmatpush1.msra.mxu0 %v237
    %303 = vmatprep.subr.mxu0 %v240
    %304 = vmatpush1.msra.mxu0 %v239
    %305 = vmatprep.subr.mxu0 %v242
    %306 = vmatpush1.msra.mxu0 %v241
    %307 = vmatprep.subr.mxu0 %v244
    %308 = vmatpush1.msra.mxu0 %v243
    %309 = vmatprep.subr.mxu0 %v246
    %310 = vmatpush1.msra.mxu0 %v245
    %311 = vmatprep.subr.mxu0 %v248
    %312 = vmatpush1.msra.mxu0 %v247
    %313 = vmatprep.subr.mxu0 %v250
    %314 = vmatpush1.msra.mxu0 %v249
    %315 = vmatprep.subr.mxu0 %v252
    %316 = vmatpush1.msra.mxu0 %v251
    %317 = vmatprep.subr.mxu0 %v254
    %318 = vmatpush1.msra.mxu0 %v253
    %319 = vmatprep.subr.mxu0 %v256
    %320 = vmatpush1.msra.mxu0 %v255
    %321 = vmatprep.subr.mxu0 %v258
    %322 = vmatpush1.msra.mxu0 %v257
    %323 = vmatprep.subr.mxu0 %v260
    %324 = vmatpush1.msra.mxu0 %v259
    %325 = vmatprep.subr.mxu0 %v262
    %326 = vmatpush1.msra.mxu0 %v261
    %327 = vmatprep.subr.mxu0 %v264
    %328 = vmatpush1.msra.mxu0 %v263
    %329 = vmatprep.subr.mxu0 %v266
    %330 = vmatpush1.msra.mxu0 %v265
    %331 = vmatprep.subr.mxu0 %v268
    %332 = vmatpush1.msra.mxu0 %v267
    %333 = vmatprep.mubr.f32.mxu0 %v204
    %334 = vmatmul.mubr.f32.gmra.mrb[0].mxu0 %v203
    %v335 = vpop.f32.mrb[0].mxu0
    %v336 = vadd.f32 0.0, %v335
    %v337 = vpop.f32.mrb[0].mxu0
    %v338 = vadd.f32 0.0, %v337
    %339 = vdwg.mxu0
    %v340 = vld [vmem:[#allocation4] sm:$0xff]
    %v341 = vld [vmem:[#allocation4 + $0x8] sm:$0xff]
    %v342 = vld [vmem:[#allocation4 + $0x10] sm:$0xff]
    %v343 = vld [vmem:[#allocation4 + $0x18] sm:$0xff]
    %v344 = vld [vmem:[#allocation4 + $0x20] sm:$0xff]
    %v345 = vld [vmem:[#allocation4 + $0x28] sm:$0xff]
    %v346 = vld [vmem:[#allocation4 + $0x30] sm:$0xff]
    %v347 = vld [vmem:[#allocation4 + $0x38] sm:$0xff]
    %v348 = vld [vmem:[#allocation4 + $0x40] sm:$0xff]
    %v349 = vld [vmem:[#allocation4 + $0x48] sm:$0xff]
    %v350 = vld [vmem:[#allocation4 + $0x50] sm:$0xff]
    %v351 = vld [vmem:[#allocation4 + $0x58] sm:$0xff]
    %v352 = vld [vmem:[#allocation4 + $0x60] sm:$0xff]
    %v353 = vld [vmem:[#allocation4 + $0x68] sm:$0xff]
    %v354 = vld [vmem:[#allocation4 + $0x70] sm:$0xff]
    %v355 = vld [vmem:[#allocation4 + $0x78] sm:$0xff]
    %v356 = vld [vmem:[#allocation4 + $0x80] sm:$0xff]
    %v357 = vld [vmem:[#allocation4 + $0x88] sm:$0xff]
    %v358 = vld [vmem:[#allocation4 + $0x90] sm:$0xff]
    %v359 = vld [vmem:[#allocation4 + $0x98] sm:$0xff]
    %v360 = vld [vmem:[#allocation4 + $0xa0] sm:$0xff]
    %v361 = vld [vmem:[#allocation4 + $0xa8] sm:$0xff]
    %v362 = vld [vmem:[#allocation4 + $0xb0] sm:$0xff]
    %v363 = vld [vmem:[#allocation4 + $0xb8] sm:$0xff]
    %v364 = vld [vmem:[#allocation4 + $0xc0] sm:$0xff]
    %v365 = vld [vmem:[#allocation4 + $0xc8] sm:$0xff]
    %v366 = vld [vmem:[#allocation4 + $0xd0] sm:$0xff]
    %v367 = vld [vmem:[#allocation4 + $0xd8] sm:$0xff]
    %v368 = vld [vmem:[#allocation4 + $0xe0] sm:$0xff]
    %v369 = vld [vmem:[#allocation4 + $0xe8] sm:$0xff]
    %v370 = vld [vmem:[#allocation4 + $0xf0] sm:$0xff]
    %v371 = vld [vmem:[#allocation4 + $0xf8] sm:$0xff]
    %v372 = vld [vmem:[#allocation4 + $0x100] sm:$0xff]
    %v373 = vld [vmem:[#allocation4 + $0x108] sm:$0xff]
    %v374 = vld [vmem:[#allocation4 + $0x110] sm:$0xff]
    %v375 = vld [vmem:[#allocation4 + $0x118] sm:$0xff]
    %v376 = vld [vmem:[#allocation4 + $0x120] sm:$0xff]
    %v377 = vld [vmem:[#allocation4 + $0x128] sm:$0xff]
    %v378 = vld [vmem:[#allocation4 + $0x130] sm:$0xff]
    %v379 = vld [vmem:[#allocation4 + $0x138] sm:$0xff]
    %v380 = vld [vmem:[#allocation4 + $0x140] sm:$0xff]
    %v381 = vld [vmem:[#allocation4 + $0x148] sm:$0xff]
    %v382 = vld [vmem:[#allocation4 + $0x150] sm:$0xff]
    %v383 = vld [vmem:[#allocation4 + $0x158] sm:$0xff]
    %v384 = vld [vmem:[#allocation4 + $0x160] sm:$0xff]
    %v385 = vld [vmem:[#allocation4 + $0x168] sm:$0xff]
    %v386 = vld [vmem:[#allocation4 + $0x170] sm:$0xff]
    %v387 = vld [vmem:[#allocation4 + $0x178] sm:$0xff]
    %v388 = vld [vmem:[#allocation4 + $0x180] sm:$0xff]
    %v389 = vld [vmem:[#allocation4 + $0x188] sm:$0xff]
    %v390 = vld [vmem:[#allocation4 + $0x190] sm:$0xff]
    %v391 = vld [vmem:[#allocation4 + $0x198] sm:$0xff]
    %v392 = vld [vmem:[#allocation4 + $0x1a0] sm:$0xff]
    %v393 = vld [vmem:[#allocation4 + $0x1a8] sm:$0xff]
    %v394 = vld [vmem:[#allocation4 + $0x1b0] sm:$0xff]
    %v395 = vld [vmem:[#allocation4 + $0x1b8] sm:$0xff]
    %v396 = vld [vmem:[#allocation4 + $0x1c0] sm:$0xff]
    %v397 = vld [vmem:[#allocation4 + $0x1c8] sm:$0xff]
    %v398 = vld [vmem:[#allocation4 + $0x1d0] sm:$0xff]
    %v399 = vld [vmem:[#allocation4 + $0x1d8] sm:$0xff]
    %v400 = vld [vmem:[#allocation4 + $0x1e0] sm:$0xff]
    %v401 = vld [vmem:[#allocation4 + $0x1e8] sm:$0xff]
    %v402 = vld [vmem:[#allocation4 + $0x1f0] sm:$0xff]
    %v403 = vld [vmem:[#allocation4 + $0x1f8] sm:$0xff]
    %404 = vmatprep.subr.mxu0 %v341
    %405 = vmatpush1.msra.mxu0 %v340
    %406 = vmatprep.subr.mxu0 %v343
    %407 = vmatpush1.msra.mxu0 %v342
    %408 = vmatprep.subr.mxu0 %v345
    %409 = vmatpush1.msra.mxu0 %v344
    %410 = vmatprep.subr.mxu0 %v347
    %411 = vmatpush1.msra.mxu0 %v346
    %412 = vmatprep.subr.mxu0 %v349
    %413 = vmatpush1.msra.mxu0 %v348
    %414 = vmatprep.subr.mxu0 %v351
    %415 = vmatpush1.msra.mxu0 %v350
    %416 = vmatprep.subr.mxu0 %v353
    %417 = vmatpush1.msra.mxu0 %v352
    %418 = vmatprep.subr.mxu0 %v355
    %419 = vmatpush1.msra.mxu0 %v354
    %420 = vmatprep.subr.mxu0 %v357
    %421 = vmatpush1.msra.mxu0 %v356
    %422 = vmatprep.subr.mxu0 %v359
    %423 = vmatpush1.msra.mxu0 %v358
    %424 = vmatprep.subr.mxu0 %v361
    %425 = vmatpush1.msra.mxu0 %v360
    %426 = vmatprep.subr.mxu0 %v363
    %427 = vmatpush1.msra.mxu0 %v362
    %428 = vmatprep.subr.mxu0 %v365
    %429 = vmatpush1.msra.mxu0 %v364
    %430 = vmatprep.subr.mxu0 %v367
    %431 = vmatpush1.msra.mxu0 %v366
    %432 = vmatprep.subr.mxu0 %v369
    %433 = vmatpush1.msra.mxu0 %v368
    %434 = vmatprep.subr.mxu0 %v371
    %435 = vmatpush1.msra.mxu0 %v370
    %436 = vmatprep.subr.mxu0 %v373
    %437 = vmatpush1.msra.mxu0 %v372
    %438 = vmatprep.subr.mxu0 %v375
    %439 = vmatpush1.msra.mxu0 %v374
    %440 = vmatprep.subr.mxu0 %v377
    %441 = vmatpush1.msra.mxu0 %v376
    %442 = vmatprep.subr.mxu0 %v379
    %443 = vmatpush1.msra.mxu0 %v378
    %444 = vmatprep.subr.mxu0 %v381
    %445 = vmatpush1.msra.mxu0 %v380
    %446 = vmatprep.subr.mxu0 %v383
    %447 = vmatpush1.msra.mxu0 %v382
    %448 = vmatprep.subr.mxu0 %v385
    %449 = vmatpush1.msra.mxu0 %v384
    %450 = vmatprep.subr.mxu0 %v387
    %451 = vmatpush1.msra.mxu0 %v386
    %452 = vmatprep.subr.mxu0 %v389
    %453 = vmatpush1.msra.mxu0 %v388
    %454 = vmatprep.subr.mxu0 %v391
    %455 = vmatpush1.msra.mxu0 %v390
    %456 = vmatprep.subr.mxu0 %v393
    %457 = vmatpush1.msra.mxu0 %v392
    %458 = vmatprep.subr.mxu0 %v395
    %459 = vmatpush1.msra.mxu0 %v394
    %460 = vmatprep.subr.mxu0 %v397
    %461 = vmatpush1.msra.mxu0 %v396
    %462 = vmatprep.subr.mxu0 %v399
    %463 = vmatpush1.msra.mxu0 %v398
    %464 = vmatprep.subr.mxu0 %v401
    %465 = vmatpush1.msra.mxu0 %v400
    %466 = vmatprep.subr.mxu0 %v403
    %467 = vmatpush1.msra.mxu0 %v402
    %468 = vmatprep.mubr.f32.mxu0 %v204
    %469 = vmatmul.mubr.f32.gmra.mrb[0].mxu0 %v203
    %v470 = vpop.f32.mrb[0].mxu0
    %v471 = vadd.f32 0.0, %v470
    %v472 = vpop.f32.mrb[0].mxu0
    %v473 = vadd.f32 0.0, %v472
    %474 = vdwg.mxu0
    %v475 = vmul.f32 %v336, %v336
    %v476 = vmul.f32 %v338, %v338
    %v477 = vmul.f32 %v471, %v471
    %v478 = vmul.f32 %v473, %v473
    %v479 = vadd.f32 %v475, %v477
    %v480 = vadd.f32 %v476, %v478
    %v481 = vrsqrt.pop %v479
    %v482 = vmul.f32 %v479, %v481
    %vm483 = vcmp.eq.f32.partialorder %v479, inf
    %v484 = vsel %vm483, %v479, %v482
    %vm485 = vcmp.eq.f32.partialorder %v479, 0.0
    %v486 = vand.u32 %v479, 2147483648
    %v487 = vsel %vm485, %v486, %v484
    %v488 = vrsqrt.pop %v480
    %v489 = vmul.f32 %v480, %v488
    %vm490 = vcmp.eq.f32.partialorder %v480, inf
    %v491 = vsel %vm490, %v480, %v489
    %vm492 = vcmp.eq.f32.partialorder %v480, 0.0
    %v493 = vand.u32 %v480, 2147483648
    %v494 = vsel %vm492, %v493, %v491
    %v495 = vand.u32 2147483647, %v336
    %v496 = vand.u32 2147483647, %v471
    %v497 = vmin.f32 %v495, %v496
    %v498 = vmax.f32 %v495, %v496
    %v499 = vrcp.pop %v498
    %v500 = vmul.f32 %v497, %v499
    %v501 = vmul.f32 %v500, %v500
    %v502 = vmul.f32 0.002785687, %v501
    %v503 = vadd.f32 %v502, -0.015866
    %v504 = vmul.f32 %v503, %v501
    %v505 = vadd.f32 %v504, 0.04247222
    %v506 = vmul.f32 %v505, %v501
    %v507 = vadd.f32 %v506, -0.074975304
    %v508 = vmul.f32 %v507, %v501
    %v509 = vadd.f32 %v508, 0.1064488
    %v510 = vmul.f32 %v509, %v501
    %v511 = vadd.f32 %v510, -0.14207031
    %v512 = vmul.f32 %v511, %v501
    %v513 = vadd.f32 %v512, 0.19993454
    %v514 = vmul.f32 %v513, %v501
    %v515 = vadd.f32 %v514, -0.33333147
    %v516 = vmul.f32 %v515, %v501
    %v517 = vmul.f32 %v516, %v500
    %v518 = vadd.f32 %v517, %v500
    %vm519 = vcmp.gt.f32.partialorder %v496, %v495
    %v520 = vsub.f32 1.5707964, %v518
    %v521 = vsel %vm519, %v520, %v518
    %vm522 = vcmp.lt.f32.partialorder %v336, 0.0
    %v523 = vsub.f32 3.1415927, %v521
    %v524 = vsel %vm522, %v523, %v521
    %vm525 = vcmp.lt.s32.totalorder %v336, 0
    %v526 = vsel %vm525, 3.1415927, 0.0
    %vm527 = vcmp.eq.f32.partialorder %v471, 0.0
    %v528 = vsel %vm527, %v526, %v524
    %vm529 = vcmp.ne.f32.partialorder %v336, %v336
    %vm530 = vcmp.ne.f32.partialorder %v471, %v471
    %vm531 = vmor %vm529, %vm530
    %v532 = vsel %vm531, nan, %v528
    %vm533 = vcmp.lt.f32.partialorder %v336, 0.0
    %v534 = vsel %vm533, 2.3561945, 0.7853982
    %vm535 = vcmp.eq.s32.totalorder %v495, inf
    %vm536 = vcmp.eq.s32.totalorder %v496, inf
    %vm537 = vmand %vm535, %vm536
    %v538 = vsel %vm537, %v534, %v532
    %v539 = vand.u32 2147483647, %v538
    %v540 = vand.u32 %v471, 2147483648
    %v541 = vor.u32 %v539, %v540
    %v542 = vand.u32 2147483647, %v338
    %v543 = vand.u32 2147483647, %v473
    %v544 = vmin.f32 %v542, %v543
    %v545 = vmax.f32 %v542, %v543
    %v546 = vrcp.pop %v545
    %v547 = vmul.f32 %v544, %v546
    %v548 = vmul.f32 %v547, %v547
    %v549 = vmul.f32 0.002785687, %v548
    %v550 = vadd.f32 %v549, -0.015866
    %v551 = vmul.f32 %v550, %v548
    %v552 = vadd.f32 %v551, 0.04247222
    %v553 = vmul.f32 %v552, %v548
    %v554 = vadd.f32 %v553, -0.074975304
    %v555 = vmul.f32 %v554, %v548
    %v556 = vadd.f32 %v555, 0.1064488
    %v557 = vmul.f32 %v556, %v548
    %v558 = vadd.f32 %v557, -0.14207031
    %v559 = vmul.f32 %v558, %v548
    %v560 = vadd.f32 %v559, 0.19993454
    %v561 = vmul.f32 %v560, %v548
    %v562 = vadd.f32 %v561, -0.33333147
    %v563 = vmul.f32 %v562, %v548
    %v564 = vmul.f32 %v563, %v547
    %v565 = vadd.f32 %v564, %v547
    %vm566 = vcmp.gt.f32.partialorder %v543, %v542
    %v567 = vsub.f32 1.5707964, %v565
    %v568 = vsel %vm566, %v567, %v565
    %vm569 = vcmp.lt.f32.partialorder %v338, 0.0
    %v570 = vsub.f32 3.1415927, %v568
    %v571 = vsel %vm569, %v570, %v568
    %vm572 = vcmp.lt.s32.totalorder %v338, 0
    %v573 = vsel %vm572, 3.1415927, 0.0
    %vm574 = vcmp.eq.f32.partialorder %v473, 0.0
    %v575 = vsel %vm574, %v573, %v571
    %vm576 = vcmp.ne.f32.partialorder %v338, %v338
    %vm577 = vcmp.ne.f32.partialorder %v473, %v473
    %vm578 = vmor %vm576, %vm577
    %v579 = vsel %vm578, nan, %v575
    %vm580 = vcmp.lt.f32.partialorder %v338, 0.0
    %v581 = vsel %vm580, 2.3561945, 0.7853982
    %vm582 = vcmp.eq.s32.totalorder %v542, inf
    %vm583 = vcmp.eq.s32.totalorder %v543, inf
    %vm584 = vmand %vm582, %vm583
    %v585 = vsel %vm584, %v581, %v579
    %v586 = vand.u32 2147483647, %v585
    %v587 = vand.u32 %v473, 2147483648
    %v588 = vor.u32 %v586, %v587
    %s589 = scalar_lea.vmem %s1, 8
    %v590 = vld [vmem:[%s589] sm:$0xff]
    %s591 = scalar_lea.vmem %s2, 8
    %v592 = vld [vmem:[%s591] sm:$0xff]
    %594 = vset.pattern.permute.xlu0 0
    %595 = vperm.xlu0 %594, %v590
    %v596 = vpop.permute.xlu0 %595
    %v598 = vlaneseq
    %v599 = vshrl.u32 %v598, 7
    %v600 = vsub.s32 0, %v599
    %v601 = vrot.slane %v487, %v600
    %v602 = vlaneseq
    %v603 = vshrl.u32 %v602, 7
    %v604 = vsub.s32 0, %v603
    %v605 = vrot.slane %v494, %v604
    %v606 = vmul.f32 %v596, %v601
    %v607 = vmul.f32 %v596, %v605
    %609 = vset.pattern.permute.xlu0 0
    %610 = vperm.xlu0 %609, %v592
    %v611 = vpop.permute.xlu0 %610
    %v613 = vadd.f32 %v606, %v611
    %v614 = vadd.f32 %v607, %v611
    %615 = vset.pattern.permute.xlu0 1
    %616 = vperm.xlu0 %615, %v590
    %v617 = vpop.permute.xlu0 %616
    %v619 = vlaneseq
    %v620 = vshrl.u32 %v619, 7
    %v621 = vsub.s32 1, %v620
    %v622 = vrot.slane %v487, %v621
    %v623 = vlaneseq
    %v624 = vshrl.u32 %v623, 7
    %v625 = vsub.s32 1, %v624
    %v626 = vrot.slane %v494, %v625
    %v627 = vmul.f32 %v617, %v622
    %v628 = vmul.f32 %v617, %v626
    %v629 = vadd.f32 %v613, %v627
    %v630 = vadd.f32 %v614, %v628
    %631 = vset.pattern.permute.xlu0 2
    %632 = vperm.xlu0 %631, %v590
    %v633 = vpop.permute.xlu0 %632
    %v635 = vlaneseq
    %v636 = vshrl.u32 %v635, 7
    %v637 = vsub.s32 2, %v636
    %v638 = vrot.slane %v487, %v637
    %v639 = vlaneseq
    %v640 = vshrl.u32 %v639, 7
    %v641 = vsub.s32 2, %v640
    %v642 = vrot.slane %v494, %v641
    %v643 = vmul.f32 %v633, %v638
    %v644 = vmul.f32 %v633, %v642
    %v645 = vadd.f32 %v629, %v643
    %v646 = vadd.f32 %v630, %v644
    %647 = vset.pattern.permute.xlu0 3
    %648 = vperm.xlu0 %647, %v590
    %v649 = vpop.permute.xlu0 %648
    %v651 = vlaneseq
    %v652 = vshrl.u32 %v651, 7
    %v653 = vsub.s32 3, %v652
    %v654 = vrot.slane %v487, %v653
    %v655 = vlaneseq
    %v656 = vshrl.u32 %v655, 7
    %v657 = vsub.s32 3, %v656
    %v658 = vrot.slane %v494, %v657
    %v659 = vmul.f32 %v649, %v654
    %v660 = vmul.f32 %v649, %v658
    %v661 = vadd.f32 %v645, %v659
    %v662 = vadd.f32 %v646, %v660
    %663 = vset.pattern.permute.xlu0 4
    %664 = vperm.xlu0 %663, %v590
    %v665 = vpop.permute.xlu0 %664
    %v667 = vlaneseq
    %v668 = vshrl.u32 %v667, 7
    %v669 = vsub.s32 4, %v668
    %v670 = vrot.slane %v487, %v669
    %v671 = vlaneseq
    %v672 = vshrl.u32 %v671, 7
    %v673 = vsub.s32 4, %v672
    %v674 = vrot.slane %v494, %v673
    %v675 = vmul.f32 %v665, %v670
    %v676 = vmul.f32 %v665, %v674
    %v677 = vadd.f32 %v661, %v675
    %v678 = vadd.f32 %v662, %v676
    %679 = vset.pattern.permute.xlu0 5
    %680 = vperm.xlu0 %679, %v590
    %v681 = vpop.permute.xlu0 %680
    %v683 = vlaneseq
    %v684 = vshrl.u32 %v683, 7
    %v685 = vsub.s32 5, %v684
    %v686 = vrot.slane %v487, %v685
    %v687 = vlaneseq
    %v688 = vshrl.u32 %v687, 7
    %v689 = vsub.s32 5, %v688
    %v690 = vrot.slane %v494, %v689
    %v691 = vmul.f32 %v681, %v686
    %v692 = vmul.f32 %v681, %v690
    %v693 = vadd.f32 %v677, %v691
    %v694 = vadd.f32 %v678, %v692
    %695 = vset.pattern.permute.xlu0 6
    %696 = vperm.xlu0 %695, %v590
    %v697 = vpop.permute.xlu0 %696
    %v699 = vlaneseq
    %v700 = vshrl.u32 %v699, 7
    %v701 = vsub.s32 6, %v700
    %v702 = vrot.slane %v487, %v701
    %v703 = vlaneseq
    %v704 = vshrl.u32 %v703, 7
    %v705 = vsub.s32 6, %v704
    %v706 = vrot.slane %v494, %v705
    %v707 = vmul.f32 %v697, %v702
    %v708 = vmul.f32 %v697, %v706
    %v709 = vadd.f32 %v693, %v707
    %v710 = vadd.f32 %v694, %v708
    %711 = vset.pattern.permute.xlu0 7
    %712 = vperm.xlu0 %711, %v590
    %v713 = vpop.permute.xlu0 %712
    %v715 = vlaneseq
    %v716 = vshrl.u32 %v715, 7
    %v717 = vsub.s32 7, %v716
    %v718 = vrot.slane %v487, %v717
    %v719 = vlaneseq
    %v720 = vshrl.u32 %v719, 7
    %v721 = vsub.s32 7, %v720
    %v722 = vrot.slane %v494, %v721
    %v723 = vmul.f32 %v713, %v718
    %v724 = vmul.f32 %v713, %v722
    %v725 = vadd.f32 %v709, %v723
    %v726 = vadd.f32 %v710, %v724
    %vm727 = vcmp.ge.f32.partialorder %v725, 0.0
    %vm728 = vcmp.ge.f32.partialorder %v726, 0.0
    %v729 = vmul.f32 %v725, 0.1
    %v730 = vmul.f32 %v726, 0.1
    %v731 = vsel %vm727, %v725, %v729
    %v732 = vsel %vm728, %v726, %v730
    %s733 = scalar_lea.vmem %s1, 16
    %v734 = vld [vmem:[%s733] sm:$0xff]
    %s735 = scalar_lea.vmem %s2, 16
    %v736 = vld [vmem:[%s735] sm:$0xff]
    %738 = vset.pattern.permute.xlu0 0
    %739 = vperm.xlu0 %738, %v734
    %v740 = vpop.permute.xlu0 %739
    %v742 = vlaneseq
    %v743 = vshrl.u32 %v742, 7
    %v744 = vsub.s32 0, %v743
    %v745 = vrot.slane %v731, %v744
    %v746 = vlaneseq
    %v747 = vshrl.u32 %v746, 7
    %v748 = vsub.s32 0, %v747
    %v749 = vrot.slane %v732, %v748
    %v750 = vmul.f32 %v740, %v745
    %v751 = vmul.f32 %v740, %v749
    %753 = vset.pattern.permute.xlu0 0
    %754 = vperm.xlu0 %753, %v736
    %v755 = vpop.permute.xlu0 %754
    %v757 = vadd.f32 %v750, %v755
    %v758 = vadd.f32 %v751, %v755
    %759 = vset.pattern.permute.xlu0 1
    %760 = vperm.xlu0 %759, %v734
    %v761 = vpop.permute.xlu0 %760
    %v763 = vlaneseq
    %v764 = vshrl.u32 %v763, 7
    %v765 = vsub.s32 1, %v764
    %v766 = vrot.slane %v731, %v765
    %v767 = vlaneseq
    %v768 = vshrl.u32 %v767, 7
    %v769 = vsub.s32 1, %v768
    %v770 = vrot.slane %v732, %v769
    %v771 = vmul.f32 %v761, %v766
    %v772 = vmul.f32 %v761, %v770
    %v773 = vadd.f32 %v757, %v771
    %v774 = vadd.f32 %v758, %v772
    %775 = vset.pattern.permute.xlu0 2
    %776 = vperm.xlu0 %775, %v734
    %v777 = vpop.permute.xlu0 %776
    %v779 = vlaneseq
    %v780 = vshrl.u32 %v779, 7
    %v781 = vsub.s32 2, %v780
    %v782 = vrot.slane %v731, %v781
    %v783 = vlaneseq
    %v784 = vshrl.u32 %v783, 7
    %v785 = vsub.s32 2, %v784
    %v786 = vrot.slane %v732, %v785
    %v787 = vmul.f32 %v777, %v782
    %v788 = vmul.f32 %v777, %v786
    %v789 = vadd.f32 %v773, %v787
    %v790 = vadd.f32 %v774, %v788
    %791 = vset.pattern.permute.xlu0 3
    %792 = vperm.xlu0 %791, %v734
    %v793 = vpop.permute.xlu0 %792
    %v795 = vlaneseq
    %v796 = vshrl.u32 %v795, 7
    %v797 = vsub.s32 3, %v796
    %v798 = vrot.slane %v731, %v797
    %v799 = vlaneseq
    %v800 = vshrl.u32 %v799, 7
    %v801 = vsub.s32 3, %v800
    %v802 = vrot.slane %v732, %v801
    %v803 = vmul.f32 %v793, %v798
    %v804 = vmul.f32 %v793, %v802
    %v805 = vadd.f32 %v789, %v803
    %v806 = vadd.f32 %v790, %v804
    %807 = vset.pattern.permute.xlu0 4
    %808 = vperm.xlu0 %807, %v734
    %v809 = vpop.permute.xlu0 %808
    %v811 = vlaneseq
    %v812 = vshrl.u32 %v811, 7
    %v813 = vsub.s32 4, %v812
    %v814 = vrot.slane %v731, %v813
    %v815 = vlaneseq
    %v816 = vshrl.u32 %v815, 7
    %v817 = vsub.s32 4, %v816
    %v818 = vrot.slane %v732, %v817
    %v819 = vmul.f32 %v809, %v814
    %v820 = vmul.f32 %v809, %v818
    %v821 = vadd.f32 %v805, %v819
    %v822 = vadd.f32 %v806, %v820
    %823 = vset.pattern.permute.xlu0 5
    %824 = vperm.xlu0 %823, %v734
    %v825 = vpop.permute.xlu0 %824
    %v827 = vlaneseq
    %v828 = vshrl.u32 %v827, 7
    %v829 = vsub.s32 5, %v828
    %v830 = vrot.slane %v731, %v829
    %v831 = vlaneseq
    %v832 = vshrl.u32 %v831, 7
    %v833 = vsub.s32 5, %v832
    %v834 = vrot.slane %v732, %v833
    %v835 = vmul.f32 %v825, %v830
    %v836 = vmul.f32 %v825, %v834
    %v837 = vadd.f32 %v821, %v835
    %v838 = vadd.f32 %v822, %v836
    %839 = vset.pattern.permute.xlu0 6
    %840 = vperm.xlu0 %839, %v734
    %v841 = vpop.permute.xlu0 %840
    %v843 = vlaneseq
    %v844 = vshrl.u32 %v843, 7
    %v845 = vsub.s32 6, %v844
    %v846 = vrot.slane %v731, %v845
    %v847 = vlaneseq
    %v848 = vshrl.u32 %v847, 7
    %v849 = vsub.s32 6, %v848
    %v850 = vrot.slane %v732, %v849
    %v851 = vmul.f32 %v841, %v846
    %v852 = vmul.f32 %v841, %v850
    %v853 = vadd.f32 %v837, %v851
    %v854 = vadd.f32 %v838, %v852
    %855 = vset.pattern.permute.xlu0 7
    %856 = vperm.xlu0 %855, %v734
    %v857 = vpop.permute.xlu0 %856
    %v859 = vlaneseq
    %v860 = vshrl.u32 %v859, 7
    %v861 = vsub.s32 7, %v860
    %v862 = vrot.slane %v731, %v861
    %v863 = vlaneseq
    %v864 = vshrl.u32 %v863, 7
    %v865 = vsub.s32 7, %v864
    %v866 = vrot.slane %v732, %v865
    %v867 = vmul.f32 %v857, %v862
    %v868 = vmul.f32 %v857, %v866
    %v869 = vadd.f32 %v853, %v867
    %v870 = vadd.f32 %v854, %v868
    %s871 = scalar_lea.vmem %s1, 24
    %v872 = vld [vmem:[%s871] sm:$0xff]
    %s873 = scalar_lea.vmem %s2, 24
    %v874 = vld [vmem:[%s873] sm:$0xff]
    %876 = vset.pattern.permute.xlu0 0
    %877 = vperm.xlu0 %876, %v872
    %v878 = vpop.permute.xlu0 %877
    %v880 = vlaneseq
    %v881 = vshrl.u32 %v880, 7
    %v882 = vsub.s32 0, %v881
    %v883 = vrot.slane %v541, %v882
    %v884 = vlaneseq
    %v885 = vshrl.u32 %v884, 7
    %v886 = vsub.s32 0, %v885
    %v887 = vrot.slane %v588, %v886
    %v888 = vmul.f32 %v878, %v883
    %v889 = vmul.f32 %v878, %v887
    %891 = vset.pattern.permute.xlu0 0
    %892 = vperm.xlu0 %891, %v874
    %v893 = vpop.permute.xlu0 %892
    %v895 = vadd.f32 %v888, %v893
    %v896 = vadd.f32 %v889, %v893
    %897 = vset.pattern.permute.xlu0 1
    %898 = vperm.xlu0 %897, %v872
    %v899 = vpop.permute.xlu0 %898
    %v901 = vlaneseq
    %v902 = vshrl.u32 %v901, 7
    %v903 = vsub.s32 1, %v902
    %v904 = vrot.slane %v541, %v903
    %v905 = vlaneseq
    %v906 = vshrl.u32 %v905, 7
    %v907 = vsub.s32 1, %v906
    %v908 = vrot.slane %v588, %v907
    %v909 = vmul.f32 %v899, %v904
    %v910 = vmul.f32 %v899, %v908
    %v911 = vadd.f32 %v895, %v909
    %v912 = vadd.f32 %v896, %v910
    %913 = vset.pattern.permute.xlu0 2
    %914 = vperm.xlu0 %913, %v872
    %v915 = vpop.permute.xlu0 %914
    %v917 = vlaneseq
    %v918 = vshrl.u32 %v917, 7
    %v919 = vsub.s32 2, %v918
    %v920 = vrot.slane %v541, %v919
    %v921 = vlaneseq
    %v922 = vshrl.u32 %v921, 7
    %v923 = vsub.s32 2, %v922
    %v924 = vrot.slane %v588, %v923
    %v925 = vmul.f32 %v915, %v920
    %v926 = vmul.f32 %v915, %v924
    %v927 = vadd.f32 %v911, %v925
    %v928 = vadd.f32 %v912, %v926
    %929 = vset.pattern.permute.xlu0 3
    %930 = vperm.xlu0 %929, %v872
    %v931 = vpop.permute.xlu0 %930
    %v933 = vlaneseq
    %v934 = vshrl.u32 %v933, 7
    %v935 = vsub.s32 3, %v934
    %v936 = vrot.slane %v541, %v935
    %v937 = vlaneseq
    %v938 = vshrl.u32 %v937, 7
    %v939 = vsub.s32 3, %v938
    %v940 = vrot.slane %v588, %v939
    %v941 = vmul.f32 %v931, %v936
    %v942 = vmul.f32 %v931, %v940
    %v943 = vadd.f32 %v927, %v941
    %v944 = vadd.f32 %v928, %v942
    %945 = vset.pattern.permute.xlu0 4
    %946 = vperm.xlu0 %945, %v872
    %v947 = vpop.permute.xlu0 %946
    %v949 = vlaneseq
    %v950 = vshrl.u32 %v949, 7
    %v951 = vsub.s32 4, %v950
    %v952 = vrot.slane %v541, %v951
    %v953 = vlaneseq
    %v954 = vshrl.u32 %v953, 7
    %v955 = vsub.s32 4, %v954
    %v956 = vrot.slane %v588, %v955
    %v957 = vmul.f32 %v947, %v952
    %v958 = vmul.f32 %v947, %v956
    %v959 = vadd.f32 %v943, %v957
    %v960 = vadd.f32 %v944, %v958
    %961 = vset.pattern.permute.xlu0 5
    %962 = vperm.xlu0 %961, %v872
    %v963 = vpop.permute.xlu0 %962
    %v965 = vlaneseq
    %v966 = vshrl.u32 %v965, 7
    %v967 = vsub.s32 5, %v966
    %v968 = vrot.slane %v541, %v967
    %v969 = vlaneseq
    %v970 = vshrl.u32 %v969, 7
    %v971 = vsub.s32 5, %v970
    %v972 = vrot.slane %v588, %v971
    %v973 = vmul.f32 %v963, %v968
    %v974 = vmul.f32 %v963, %v972
    %v975 = vadd.f32 %v959, %v973
    %v976 = vadd.f32 %v960, %v974
    %977 = vset.pattern.permute.xlu0 6
    %978 = vperm.xlu0 %977, %v872
    %v979 = vpop.permute.xlu0 %978
    %v981 = vlaneseq
    %v982 = vshrl.u32 %v981, 7
    %v983 = vsub.s32 6, %v982
    %v984 = vrot.slane %v541, %v983
    %v985 = vlaneseq
    %v986 = vshrl.u32 %v985, 7
    %v987 = vsub.s32 6, %v986
    %v988 = vrot.slane %v588, %v987
    %v989 = vmul.f32 %v979, %v984
    %v990 = vmul.f32 %v979, %v988
    %v991 = vadd.f32 %v975, %v989
    %v992 = vadd.f32 %v976, %v990
    %993 = vset.pattern.permute.xlu0 7
    %994 = vperm.xlu0 %993, %v872
    %v995 = vpop.permute.xlu0 %994
    %v997 = vlaneseq
    %v998 = vshrl.u32 %v997, 7
    %v999 = vsub.s32 7, %v998
    %v1000 = vrot.slane %v541, %v999
    %v1001 = vlaneseq
    %v1002 = vshrl.u32 %v1001, 7
    %v1003 = vsub.s32 7, %v1002
    %v1004 = vrot.slane %v588, %v1003
    %v1005 = vmul.f32 %v995, %v1000
    %v1006 = vmul.f32 %v995, %v1004
    %v1007 = vadd.f32 %v991, %v1005
    %v1008 = vadd.f32 %v992, %v1006
    %vm1009 = vcmp.ge.f32.partialorder %v1007, 0.0
    %vm1010 = vcmp.ge.f32.partialorder %v1008, 0.0
    %v1011 = vmul.f32 %v1007, 0.1
    %v1012 = vmul.f32 %v1008, 0.1
    %v1013 = vsel %vm1009, %v1007, %v1011
    %v1014 = vsel %vm1010, %v1008, %v1012
    %s1015 = scalar_lea.vmem %s1, 32
    %v1016 = vld [vmem:[%s1015] sm:$0xff]
    %s1017 = scalar_lea.vmem %s2, 32
    %v1018 = vld [vmem:[%s1017] sm:$0xff]
    %1020 = vset.pattern.permute.xlu0 0
    %1021 = vperm.xlu0 %1020, %v1016
    %v1022 = vpop.permute.xlu0 %1021
    %v1024 = vlaneseq
    %v1025 = vshrl.u32 %v1024, 7
    %v1026 = vsub.s32 0, %v1025
    %v1027 = vrot.slane %v1013, %v1026
    %v1028 = vlaneseq
    %v1029 = vshrl.u32 %v1028, 7
    %v1030 = vsub.s32 0, %v1029
    %v1031 = vrot.slane %v1014, %v1030
    %v1032 = vmul.f32 %v1022, %v1027
    %v1033 = vmul.f32 %v1022, %v1031
    %1035 = vset.pattern.permute.xlu0 0
    %1036 = vperm.xlu0 %1035, %v1018
    %v1037 = vpop.permute.xlu0 %1036
    %v1039 = vadd.f32 %v1032, %v1037
    %v1040 = vadd.f32 %v1033, %v1037
    %1041 = vset.pattern.permute.xlu0 1
    %1042 = vperm.xlu0 %1041, %v1016
    %v1043 = vpop.permute.xlu0 %1042
    %v1045 = vlaneseq
    %v1046 = vshrl.u32 %v1045, 7
    %v1047 = vsub.s32 1, %v1046
    %v1048 = vrot.slane %v1013, %v1047
    %v1049 = vlaneseq
    %v1050 = vshrl.u32 %v1049, 7
    %v1051 = vsub.s32 1, %v1050
    %v1052 = vrot.slane %v1014, %v1051
    %v1053 = vmul.f32 %v1043, %v1048
    %v1054 = vmul.f32 %v1043, %v1052
    %v1055 = vadd.f32 %v1039, %v1053
    %v1056 = vadd.f32 %v1040, %v1054
    %1057 = vset.pattern.permute.xlu0 2
    %1058 = vperm.xlu0 %1057, %v1016
    %v1059 = vpop.permute.xlu0 %1058
    %v1061 = vlaneseq
    %v1062 = vshrl.u32 %v1061, 7
    %v1063 = vsub.s32 2, %v1062
    %v1064 = vrot.slane %v1013, %v1063
    %v1065 = vlaneseq
    %v1066 = vshrl.u32 %v1065, 7
    %v1067 = vsub.s32 2, %v1066
    %v1068 = vrot.slane %v1014, %v1067
    %v1069 = vmul.f32 %v1059, %v1064
    %v1070 = vmul.f32 %v1059, %v1068
    %v1071 = vadd.f32 %v1055, %v1069
    %v1072 = vadd.f32 %v1056, %v1070
    %1073 = vset.pattern.permute.xlu0 3
    %1074 = vperm.xlu0 %1073, %v1016
    %v1075 = vpop.permute.xlu0 %1074
    %v1077 = vlaneseq
    %v1078 = vshrl.u32 %v1077, 7
    %v1079 = vsub.s32 3, %v1078
    %v1080 = vrot.slane %v1013, %v1079
    %v1081 = vlaneseq
    %v1082 = vshrl.u32 %v1081, 7
    %v1083 = vsub.s32 3, %v1082
    %v1084 = vrot.slane %v1014, %v1083
    %v1085 = vmul.f32 %v1075, %v1080
    %v1086 = vmul.f32 %v1075, %v1084
    %v1087 = vadd.f32 %v1071, %v1085
    %v1088 = vadd.f32 %v1072, %v1086
    %1089 = vset.pattern.permute.xlu0 4
    %1090 = vperm.xlu0 %1089, %v1016
    %v1091 = vpop.permute.xlu0 %1090
    %v1093 = vlaneseq
    %v1094 = vshrl.u32 %v1093, 7
    %v1095 = vsub.s32 4, %v1094
    %v1096 = vrot.slane %v1013, %v1095
    %v1097 = vlaneseq
    %v1098 = vshrl.u32 %v1097, 7
    %v1099 = vsub.s32 4, %v1098
    %v1100 = vrot.slane %v1014, %v1099
    %v1101 = vmul.f32 %v1091, %v1096
    %v1102 = vmul.f32 %v1091, %v1100
    %v1103 = vadd.f32 %v1087, %v1101
    %v1104 = vadd.f32 %v1088, %v1102
    %1105 = vset.pattern.permute.xlu0 5
    %1106 = vperm.xlu0 %1105, %v1016
    %v1107 = vpop.permute.xlu0 %1106
    %v1109 = vlaneseq
    %v1110 = vshrl.u32 %v1109, 7
    %v1111 = vsub.s32 5, %v1110
    %v1112 = vrot.slane %v1013, %v1111
    %v1113 = vlaneseq
    %v1114 = vshrl.u32 %v1113, 7
    %v1115 = vsub.s32 5, %v1114
    %v1116 = vrot.slane %v1014, %v1115
    %v1117 = vmul.f32 %v1107, %v1112
    %v1118 = vmul.f32 %v1107, %v1116
    %v1119 = vadd.f32 %v1103, %v1117
    %v1120 = vadd.f32 %v1104, %v1118
    %1121 = vset.pattern.permute.xlu0 6
    %1122 = vperm.xlu0 %1121, %v1016
    %v1123 = vpop.permute.xlu0 %1122
    %v1125 = vlaneseq
    %v1126 = vshrl.u32 %v1125, 7
    %v1127 = vsub.s32 6, %v1126
    %v1128 = vrot.slane %v1013, %v1127
    %v1129 = vlaneseq
    %v1130 = vshrl.u32 %v1129, 7
    %v1131 = vsub.s32 6, %v1130
    %v1132 = vrot.slane %v1014, %v1131
    %v1133 = vmul.f32 %v1123, %v1128
    %v1134 = vmul.f32 %v1123, %v1132
    %v1135 = vadd.f32 %v1119, %v1133
    %v1136 = vadd.f32 %v1120, %v1134
    %1137 = vset.pattern.permute.xlu0 7
    %1138 = vperm.xlu0 %1137, %v1016
    %v1139 = vpop.permute.xlu0 %1138
    %v1141 = vlaneseq
    %v1142 = vshrl.u32 %v1141, 7
    %v1143 = vsub.s32 7, %v1142
    %v1144 = vrot.slane %v1013, %v1143
    %v1145 = vlaneseq
    %v1146 = vshrl.u32 %v1145, 7
    %v1147 = vsub.s32 7, %v1146
    %v1148 = vrot.slane %v1014, %v1147
    %v1149 = vmul.f32 %v1139, %v1144
    %v1150 = vmul.f32 %v1139, %v1148
    %v1151 = vadd.f32 %v1135, %v1149
    %v1152 = vadd.f32 %v1136, %v1150
    %v1153 = vand.u32 2147483647, %v1151
    %vm1154 = vcmp.le.f32.partialorder %v1153, 0.7853982
    %vm1155 = vcmp.lt.s32.totalorder %v1151, 0
    %v1156 = vand.u32 %v1151, 2139095040
    %v1157 = vshrl.u32 %v1156, 23
    %v1158 = vsub.s32 %v1157, 127
    %v1159 = vand.u32 2147483647, %v1151
    %v1160 = vand.u32 %v1159, 8388607
    %v1161 = vor.u32 %v1160, 8388608
    %v1162 = vsub.s32 0, %v1161
    %v1163 = vadd.s32 %v1158, 1
    %vm1164 = vcmp.gt.s32.totalorder %v1163, 0
    %v1165 = vsel %vm1164, %v1163, 0
    %v1166 = vshrl.u32 %v1165, 5
    %v1167 = vand.u32 %v1165, 31
    %v1168 = vsub.s32 32, %v1167
    %v1169 = vshrl.u32 683565275, %v1168
    %v1170 = vshll.u32 683565275, %v1167
    %v1171 = vshrl.u32 2475754826, %v1168
    %v1172 = vor.u32 %v1170, %v1171
    %v1173 = vshll.u32 2475754826, %v1167
    %v1174 = vshrl.u32 2131351028, %v1168
    %v1175 = vor.u32 %v1173, %v1174
    %v1176 = vshll.u32 2131351028, %v1167
    %v1177 = vshrl.u32 2102212464, %v1168
    %v1178 = vor.u32 %v1176, %v1177
    %v1179 = vshll.u32 2102212464, %v1167
    %v1180 = vshrl.u32 920167782, %v1168
    %v1181 = vor.u32 %v1179, %v1180
    %v1182 = vshll.u32 920167782, %v1167
    %v1183 = vshrl.u32 1326507024, %v1168
    %v1184 = vor.u32 %v1182, %v1183
    %vm1185 = vcmp.lt.s32.totalorder %v1166, 1
    %vm1186 = vcmp.lt.s32.totalorder %v1166, 2
    %vm1187 = vcmp.lt.s32.totalorder %v1166, 3
    %vm1188 = vcmp.lt.s32.totalorder %v1166, 4
    %v1189 = vsel %vm1185, %v1169, %v1172
    %v1190 = vsel %vm1188, %v1178, 2102212464
    %v1191 = vsel %vm1187, %v1175, %v1190
    %v1192 = vsel %vm1186, %v1189, %v1191
    %v1193 = vsel %vm1185, %v1172, %v1175
    %v1194 = vsel %vm1188, %v1181, 920167782
    %v1195 = vsel %vm1187, %v1178, %v1194
    %v1196 = vsel %vm1186, %v1193, %v1195
    %v1197 = vsel %vm1185, %v1175, %v1178
    %v1198 = vsel %vm1188, %v1184, 1326507024
    %v1199 = vsel %vm1187, %v1181, %v1198
    %v1200 = vsel %vm1186, %v1197, %v1199
    %v1201 = vshll.u32 %v1161, 8
    %v1202 = vmul.u32.u64.compose %v1201, %v1200
    %v1203 = vextract.low.u32 %v1202
    %v1204 = vextract.high.u32 %v1202
    %v1205 = vmul.u32.u64.compose %v1201, %v1196
    %v1206 = vextract.low.u32 %v1205
    %v1207 = vextract.high.u32 %v1205
    %v1208 = vmul.u32 %v1201, %v1192
    %v1209 = vadd.s32 %v1204, %v1206
    %vm1210 = vc.u32 %v1204, %v1206
    %v1211 = vadd.s32 %v1207, 1
    %v1212 = vsel %vm1210, %v1211, %v1207
    %v1213 = vadd.s32 %v1208, %v1212
    %v1214 = vadd.s32 %v1213, 536870912
    %v1215 = vshrl.u32 %v1214, 30
    %v1216 = vshll.u32 %v1215, 30
    %v1217 = vsub.s32 %v1213, %v1216
    %vm1218 = vcmp.lt.s32.totalorder %v1217, 0
    %v1219 = vsub.s32 0, %v1217
    %v1220 = vsel %vm1218, %v1219, %v1217
    %v1221 = vclz %v1220
    %v1222 = vsub.s32 %v1221, 2
    %vm1223 = vcmp.gt.s32.totalorder 0, %v1222
    %v1224 = vsel %vm1223, 0, %v1222
    %v1225 = vsub.s32 32, %v1224
    %v1226 = vshll.u32 %v1217, %v1224
    %v1227 = vshrl.u32 %v1209, %v1225
    %v1228 = vor.u32 %v1226, %v1227
    %v1229 = vsub.s32 4294967266, %v1224
    %v1230 = vadd.s32 %v1229, 127
    %v1231 = vshll.u32 %v1230, 23
    %v1232 = vor.u32 4788187, %v1231
    %v1233 = vand.u32 2147483647, %v1232
    %v1235 = vcvt.s32.f32 %v1228
    %v1236 = vmul.f32 %v1235, %v1233
    %v1237 = vxor.u32 %v1236, 2147483648
    %v1238 = vsel %vm1155, %v1237, %v1236
    %v1239 = vsub.s32 4, %v1215
    %v1240 = vsel %vm1155, %v1239, %v1215
    %v1241 = vsel %vm1154, %v1151, %v1238
    %v1242 = vsel %vm1154, 0, %v1240
    %v1243 = vcosq.f32.pop %v1241
    %v1244 = vsinq.f32.pop %v1241
    %vm1245 = vweird.f32 %v1151
    %v1246 = vand.u32 %v1242, 3
    %vm1247 = vcmp.lt.s32.totalorder %v1246, 2
    %vm1248 = vcmp.eq.s32.totalorder %v1246, 0
    %v1249 = vxor.u32 %v1244, 2147483648
    %v1250 = vsel %vm1248, %v1243, %v1249
    %vm1251 = vcmp.eq.s32.totalorder %v1246, 2
    %v1252 = vxor.u32 %v1243, 2147483648
    %v1253 = vsel %vm1251, %v1252, %v1244
    %v1254 = vsel %vm1247, %v1250, %v1253
    %v1255 = vsel %vm1245, nan, %v1254
    %v1256 = vand.u32 2147483647, %v1152
    %vm1257 = vcmp.le.f32.partialorder %v1256, 0.7853982
    %vm1258 = vcmp.lt.s32.totalorder %v1152, 0
    %v1259 = vand.u32 %v1152, 2139095040
    %v1260 = vshrl.u32 %v1259, 23
    %v1261 = vsub.s32 %v1260, 127
    %v1262 = vand.u32 2147483647, %v1152
    %v1263 = vand.u32 %v1262, 8388607
    %v1264 = vor.u32 %v1263, 8388608
    %v1265 = vsub.s32 0, %v1264
    %v1266 = vadd.s32 %v1261, 1
    %vm1267 = vcmp.gt.s32.totalorder %v1266, 0
    %v1268 = vsel %vm1267, %v1266, 0
    %v1269 = vshrl.u32 %v1268, 5
    %v1270 = vand.u32 %v1268, 31
    %v1271 = vsub.s32 32, %v1270
    %v1272 = vshrl.u32 683565275, %v1271
    %v1273 = vshll.u32 683565275, %v1270
    %v1274 = vshrl.u32 2475754826, %v1271
    %v1275 = vor.u32 %v1273, %v1274
    %v1276 = vshll.u32 2475754826, %v1270
    %v1277 = vshrl.u32 2131351028, %v1271
    %v1278 = vor.u32 %v1276, %v1277
    %v1279 = vshll.u32 2131351028, %v1270
    %v1280 = vshrl.u32 2102212464, %v1271
    %v1281 = vor.u32 %v1279, %v1280
    %v1282 = vshll.u32 2102212464, %v1270
    %v1283 = vshrl.u32 920167782, %v1271
    %v1284 = vor.u32 %v1282, %v1283
    %v1285 = vshll.u32 920167782, %v1270
    %v1286 = vshrl.u32 1326507024, %v1271
    %v1287 = vor.u32 %v1285, %v1286
    %vm1288 = vcmp.lt.s32.totalorder %v1269, 1
    %vm1289 = vcmp.lt.s32.totalorder %v1269, 2
    %vm1290 = vcmp.lt.s32.totalorder %v1269, 3
    %vm1291 = vcmp.lt.s32.totalorder %v1269, 4
    %v1292 = vsel %vm1288, %v1272, %v1275
    %v1293 = vsel %vm1291, %v1281, 2102212464
    %v1294 = vsel %vm1290, %v1278, %v1293
    %v1295 = vsel %vm1289, %v1292, %v1294
    %v1296 = vsel %vm1288, %v1275, %v1278
    %v1297 = vsel %vm1291, %v1284, 920167782
    %v1298 = vsel %vm1290, %v1281, %v1297
    %v1299 = vsel %vm1289, %v1296, %v1298
    %v1300 = vsel %vm1288, %v1278, %v1281
    %v1301 = vsel %vm1291, %v1287, 1326507024
    %v1302 = vsel %vm1290, %v1284, %v1301
    %v1303 = vsel %vm1289, %v1300, %v1302
    %v1304 = vshll.u32 %v1264, 8
    %v1305 = vmul.u32.u64.compose %v1304, %v1303
    %v1306 = vextract.low.u32 %v1305
    %v1307 = vextract.high.u32 %v1305
    %v1308 = vmul.u32.u64.compose %v1304, %v1299
    %v1309 = vextract.low.u32 %v1308
    %v1310 = vextract.high.u32 %v1308
    %v1311 = vmul.u32 %v1304, %v1295
    %v1312 = vadd.s32 %v1307, %v1309
    %vm1313 = vc.u32 %v1307, %v1309
    %v1314 = vadd.s32 %v1310, 1
    %v1315 = vsel %vm1313, %v1314, %v1310
    %v1316 = vadd.s32 %v1311, %v1315
    %v1317 = vadd.s32 %v1316, 536870912
    %v1318 = vshrl.u32 %v1317, 30
    %v1319 = vshll.u32 %v1318, 30
    %v1320 = vsub.s32 %v1316, %v1319
    %vm1321 = vcmp.lt.s32.totalorder %v1320, 0
    %v1322 = vsub.s32 0, %v1320
    %v1323 = vsel %vm1321, %v1322, %v1320
    %v1324 = vclz %v1323
    %v1325 = vsub.s32 %v1324, 2
    %vm1326 = vcmp.gt.s32.totalorder 0, %v1325
    %v1327 = vsel %vm1326, 0, %v1325
    %v1328 = vsub.s32 32, %v1327
    %v1329 = vshll.u32 %v1320, %v1327
    %v1330 = vshrl.u32 %v1312, %v1328
    %v1331 = vor.u32 %v1329, %v1330
    %v1332 = vsub.s32 4294967266, %v1327
    %v1333 = vadd.s32 %v1332, 127
    %v1334 = vshll.u32 %v1333, 23
    %v1335 = vor.u32 4788187, %v1334
    %v1336 = vand.u32 2147483647, %v1335
    %v1338 = vcvt.s32.f32 %v1331
    %v1339 = vmul.f32 %v1338, %v1336
    %v1340 = vxor.u32 %v1339, 2147483648
    %v1341 = vsel %vm1258, %v1340, %v1339
    %v1342 = vsub.s32 4, %v1318
    %v1343 = vsel %vm1258, %v1342, %v1318
    %v1344 = vsel %vm1257, %v1152, %v1341
    %v1345 = vsel %vm1257, 0, %v1343
    %v1346 = vcosq.f32.pop %v1344
    %v1347 = vsinq.f32.pop %v1344
    %vm1348 = vweird.f32 %v1152
    %v1349 = vand.u32 %v1345, 3
    %vm1350 = vcmp.lt.s32.totalorder %v1349, 2
    %vm1351 = vcmp.eq.s32.totalorder %v1349, 0
    %v1352 = vxor.u32 %v1347, 2147483648
    %v1353 = vsel %vm1351, %v1346, %v1352
    %vm1354 = vcmp.eq.s32.totalorder %v1349, 2
    %v1355 = vxor.u32 %v1346, 2147483648
    %v1356 = vsel %vm1354, %v1355, %v1347
    %v1357 = vsel %vm1350, %v1353, %v1356
    %v1358 = vsel %vm1348, nan, %v1357
    %v1359 = vmul.f32 %v869, %v1255
    %v1360 = vmul.f32 %v870, %v1358
    %v1361 = vand.u32 2147483647, %v1151
    %vm1362 = vcmp.le.f32.partialorder %v1361, 0.7853982
    %vm1363 = vcmp.lt.s32.totalorder %v1151, 0
    %v1364 = vand.u32 %v1151, 2139095040
    %v1365 = vshrl.u32 %v1364, 23
    %v1366 = vsub.s32 %v1365, 127
    %v1367 = vand.u32 2147483647, %v1151
    %v1368 = vand.u32 %v1367, 8388607
    %v1369 = vor.u32 %v1368, 8388608
    %v1370 = vsub.s32 0, %v1369
    %v1371 = vadd.s32 %v1366, 1
    %vm1372 = vcmp.gt.s32.totalorder %v1371, 0
    %v1373 = vsel %vm1372, %v1371, 0
    %v1374 = vshrl.u32 %v1373, 5
    %v1375 = vand.u32 %v1373, 31
    %v1376 = vsub.s32 32, %v1375
    %v1377 = vshrl.u32 683565275, %v1376
    %v1378 = vshll.u32 683565275, %v1375
    %v1379 = vshrl.u32 2475754826, %v1376
    %v1380 = vor.u32 %v1378, %v1379
    %v1381 = vshll.u32 2475754826, %v1375
    %v1382 = vshrl.u32 2131351028, %v1376
    %v1383 = vor.u32 %v1381, %v1382
    %v1384 = vshll.u32 2131351028, %v1375
    %v1385 = vshrl.u32 2102212464, %v1376
    %v1386 = vor.u32 %v1384, %v1385
    %v1387 = vshll.u32 2102212464, %v1375
    %v1388 = vshrl.u32 920167782, %v1376
    %v1389 = vor.u32 %v1387, %v1388
    %v1390 = vshll.u32 920167782, %v1375
    %v1391 = vshrl.u32 1326507024, %v1376
    %v1392 = vor.u32 %v1390, %v1391
    %vm1393 = vcmp.lt.s32.totalorder %v1374, 1
    %vm1394 = vcmp.lt.s32.totalorder %v1374, 2
    %vm1395 = vcmp.lt.s32.totalorder %v1374, 3
    %vm1396 = vcmp.lt.s32.totalorder %v1374, 4
    %v1397 = vsel %vm1393, %v1377, %v1380
    %v1398 = vsel %vm1396, %v1386, 2102212464
    %v1399 = vsel %vm1395, %v1383, %v1398
    %v1400 = vsel %vm1394, %v1397, %v1399
    %v1401 = vsel %vm1393, %v1380, %v1383
    %v1402 = vsel %vm1396, %v1389, 920167782
    %v1403 = vsel %vm1395, %v1386, %v1402
    %v1404 = vsel %vm1394, %v1401, %v1403
    %v1405 = vsel %vm1393, %v1383, %v1386
    %v1406 = vsel %vm1396, %v1392, 1326507024
    %v1407 = vsel %vm1395, %v1389, %v1406
    %v1408 = vsel %vm1394, %v1405, %v1407
    %v1409 = vshll.u32 %v1369, 8
    %v1410 = vmul.u32.u64.compose %v1409, %v1408
    %v1411 = vextract.low.u32 %v1410
    %v1412 = vextract.high.u32 %v1410
    %v1413 = vmul.u32.u64.compose %v1409, %v1404
    %v1414 = vextract.low.u32 %v1413
    %v1415 = vextract.high.u32 %v1413
    %v1416 = vmul.u32 %v1409, %v1400
    %v1417 = vadd.s32 %v1412, %v1414
    %vm1418 = vc.u32 %v1412, %v1414
    %v1419 = vadd.s32 %v1415, 1
    %v1420 = vsel %vm1418, %v1419, %v1415
    %v1421 = vadd.s32 %v1416, %v1420
    %v1422 = vadd.s32 %v1421, 536870912
    %v1423 = vshrl.u32 %v1422, 30
    %v1424 = vshll.u32 %v1423, 30
    %v1425 = vsub.s32 %v1421, %v1424
    %vm1426 = vcmp.lt.s32.totalorder %v1425, 0
    %v1427 = vsub.s32 0, %v1425
    %v1428 = vsel %vm1426, %v1427, %v1425
    %v1429 = vclz %v1428
    %v1430 = vsub.s32 %v1429, 2
    %vm1431 = vcmp.gt.s32.totalorder 0, %v1430
    %v1432 = vsel %vm1431, 0, %v1430
    %v1433 = vsub.s32 32, %v1432
    %v1434 = vshll.u32 %v1425, %v1432
    %v1435 = vshrl.u32 %v1417, %v1433
    %v1436 = vor.u32 %v1434, %v1435
    %v1437 = vsub.s32 4294967266, %v1432
    %v1438 = vadd.s32 %v1437, 127
    %v1439 = vshll.u32 %v1438, 23
    %v1440 = vor.u32 4788187, %v1439
    %v1441 = vand.u32 2147483647, %v1440
    %v1443 = vcvt.s32.f32 %v1436
    %v1444 = vmul.f32 %v1443, %v1441
    %v1445 = vxor.u32 %v1444, 2147483648
    %v1446 = vsel %vm1363, %v1445, %v1444
    %v1447 = vsub.s32 4, %v1423
    %v1448 = vsel %vm1363, %v1447, %v1423
    %v1449 = vsel %vm1362, %v1151, %v1446
    %v1450 = vsel %vm1362, 0, %v1448
    %v1451 = vcosq.f32.pop %v1449
    %v1452 = vsinq.f32.pop %v1449
    %vm1453 = vweird.f32 %v1151
    %v1454 = vadd.s32 %v1450, 3
    %v1455 = vand.u32 %v1454, 3
    %vm1456 = vcmp.lt.s32.totalorder %v1455, 2
    %vm1457 = vcmp.eq.s32.totalorder %v1455, 0
    %v1458 = vxor.u32 %v1452, 2147483648
    %v1459 = vsel %vm1457, %v1451, %v1458
    %vm1460 = vcmp.eq.s32.totalorder %v1455, 2
    %v1461 = vxor.u32 %v1451, 2147483648
    %v1462 = vsel %vm1460, %v1461, %v1452
    %v1463 = vsel %vm1456, %v1459, %v1462
    %v1464 = vsel %vm1453, nan, %v1463
    %v1465 = vand.u32 2147483647, %v1152
    %vm1466 = vcmp.le.f32.partialorder %v1465, 0.7853982
    %vm1467 = vcmp.lt.s32.totalorder %v1152, 0
    %v1468 = vand.u32 %v1152, 2139095040
    %v1469 = vshrl.u32 %v1468, 23
    %v1470 = vsub.s32 %v1469, 127
    %v1471 = vand.u32 2147483647, %v1152
    %v1472 = vand.u32 %v1471, 8388607
    %v1473 = vor.u32 %v1472, 8388608
    %v1474 = vsub.s32 0, %v1473
    %v1475 = vadd.s32 %v1470, 1
    %vm1476 = vcmp.gt.s32.totalorder %v1475, 0
    %v1477 = vsel %vm1476, %v1475, 0
    %v1478 = vshrl.u32 %v1477, 5
    %v1479 = vand.u32 %v1477, 31
    %v1480 = vsub.s32 32, %v1479
    %v1481 = vshrl.u32 683565275, %v1480
    %v1482 = vshll.u32 683565275, %v1479
    %v1483 = vshrl.u32 2475754826, %v1480
    %v1484 = vor.u32 %v1482, %v1483
    %v1485 = vshll.u32 2475754826, %v1479
    %v1486 = vshrl.u32 2131351028, %v1480
    %v1487 = vor.u32 %v1485, %v1486
    %v1488 = vshll.u32 2131351028, %v1479
    %v1489 = vshrl.u32 2102212464, %v1480
    %v1490 = vor.u32 %v1488, %v1489
    %v1491 = vshll.u32 2102212464, %v1479
    %v1492 = vshrl.u32 920167782, %v1480
    %v1493 = vor.u32 %v1491, %v1492
    %v1494 = vshll.u32 920167782, %v1479
    %v1495 = vshrl.u32 1326507024, %v1480
    %v1496 = vor.u32 %v1494, %v1495
    %vm1497 = vcmp.lt.s32.totalorder %v1478, 1
    %vm1498 = vcmp.lt.s32.totalorder %v1478, 2
    %vm1499 = vcmp.lt.s32.totalorder %v1478, 3
    %vm1500 = vcmp.lt.s32.totalorder %v1478, 4
    %v1501 = vsel %vm1497, %v1481, %v1484
    %v1502 = vsel %vm1500, %v1490, 2102212464
    %v1503 = vsel %vm1499, %v1487, %v1502
    %v1504 = vsel %vm1498, %v1501, %v1503
    %v1505 = vsel %vm1497, %v1484, %v1487
    %v1506 = vsel %vm1500, %v1493, 920167782
    %v1507 = vsel %vm1499, %v1490, %v1506
    %v1508 = vsel %vm1498, %v1505, %v1507
    %v1509 = vsel %vm1497, %v1487, %v1490
    %v1510 = vsel %vm1500, %v1496, 1326507024
    %v1511 = vsel %vm1499, %v1493, %v1510
    %v1512 = vsel %vm1498, %v1509, %v1511
    %v1513 = vshll.u32 %v1473, 8
    %v1514 = vmul.u32.u64.compose %v1513, %v1512
    %v1515 = vextract.low.u32 %v1514
    %v1516 = vextract.high.u32 %v1514
    %v1517 = vmul.u32.u64.compose %v1513, %v1508
    %v1518 = vextract.low.u32 %v1517
    %v1519 = vextract.high.u32 %v1517
    %v1520 = vmul.u32 %v1513, %v1504
    %v1521 = vadd.s32 %v1516, %v1518
    %vm1522 = vc.u32 %v1516, %v1518
    %v1523 = vadd.s32 %v1519, 1
    %v1524 = vsel %vm1522, %v1523, %v1519
    %v1525 = vadd.s32 %v1520, %v1524
    %v1526 = vadd.s32 %v1525, 536870912
    %v1527 = vshrl.u32 %v1526, 30
    %v1528 = vshll.u32 %v1527, 30
    %v1529 = vsub.s32 %v1525, %v1528
    %vm1530 = vcmp.lt.s32.totalorder %v1529, 0
    %v1531 = vsub.s32 0, %v1529
    %v1532 = vsel %vm1530, %v1531, %v1529
    %v1533 = vclz %v1532
    %v1534 = vsub.s32 %v1533, 2
    %vm1535 = vcmp.gt.s32.totalorder 0, %v1534
    %v1536 = vsel %vm1535, 0, %v1534
    %v1537 = vsub.s32 32, %v1536
    %v1538 = vshll.u32 %v1529, %v1536
    %v1539 = vshrl.u32 %v1521, %v1537
    %v1540 = vor.u32 %v1538, %v1539
    %v1541 = vsub.s32 4294967266, %v1536
    %v1542 = vadd.s32 %v1541, 127
    %v1543 = vshll.u32 %v1542, 23
    %v1544 = vor.u32 4788187, %v1543
    %v1545 = vand.u32 2147483647, %v1544
    %v1547 = vcvt.s32.f32 %v1540
    %v1548 = vmul.f32 %v1547, %v1545
    %v1549 = vxor.u32 %v1548, 2147483648
    %v1550 = vsel %vm1467, %v1549, %v1548
    %v1551 = vsub.s32 4, %v1527
    %v1552 = vsel %vm1467, %v1551, %v1527
    %v1553 = vsel %vm1466, %v1152, %v1550
    %v1554 = vsel %vm1466, 0, %v1552
    %v1555 = vcosq.f32.pop %v1553
    %v1556 = vsinq.f32.pop %v1553
    %vm1557 = vweird.f32 %v1152
    %v1558 = vadd.s32 %v1554, 3
    %v1559 = vand.u32 %v1558, 3
    %vm1560 = vcmp.lt.s32.totalorder %v1559, 2
    %vm1561 = vcmp.eq.s32.totalorder %v1559, 0
    %v1562 = vxor.u32 %v1556, 2147483648
    %v1563 = vsel %vm1561, %v1555, %v1562
    %vm1564 = vcmp.eq.s32.totalorder %v1559, 2
    %v1565 = vxor.u32 %v1555, 2147483648
    %v1566 = vsel %vm1564, %v1565, %v1556
    %v1567 = vsel %vm1560, %v1563, %v1566
    %v1568 = vsel %vm1557, nan, %v1567
    %v1569 = vmul.f32 %v869, %v1464
    %v1570 = vmul.f32 %v870, %v1568
    %v1571 = vld [vmem:[#allocation6] sm:$0xff]
    %v1572 = vld [vmem:[#allocation6 + $0x8] sm:$0xff]
    %v1573 = vld [vmem:[#allocation6 + $0x10] sm:$0xff]
    %v1574 = vld [vmem:[#allocation6 + $0x18] sm:$0xff]
    %v1575 = vld [vmem:[#allocation6 + $0x20] sm:$0xff]
    %v1576 = vld [vmem:[#allocation6 + $0x28] sm:$0xff]
    %v1577 = vld [vmem:[#allocation6 + $0x30] sm:$0xff]
    %v1578 = vld [vmem:[#allocation6 + $0x38] sm:$0xff]
    %v1579 = vld [vmem:[#allocation6 + $0x40] sm:$0xff]
    %v1580 = vld [vmem:[#allocation6 + $0x48] sm:$0xff]
    %v1581 = vld [vmem:[#allocation6 + $0x50] sm:$0xff]
    %v1582 = vld [vmem:[#allocation6 + $0x58] sm:$0xff]
    %v1583 = vld [vmem:[#allocation6 + $0x60] sm:$0xff]
    %v1584 = vld [vmem:[#allocation6 + $0x68] sm:$0xff]
    %v1585 = vld [vmem:[#allocation6 + $0x70] sm:$0xff]
    %v1586 = vld [vmem:[#allocation6 + $0x78] sm:$0xff]
    %v1587 = vld [vmem:[#allocation6 + $0x80] sm:$0xff]
    %v1588 = vld [vmem:[#allocation6 + $0x88] sm:$0xff]
    %v1589 = vld [vmem:[#allocation6 + $0x90] sm:$0xff]
    %v1590 = vld [vmem:[#allocation6 + $0x98] sm:$0xff]
    %v1591 = vld [vmem:[#allocation6 + $0xa0] sm:$0xff]
    %v1592 = vld [vmem:[#allocation6 + $0xa8] sm:$0xff]
    %v1593 = vld [vmem:[#allocation6 + $0xb0] sm:$0xff]
    %v1594 = vld [vmem:[#allocation6 + $0xb8] sm:$0xff]
    %v1595 = vld [vmem:[#allocation6 + $0xc0] sm:$0xff]
    %v1596 = vld [vmem:[#allocation6 + $0xc8] sm:$0xff]
    %v1597 = vld [vmem:[#allocation6 + $0xd0] sm:$0xff]
    %v1598 = vld [vmem:[#allocation6 + $0xd8] sm:$0xff]
    %v1599 = vld [vmem:[#allocation6 + $0xe0] sm:$0xff]
    %v1600 = vld [vmem:[#allocation6 + $0xe8] sm:$0xff]
    %v1601 = vld [vmem:[#allocation6 + $0xf0] sm:$0xff]
    %v1602 = vld [vmem:[#allocation6 + $0xf8] sm:$0xff]
    %v1603 = vld [vmem:[#allocation6 + $0x100] sm:$0xff]
    %v1604 = vld [vmem:[#allocation6 + $0x108] sm:$0xff]
    %v1605 = vld [vmem:[#allocation6 + $0x110] sm:$0xff]
    %v1606 = vld [vmem:[#allocation6 + $0x118] sm:$0xff]
    %v1607 = vld [vmem:[#allocation6 + $0x120] sm:$0xff]
    %v1608 = vld [vmem:[#allocation6 + $0x128] sm:$0xff]
    %v1609 = vld [vmem:[#allocation6 + $0x130] sm:$0xff]
    %v1610 = vld [vmem:[#allocation6 + $0x138] sm:$0xff]
    %v1611 = vld [vmem:[#allocation6 + $0x140] sm:$0xff]
    %v1612 = vld [vmem:[#allocation6 + $0x148] sm:$0xff]
    %v1613 = vld [vmem:[#allocation6 + $0x150] sm:$0xff]
    %v1614 = vld [vmem:[#allocation6 + $0x158] sm:$0xff]
    %v1615 = vld [vmem:[#allocation6 + $0x160] sm:$0xff]
    %v1616 = vld [vmem:[#allocation6 + $0x168] sm:$0xff]
    %v1617 = vld [vmem:[#allocation6 + $0x170] sm:$0xff]
    %v1618 = vld [vmem:[#allocation6 + $0x178] sm:$0xff]
    %v1619 = vld [vmem:[#allocation6 + $0x180] sm:$0xff]
    %v1620 = vld [vmem:[#allocation6 + $0x188] sm:$0xff]
    %v1621 = vld [vmem:[#allocation6 + $0x190] sm:$0xff]
    %v1622 = vld [vmem:[#allocation6 + $0x198] sm:$0xff]
    %v1623 = vld [vmem:[#allocation6 + $0x1a0] sm:$0xff]
    %v1624 = vld [vmem:[#allocation6 + $0x1a8] sm:$0xff]
    %v1625 = vld [vmem:[#allocation6 + $0x1b0] sm:$0xff]
    %v1626 = vld [vmem:[#allocation6 + $0x1b8] sm:$0xff]
    %v1627 = vld [vmem:[#allocation6 + $0x1c0] sm:$0xff]
    %v1628 = vld [vmem:[#allocation6 + $0x1c8] sm:$0xff]
    %v1629 = vld [vmem:[#allocation6 + $0x1d0] sm:$0xff]
    %v1630 = vld [vmem:[#allocation6 + $0x1d8] sm:$0xff]
    %v1631 = vld [vmem:[#allocation6 + $0x1e0] sm:$0xff]
    %v1632 = vld [vmem:[#allocation6 + $0x1e8] sm:$0xff]
    %v1633 = vld [vmem:[#allocation6 + $0x1f0] sm:$0xff]
    %v1634 = vld [vmem:[#allocation6 + $0x1f8] sm:$0xff]
    %v1635 = vld [vmem:[%s6] sm:$0xff]
    %v1636 = vld [vmem:[%s6 + $0x8] sm:$0xff]
    %v1637 = vld [vmem:[%s6 + $0x10] sm:$0xff]
    %v1638 = vld [vmem:[%s6 + $0x18] sm:$0xff]
    %v1639 = vld [vmem:[%s6 + $0x20] sm:$0xff]
    %v1640 = vld [vmem:[%s6 + $0x28] sm:$0xff]
    %v1641 = vld [vmem:[%s6 + $0x30] sm:$0xff]
    %v1642 = vld [vmem:[%s6 + $0x38] sm:$0xff]
    %v1643 = vld [vmem:[%s6 + $0x40] sm:$0xff]
    %v1644 = vld [vmem:[%s6 + $0x48] sm:$0xff]
    %v1645 = vld [vmem:[%s6 + $0x50] sm:$0xff]
    %v1646 = vld [vmem:[%s6 + $0x58] sm:$0xff]
    %v1647 = vld [vmem:[%s6 + $0x60] sm:$0xff]
    %v1648 = vld [vmem:[%s6 + $0x68] sm:$0xff]
    %v1649 = vld [vmem:[%s6 + $0x70] sm:$0xff]
    %v1650 = vld [vmem:[%s6 + $0x78] sm:$0xff]
    %v1651 = vld [vmem:[%s6 + $0x80] sm:$0xff]
    %v1652 = vld [vmem:[%s6 + $0x88] sm:$0xff]
    %v1653 = vld [vmem:[%s6 + $0x90] sm:$0xff]
    %v1654 = vld [vmem:[%s6 + $0x98] sm:$0xff]
    %v1655 = vld [vmem:[%s6 + $0xa0] sm:$0xff]
    %v1656 = vld [vmem:[%s6 + $0xa8] sm:$0xff]
    %v1657 = vld [vmem:[%s6 + $0xb0] sm:$0xff]
    %v1658 = vld [vmem:[%s6 + $0xb8] sm:$0xff]
    %v1659 = vld [vmem:[%s6 + $0xc0] sm:$0xff]
    %v1660 = vld [vmem:[%s6 + $0xc8] sm:$0xff]
    %v1661 = vld [vmem:[%s6 + $0xd0] sm:$0xff]
    %v1662 = vld [vmem:[%s6 + $0xd8] sm:$0xff]
    %v1663 = vld [vmem:[%s6 + $0xe0] sm:$0xff]
    %v1664 = vld [vmem:[%s6 + $0xe8] sm:$0xff]
    %v1665 = vld [vmem:[%s6 + $0xf0] sm:$0xff]
    %v1666 = vld [vmem:[%s6 + $0xf8] sm:$0xff]
    %v1667 = vld [vmem:[%s6 + $0x100] sm:$0xff]
    %v1668 = vld [vmem:[%s6 + $0x108] sm:$0xff]
    %v1669 = vld [vmem:[%s6 + $0x110] sm:$0xff]
    %v1670 = vld [vmem:[%s6 + $0x118] sm:$0xff]
    %v1671 = vld [vmem:[%s6 + $0x120] sm:$0xff]
    %v1672 = vld [vmem:[%s6 + $0x128] sm:$0xff]
    %v1673 = vld [vmem:[%s6 + $0x130] sm:$0xff]
    %v1674 = vld [vmem:[%s6 + $0x138] sm:$0xff]
    %v1675 = vld [vmem:[%s6 + $0x140] sm:$0xff]
    %v1676 = vld [vmem:[%s6 + $0x148] sm:$0xff]
    %v1677 = vld [vmem:[%s6 + $0x150] sm:$0xff]
    %v1678 = vld [vmem:[%s6 + $0x158] sm:$0xff]
    %v1679 = vld [vmem:[%s6 + $0x160] sm:$0xff]
    %v1680 = vld [vmem:[%s6 + $0x168] sm:$0xff]
    %v1681 = vld [vmem:[%s6 + $0x170] sm:$0xff]
    %v1682 = vld [vmem:[%s6 + $0x178] sm:$0xff]
    %v1683 = vld [vmem:[%s6 + $0x180] sm:$0xff]
    %v1684 = vld [vmem:[%s6 + $0x188] sm:$0xff]
    %v1685 = vld [vmem:[%s6 + $0x190] sm:$0xff]
    %v1686 = vld [vmem:[%s6 + $0x198] sm:$0xff]
    %v1687 = vld [vmem:[%s6 + $0x1a0] sm:$0xff]
    %v1688 = vld [vmem:[%s6 + $0x1a8] sm:$0xff]
    %v1689 = vld [vmem:[%s6 + $0x1b0] sm:$0xff]
    %v1690 = vld [vmem:[%s6 + $0x1b8] sm:$0xff]
    %v1691 = vld [vmem:[%s6 + $0x1c0] sm:$0xff]
    %v1692 = vld [vmem:[%s6 + $0x1c8] sm:$0xff]
    %v1693 = vld [vmem:[%s6 + $0x1d0] sm:$0xff]
    %v1694 = vld [vmem:[%s6 + $0x1d8] sm:$0xff]
    %v1695 = vld [vmem:[%s6 + $0x1e0] sm:$0xff]
    %v1696 = vld [vmem:[%s6 + $0x1e8] sm:$0xff]
    %v1697 = vld [vmem:[%s6 + $0x1f0] sm:$0xff]
    %v1698 = vld [vmem:[%s6 + $0x1f8] sm:$0xff]
    %1699 = vmatprep.subr.mxu0 %v1636
    %1700 = vmatpush1.msra.mxu0 %v1635
    %1701 = vmatprep.subr.mxu0 %v1638
    %1702 = vmatpush1.msra.mxu0 %v1637
    %1703 = vmatprep.subr.mxu0 %v1640
    %1704 = vmatpush1.msra.mxu0 %v1639
    %1705 = vmatprep.subr.mxu0 %v1642
    %1706 = vmatpush1.msra.mxu0 %v1641
    %1707 = vmatprep.subr.mxu0 %v1644
    %1708 = vmatpush1.msra.mxu0 %v1643
    %1709 = vmatprep.subr.mxu0 %v1646
    %1710 = vmatpush1.msra.mxu0 %v1645
    %1711 = vmatprep.subr.mxu0 %v1648
    %1712 = vmatpush1.msra.mxu0 %v1647
    %1713 = vmatprep.subr.mxu0 %v1650
    %1714 = vmatpush1.msra.mxu0 %v1649
    %1715 = vmatprep.subr.mxu0 %v1652
    %1716 = vmatpush1.msra.mxu0 %v1651
    %1717 = vmatprep.subr.mxu0 %v1654
    %1718 = vmatpush1.msra.mxu0 %v1653
    %1719 = vmatprep.subr.mxu0 %v1656
    %1720 = vmatpush1.msra.mxu0 %v1655
    %1721 = vmatprep.subr.mxu0 %v1658
    %1722 = vmatpush1.msra.mxu0 %v1657
    %1723 = vmatprep.subr.mxu0 %v1660
    %1724 = vmatpush1.msra.mxu0 %v1659
    %1725 = vmatprep.subr.mxu0 %v1662
    %1726 = vmatpush1.msra.mxu0 %v1661
    %1727 = vmatprep.subr.mxu0 %v1664
    %1728 = vmatpush1.msra.mxu0 %v1663
    %1729 = vmatprep.subr.mxu0 %v1666
    %1730 = vmatpush1.msra.mxu0 %v1665
    %1731 = vmatprep.subr.mxu0 %v1668
    %1732 = vmatpush1.msra.mxu0 %v1667
    %1733 = vmatprep.subr.mxu0 %v1670
    %1734 = vmatpush1.msra.mxu0 %v1669
    %1735 = vmatprep.subr.mxu0 %v1672
    %1736 = vmatpush1.msra.mxu0 %v1671
    %1737 = vmatprep.subr.mxu0 %v1674
    %1738 = vmatpush1.msra.mxu0 %v1673
    %1739 = vmatprep.subr.mxu0 %v1676
    %1740 = vmatpush1.msra.mxu0 %v1675
    %1741 = vmatprep.subr.mxu0 %v1678
    %1742 = vmatpush1.msra.mxu0 %v1677
    %1743 = vmatprep.subr.mxu0 %v1680
    %1744 = vmatpush1.msra.mxu0 %v1679
    %1745 = vmatprep.subr.mxu0 %v1682
    %1746 = vmatpush1.msra.mxu0 %v1681
    %1747 = vmatprep.subr.mxu0 %v1684
    %1748 = vmatpush1.msra.mxu0 %v1683
    %1749 = vmatprep.subr.mxu0 %v1686
    %1750 = vmatpush1.msra.mxu0 %v1685
    %1751 = vmatprep.subr.mxu0 %v1688
    %1752 = vmatpush1.msra.mxu0 %v1687
    %1753 = vmatprep.subr.mxu0 %v1690
    %1754 = vmatpush1.msra.mxu0 %v1689
    %1755 = vmatprep.subr.mxu0 %v1692
    %1756 = vmatpush1.msra.mxu0 %v1691
    %1757 = vmatprep.subr.mxu0 %v1694
    %1758 = vmatpush1.msra.mxu0 %v1693
    %1759 = vmatprep.subr.mxu0 %v1696
    %1760 = vmatpush1.msra.mxu0 %v1695
    %1761 = vmatprep.subr.mxu0 %v1698
    %1762 = vmatpush1.msra.mxu0 %v1697
    %1763 = vmatprep.mubr.f32.mxu0 %v1570
    %1764 = vmatmul.mubr.f32.gmra.mrb[0].mxu0 %v1569
    %v1765 = vpop.f32.mrb[0].mxu0
    %v1766 = vadd.f32 0.0, %v1765
    %v1767 = vpop.f32.mrb[0].mxu0
    %v1768 = vadd.f32 0.0, %v1767
    %1769 = vdwg.mxu0
    %1770 = vmatprep.subr.mxu0 %v1572
    %1771 = vmatpush1.msra.mxu0 %v1571
    %1772 = vmatprep.subr.mxu0 %v1574
    %1773 = vmatpush1.msra.mxu0 %v1573
    %1774 = vmatprep.subr.mxu0 %v1576
    %1775 = vmatpush1.msra.mxu0 %v1575
    %1776 = vmatprep.subr.mxu0 %v1578
    %1777 = vmatpush1.msra.mxu0 %v1577
    %1778 = vmatprep.subr.mxu0 %v1580
    %1779 = vmatpush1.msra.mxu0 %v1579
    %1780 = vmatprep.subr.mxu0 %v1582
    %1781 = vmatpush1.msra.mxu0 %v1581
    %1782 = vmatprep.subr.mxu0 %v1584
    %1783 = vmatpush1.msra.mxu0 %v1583
    %1784 = vmatprep.subr.mxu0 %v1586
    %1785 = vmatpush1.msra.mxu0 %v1585
    %1786 = vmatprep.subr.mxu0 %v1588
    %1787 = vmatpush1.msra.mxu0 %v1587
    %1788 = vmatprep.subr.mxu0 %v1590
    %1789 = vmatpush1.msra.mxu0 %v1589
    %1790 = vmatprep.subr.mxu0 %v1592
    %1791 = vmatpush1.msra.mxu0 %v1591
    %1792 = vmatprep.subr.mxu0 %v1594
    %1793 = vmatpush1.msra.mxu0 %v1593
    %1794 = vmatprep.subr.mxu0 %v1596
    %1795 = vmatpush1.msra.mxu0 %v1595
    %1796 = vmatprep.subr.mxu0 %v1598
    %1797 = vmatpush1.msra.mxu0 %v1597
    %1798 = vmatprep.subr.mxu0 %v1600
    %1799 = vmatpush1.msra.mxu0 %v1599
    %1800 = vmatprep.subr.mxu0 %v1602
    %1801 = vmatpush1.msra.mxu0 %v1601
    %1802 = vmatprep.subr.mxu0 %v1604
    %1803 = vmatpush1.msra.mxu0 %v1603
    %1804 = vmatprep.subr.mxu0 %v1606
    %1805 = vmatpush1.msra.mxu0 %v1605
    %1806 = vmatprep.subr.mxu0 %v1608
    %1807 = vmatpush1.msra.mxu0 %v1607
    %1808 = vmatprep.subr.mxu0 %v1610
    %1809 = vmatpush1.msra.mxu0 %v1609
    %1810 = vmatprep.subr.mxu0 %v1612
    %1811 = vmatpush1.msra.mxu0 %v1611
    %1812 = vmatprep.subr.mxu0 %v1614
    %1813 = vmatpush1.msra.mxu0 %v1613
    %1814 = vmatprep.subr.mxu0 %v1616
    %1815 = vmatpush1.msra.mxu0 %v1615
    %1816 = vmatprep.subr.mxu0 %v1618
    %1817 = vmatpush1.msra.mxu0 %v1617
    %1818 = vmatprep.subr.mxu0 %v1620
    %1819 = vmatpush1.msra.mxu0 %v1619
    %1820 = vmatprep.subr.mxu0 %v1622
    %1821 = vmatpush1.msra.mxu0 %v1621
    %1822 = vmatprep.subr.mxu0 %v1624
    %1823 = vmatpush1.msra.mxu0 %v1623
    %1824 = vmatprep.subr.mxu0 %v1626
    %1825 = vmatpush1.msra.mxu0 %v1625
    %1826 = vmatprep.subr.mxu0 %v1628
    %1827 = vmatpush1.msra.mxu0 %v1627
    %1828 = vmatprep.subr.mxu0 %v1630
    %1829 = vmatpush1.msra.mxu0 %v1629
    %1830 = vmatprep.subr.mxu0 %v1632
    %1831 = vmatpush1.msra.mxu0 %v1631
    %1832 = vmatprep.subr.mxu0 %v1634
    %1833 = vmatpush1.msra.mxu0 %v1633
    %1834 = vmatprep.mubr.f32.mxu0 %v1360
    %1835 = vmatmul.mubr.f32.gmra.mrb[0].mxu0 %v1359
    %v1836 = vpop.f32.mrb[0].mxu0
    %v1837 = vadd.f32 %v1766, %v1836
    %v1838 = vpop.f32.mrb[0].mxu0
    %v1839 = vadd.f32 %v1768, %v1838
    %1840 = vdwg.mxu0
    %v1841 = vadd.f32 %v1837, %v67
    %v1842 = vadd.f32 %v1839, %v68
    %s1843 = scalar_lea.vmem %s1, 40
    %v1844 = vld [vmem:[%s1843] sm:$0xff]
    %s1845 = scalar_lea.vmem %s2, 40
    %v1846 = vld [vmem:[%s1845] sm:$0xff]
    %1848 = vset.pattern.permute.xlu0 0
    %1849 = vperm.xlu0 %1848, %v1844
    %v1850 = vpop.permute.xlu0 %1849
    %v1852 = vlaneseq
    %v1853 = vshrl.u32 %v1852, 7
    %v1854 = vsub.s32 0, %v1853
    %v1855 = vrot.slane %v1841, %v1854
    %v1856 = vlaneseq
    %v1857 = vshrl.u32 %v1856, 7
    %v1858 = vsub.s32 0, %v1857
    %v1859 = vrot.slane %v1842, %v1858
    %v1860 = vmul.f32 %v1850, %v1855
    %v1861 = vmul.f32 %v1850, %v1859
    %1863 = vset.pattern.permute.xlu0 0
    %1864 = vperm.xlu0 %1863, %v1846
    %v1865 = vpop.permute.xlu0 %1864
    %v1867 = vadd.f32 %v1860, %v1865
    %v1868 = vadd.f32 %v1861, %v1865
    %1869 = vset.pattern.permute.xlu0 1
    %1870 = vperm.xlu0 %1869, %v1844
    %v1871 = vpop.permute.xlu0 %1870
    %v1873 = vlaneseq
    %v1874 = vshrl.u32 %v1873, 7
    %v1875 = vsub.s32 1, %v1874
    %v1876 = vrot.slane %v1841, %v1875
    %v1877 = vlaneseq
    %v1878 = vshrl.u32 %v1877, 7
    %v1879 = vsub.s32 1, %v1878
    %v1880 = vrot.slane %v1842, %v1879
    %v1881 = vmul.f32 %v1871, %v1876
    %v1882 = vmul.f32 %v1871, %v1880
    %v1883 = vadd.f32 %v1867, %v1881
    %v1884 = vadd.f32 %v1868, %v1882
    %1885 = vset.pattern.permute.xlu0 2
    %1886 = vperm.xlu0 %1885, %v1844
    %v1887 = vpop.permute.xlu0 %1886
    %v1889 = vlaneseq
    %v1890 = vshrl.u32 %v1889, 7
    %v1891 = vsub.s32 2, %v1890
    %v1892 = vrot.slane %v1841, %v1891
    %v1893 = vlaneseq
    %v1894 = vshrl.u32 %v1893, 7
    %v1895 = vsub.s32 2, %v1894
    %v1896 = vrot.slane %v1842, %v1895
    %v1897 = vmul.f32 %v1887, %v1892
    %v1898 = vmul.f32 %v1887, %v1896
    %v1899 = vadd.f32 %v1883, %v1897
    %v1900 = vadd.f32 %v1884, %v1898
    %1901 = vset.pattern.permute.xlu0 3
    %1902 = vperm.xlu0 %1901, %v1844
    %v1903 = vpop.permute.xlu0 %1902
    %v1905 = vlaneseq
    %v1906 = vshrl.u32 %v1905, 7
    %v1907 = vsub.s32 3, %v1906
    %v1908 = vrot.slane %v1841, %v1907
    %v1909 = vlaneseq
    %v1910 = vshrl.u32 %v1909, 7
    %v1911 = vsub.s32 3, %v1910
    %v1912 = vrot.slane %v1842, %v1911
    %v1913 = vmul.f32 %v1903, %v1908
    %v1914 = vmul.f32 %v1903, %v1912
    %v1915 = vadd.f32 %v1899, %v1913
    %v1916 = vadd.f32 %v1900, %v1914
    %1917 = vset.pattern.permute.xlu0 4
    %1918 = vperm.xlu0 %1917, %v1844
    %v1919 = vpop.permute.xlu0 %1918
    %v1921 = vlaneseq
    %v1922 = vshrl.u32 %v1921, 7
    %v1923 = vsub.s32 4, %v1922
    %v1924 = vrot.slane %v1841, %v1923
    %v1925 = vlaneseq
    %v1926 = vshrl.u32 %v1925, 7
    %v1927 = vsub.s32 4, %v1926
    %v1928 = vrot.slane %v1842, %v1927
    %v1929 = vmul.f32 %v1919, %v1924
    %v1930 = vmul.f32 %v1919, %v1928
    %v1931 = vadd.f32 %v1915, %v1929
    %v1932 = vadd.f32 %v1916, %v1930
    %1933 = vset.pattern.permute.xlu0 5
    %1934 = vperm.xlu0 %1933, %v1844
    %v1935 = vpop.permute.xlu0 %1934
    %v1937 = vlaneseq
    %v1938 = vshrl.u32 %v1937, 7
    %v1939 = vsub.s32 5, %v1938
    %v1940 = vrot.slane %v1841, %v1939
    %v1941 = vlaneseq
    %v1942 = vshrl.u32 %v1941, 7
    %v1943 = vsub.s32 5, %v1942
    %v1944 = vrot.slane %v1842, %v1943
    %v1945 = vmul.f32 %v1935, %v1940
    %v1946 = vmul.f32 %v1935, %v1944
    %v1947 = vadd.f32 %v1931, %v1945
    %v1948 = vadd.f32 %v1932, %v1946
    %1949 = vset.pattern.permute.xlu0 6
    %1950 = vperm.xlu0 %1949, %v1844
    %v1951 = vpop.permute.xlu0 %1950
    %v1953 = vlaneseq
    %v1954 = vshrl.u32 %v1953, 7
    %v1955 = vsub.s32 6, %v1954
    %v1956 = vrot.slane %v1841, %v1955
    %v1957 = vlaneseq
    %v1958 = vshrl.u32 %v1957, 7
    %v1959 = vsub.s32 6, %v1958
    %v1960 = vrot.slane %v1842, %v1959
    %v1961 = vmul.f32 %v1951, %v1956
    %v1962 = vmul.f32 %v1951, %v1960
    %v1963 = vadd.f32 %v1947, %v1961
    %v1964 = vadd.f32 %v1948, %v1962
    %1965 = vset.pattern.permute.xlu0 7
    %1966 = vperm.xlu0 %1965, %v1844
    %v1967 = vpop.permute.xlu0 %1966
    %v1969 = vlaneseq
    %v1970 = vshrl.u32 %v1969, 7
    %v1971 = vsub.s32 7, %v1970
    %v1972 = vrot.slane %v1841, %v1971
    %v1973 = vlaneseq
    %v1974 = vshrl.u32 %v1973, 7
    %v1975 = vsub.s32 7, %v1974
    %v1976 = vrot.slane %v1842, %v1975
    %v1977 = vmul.f32 %v1967, %v1972
    %v1978 = vmul.f32 %v1967, %v1976
    %v1979 = vadd.f32 %v1963, %v1977
    %v1980 = vadd.f32 %v1964, %v1978
    %v1981 = vadd.f32 %v1979, %v67
    %v1982 = vadd.f32 %v1980, %v68
    %s1983 = scalar_lea.vmem %s1, 48
    %v1984 = vld [vmem:[%s1983] sm:$0xff]
    %s1985 = scalar_lea.vmem %s2, 48
    %v1986 = vld [vmem:[%s1985] sm:$0xff]
    %1988 = vset.pattern.permute.xlu0 0
    %1989 = vperm.xlu0 %1988, %v1984
    %v1990 = vpop.permute.xlu0 %1989
    %v1992 = vlaneseq
    %v1993 = vshrl.u32 %v1992, 7
    %v1994 = vsub.s32 0, %v1993
    %v1995 = vrot.slane %v1981, %v1994
    %v1996 = vlaneseq
    %v1997 = vshrl.u32 %v1996, 7
    %v1998 = vsub.s32 0, %v1997
    %v1999 = vrot.slane %v1982, %v1998
    %v2000 = vmul.f32 %v1990, %v1995
    %v2001 = vmul.f32 %v1990, %v1999
    %2003 = vset.pattern.permute.xlu0 0
    %2004 = vperm.xlu0 %2003, %v1986
    %v2005 = vpop.permute.xlu0 %2004
    %v2007 = vadd.f32 %v2000, %v2005
    %v2008 = vadd.f32 %v2001, %v2005
    %2009 = vset.pattern.permute.xlu0 1
    %2010 = vperm.xlu0 %2009, %v1984
    %v2011 = vpop.permute.xlu0 %2010
    %v2013 = vlaneseq
    %v2014 = vshrl.u32 %v2013, 7
    %v2015 = vsub.s32 1, %v2014
    %v2016 = vrot.slane %v1981, %v2015
    %v2017 = vlaneseq
    %v2018 = vshrl.u32 %v2017, 7
    %v2019 = vsub.s32 1, %v2018
    %v2020 = vrot.slane %v1982, %v2019
    %v2021 = vmul.f32 %v2011, %v2016
    %v2022 = vmul.f32 %v2011, %v2020
    %v2023 = vadd.f32 %v2007, %v2021
    %v2024 = vadd.f32 %v2008, %v2022
    %2025 = vset.pattern.permute.xlu0 2
    %2026 = vperm.xlu0 %2025, %v1984
    %v2027 = vpop.permute.xlu0 %2026
    %v2029 = vlaneseq
    %v2030 = vshrl.u32 %v2029, 7
    %v2031 = vsub.s32 2, %v2030
    %v2032 = vrot.slane %v1981, %v2031
    %v2033 = vlaneseq
    %v2034 = vshrl.u32 %v2033, 7
    %v2035 = vsub.s32 2, %v2034
    %v2036 = vrot.slane %v1982, %v2035
    %v2037 = vmul.f32 %v2027, %v2032
    %v2038 = vmul.f32 %v2027, %v2036
    %v2039 = vadd.f32 %v2023, %v2037
    %v2040 = vadd.f32 %v2024, %v2038
    %2041 = vset.pattern.permute.xlu0 3
    %2042 = vperm.xlu0 %2041, %v1984
    %v2043 = vpop.permute.xlu0 %2042
    %v2045 = vlaneseq
    %v2046 = vshrl.u32 %v2045, 7
    %v2047 = vsub.s32 3, %v2046
    %v2048 = vrot.slane %v1981, %v2047
    %v2049 = vlaneseq
    %v2050 = vshrl.u32 %v2049, 7
    %v2051 = vsub.s32 3, %v2050
    %v2052 = vrot.slane %v1982, %v2051
    %v2053 = vmul.f32 %v2043, %v2048
    %v2054 = vmul.f32 %v2043, %v2052
    %v2055 = vadd.f32 %v2039, %v2053
    %v2056 = vadd.f32 %v2040, %v2054
    %2057 = vset.pattern.permute.xlu0 4
    %2058 = vperm.xlu0 %2057, %v1984
    %v2059 = vpop.permute.xlu0 %2058
    %v2061 = vlaneseq
    %v2062 = vshrl.u32 %v2061, 7
    %v2063 = vsub.s32 4, %v2062
    %v2064 = vrot.slane %v1981, %v2063
    %v2065 = vlaneseq
    %v2066 = vshrl.u32 %v2065, 7
    %v2067 = vsub.s32 4, %v2066
    %v2068 = vrot.slane %v1982, %v2067
    %v2069 = vmul.f32 %v2059, %v2064
    %v2070 = vmul.f32 %v2059, %v2068
    %v2071 = vadd.f32 %v2055, %v2069
    %v2072 = vadd.f32 %v2056, %v2070
    %2073 = vset.pattern.permute.xlu0 5
    %2074 = vperm.xlu0 %2073, %v1984
    %v2075 = vpop.permute.xlu0 %2074
    %v2077 = vlaneseq
    %v2078 = vshrl.u32 %v2077, 7
    %v2079 = vsub.s32 5, %v2078
    %v2080 = vrot.slane %v1981, %v2079
    %v2081 = vlaneseq
    %v2082 = vshrl.u32 %v2081, 7
    %v2083 = vsub.s32 5, %v2082
    %v2084 = vrot.slane %v1982, %v2083
    %v2085 = vmul.f32 %v2075, %v2080
    %v2086 = vmul.f32 %v2075, %v2084
    %v2087 = vadd.f32 %v2071, %v2085
    %v2088 = vadd.f32 %v2072, %v2086
    %2089 = vset.pattern.permute.xlu0 6
    %2090 = vperm.xlu0 %2089, %v1984
    %v2091 = vpop.permute.xlu0 %2090
    %v2093 = vlaneseq
    %v2094 = vshrl.u32 %v2093, 7
    %v2095 = vsub.s32 6, %v2094
    %v2096 = vrot.slane %v1981, %v2095
    %v2097 = vlaneseq
    %v2098 = vshrl.u32 %v2097, 7
    %v2099 = vsub.s32 6, %v2098
    %v2100 = vrot.slane %v1982, %v2099
    %v2101 = vmul.f32 %v2091, %v2096
    %v2102 = vmul.f32 %v2091, %v2100
    %v2103 = vadd.f32 %v2087, %v2101
    %v2104 = vadd.f32 %v2088, %v2102
    %2105 = vset.pattern.permute.xlu0 7
    %2106 = vperm.xlu0 %2105, %v1984
    %v2107 = vpop.permute.xlu0 %2106
    %v2109 = vlaneseq
    %v2110 = vshrl.u32 %v2109, 7
    %v2111 = vsub.s32 7, %v2110
    %v2112 = vrot.slane %v1981, %v2111
    %v2113 = vlaneseq
    %v2114 = vshrl.u32 %v2113, 7
    %v2115 = vsub.s32 7, %v2114
    %v2116 = vrot.slane %v1982, %v2115
    %v2117 = vmul.f32 %v2107, %v2112
    %v2118 = vmul.f32 %v2107, %v2116
    %v2119 = vadd.f32 %v2103, %v2117
    %v2120 = vadd.f32 %v2104, %v2118
    %2121 = vmatprep.subr.mxu0 %v206
    %2122 = vmatpush1.msra.mxu0 %v205
    %2123 = vmatprep.subr.mxu0 %v208
    %2124 = vmatpush1.msra.mxu0 %v207
    %2125 = vmatprep.subr.mxu0 %v210
    %2126 = vmatpush1.msra.mxu0 %v209
    %2127 = vmatprep.subr.mxu0 %v212
    %2128 = vmatpush1.msra.mxu0 %v211
    %2129 = vmatprep.subr.mxu0 %v214
    %2130 = vmatpush1.msra.mxu0 %v213
    %2131 = vmatprep.subr.mxu0 %v216
    %2132 = vmatpush1.msra.mxu0 %v215
    %2133 = vmatprep.subr.mxu0 %v218
    %2134 = vmatpush1.msra.mxu0 %v217
    %2135 = vmatprep.subr.mxu0 %v220
    %2136 = vmatpush1.msra.mxu0 %v219
    %2137 = vmatprep.subr.mxu0 %v222
    %2138 = vmatpush1.msra.mxu0 %v221
    %2139 = vmatprep.subr.mxu0 %v224
    %2140 = vmatpush1.msra.mxu0 %v223
    %2141 = vmatprep.subr.mxu0 %v226
    %2142 = vmatpush1.msra.mxu0 %v225
    %2143 = vmatprep.subr.mxu0 %v228
    %2144 = vmatpush1.msra.mxu0 %v227
    %2145 = vmatprep.subr.mxu0 %v230
    %2146 = vmatpush1.msra.mxu0 %v229
    %2147 = vmatprep.subr.mxu0 %v232
    %2148 = vmatpush1.msra.mxu0 %v231
    %2149 = vmatprep.subr.mxu0 %v234
    %2150 = vmatpush1.msra.mxu0 %v233
    %2151 = vmatprep.subr.mxu0 %v236
    %2152 = vmatpush1.msra.mxu0 %v235
    %2153 = vmatprep.subr.mxu0 %v238
    %2154 = vmatpush1.msra.mxu0 %v237
    %2155 = vmatprep.subr.mxu0 %v240
    %2156 = vmatpush1.msra.mxu0 %v239
    %2157 = vmatprep.subr.mxu0 %v242
    %2158 = vmatpush1.msra.mxu0 %v241
    %2159 = vmatprep.subr.mxu0 %v244
    %2160 = vmatpush1.msra.mxu0 %v243
    %2161 = vmatprep.subr.mxu0 %v246
    %2162 = vmatpush1.msra.mxu0 %v245
    %2163 = vmatprep.subr.mxu0 %v248
    %2164 = vmatpush1.msra.mxu0 %v247
    %2165 = vmatprep.subr.mxu0 %v250
    %2166 = vmatpush1.msra.mxu0 %v249
    %2167 = vmatprep.subr.mxu0 %v252
    %2168 = vmatpush1.msra.mxu0 %v251
    %2169 = vmatprep.subr.mxu0 %v254
    %2170 = vmatpush1.msra.mxu0 %v253
    %2171 = vmatprep.subr.mxu0 %v256
    %2172 = vmatpush1.msra.mxu0 %v255
    %2173 = vmatprep.subr.mxu0 %v258
    %2174 = vmatpush1.msra.mxu0 %v257
    %2175 = vmatprep.subr.mxu0 %v260
    %2176 = vmatpush1.msra.mxu0 %v259
    %2177 = vmatprep.subr.mxu0 %v262
    %2178 = vmatpush1.msra.mxu0 %v261
    %2179 = vmatprep.subr.mxu0 %v264
    %2180 = vmatpush1.msra.mxu0 %v263
    %2181 = vmatprep.subr.mxu0 %v266
    %2182 = vmatpush1.msra.mxu0 %v265
    %2183 = vmatprep.subr.mxu0 %v268
    %2184 = vmatpush1.msra.mxu0 %v267
    %2185 = vmatprep.mubr.f32.mxu0 %v2120
    %2186 = vmatmul.mubr.f32.gmra.mrb[0].mxu0 %v2119
    %v2187 = vpop.f32.mrb[0].mxu0
    %v2188 = vadd.f32 0.0, %v2187
    %v2189 = vpop.f32.mrb[0].mxu0
    %v2190 = vadd.f32 0.0, %v2189
    %2191 = vdwg.mxu0
    %2192 = vmatprep.subr.mxu0 %v341
    %2193 = vmatpush1.msra.mxu0 %v340
    %2194 = vmatprep.subr.mxu0 %v343
    %2195 = vmatpush1.msra.mxu0 %v342
    %2196 = vmatprep.subr.mxu0 %v345
    %2197 = vmatpush1.msra.mxu0 %v344
    %2198 = vmatprep.subr.mxu0 %v347
    %2199 = vmatpush1.msra.mxu0 %v346
    %2200 = vmatprep.subr.mxu0 %v349
    %2201 = vmatpush1.msra.mxu0 %v348
    %2202 = vmatprep.subr.mxu0 %v351
    %2203 = vmatpush1.msra.mxu0 %v350
    %2204 = vmatprep.subr.mxu0 %v353
    %2205 = vmatpush1.msra.mxu0 %v352
    %2206 = vmatprep.subr.mxu0 %v355
    %2207 = vmatpush1.msra.mxu0 %v354
    %2208 = vmatprep.subr.mxu0 %v357
    %2209 = vmatpush1.msra.mxu0 %v356
    %2210 = vmatprep.subr.mxu0 %v359
    %2211 = vmatpush1.msra.mxu0 %v358
    %2212 = vmatprep.subr.mxu0 %v361
    %2213 = vmatpush1.msra.mxu0 %v360
    %2214 = vmatprep.subr.mxu0 %v363
    %2215 = vmatpush1.msra.mxu0 %v362
    %2216 = vmatprep.subr.mxu0 %v365
    %2217 = vmatpush1.msra.mxu0 %v364
    %2218 = vmatprep.subr.mxu0 %v367
    %2219 = vmatpush1.msra.mxu0 %v366
    %2220 = vmatprep.subr.mxu0 %v369
    %2221 = vmatpush1.msra.mxu0 %v368
    %2222 = vmatprep.subr.mxu0 %v371
    %2223 = vmatpush1.msra.mxu0 %v370
    %2224 = vmatprep.subr.mxu0 %v373
    %2225 = vmatpush1.msra.mxu0 %v372
    %2226 = vmatprep.subr.mxu0 %v375
    %2227 = vmatpush1.msra.mxu0 %v374
    %2228 = vmatprep.subr.mxu0 %v377
    %2229 = vmatpush1.msra.mxu0 %v376
    %2230 = vmatprep.subr.mxu0 %v379
    %2231 = vmatpush1.msra.mxu0 %v378
    %2232 = vmatprep.subr.mxu0 %v381
    %2233 = vmatpush1.msra.mxu0 %v380
    %2234 = vmatprep.subr.mxu0 %v383
    %2235 = vmatpush1.msra.mxu0 %v382
    %2236 = vmatprep.subr.mxu0 %v385
    %2237 = vmatpush1.msra.mxu0 %v384
    %2238 = vmatprep.subr.mxu0 %v387
    %2239 = vmatpush1.msra.mxu0 %v386
    %2240 = vmatprep.subr.mxu0 %v389
    %2241 = vmatpush1.msra.mxu0 %v388
    %2242 = vmatprep.subr.mxu0 %v391
    %2243 = vmatpush1.msra.mxu0 %v390
    %2244 = vmatprep.subr.mxu0 %v393
    %2245 = vmatpush1.msra.mxu0 %v392
    %2246 = vmatprep.subr.mxu0 %v395
    %2247 = vmatpush1.msra.mxu0 %v394
    %2248 = vmatprep.subr.mxu0 %v397
    %2249 = vmatpush1.msra.mxu0 %v396
    %2250 = vmatprep.subr.mxu0 %v399
    %2251 = vmatpush1.msra.mxu0 %v398
    %2252 = vmatprep.subr.mxu0 %v401
    %2253 = vmatpush1.msra.mxu0 %v400
    %2254 = vmatprep.subr.mxu0 %v403
    %2255 = vmatpush1.msra.mxu0 %v402
    %2256 = vmatprep.mubr.f32.mxu0 %v2120
    %2257 = vmatmul.mubr.f32.gmra.mrb[0].mxu0 %v2119
    %v2258 = vpop.f32.mrb[0].mxu0
    %v2259 = vadd.f32 0.0, %v2258
    %v2260 = vpop.f32.mrb[0].mxu0
    %v2261 = vadd.f32 0.0, %v2260
    %2262 = vdwg.mxu0
    %v2263 = vmul.f32 %v2188, %v2188
    %v2264 = vmul.f32 %v2190, %v2190
    %v2265 = vmul.f32 %v2259, %v2259
    %v2266 = vmul.f32 %v2261, %v2261
    %v2267 = vadd.f32 %v2263, %v2265
    %v2268 = vadd.f32 %v2264, %v2266
    %v2269 = vrsqrt.pop %v2267
    %v2270 = vmul.f32 %v2267, %v2269
    %vm2271 = vcmp.eq.f32.partialorder %v2267, inf
    %v2272 = vsel %vm2271, %v2267, %v2270
    %vm2273 = vcmp.eq.f32.partialorder %v2267, 0.0
    %v2274 = vand.u32 %v2267, 2147483648
    %v2275 = vsel %vm2273, %v2274, %v2272
    %v2276 = vrsqrt.pop %v2268
    %v2277 = vmul.f32 %v2268, %v2276
    %vm2278 = vcmp.eq.f32.partialorder %v2268, inf
    %v2279 = vsel %vm2278, %v2268, %v2277
    %vm2280 = vcmp.eq.f32.partialorder %v2268, 0.0
    %v2281 = vand.u32 %v2268, 2147483648
    %v2282 = vsel %vm2280, %v2281, %v2279
    %v2283 = vand.u32 2147483647, %v2188
    %v2284 = vand.u32 2147483647, %v2259
    %v2285 = vmin.f32 %v2283, %v2284
    %v2286 = vmax.f32 %v2283, %v2284
    %v2287 = vrcp.pop %v2286
    %v2288 = vmul.f32 %v2285, %v2287
    %v2289 = vmul.f32 %v2288, %v2288
    %v2290 = vmul.f32 0.002785687, %v2289
    %v2291 = vadd.f32 %v2290, -0.015866
    %v2292 = vmul.f32 %v2291, %v2289
    %v2293 = vadd.f32 %v2292, 0.04247222
    %v2294 = vmul.f32 %v2293, %v2289
    %v2295 = vadd.f32 %v2294, -0.074975304
    %v2296 = vmul.f32 %v2295, %v2289
    %v2297 = vadd.f32 %v2296, 0.1064488
    %v2298 = vmul.f32 %v2297, %v2289
    %v2299 = vadd.f32 %v2298, -0.14207031
    %v2300 = vmul.f32 %v2299, %v2289
    %v2301 = vadd.f32 %v2300, 0.19993454
    %v2302 = vmul.f32 %v2301, %v2289
    %v2303 = vadd.f32 %v2302, -0.33333147
    %v2304 = vmul.f32 %v2303, %v2289
    %v2305 = vmul.f32 %v2304, %v2288
    %v2306 = vadd.f32 %v2305, %v2288
    %vm2307 = vcmp.gt.f32.partialorder %v2284, %v2283
    %v2308 = vsub.f32 1.5707964, %v2306
    %v2309 = vsel %vm2307, %v2308, %v2306
    %vm2310 = vcmp.lt.f32.partialorder %v2188, 0.0
    %v2311 = vsub.f32 3.1415927, %v2309
    %v2312 = vsel %vm2310, %v2311, %v2309
    %vm2313 = vcmp.lt.s32.totalorder %v2188, 0
    %v2314 = vsel %vm2313, 3.1415927, 0.0
    %vm2315 = vcmp.eq.f32.partialorder %v2259, 0.0
    %v2316 = vsel %vm2315, %v2314, %v2312
    %vm2317 = vcmp.ne.f32.partialorder %v2188, %v2188
    %vm2318 = vcmp.ne.f32.partialorder %v2259, %v2259
    %vm2319 = vmor %vm2317, %vm2318
    %v2320 = vsel %vm2319, nan, %v2316
    %vm2321 = vcmp.lt.f32.partialorder %v2188, 0.0
    %v2322 = vsel %vm2321, 2.3561945, 0.7853982
    %vm2323 = vcmp.eq.s32.totalorder %v2283, inf
    %vm2324 = vcmp.eq.s32.totalorder %v2284, inf
    %vm2325 = vmand %vm2323, %vm2324
    %v2326 = vsel %vm2325, %v2322, %v2320
    %v2327 = vand.u32 2147483647, %v2326
    %v2328 = vand.u32 %v2259, 2147483648
    %v2329 = vor.u32 %v2327, %v2328
    %v2330 = vand.u32 2147483647, %v2190
    %v2331 = vand.u32 2147483647, %v2261
    %v2332 = vmin.f32 %v2330, %v2331
    %v2333 = vmax.f32 %v2330, %v2331
    %v2334 = vrcp.pop %v2333
    %v2335 = vmul.f32 %v2332, %v2334
    %v2336 = vmul.f32 %v2335, %v2335
    %v2337 = vmul.f32 0.002785687, %v2336
    %v2338 = vadd.f32 %v2337, -0.015866
    %v2339 = vmul.f32 %v2338, %v2336
    %v2340 = vadd.f32 %v2339, 0.04247222
    %v2341 = vmul.f32 %v2340, %v2336
    %v2342 = vadd.f32 %v2341, -0.074975304
    %v2343 = vmul.f32 %v2342, %v2336
    %v2344 = vadd.f32 %v2343, 0.1064488
    %v2345 = vmul.f32 %v2344, %v2336
    %v2346 = vadd.f32 %v2345, -0.14207031
    %v2347 = vmul.f32 %v2346, %v2336
    %v2348 = vadd.f32 %v2347, 0.19993454
    %v2349 = vmul.f32 %v2348, %v2336
    %v2350 = vadd.f32 %v2349, -0.33333147
    %v2351 = vmul.f32 %v2350, %v2336
    %v2352 = vmul.f32 %v2351, %v2335
    %v2353 = vadd.f32 %v2352, %v2335
    %vm2354 = vcmp.gt.f32.partialorder %v2331, %v2330
    %v2355 = vsub.f32 1.5707964, %v2353
    %v2356 = vsel %vm2354, %v2355, %v2353
    %vm2357 = vcmp.lt.f32.partialorder %v2190, 0.0
    %v2358 = vsub.f32 3.1415927, %v2356
    %v2359 = vsel %vm2357, %v2358, %v2356
    %vm2360 = vcmp.lt.s32.totalorder %v2190, 0
    %v2361 = vsel %vm2360, 3.1415927, 0.0
    %vm2362 = vcmp.eq.f32.partialorder %v2261, 0.0
    %v2363 = vsel %vm2362, %v2361, %v2359
    %vm2364 = vcmp.ne.f32.partialorder %v2190, %v2190
    %vm2365 = vcmp.ne.f32.partialorder %v2261, %v2261
    %vm2366 = vmor %vm2364, %vm2365
    %v2367 = vsel %vm2366, nan, %v2363
    %vm2368 = vcmp.lt.f32.partialorder %v2190, 0.0
    %v2369 = vsel %vm2368, 2.3561945, 0.7853982
    %vm2370 = vcmp.eq.s32.totalorder %v2330, inf
    %vm2371 = vcmp.eq.s32.totalorder %v2331, inf
    %vm2372 = vmand %vm2370, %vm2371
    %v2373 = vsel %vm2372, %v2369, %v2367
    %v2374 = vand.u32 2147483647, %v2373
    %v2375 = vand.u32 %v2261, 2147483648
    %v2376 = vor.u32 %v2374, %v2375
    %s2377 = scalar_lea.vmem %s1, 56
    %v2378 = vld [vmem:[%s2377] sm:$0xff]
    %s2379 = scalar_lea.vmem %s2, 56
    %v2380 = vld [vmem:[%s2379] sm:$0xff]
    %2382 = vset.pattern.permute.xlu0 0
    %2383 = vperm.xlu0 %2382, %v2378
    %v2384 = vpop.permute.xlu0 %2383
    %v2386 = vlaneseq
    %v2387 = vshrl.u32 %v2386, 7
    %v2388 = vsub.s32 0, %v2387
    %v2389 = vrot.slane %v2275, %v2388
    %v2390 = vlaneseq
    %v2391 = vshrl.u32 %v2390, 7
    %v2392 = vsub.s32 0, %v2391
    %v2393 = vrot.slane %v2282, %v2392
    %v2394 = vmul.f32 %v2384, %v2389
    %v2395 = vmul.f32 %v2384, %v2393
    %2397 = vset.pattern.permute.xlu0 0
    %2398 = vperm.xlu0 %2397, %v2380
    %v2399 = vpop.permute.xlu0 %2398
    %v2401 = vadd.f32 %v2394, %v2399
    %v2402 = vadd.f32 %v2395, %v2399
    %2403 = vset.pattern.permute.xlu0 1
    %2404 = vperm.xlu0 %2403, %v2378
    %v2405 = vpop.permute.xlu0 %2404
    %v2407 = vlaneseq
    %v2408 = vshrl.u32 %v2407, 7
    %v2409 = vsub.s32 1, %v2408
    %v2410 = vrot.slane %v2275, %v2409
    %v2411 = vlaneseq
    %v2412 = vshrl.u32 %v2411, 7
    %v2413 = vsub.s32 1, %v2412
    %v2414 = vrot.slane %v2282, %v2413
    %v2415 = vmul.f32 %v2405, %v2410
    %v2416 = vmul.f32 %v2405, %v2414
    %v2417 = vadd.f32 %v2401, %v2415
    %v2418 = vadd.f32 %v2402, %v2416
    %2419 = vset.pattern.permute.xlu0 2
    %2420 = vperm.xlu0 %2419, %v2378
    %v2421 = vpop.permute.xlu0 %2420
    %v2423 = vlaneseq
    %v2424 = vshrl.u32 %v2423, 7
    %v2425 = vsub.s32 2, %v2424
    %v2426 = vrot.slane %v2275, %v2425
    %v2427 = vlaneseq
    %v2428 = vshrl.u32 %v2427, 7
    %v2429 = vsub.s32 2, %v2428
    %v2430 = vrot.slane %v2282, %v2429
    %v2431 = vmul.f32 %v2421, %v2426
    %v2432 = vmul.f32 %v2421, %v2430
    %v2433 = vadd.f32 %v2417, %v2431
    %v2434 = vadd.f32 %v2418, %v2432
    %2435 = vset.pattern.permute.xlu0 3
    %2436 = vperm.xlu0 %2435, %v2378
    %v2437 = vpop.permute.xlu0 %2436
    %v2439 = vlaneseq
    %v2440 = vshrl.u32 %v2439, 7
    %v2441 = vsub.s32 3, %v2440
    %v2442 = vrot.slane %v2275, %v2441
    %v2443 = vlaneseq
    %v2444 = vshrl.u32 %v2443, 7
    %v2445 = vsub.s32 3, %v2444
    %v2446 = vrot.slane %v2282, %v2445
    %v2447 = vmul.f32 %v2437, %v2442
    %v2448 = vmul.f32 %v2437, %v2446
    %v2449 = vadd.f32 %v2433, %v2447
    %v2450 = vadd.f32 %v2434, %v2448
    %2451 = vset.pattern.permute.xlu0 4
    %2452 = vperm.xlu0 %2451, %v2378
    %v2453 = vpop.permute.xlu0 %2452
    %v2455 = vlaneseq
    %v2456 = vshrl.u32 %v2455, 7
    %v2457 = vsub.s32 4, %v2456
    %v2458 = vrot.slane %v2275, %v2457
    %v2459 = vlaneseq
    %v2460 = vshrl.u32 %v2459, 7
    %v2461 = vsub.s32 4, %v2460
    %v2462 = vrot.slane %v2282, %v2461
    %v2463 = vmul.f32 %v2453, %v2458
    %v2464 = vmul.f32 %v2453, %v2462
    %v2465 = vadd.f32 %v2449, %v2463
    %v2466 = vadd.f32 %v2450, %v2464
    %2467 = vset.pattern.permute.xlu0 5
    %2468 = vperm.xlu0 %2467, %v2378
    %v2469 = vpop.permute.xlu0 %2468
    %v2471 = vlaneseq
    %v2472 = vshrl.u32 %v2471, 7
    %v2473 = vsub.s32 5, %v2472
    %v2474 = vrot.slane %v2275, %v2473
    %v2475 = vlaneseq
    %v2476 = vshrl.u32 %v2475, 7
    %v2477 = vsub.s32 5, %v2476
    %v2478 = vrot.slane %v2282, %v2477
    %v2479 = vmul.f32 %v2469, %v2474
    %v2480 = vmul.f32 %v2469, %v2478
    %v2481 = vadd.f32 %v2465, %v2479
    %v2482 = vadd.f32 %v2466, %v2480
    %2483 = vset.pattern.permute.xlu0 6
    %2484 = vperm.xlu0 %2483, %v2378
    %v2485 = vpop.permute.xlu0 %2484
    %v2487 = vlaneseq
    %v2488 = vshrl.u32 %v2487, 7
    %v2489 = vsub.s32 6, %v2488
    %v2490 = vrot.slane %v2275, %v2489
    %v2491 = vlaneseq
    %v2492 = vshrl.u32 %v2491, 7
    %v2493 = vsub.s32 6, %v2492
    %v2494 = vrot.slane %v2282, %v2493
    %v2495 = vmul.f32 %v2485, %v2490
    %v2496 = vmul.f32 %v2485, %v2494
    %v2497 = vadd.f32 %v2481, %v2495
    %v2498 = vadd.f32 %v2482, %v2496
    %2499 = vset.pattern.permute.xlu0 7
    %2500 = vperm.xlu0 %2499, %v2378
    %v2501 = vpop.permute.xlu0 %2500
    %v2503 = vlaneseq
    %v2504 = vshrl.u32 %v2503, 7
    %v2505 = vsub.s32 7, %v2504
    %v2506 = vrot.slane %v2275, %v2505
    %v2507 = vlaneseq
    %v2508 = vshrl.u32 %v2507, 7
    %v2509 = vsub.s32 7, %v2508
    %v2510 = vrot.slane %v2282, %v2509
    %v2511 = vmul.f32 %v2501, %v2506
    %v2512 = vmul.f32 %v2501, %v2510
    %v2513 = vadd.f32 %v2497, %v2511
    %v2514 = vadd.f32 %v2498, %v2512
    %vm2515 = vcmp.ge.f32.partialorder %v2513, 0.0
    %vm2516 = vcmp.ge.f32.partialorder %v2514, 0.0
    %v2517 = vmul.f32 %v2513, 0.1
    %v2518 = vmul.f32 %v2514, 0.1
    %v2519 = vsel %vm2515, %v2513, %v2517
    %v2520 = vsel %vm2516, %v2514, %v2518
    %s2521 = scalar_lea.vmem %s1, 64
    %v2522 = vld [vmem:[%s2521] sm:$0xff]
    %s2523 = scalar_lea.vmem %s2, 64
    %v2524 = vld [vmem:[%s2523] sm:$0xff]
    %2526 = vset.pattern.permute.xlu0 0
    %2527 = vperm.xlu0 %2526, %v2522
    %v2528 = vpop.permute.xlu0 %2527
    %v2530 = vlaneseq
    %v2531 = vshrl.u32 %v2530, 7
    %v2532 = vsub.s32 0, %v2531
    %v2533 = vrot.slane %v2519, %v2532
    %v2534 = vlaneseq
    %v2535 = vshrl.u32 %v2534, 7
    %v2536 = vsub.s32 0, %v2535
    %v2537 = vrot.slane %v2520, %v2536
    %v2538 = vmul.f32 %v2528, %v2533
    %v2539 = vmul.f32 %v2528, %v2537
    %2541 = vset.pattern.permute.xlu0 0
    %2542 = vperm.xlu0 %2541, %v2524
    %v2543 = vpop.permute.xlu0 %2542
    %v2545 = vadd.f32 %v2538, %v2543
    %v2546 = vadd.f32 %v2539, %v2543
    %2547 = vset.pattern.permute.xlu0 1
    %2548 = vperm.xlu0 %2547, %v2522
    %v2549 = vpop.permute.xlu0 %2548
    %v2551 = vlaneseq
    %v2552 = vshrl.u32 %v2551, 7
    %v2553 = vsub.s32 1, %v2552
    %v2554 = vrot.slane %v2519, %v2553
    %v2555 = vlaneseq
    %v2556 = vshrl.u32 %v2555, 7
    %v2557 = vsub.s32 1, %v2556
    %v2558 = vrot.slane %v2520, %v2557
    %v2559 = vmul.f32 %v2549, %v2554
    %v2560 = vmul.f32 %v2549, %v2558
    %v2561 = vadd.f32 %v2545, %v2559
    %v2562 = vadd.f32 %v2546, %v2560
    %2563 = vset.pattern.permute.xlu0 2
    %2564 = vperm.xlu0 %2563, %v2522
    %v2565 = vpop.permute.xlu0 %2564
    %v2567 = vlaneseq
    %v2568 = vshrl.u32 %v2567, 7
    %v2569 = vsub.s32 2, %v2568
    %v2570 = vrot.slane %v2519, %v2569
    %v2571 = vlaneseq
    %v2572 = vshrl.u32 %v2571, 7
    %v2573 = vsub.s32 2, %v2572
    %v2574 = vrot.slane %v2520, %v2573
    %v2575 = vmul.f32 %v2565, %v2570
    %v2576 = vmul.f32 %v2565, %v2574
    %v2577 = vadd.f32 %v2561, %v2575
    %v2578 = vadd.f32 %v2562, %v2576
    %2579 = vset.pattern.permute.xlu0 3
    %2580 = vperm.xlu0 %2579, %v2522
    %v2581 = vpop.permute.xlu0 %2580
    %v2583 = vlaneseq
    %v2584 = vshrl.u32 %v2583, 7
    %v2585 = vsub.s32 3, %v2584
    %v2586 = vrot.slane %v2519, %v2585
    %v2587 = vlaneseq
    %v2588 = vshrl.u32 %v2587, 7
    %v2589 = vsub.s32 3, %v2588
    %v2590 = vrot.slane %v2520, %v2589
    %v2591 = vmul.f32 %v2581, %v2586
    %v2592 = vmul.f32 %v2581, %v2590
    %v2593 = vadd.f32 %v2577, %v2591
    %v2594 = vadd.f32 %v2578, %v2592
    %2595 = vset.pattern.permute.xlu0 4
    %2596 = vperm.xlu0 %2595, %v2522
    %v2597 = vpop.permute.xlu0 %2596
    %v2599 = vlaneseq
    %v2600 = vshrl.u32 %v2599, 7
    %v2601 = vsub.s32 4, %v2600
    %v2602 = vrot.slane %v2519, %v2601
    %v2603 = vlaneseq
    %v2604 = vshrl.u32 %v2603, 7
    %v2605 = vsub.s32 4, %v2604
    %v2606 = vrot.slane %v2520, %v2605
    %v2607 = vmul.f32 %v2597, %v2602
    %v2608 = vmul.f32 %v2597, %v2606
    %v2609 = vadd.f32 %v2593, %v2607
    %v2610 = vadd.f32 %v2594, %v2608
    %2611 = vset.pattern.permute.xlu0 5
    %2612 = vperm.xlu0 %2611, %v2522
    %v2613 = vpop.permute.xlu0 %2612
    %v2615 = vlaneseq
    %v2616 = vshrl.u32 %v2615, 7
    %v2617 = vsub.s32 5, %v2616
    %v2618 = vrot.slane %v2519, %v2617
    %v2619 = vlaneseq
    %v2620 = vshrl.u32 %v2619, 7
    %v2621 = vsub.s32 5, %v2620
    %v2622 = vrot.slane %v2520, %v2621
    %v2623 = vmul.f32 %v2613, %v2618
    %v2624 = vmul.f32 %v2613, %v2622
    %v2625 = vadd.f32 %v2609, %v2623
    %v2626 = vadd.f32 %v2610, %v2624
    %2627 = vset.pattern.permute.xlu0 6
    %2628 = vperm.xlu0 %2627, %v2522
    %v2629 = vpop.permute.xlu0 %2628
    %v2631 = vlaneseq
    %v2632 = vshrl.u32 %v2631, 7
    %v2633 = vsub.s32 6, %v2632
    %v2634 = vrot.slane %v2519, %v2633
    %v2635 = vlaneseq
    %v2636 = vshrl.u32 %v2635, 7
    %v2637 = vsub.s32 6, %v2636
    %v2638 = vrot.slane %v2520, %v2637
    %v2639 = vmul.f32 %v2629, %v2634
    %v2640 = vmul.f32 %v2629, %v2638
    %v2641 = vadd.f32 %v2625, %v2639
    %v2642 = vadd.f32 %v2626, %v2640
    %2643 = vset.pattern.permute.xlu0 7
    %2644 = vperm.xlu0 %2643, %v2522
    %v2645 = vpop.permute.xlu0 %2644
    %v2647 = vlaneseq
    %v2648 = vshrl.u32 %v2647, 7
    %v2649 = vsub.s32 7, %v2648
    %v2650 = vrot.slane %v2519, %v2649
    %v2651 = vlaneseq
    %v2652 = vshrl.u32 %v2651, 7
    %v2653 = vsub.s32 7, %v2652
    %v2654 = vrot.slane %v2520, %v2653
    %v2655 = vmul.f32 %v2645, %v2650
    %v2656 = vmul.f32 %v2645, %v2654
    %v2657 = vadd.f32 %v2641, %v2655
    %v2658 = vadd.f32 %v2642, %v2656
    %s2659 = scalar_lea.vmem %s1, 72
    %v2660 = vld [vmem:[%s2659] sm:$0xff]
    %s2661 = scalar_lea.vmem %s2, 72
    %v2662 = vld [vmem:[%s2661] sm:$0xff]
    %2664 = vset.pattern.permute.xlu0 0
    %2665 = vperm.xlu0 %2664, %v2660
    %v2666 = vpop.permute.xlu0 %2665
    %v2668 = vlaneseq
    %v2669 = vshrl.u32 %v2668, 7
    %v2670 = vsub.s32 0, %v2669
    %v2671 = vrot.slane %v2329, %v2670
    %v2672 = vlaneseq
    %v2673 = vshrl.u32 %v2672, 7
    %v2674 = vsub.s32 0, %v2673
    %v2675 = vrot.slane %v2376, %v2674
    %v2676 = vmul.f32 %v2666, %v2671
    %v2677 = vmul.f32 %v2666, %v2675
    %2679 = vset.pattern.permute.xlu0 0
    %2680 = vperm.xlu0 %2679, %v2662
    %v2681 = vpop.permute.xlu0 %2680
    %v2683 = vadd.f32 %v2676, %v2681
    %v2684 = vadd.f32 %v2677, %v2681
    %2685 = vset.pattern.permute.xlu0 1
    %2686 = vperm.xlu0 %2685, %v2660
    %v2687 = vpop.permute.xlu0 %2686
    %v2689 = vlaneseq
    %v2690 = vshrl.u32 %v2689, 7
    %v2691 = vsub.s32 1, %v2690
    %v2692 = vrot.slane %v2329, %v2691
    %v2693 = vlaneseq
    %v2694 = vshrl.u32 %v2693, 7
    %v2695 = vsub.s32 1, %v2694
    %v2696 = vrot.slane %v2376, %v2695
    %v2697 = vmul.f32 %v2687, %v2692
    %v2698 = vmul.f32 %v2687, %v2696
    %v2699 = vadd.f32 %v2683, %v2697
    %v2700 = vadd.f32 %v2684, %v2698
    %2701 = vset.pattern.permute.xlu0 2
    %2702 = vperm.xlu0 %2701, %v2660
    %v2703 = vpop.permute.xlu0 %2702
    %v2705 = vlaneseq
    %v2706 = vshrl.u32 %v2705, 7
    %v2707 = vsub.s32 2, %v2706
    %v2708 = vrot.slane %v2329, %v2707
    %v2709 = vlaneseq
    %v2710 = vshrl.u32 %v2709, 7
    %v2711 = vsub.s32 2, %v2710
    %v2712 = vrot.slane %v2376, %v2711
    %v2713 = vmul.f32 %v2703, %v2708
    %v2714 = vmul.f32 %v2703, %v2712
    %v2715 = vadd.f32 %v2699, %v2713
    %v2716 = vadd.f32 %v2700, %v2714
    %2717 = vset.pattern.permute.xlu0 3
    %2718 = vperm.xlu0 %2717, %v2660
    %v2719 = vpop.permute.xlu0 %2718
    %v2721 = vlaneseq
    %v2722 = vshrl.u32 %v2721, 7
    %v2723 = vsub.s32 3, %v2722
    %v2724 = vrot.slane %v2329, %v2723
    %v2725 = vlaneseq
    %v2726 = vshrl.u32 %v2725, 7
    %v2727 = vsub.s32 3, %v2726
    %v2728 = vrot.slane %v2376, %v2727
    %v2729 = vmul.f32 %v2719, %v2724
    %v2730 = vmul.f32 %v2719, %v2728
    %v2731 = vadd.f32 %v2715, %v2729
    %v2732 = vadd.f32 %v2716, %v2730
    %2733 = vset.pattern.permute.xlu0 4
    %2734 = vperm.xlu0 %2733, %v2660
    %v2735 = vpop.permute.xlu0 %2734
    %v2737 = vlaneseq
    %v2738 = vshrl.u32 %v2737, 7
    %v2739 = vsub.s32 4, %v2738
    %v2740 = vrot.slane %v2329, %v2739
    %v2741 = vlaneseq
    %v2742 = vshrl.u32 %v2741, 7
    %v2743 = vsub.s32 4, %v2742
    %v2744 = vrot.slane %v2376, %v2743
    %v2745 = vmul.f32 %v2735, %v2740
    %v2746 = vmul.f32 %v2735, %v2744
    %v2747 = vadd.f32 %v2731, %v2745
    %v2748 = vadd.f32 %v2732, %v2746
    %2749 = vset.pattern.permute.xlu0 5
    %2750 = vperm.xlu0 %2749, %v2660
    %v2751 = vpop.permute.xlu0 %2750
    %v2753 = vlaneseq
    %v2754 = vshrl.u32 %v2753, 7
    %v2755 = vsub.s32 5, %v2754
    %v2756 = vrot.slane %v2329, %v2755
    %v2757 = vlaneseq
    %v2758 = vshrl.u32 %v2757, 7
    %v2759 = vsub.s32 5, %v2758
    %v2760 = vrot.slane %v2376, %v2759
    %v2761 = vmul.f32 %v2751, %v2756
    %v2762 = vmul.f32 %v2751, %v2760
    %v2763 = vadd.f32 %v2747, %v2761
    %v2764 = vadd.f32 %v2748, %v2762
    %2765 = vset.pattern.permute.xlu0 6
    %2766 = vperm.xlu0 %2765, %v2660
    %v2767 = vpop.permute.xlu0 %2766
    %v2769 = vlaneseq
    %v2770 = vshrl.u32 %v2769, 7
    %v2771 = vsub.s32 6, %v2770
    %v2772 = vrot.slane %v2329, %v2771
    %v2773 = vlaneseq
    %v2774 = vshrl.u32 %v2773, 7
    %v2775 = vsub.s32 6, %v2774
    %v2776 = vrot.slane %v2376, %v2775
    %v2777 = vmul.f32 %v2767, %v2772
    %v2778 = vmul.f32 %v2767, %v2776
    %v2779 = vadd.f32 %v2763, %v2777
    %v2780 = vadd.f32 %v2764, %v2778
    %2781 = vset.pattern.permute.xlu0 7
    %2782 = vperm.xlu0 %2781, %v2660
    %v2783 = vpop.permute.xlu0 %2782
    %v2785 = vlaneseq
    %v2786 = vshrl.u32 %v2785, 7
    %v2787 = vsub.s32 7, %v2786
    %v2788 = vrot.slane %v2329, %v2787
    %v2789 = vlaneseq
    %v2790 = vshrl.u32 %v2789, 7
    %v2791 = vsub.s32 7, %v2790
    %v2792 = vrot.slane %v2376, %v2791
    %v2793 = vmul.f32 %v2783, %v2788
    %v2794 = vmul.f32 %v2783, %v2792
    %v2795 = vadd.f32 %v2779, %v2793
    %v2796 = vadd.f32 %v2780, %v2794
    %vm2797 = vcmp.ge.f32.partialorder %v2795, 0.0
    %vm2798 = vcmp.ge.f32.partialorder %v2796, 0.0
    %v2799 = vmul.f32 %v2795, 0.1
    %v2800 = vmul.f32 %v2796, 0.1
    %v2801 = vsel %vm2797, %v2795, %v2799
    %v2802 = vsel %vm2798, %v2796, %v2800
    %s2803 = scalar_lea.vmem %s1, 80
    %v2804 = vld [vmem:[%s2803] sm:$0xff]
    %s2805 = scalar_lea.vmem %s2, 80
    %v2806 = vld [vmem:[%s2805] sm:$0xff]
    %2808 = vset.pattern.permute.xlu0 0
    %2809 = vperm.xlu0 %2808, %v2804
    %v2810 = vpop.permute.xlu0 %2809
    %v2812 = vlaneseq
    %v2813 = vshrl.u32 %v2812, 7
    %v2814 = vsub.s32 0, %v2813
    %v2815 = vrot.slane %v2801, %v2814
    %v2816 = vlaneseq
    %v2817 = vshrl.u32 %v2816, 7
    %v2818 = vsub.s32 0, %v2817
    %v2819 = vrot.slane %v2802, %v2818
    %v2820 = vmul.f32 %v2810, %v2815
    %v2821 = vmul.f32 %v2810, %v2819
    %2823 = vset.pattern.permute.xlu0 0
    %2824 = vperm.xlu0 %2823, %v2806
    %v2825 = vpop.permute.xlu0 %2824
    %v2827 = vadd.f32 %v2820, %v2825
    %v2828 = vadd.f32 %v2821, %v2825
    %2829 = vset.pattern.permute.xlu0 1
    %2830 = vperm.xlu0 %2829, %v2804
    %v2831 = vpop.permute.xlu0 %2830
    %v2833 = vlaneseq
    %v2834 = vshrl.u32 %v2833, 7
    %v2835 = vsub.s32 1, %v2834
    %v2836 = vrot.slane %v2801, %v2835
    %v2837 = vlaneseq
    %v2838 = vshrl.u32 %v2837, 7
    %v2839 = vsub.s32 1, %v2838
    %v2840 = vrot.slane %v2802, %v2839
    %v2841 = vmul.f32 %v2831, %v2836
    %v2842 = vmul.f32 %v2831, %v2840
    %v2843 = vadd.f32 %v2827, %v2841
    %v2844 = vadd.f32 %v2828, %v2842
    %2845 = vset.pattern.permute.xlu0 2
    %2846 = vperm.xlu0 %2845, %v2804
    %v2847 = vpop.permute.xlu0 %2846
    %v2849 = vlaneseq
    %v2850 = vshrl.u32 %v2849, 7
    %v2851 = vsub.s32 2, %v2850
    %v2852 = vrot.slane %v2801, %v2851
    %v2853 = vlaneseq
    %v2854 = vshrl.u32 %v2853, 7
    %v2855 = vsub.s32 2, %v2854
    %v2856 = vrot.slane %v2802, %v2855
    %v2857 = vmul.f32 %v2847, %v2852
    %v2858 = vmul.f32 %v2847, %v2856
    %v2859 = vadd.f32 %v2843, %v2857
    %v2860 = vadd.f32 %v2844, %v2858
    %2861 = vset.pattern.permute.xlu0 3
    %2862 = vperm.xlu0 %2861, %v2804
    %v2863 = vpop.permute.xlu0 %2862
    %v2865 = vlaneseq
    %v2866 = vshrl.u32 %v2865, 7
    %v2867 = vsub.s32 3, %v2866
    %v2868 = vrot.slane %v2801, %v2867
    %v2869 = vlaneseq
    %v2870 = vshrl.u32 %v2869, 7
    %v2871 = vsub.s32 3, %v2870
    %v2872 = vrot.slane %v2802, %v2871
    %v2873 = vmul.f32 %v2863, %v2868
    %v2874 = vmul.f32 %v2863, %v2872
    %v2875 = vadd.f32 %v2859, %v2873
    %v2876 = vadd.f32 %v2860, %v2874
    %2877 = vset.pattern.permute.xlu0 4
    %2878 = vperm.xlu0 %2877, %v2804
    %v2879 = vpop.permute.xlu0 %2878
    %v2881 = vlaneseq
    %v2882 = vshrl.u32 %v2881, 7
    %v2883 = vsub.s32 4, %v2882
    %v2884 = vrot.slane %v2801, %v2883
    %v2885 = vlaneseq
    %v2886 = vshrl.u32 %v2885, 7
    %v2887 = vsub.s32 4, %v2886
    %v2888 = vrot.slane %v2802, %v2887
    %v2889 = vmul.f32 %v2879, %v2884
    %v2890 = vmul.f32 %v2879, %v2888
    %v2891 = vadd.f32 %v2875, %v2889
    %v2892 = vadd.f32 %v2876, %v2890
    %2893 = vset.pattern.permute.xlu0 5
    %2894 = vperm.xlu0 %2893, %v2804
    %v2895 = vpop.permute.xlu0 %2894
    %v2897 = vlaneseq
    %v2898 = vshrl.u32 %v2897, 7
    %v2899 = vsub.s32 5, %v2898
    %v2900 = vrot.slane %v2801, %v2899
    %v2901 = vlaneseq
    %v2902 = vshrl.u32 %v2901, 7
    %v2903 = vsub.s32 5, %v2902
    %v2904 = vrot.slane %v2802, %v2903
    %v2905 = vmul.f32 %v2895, %v2900
    %v2906 = vmul.f32 %v2895, %v2904
    %v2907 = vadd.f32 %v2891, %v2905
    %v2908 = vadd.f32 %v2892, %v2906
    %2909 = vset.pattern.permute.xlu0 6
    %2910 = vperm.xlu0 %2909, %v2804
    %v2911 = vpop.permute.xlu0 %2910
    %v2913 = vlaneseq
    %v2914 = vshrl.u32 %v2913, 7
    %v2915 = vsub.s32 6, %v2914
    %v2916 = vrot.slane %v2801, %v2915
    %v2917 = vlaneseq
    %v2918 = vshrl.u32 %v2917, 7
    %v2919 = vsub.s32 6, %v2918
    %v2920 = vrot.slane %v2802, %v2919
    %v2921 = vmul.f32 %v2911, %v2916
    %v2922 = vmul.f32 %v2911, %v2920
    %v2923 = vadd.f32 %v2907, %v2921
    %v2924 = vadd.f32 %v2908, %v2922
    %2925 = vset.pattern.permute.xlu0 7
    %2926 = vperm.xlu0 %2925, %v2804
    %v2927 = vpop.permute.xlu0 %2926
    %v2929 = vlaneseq
    %v2930 = vshrl.u32 %v2929, 7
    %v2931 = vsub.s32 7, %v2930
    %v2932 = vrot.slane %v2801, %v2931
    %v2933 = vlaneseq
    %v2934 = vshrl.u32 %v2933, 7
    %v2935 = vsub.s32 7, %v2934
    %v2936 = vrot.slane %v2802, %v2935
    %v2937 = vmul.f32 %v2927, %v2932
    %v2938 = vmul.f32 %v2927, %v2936
    %v2939 = vadd.f32 %v2923, %v2937
    %v2940 = vadd.f32 %v2924, %v2938
    %v2941 = vand.u32 2147483647, %v2939
    %vm2942 = vcmp.le.f32.partialorder %v2941, 0.7853982
    %vm2943 = vcmp.lt.s32.totalorder %v2939, 0
    %v2944 = vand.u32 %v2939, 2139095040
    %v2945 = vshrl.u32 %v2944, 23
    %v2946 = vsub.s32 %v2945, 127
    %v2947 = vand.u32 2147483647, %v2939
    %v2948 = vand.u32 %v2947, 8388607
    %v2949 = vor.u32 %v2948, 8388608
    %v2950 = vsub.s32 0, %v2949
    %v2951 = vadd.s32 %v2946, 1
    %vm2952 = vcmp.gt.s32.totalorder %v2951, 0
    %v2953 = vsel %vm2952, %v2951, 0
    %v2954 = vshrl.u32 %v2953, 5
    %v2955 = vand.u32 %v2953, 31
    %v2956 = vsub.s32 32, %v2955
    %v2957 = vshrl.u32 683565275, %v2956
    %v2958 = vshll.u32 683565275, %v2955
    %v2959 = vshrl.u32 2475754826, %v2956
    %v2960 = vor.u32 %v2958, %v2959
    %v2961 = vshll.u32 2475754826, %v2955
    %v2962 = vshrl.u32 2131351028, %v2956
    %v2963 = vor.u32 %v2961, %v2962
    %v2964 = vshll.u32 2131351028, %v2955
    %v2965 = vshrl.u32 2102212464, %v2956
    %v2966 = vor.u32 %v2964, %v2965
    %v2967 = vshll.u32 2102212464, %v2955
    %v2968 = vshrl.u32 920167782, %v2956
    %v2969 = vor.u32 %v2967, %v2968
    %v2970 = vshll.u32 920167782, %v2955
    %v2971 = vshrl.u32 1326507024, %v2956
    %v2972 = vor.u32 %v2970, %v2971
    %vm2973 = vcmp.lt.s32.totalorder %v2954, 1
    %vm2974 = vcmp.lt.s32.totalorder %v2954, 2
    %vm2975 = vcmp.lt.s32.totalorder %v2954, 3
    %vm2976 = vcmp.lt.s32.totalorder %v2954, 4
    %v2977 = vsel %vm2973, %v2957, %v2960
    %v2978 = vsel %vm2976, %v2966, 2102212464
    %v2979 = vsel %vm2975, %v2963, %v2978
    %v2980 = vsel %vm2974, %v2977, %v2979
    %v2981 = vsel %vm2973, %v2960, %v2963
    %v2982 = vsel %vm2976, %v2969, 920167782
    %v2983 = vsel %vm2975, %v2966, %v2982
    %v2984 = vsel %vm2974, %v2981, %v2983
    %v2985 = vsel %vm2973, %v2963, %v2966
    %v2986 = vsel %vm2976, %v2972, 1326507024
    %v2987 = vsel %vm2975, %v2969, %v2986
    %v2988 = vsel %vm2974, %v2985, %v2987
    %v2989 = vshll.u32 %v2949, 8
    %v2990 = vmul.u32.u64.compose %v2989, %v2988
    %v2991 = vextract.low.u32 %v2990
    %v2992 = vextract.high.u32 %v2990
    %v2993 = vmul.u32.u64.compose %v2989, %v2984
    %v2994 = vextract.low.u32 %v2993
    %v2995 = vextract.high.u32 %v2993
    %v2996 = vmul.u32 %v2989, %v2980
    %v2997 = vadd.s32 %v2992, %v2994
    %vm2998 = vc.u32 %v2992, %v2994
    %v2999 = vadd.s32 %v2995, 1
    %v3000 = vsel %vm2998, %v2999, %v2995
    %v3001 = vadd.s32 %v2996, %v3000
    %v3002 = vadd.s32 %v3001, 536870912
    %v3003 = vshrl.u32 %v3002, 30
    %v3004 = vshll.u32 %v3003, 30
    %v3005 = vsub.s32 %v3001, %v3004
    %vm3006 = vcmp.lt.s32.totalorder %v3005, 0
    %v3007 = vsub.s32 0, %v3005
    %v3008 = vsel %vm3006, %v3007, %v3005
    %v3009 = vclz %v3008
    %v3010 = vsub.s32 %v3009, 2
    %vm3011 = vcmp.gt.s32.totalorder 0, %v3010
    %v3012 = vsel %vm3011, 0, %v3010
    %v3013 = vsub.s32 32, %v3012
    %v3014 = vshll.u32 %v3005, %v3012
    %v3015 = vshrl.u32 %v2997, %v3013
    %v3016 = vor.u32 %v3014, %v3015
    %v3017 = vsub.s32 4294967266, %v3012
    %v3018 = vadd.s32 %v3017, 127
    %v3019 = vshll.u32 %v3018, 23
    %v3020 = vor.u32 4788187, %v3019
    %v3021 = vand.u32 2147483647, %v3020
    %v3023 = vcvt.s32.f32 %v3016
    %v3024 = vmul.f32 %v3023, %v3021
    %v3025 = vxor.u32 %v3024, 2147483648
    %v3026 = vsel %vm2943, %v3025, %v3024
    %v3027 = vsub.s32 4, %v3003
    %v3028 = vsel %vm2943, %v3027, %v3003
    %v3029 = vsel %vm2942, %v2939, %v3026
    %v3030 = vsel %vm2942, 0, %v3028
    %v3031 = vcosq.f32.pop %v3029
    %v3032 = vsinq.f32.pop %v3029
    %vm3033 = vweird.f32 %v2939
    %v3034 = vand.u32 %v3030, 3
    %vm3035 = vcmp.lt.s32.totalorder %v3034, 2
    %vm3036 = vcmp.eq.s32.totalorder %v3034, 0
    %v3037 = vxor.u32 %v3032, 2147483648
    %v3038 = vsel %vm3036, %v3031, %v3037
    %vm3039 = vcmp.eq.s32.totalorder %v3034, 2
    %v3040 = vxor.u32 %v3031, 2147483648
    %v3041 = vsel %vm3039, %v3040, %v3032
    %v3042 = vsel %vm3035, %v3038, %v3041
    %v3043 = vsel %vm3033, nan, %v3042
    %v3044 = vand.u32 2147483647, %v2940
    %vm3045 = vcmp.le.f32.partialorder %v3044, 0.7853982
    %vm3046 = vcmp.lt.s32.totalorder %v2940, 0
    %v3047 = vand.u32 %v2940, 2139095040
    %v3048 = vshrl.u32 %v3047, 23
    %v3049 = vsub.s32 %v3048, 127
    %v3050 = vand.u32 2147483647, %v2940
    %v3051 = vand.u32 %v3050, 8388607
    %v3052 = vor.u32 %v3051, 8388608
    %v3053 = vsub.s32 0, %v3052
    %v3054 = vadd.s32 %v3049, 1
    %vm3055 = vcmp.gt.s32.totalorder %v3054, 0
    %v3056 = vsel %vm3055, %v3054, 0
    %v3057 = vshrl.u32 %v3056, 5
    %v3058 = vand.u32 %v3056, 31
    %v3059 = vsub.s32 32, %v3058
    %v3060 = vshrl.u32 683565275, %v3059
    %v3061 = vshll.u32 683565275, %v3058
    %v3062 = vshrl.u32 2475754826, %v3059
    %v3063 = vor.u32 %v3061, %v3062
    %v3064 = vshll.u32 2475754826, %v3058
    %v3065 = vshrl.u32 2131351028, %v3059
    %v3066 = vor.u32 %v3064, %v3065
    %v3067 = vshll.u32 2131351028, %v3058
    %v3068 = vshrl.u32 2102212464, %v3059
    %v3069 = vor.u32 %v3067, %v3068
    %v3070 = vshll.u32 2102212464, %v3058
    %v3071 = vshrl.u32 920167782, %v3059
    %v3072 = vor.u32 %v3070, %v3071
    %v3073 = vshll.u32 920167782, %v3058
    %v3074 = vshrl.u32 1326507024, %v3059
    %v3075 = vor.u32 %v3073, %v3074
    %vm3076 = vcmp.lt.s32.totalorder %v3057, 1
    %vm3077 = vcmp.lt.s32.totalorder %v3057, 2
    %vm3078 = vcmp.lt.s32.totalorder %v3057, 3
    %vm3079 = vcmp.lt.s32.totalorder %v3057, 4
    %v3080 = vsel %vm3076, %v3060, %v3063
    %v3081 = vsel %vm3079, %v3069, 2102212464
    %v3082 = vsel %vm3078, %v3066, %v3081
    %v3083 = vsel %vm3077, %v3080, %v3082
    %v3084 = vsel %vm3076, %v3063, %v3066
    %v3085 = vsel %vm3079, %v3072, 920167782
    %v3086 = vsel %vm3078, %v3069, %v3085
    %v3087 = vsel %vm3077, %v3084, %v3086
    %v3088 = vsel %vm3076, %v3066, %v3069
    %v3089 = vsel %vm3079, %v3075, 1326507024
    %v3090 = vsel %vm3078, %v3072, %v3089
    %v3091 = vsel %vm3077, %v3088, %v3090
    %v3092 = vshll.u32 %v3052, 8
    %v3093 = vmul.u32.u64.compose %v3092, %v3091
    %v3094 = vextract.low.u32 %v3093
    %v3095 = vextract.high.u32 %v3093
    %v3096 = vmul.u32.u64.compose %v3092, %v3087
    %v3097 = vextract.low.u32 %v3096
    %v3098 = vextract.high.u32 %v3096
    %v3099 = vmul.u32 %v3092, %v3083
    %v3100 = vadd.s32 %v3095, %v3097
    %vm3101 = vc.u32 %v3095, %v3097
    %v3102 = vadd.s32 %v3098, 1
    %v3103 = vsel %vm3101, %v3102, %v3098
    %v3104 = vadd.s32 %v3099, %v3103
    %v3105 = vadd.s32 %v3104, 536870912
    %v3106 = vshrl.u32 %v3105, 30
    %v3107 = vshll.u32 %v3106, 30
    %v3108 = vsub.s32 %v3104, %v3107
    %vm3109 = vcmp.lt.s32.totalorder %v3108, 0
    %v3110 = vsub.s32 0, %v3108
    %v3111 = vsel %vm3109, %v3110, %v3108
    %v3112 = vclz %v3111
    %v3113 = vsub.s32 %v3112, 2
    %vm3114 = vcmp.gt.s32.totalorder 0, %v3113
    %v3115 = vsel %vm3114, 0, %v3113
    %v3116 = vsub.s32 32, %v3115
    %v3117 = vshll.u32 %v3108, %v3115
    %v3118 = vshrl.u32 %v3100, %v3116
    %v3119 = vor.u32 %v3117, %v3118
    %v3120 = vsub.s32 4294967266, %v3115
    %v3121 = vadd.s32 %v3120, 127
    %v3122 = vshll.u32 %v3121, 23
    %v3123 = vor.u32 4788187, %v3122
    %v3124 = vand.u32 2147483647, %v3123
    %v3126 = vcvt.s32.f32 %v3119
    %v3127 = vmul.f32 %v3126, %v3124
    %v3128 = vxor.u32 %v3127, 2147483648
    %v3129 = vsel %vm3046, %v3128, %v3127
    %v3130 = vsub.s32 4, %v3106
    %v3131 = vsel %vm3046, %v3130, %v3106
    %v3132 = vsel %vm3045, %v2940, %v3129
    %v3133 = vsel %vm3045, 0, %v3131
    %v3134 = vcosq.f32.pop %v3132
    %v3135 = vsinq.f32.pop %v3132
    %vm3136 = vweird.f32 %v2940
    %v3137 = vand.u32 %v3133, 3
    %vm3138 = vcmp.lt.s32.totalorder %v3137, 2
    %vm3139 = vcmp.eq.s32.totalorder %v3137, 0
    %v3140 = vxor.u32 %v3135, 2147483648
    %v3141 = vsel %vm3139, %v3134, %v3140
    %vm3142 = vcmp.eq.s32.totalorder %v3137, 2
    %v3143 = vxor.u32 %v3134, 2147483648
    %v3144 = vsel %vm3142, %v3143, %v3135
    %v3145 = vsel %vm3138, %v3141, %v3144
    %v3146 = vsel %vm3136, nan, %v3145
    %v3147 = vmul.f32 %v2657, %v3043
    %v3148 = vmul.f32 %v2658, %v3146
    %v3149 = vand.u32 2147483647, %v2939
    %vm3150 = vcmp.le.f32.partialorder %v3149, 0.7853982
    %vm3151 = vcmp.lt.s32.totalorder %v2939, 0
    %v3152 = vand.u32 %v2939, 2139095040
    %v3153 = vshrl.u32 %v3152, 23
    %v3154 = vsub.s32 %v3153, 127
    %v3155 = vand.u32 2147483647, %v2939
    %v3156 = vand.u32 %v3155, 8388607
    %v3157 = vor.u32 %v3156, 8388608
    %v3158 = vsub.s32 0, %v3157
    %v3159 = vadd.s32 %v3154, 1
    %vm3160 = vcmp.gt.s32.totalorder %v3159, 0
    %v3161 = vsel %vm3160, %v3159, 0
    %v3162 = vshrl.u32 %v3161, 5
    %v3163 = vand.u32 %v3161, 31
    %v3164 = vsub.s32 32, %v3163
    %v3165 = vshrl.u32 683565275, %v3164
    %v3166 = vshll.u32 683565275, %v3163
    %v3167 = vshrl.u32 2475754826, %v3164
    %v3168 = vor.u32 %v3166, %v3167
    %v3169 = vshll.u32 2475754826, %v3163
    %v3170 = vshrl.u32 2131351028, %v3164
    %v3171 = vor.u32 %v3169, %v3170
    %v3172 = vshll.u32 2131351028, %v3163
    %v3173 = vshrl.u32 2102212464, %v3164
    %v3174 = vor.u32 %v3172, %v3173
    %v3175 = vshll.u32 2102212464, %v3163
    %v3176 = vshrl.u32 920167782, %v3164
    %v3177 = vor.u32 %v3175, %v3176
    %v3178 = vshll.u32 920167782, %v3163
    %v3179 = vshrl.u32 1326507024, %v3164
    %v3180 = vor.u32 %v3178, %v3179
    %vm3181 = vcmp.lt.s32.totalorder %v3162, 1
    %vm3182 = vcmp.lt.s32.totalorder %v3162, 2
    %vm3183 = vcmp.lt.s32.totalorder %v3162, 3
    %vm3184 = vcmp.lt.s32.totalorder %v3162, 4
    %v3185 = vsel %vm3181, %v3165, %v3168
    %v3186 = vsel %vm3184, %v3174, 2102212464
    %v3187 = vsel %vm3183, %v3171, %v3186
    %v3188 = vsel %vm3182, %v3185, %v3187
    %v3189 = vsel %vm3181, %v3168, %v3171
    %v3190 = vsel %vm3184, %v3177, 920167782
    %v3191 = vsel %vm3183, %v3174, %v3190
    %v3192 = vsel %vm3182, %v3189, %v3191
    %v3193 = vsel %vm3181, %v3171, %v3174
    %v3194 = vsel %vm3184, %v3180, 1326507024
    %v3195 = vsel %vm3183, %v3177, %v3194
    %v3196 = vsel %vm3182, %v3193, %v3195
    %v3197 = vshll.u32 %v3157, 8
    %v3198 = vmul.u32.u64.compose %v3197, %v3196
    %v3199 = vextract.low.u32 %v3198
    %v3200 = vextract.high.u32 %v3198
    %v3201 = vmul.u32.u64.compose %v3197, %v3192
    %v3202 = vextract.low.u32 %v3201
    %v3203 = vextract.high.u32 %v3201
    %v3204 = vmul.u32 %v3197, %v3188
    %v3205 = vadd.s32 %v3200, %v3202
    %vm3206 = vc.u32 %v3200, %v3202
    %v3207 = vadd.s32 %v3203, 1
    %v3208 = vsel %vm3206, %v3207, %v3203
    %v3209 = vadd.s32 %v3204, %v3208
    %v3210 = vadd.s32 %v3209, 536870912
    %v3211 = vshrl.u32 %v3210, 30
    %v3212 = vshll.u32 %v3211, 30
    %v3213 = vsub.s32 %v3209, %v3212
    %vm3214 = vcmp.lt.s32.totalorder %v3213, 0
    %v3215 = vsub.s32 0, %v3213
    %v3216 = vsel %vm3214, %v3215, %v3213
    %v3217 = vclz %v3216
    %v3218 = vsub.s32 %v3217, 2
    %vm3219 = vcmp.gt.s32.totalorder 0, %v3218
    %v3220 = vsel %vm3219, 0, %v3218
    %v3221 = vsub.s32 32, %v3220
    %v3222 = vshll.u32 %v3213, %v3220
    %v3223 = vshrl.u32 %v3205, %v3221
    %v3224 = vor.u32 %v3222, %v3223
    %v3225 = vsub.s32 4294967266, %v3220
    %v3226 = vadd.s32 %v3225, 127
    %v3227 = vshll.u32 %v3226, 23
    %v3228 = vor.u32 4788187, %v3227
    %v3229 = vand.u32 2147483647, %v3228
    %v3231 = vcvt.s32.f32 %v3224
    %v3232 = vmul.f32 %v3231, %v3229
    %v3233 = vxor.u32 %v3232, 2147483648
    %v3234 = vsel %vm3151, %v3233, %v3232
    %v3235 = vsub.s32 4, %v3211
    %v3236 = vsel %vm3151, %v3235, %v3211
    %v3237 = vsel %vm3150, %v2939, %v3234
    %v3238 = vsel %vm3150, 0, %v3236
    %v3239 = vcosq.f32.pop %v3237
    %v3240 = vsinq.f32.pop %v3237
    %vm3241 = vweird.f32 %v2939
    %v3242 = vadd.s32 %v3238, 3
    %v3243 = vand.u32 %v3242, 3
    %vm3244 = vcmp.lt.s32.totalorder %v3243, 2
    %vm3245 = vcmp.eq.s32.totalorder %v3243, 0
    %v3246 = vxor.u32 %v3240, 2147483648
    %v3247 = vsel %vm3245, %v3239, %v3246
    %vm3248 = vcmp.eq.s32.totalorder %v3243, 2
    %v3249 = vxor.u32 %v3239, 2147483648
    %v3250 = vsel %vm3248, %v3249, %v3240
    %v3251 = vsel %vm3244, %v3247, %v3250
    %v3252 = vsel %vm3241, nan, %v3251
    %v3253 = vand.u32 2147483647, %v2940
    %vm3254 = vcmp.le.f32.partialorder %v3253, 0.7853982
    %vm3255 = vcmp.lt.s32.totalorder %v2940, 0
    %v3256 = vand.u32 %v2940, 2139095040
    %v3257 = vshrl.u32 %v3256, 23
    %v3258 = vsub.s32 %v3257, 127
    %v3259 = vand.u32 2147483647, %v2940
    %v3260 = vand.u32 %v3259, 8388607
    %v3261 = vor.u32 %v3260, 8388608
    %v3262 = vsub.s32 0, %v3261
    %v3263 = vadd.s32 %v3258, 1
    %vm3264 = vcmp.gt.s32.totalorder %v3263, 0
    %v3265 = vsel %vm3264, %v3263, 0
    %v3266 = vshrl.u32 %v3265, 5
    %v3267 = vand.u32 %v3265, 31
    %v3268 = vsub.s32 32, %v3267
    %v3269 = vshrl.u32 683565275, %v3268
    %v3270 = vshll.u32 683565275, %v3267
    %v3271 = vshrl.u32 2475754826, %v3268
    %v3272 = vor.u32 %v3270, %v3271
    %v3273 = vshll.u32 2475754826, %v3267
    %v3274 = vshrl.u32 2131351028, %v3268
    %v3275 = vor.u32 %v3273, %v3274
    %v3276 = vshll.u32 2131351028, %v3267
    %v3277 = vshrl.u32 2102212464, %v3268
    %v3278 = vor.u32 %v3276, %v3277
    %v3279 = vshll.u32 2102212464, %v3267
    %v3280 = vshrl.u32 920167782, %v3268
    %v3281 = vor.u32 %v3279, %v3280
    %v3282 = vshll.u32 920167782, %v3267
    %v3283 = vshrl.u32 1326507024, %v3268
    %v3284 = vor.u32 %v3282, %v3283
    %vm3285 = vcmp.lt.s32.totalorder %v3266, 1
    %vm3286 = vcmp.lt.s32.totalorder %v3266, 2
    %vm3287 = vcmp.lt.s32.totalorder %v3266, 3
    %vm3288 = vcmp.lt.s32.totalorder %v3266, 4
    %v3289 = vsel %vm3285, %v3269, %v3272
    %v3290 = vsel %vm3288, %v3278, 2102212464
    %v3291 = vsel %vm3287, %v3275, %v3290
    %v3292 = vsel %vm3286, %v3289, %v3291
    %v3293 = vsel %vm3285, %v3272, %v3275
    %v3294 = vsel %vm3288, %v3281, 920167782
    %v3295 = vsel %vm3287, %v3278, %v3294
    %v3296 = vsel %vm3286, %v3293, %v3295
    %v3297 = vsel %vm3285, %v3275, %v3278
    %v3298 = vsel %vm3288, %v3284, 1326507024
    %v3299 = vsel %vm3287, %v3281, %v3298
    %v3300 = vsel %vm3286, %v3297, %v3299
    %v3301 = vshll.u32 %v3261, 8
    %v3302 = vmul.u32.u64.compose %v3301, %v3300
    %v3303 = vextract.low.u32 %v3302
    %v3304 = vextract.high.u32 %v3302
    %v3305 = vmul.u32.u64.compose %v3301, %v3296
    %v3306 = vextract.low.u32 %v3305
    %v3307 = vextract.high.u32 %v3305
    %v3308 = vmul.u32 %v3301, %v3292
    %v3309 = vadd.s32 %v3304, %v3306
    %vm3310 = vc.u32 %v3304, %v3306
    %v3311 = vadd.s32 %v3307, 1
    %v3312 = vsel %vm3310, %v3311, %v3307
    %v3313 = vadd.s32 %v3308, %v3312
    %v3314 = vadd.s32 %v3313, 536870912
    %v3315 = vshrl.u32 %v3314, 30
    %v3316 = vshll.u32 %v3315, 30
    %v3317 = vsub.s32 %v3313, %v3316
    %vm3318 = vcmp.lt.s32.totalorder %v3317, 0
    %v3319 = vsub.s32 0, %v3317
    %v3320 = vsel %vm3318, %v3319, %v3317
    %v3321 = vclz %v3320
    %v3322 = vsub.s32 %v3321, 2
    %vm3323 = vcmp.gt.s32.totalorder 0, %v3322
    %v3324 = vsel %vm3323, 0, %v3322
    %v3325 = vsub.s32 32, %v3324
    %v3326 = vshll.u32 %v3317, %v3324
    %v3327 = vshrl.u32 %v3309, %v3325
    %v3328 = vor.u32 %v3326, %v3327
    %v3329 = vsub.s32 4294967266, %v3324
    %v3330 = vadd.s32 %v3329, 127
    %v3331 = vshll.u32 %v3330, 23
    %v3332 = vor.u32 4788187, %v3331
    %v3333 = vand.u32 2147483647, %v3332
    %v3335 = vcvt.s32.f32 %v3328
    %v3336 = vmul.f32 %v3335, %v3333
    %v3337 = vxor.u32 %v3336, 2147483648
    %v3338 = vsel %vm3255, %v3337, %v3336
    %v3339 = vsub.s32 4, %v3315
    %v3340 = vsel %vm3255, %v3339, %v3315
    %v3341 = vsel %vm3254, %v2940, %v3338
    %v3342 = vsel %vm3254, 0, %v3340
    %v3343 = vcosq.f32.pop %v3341
    %v3344 = vsinq.f32.pop %v3341
    %vm3345 = vweird.f32 %v2940
    %v3346 = vadd.s32 %v3342, 3
    %v3347 = vand.u32 %v3346, 3
    %vm3348 = vcmp.lt.s32.totalorder %v3347, 2
    %vm3349 = vcmp.eq.s32.totalorder %v3347, 0
    %v3350 = vxor.u32 %v3344, 2147483648
    %v3351 = vsel %vm3349, %v3343, %v3350
    %vm3352 = vcmp.eq.s32.totalorder %v3347, 2
    %v3353 = vxor.u32 %v3343, 2147483648
    %v3354 = vsel %vm3352, %v3353, %v3344
    %v3355 = vsel %vm3348, %v3351, %v3354
    %v3356 = vsel %vm3345, nan, %v3355
    %v3357 = vmul.f32 %v2657, %v3252
    %v3358 = vmul.f32 %v2658, %v3356
    %3359 = vmatprep.subr.mxu0 %v1636
    %3360 = vmatpush1.msra.mxu0 %v1635
    %3361 = vmatprep.subr.mxu0 %v1638
    %3362 = vmatpush1.msra.mxu0 %v1637
    %3363 = vmatprep.subr.mxu0 %v1640
    %3364 = vmatpush1.msra.mxu0 %v1639
    %3365 = vmatprep.subr.mxu0 %v1642
    %3366 = vmatpush1.msra.mxu0 %v1641
    %3367 = vmatprep.subr.mxu0 %v1644
    %3368 = vmatpush1.msra.mxu0 %v1643
    %3369 = vmatprep.subr.mxu0 %v1646
    %3370 = vmatpush1.msra.mxu0 %v1645
    %3371 = vmatprep.subr.mxu0 %v1648
    %3372 = vmatpush1.msra.mxu0 %v1647
    %3373 = vmatprep.subr.mxu0 %v1650
    %3374 = vmatpush1.msra.mxu0 %v1649
    %3375 = vmatprep.subr.mxu0 %v1652
    %3376 = vmatpush1.msra.mxu0 %v1651
    %3377 = vmatprep.subr.mxu0 %v1654
    %3378 = vmatpush1.msra.mxu0 %v1653
    %3379 = vmatprep.subr.mxu0 %v1656
    %3380 = vmatpush1.msra.mxu0 %v1655
    %3381 = vmatprep.subr.mxu0 %v1658
    %3382 = vmatpush1.msra.mxu0 %v1657
    %3383 = vmatprep.subr.mxu0 %v1660
    %3384 = vmatpush1.msra.mxu0 %v1659
    %3385 = vmatprep.subr.mxu0 %v1662
    %3386 = vmatpush1.msra.mxu0 %v1661
    %3387 = vmatprep.subr.mxu0 %v1664
    %3388 = vmatpush1.msra.mxu0 %v1663
    %3389 = vmatprep.subr.mxu0 %v1666
    %3390 = vmatpush1.msra.mxu0 %v1665
    %3391 = vmatprep.subr.mxu0 %v1668
    %3392 = vmatpush1.msra.mxu0 %v1667
    %3393 = vmatprep.subr.mxu0 %v1670
    %3394 = vmatpush1.msra.mxu0 %v1669
    %3395 = vmatprep.subr.mxu0 %v1672
    %3396 = vmatpush1.msra.mxu0 %v1671
    %3397 = vmatprep.subr.mxu0 %v1674
    %3398 = vmatpush1.msra.mxu0 %v1673
    %3399 = vmatprep.subr.mxu0 %v1676
    %3400 = vmatpush1.msra.mxu0 %v1675
    %3401 = vmatprep.subr.mxu0 %v1678
    %3402 = vmatpush1.msra.mxu0 %v1677
    %3403 = vmatprep.subr.mxu0 %v1680
    %3404 = vmatpush1.msra.mxu0 %v1679
    %3405 = vmatprep.subr.mxu0 %v1682
    %3406 = vmatpush1.msra.mxu0 %v1681
    %3407 = vmatprep.subr.mxu0 %v1684
    %3408 = vmatpush1.msra.mxu0 %v1683
    %3409 = vmatprep.subr.mxu0 %v1686
    %3410 = vmatpush1.msra.mxu0 %v1685
    %3411 = vmatprep.subr.mxu0 %v1688
    %3412 = vmatpush1.msra.mxu0 %v1687
    %3413 = vmatprep.subr.mxu0 %v1690
    %3414 = vmatpush1.msra.mxu0 %v1689
    %3415 = vmatprep.subr.mxu0 %v1692
    %3416 = vmatpush1.msra.mxu0 %v1691
    %3417 = vmatprep.subr.mxu0 %v1694
    %3418 = vmatpush1.msra.mxu0 %v1693
    %3419 = vmatprep.subr.mxu0 %v1696
    %3420 = vmatpush1.msra.mxu0 %v1695
    %3421 = vmatprep.subr.mxu0 %v1698
    %3422 = vmatpush1.msra.mxu0 %v1697
    %3423 = vmatprep.mubr.f32.mxu0 %v3358
    %3424 = vmatmul.mubr.f32.gmra.mrb[0].mxu0 %v3357
    %v3425 = vpop.f32.mrb[0].mxu0
    %v3426 = vadd.f32 0.0, %v3425
    %v3427 = vpop.f32.mrb[0].mxu0
    %v3428 = vadd.f32 0.0, %v3427
    %3429 = vdwg.mxu0
    %3430 = vmatprep.subr.mxu0 %v1572
    %3431 = vmatpush1.msra.mxu0 %v1571
    %3432 = vmatprep.subr.mxu0 %v1574
    %3433 = vmatpush1.msra.mxu0 %v1573
    %3434 = vmatprep.subr.mxu0 %v1576
    %3435 = vmatpush1.msra.mxu0 %v1575
    %3436 = vmatprep.subr.mxu0 %v1578
    %3437 = vmatpush1.msra.mxu0 %v1577
    %3438 = vmatprep.subr.mxu0 %v1580
    %3439 = vmatpush1.msra.mxu0 %v1579
    %3440 = vmatprep.subr.mxu0 %v1582
    %3441 = vmatpush1.msra.mxu0 %v1581
    %3442 = vmatprep.subr.mxu0 %v1584
    %3443 = vmatpush1.msra.mxu0 %v1583
    %3444 = vmatprep.subr.mxu0 %v1586
    %3445 = vmatpush1.msra.mxu0 %v1585
    %3446 = vmatprep.subr.mxu0 %v1588
    %3447 = vmatpush1.msra.mxu0 %v1587
    %3448 = vmatprep.subr.mxu0 %v1590
    %3449 = vmatpush1.msra.mxu0 %v1589
    %3450 = vmatprep.subr.mxu0 %v1592
    %3451 = vmatpush1.msra.mxu0 %v1591
    %3452 = vmatprep.subr.mxu0 %v1594
    %3453 = vmatpush1.msra.mxu0 %v1593
    %3454 = vmatprep.subr.mxu0 %v1596
    %3455 = vmatpush1.msra.mxu0 %v1595
    %3456 = vmatprep.subr.mxu0 %v1598
    %3457 = vmatpush1.msra.mxu0 %v1597
    %3458 = vmatprep.subr.mxu0 %v1600
    %3459 = vmatpush1.msra.mxu0 %v1599
    %3460 = vmatprep.subr.mxu0 %v1602
    %3461 = vmatpush1.msra.mxu0 %v1601
    %3462 = vmatprep.subr.mxu0 %v1604
    %3463 = vmatpush1.msra.mxu0 %v1603
    %3464 = vmatprep.subr.mxu0 %v1606
    %3465 = vmatpush1.msra.mxu0 %v1605
    %3466 = vmatprep.subr.mxu0 %v1608
    %3467 = vmatpush1.msra.mxu0 %v1607
    %3468 = vmatprep.subr.mxu0 %v1610
    %3469 = vmatpush1.msra.mxu0 %v1609
    %3470 = vmatprep.subr.mxu0 %v1612
    %3471 = vmatpush1.msra.mxu0 %v1611
    %3472 = vmatprep.subr.mxu0 %v1614
    %3473 = vmatpush1.msra.mxu0 %v1613
    %3474 = vmatprep.subr.mxu0 %v1616
    %3475 = vmatpush1.msra.mxu0 %v1615
    %3476 = vmatprep.subr.mxu0 %v1618
    %3477 = vmatpush1.msra.mxu0 %v1617
    %3478 = vmatprep.subr.mxu0 %v1620
    %3479 = vmatpush1.msra.mxu0 %v1619
    %3480 = vmatprep.subr.mxu0 %v1622
    %3481 = vmatpush1.msra.mxu0 %v1621
    %3482 = vmatprep.subr.mxu0 %v1624
    %3483 = vmatpush1.msra.mxu0 %v1623
    %3484 = vmatprep.subr.mxu0 %v1626
    %3485 = vmatpush1.msra.mxu0 %v1625
    %3486 = vmatprep.subr.mxu0 %v1628
    %3487 = vmatpush1.msra.mxu0 %v1627
    %3488 = vmatprep.subr.mxu0 %v1630
    %3489 = vmatpush1.msra.mxu0 %v1629
    %3490 = vmatprep.subr.mxu0 %v1632
    %3491 = vmatpush1.msra.mxu0 %v1631
    %3492 = vmatprep.subr.mxu0 %v1634
    %3493 = vmatpush1.msra.mxu0 %v1633
    %3494 = vmatprep.mubr.f32.mxu0 %v3148
    %3495 = vmatmul.mubr.f32.gmra.mrb[0].mxu0 %v3147
    %v3496 = vpop.f32.mrb[0].mxu0
    %v3497 = vadd.f32 %v3426, %v3496
    %v3498 = vpop.f32.mrb[0].mxu0
    %v3499 = vadd.f32 %v3428, %v3498
    %3500 = vdwg.mxu0
    %v3501 = vadd.f32 %v3497, %v1981
    %v3502 = vadd.f32 %v3499, %v1982
    %s3503 = scalar_lea.vmem %s1, 88
    %v3504 = vld [vmem:[%s3503] sm:$0xff]
    %s3505 = scalar_lea.vmem %s2, 88
    %v3506 = vld [vmem:[%s3505] sm:$0xff]
    %3508 = vset.pattern.permute.xlu0 0
    %3509 = vperm.xlu0 %3508, %v3504
    %v3510 = vpop.permute.xlu0 %3509
    %v3512 = vlaneseq
    %v3513 = vshrl.u32 %v3512, 7
    %v3514 = vsub.s32 0, %v3513
    %v3515 = vrot.slane %v3501, %v3514
    %v3516 = vlaneseq
    %v3517 = vshrl.u32 %v3516, 7
    %v3518 = vsub.s32 0, %v3517
    %v3519 = vrot.slane %v3502, %v3518
    %v3520 = vmul.f32 %v3510, %v3515
    %v3521 = vmul.f32 %v3510, %v3519
    %3523 = vset.pattern.permute.xlu0 0
    %3524 = vperm.xlu0 %3523, %v3506
    %v3525 = vpop.permute.xlu0 %3524
    %v3527 = vadd.f32 %v3520, %v3525
    %v3528 = vadd.f32 %v3521, %v3525
    %3529 = vset.pattern.permute.xlu0 1
    %3530 = vperm.xlu0 %3529, %v3504
    %v3531 = vpop.permute.xlu0 %3530
    %v3533 = vlaneseq
    %v3534 = vshrl.u32 %v3533, 7
    %v3535 = vsub.s32 1, %v3534
    %v3536 = vrot.slane %v3501, %v3535
    %v3537 = vlaneseq
    %v3538 = vshrl.u32 %v3537, 7
    %v3539 = vsub.s32 1, %v3538
    %v3540 = vrot.slane %v3502, %v3539
    %v3541 = vmul.f32 %v3531, %v3536
    %v3542 = vmul.f32 %v3531, %v3540
    %v3543 = vadd.f32 %v3527, %v3541
    %v3544 = vadd.f32 %v3528, %v3542
    %3545 = vset.pattern.permute.xlu0 2
    %3546 = vperm.xlu0 %3545, %v3504
    %v3547 = vpop.permute.xlu0 %3546
    %v3549 = vlaneseq
    %v3550 = vshrl.u32 %v3549, 7
    %v3551 = vsub.s32 2, %v3550
    %v3552 = vrot.slane %v3501, %v3551
    %v3553 = vlaneseq
    %v3554 = vshrl.u32 %v3553, 7
    %v3555 = vsub.s32 2, %v3554
    %v3556 = vrot.slane %v3502, %v3555
    %v3557 = vmul.f32 %v3547, %v3552
    %v3558 = vmul.f32 %v3547, %v3556
    %v3559 = vadd.f32 %v3543, %v3557
    %v3560 = vadd.f32 %v3544, %v3558
    %3561 = vset.pattern.permute.xlu0 3
    %3562 = vperm.xlu0 %3561, %v3504
    %v3563 = vpop.permute.xlu0 %3562
    %v3565 = vlaneseq
    %v3566 = vshrl.u32 %v3565, 7
    %v3567 = vsub.s32 3, %v3566
    %v3568 = vrot.slane %v3501, %v3567
    %v3569 = vlaneseq
    %v3570 = vshrl.u32 %v3569, 7
    %v3571 = vsub.s32 3, %v3570
    %v3572 = vrot.slane %v3502, %v3571
    %v3573 = vmul.f32 %v3563, %v3568
    %v3574 = vmul.f32 %v3563, %v3572
    %v3575 = vadd.f32 %v3559, %v3573
    %v3576 = vadd.f32 %v3560, %v3574
    %3577 = vset.pattern.permute.xlu0 4
    %3578 = vperm.xlu0 %3577, %v3504
    %v3579 = vpop.permute.xlu0 %3578
    %v3581 = vlaneseq
    %v3582 = vshrl.u32 %v3581, 7
    %v3583 = vsub.s32 4, %v3582
    %v3584 = vrot.slane %v3501, %v3583
    %v3585 = vlaneseq
    %v3586 = vshrl.u32 %v3585, 7
    %v3587 = vsub.s32 4, %v3586
    %v3588 = vrot.slane %v3502, %v3587
    %v3589 = vmul.f32 %v3579, %v3584
    %v3590 = vmul.f32 %v3579, %v3588
    %v3591 = vadd.f32 %v3575, %v3589
    %v3592 = vadd.f32 %v3576, %v3590
    %3593 = vset.pattern.permute.xlu0 5
    %3594 = vperm.xlu0 %3593, %v3504
    %v3595 = vpop.permute.xlu0 %3594
    %v3597 = vlaneseq
    %v3598 = vshrl.u32 %v3597, 7
    %v3599 = vsub.s32 5, %v3598
    %v3600 = vrot.slane %v3501, %v3599
    %v3601 = vlaneseq
    %v3602 = vshrl.u32 %v3601, 7
    %v3603 = vsub.s32 5, %v3602
    %v3604 = vrot.slane %v3502, %v3603
    %v3605 = vmul.f32 %v3595, %v3600
    %v3606 = vmul.f32 %v3595, %v3604
    %v3607 = vadd.f32 %v3591, %v3605
    %v3608 = vadd.f32 %v3592, %v3606
    %3609 = vset.pattern.permute.xlu0 6
    %3610 = vperm.xlu0 %3609, %v3504
    %v3611 = vpop.permute.xlu0 %3610
    %v3613 = vlaneseq
    %v3614 = vshrl.u32 %v3613, 7
    %v3615 = vsub.s32 6, %v3614
    %v3616 = vrot.slane %v3501, %v3615
    %v3617 = vlaneseq
    %v3618 = vshrl.u32 %v3617, 7
    %v3619 = vsub.s32 6, %v3618
    %v3620 = vrot.slane %v3502, %v3619
    %v3621 = vmul.f32 %v3611, %v3616
    %v3622 = vmul.f32 %v3611, %v3620
    %v3623 = vadd.f32 %v3607, %v3621
    %v3624 = vadd.f32 %v3608, %v3622
    %3625 = vset.pattern.permute.xlu0 7
    %3626 = vperm.xlu0 %3625, %v3504
    %v3627 = vpop.permute.xlu0 %3626
    %v3629 = vlaneseq
    %v3630 = vshrl.u32 %v3629, 7
    %v3631 = vsub.s32 7, %v3630
    %v3632 = vrot.slane %v3501, %v3631
    %v3633 = vlaneseq
    %v3634 = vshrl.u32 %v3633, 7
    %v3635 = vsub.s32 7, %v3634
    %v3636 = vrot.slane %v3502, %v3635
    %v3637 = vmul.f32 %v3627, %v3632
    %v3638 = vmul.f32 %v3627, %v3636
    %v3639 = vadd.f32 %v3623, %v3637
    %v3640 = vadd.f32 %v3624, %v3638
    %v3641 = vadd.f32 %v3639, %v1981
    %v3642 = vadd.f32 %v3640, %v1982
    %s3643 = scalar_lea.vmem %s1, 96
    %v3644 = vld [vmem:[%s3643] sm:$0xff]
    %s3645 = scalar_lea.vmem %s2, 96
    %v3646 = vld [vmem:[%s3645] sm:$0xff]
    %3648 = vset.pattern.permute.xlu0 0
    %3649 = vperm.xlu0 %3648, %v3644
    %v3650 = vpop.permute.xlu0 %3649
    %v3652 = vlaneseq
    %v3653 = vshrl.u32 %v3652, 7
    %v3654 = vsub.s32 0, %v3653
    %v3655 = vrot.slane %v3641, %v3654
    %v3656 = vlaneseq
    %v3657 = vshrl.u32 %v3656, 7
    %v3658 = vsub.s32 0, %v3657
    %v3659 = vrot.slane %v3642, %v3658
    %v3660 = vmul.f32 %v3650, %v3655
    %v3661 = vmul.f32 %v3650, %v3659
    %3663 = vset.pattern.permute.xlu0 0
    %3664 = vperm.xlu0 %3663, %v3646
    %v3665 = vpop.permute.xlu0 %3664
    %v3667 = vadd.f32 %v3660, %v3665
    %v3668 = vadd.f32 %v3661, %v3665
    %3669 = vset.pattern.permute.xlu0 1
    %3670 = vperm.xlu0 %3669, %v3644
    %v3671 = vpop.permute.xlu0 %3670
    %v3673 = vlaneseq
    %v3674 = vshrl.u32 %v3673, 7
    %v3675 = vsub.s32 1, %v3674
    %v3676 = vrot.slane %v3641, %v3675
    %v3677 = vlaneseq
    %v3678 = vshrl.u32 %v3677, 7
    %v3679 = vsub.s32 1, %v3678
    %v3680 = vrot.slane %v3642, %v3679
    %v3681 = vmul.f32 %v3671, %v3676
    %v3682 = vmul.f32 %v3671, %v3680
    %v3683 = vadd.f32 %v3667, %v3681
    %v3684 = vadd.f32 %v3668, %v3682
    %3685 = vset.pattern.permute.xlu0 2
    %3686 = vperm.xlu0 %3685, %v3644
    %v3687 = vpop.permute.xlu0 %3686
    %v3689 = vlaneseq
    %v3690 = vshrl.u32 %v3689, 7
    %v3691 = vsub.s32 2, %v3690
    %v3692 = vrot.slane %v3641, %v3691
    %v3693 = vlaneseq
    %v3694 = vshrl.u32 %v3693, 7
    %v3695 = vsub.s32 2, %v3694
    %v3696 = vrot.slane %v3642, %v3695
    %v3697 = vmul.f32 %v3687, %v3692
    %v3698 = vmul.f32 %v3687, %v3696
    %v3699 = vadd.f32 %v3683, %v3697
    %v3700 = vadd.f32 %v3684, %v3698
    %3701 = vset.pattern.permute.xlu0 3
    %3702 = vperm.xlu0 %3701, %v3644
    %v3703 = vpop.permute.xlu0 %3702
    %v3705 = vlaneseq
    %v3706 = vshrl.u32 %v3705, 7
    %v3707 = vsub.s32 3, %v3706
    %v3708 = vrot.slane %v3641, %v3707
    %v3709 = vlaneseq
    %v3710 = vshrl.u32 %v3709, 7
    %v3711 = vsub.s32 3, %v3710
    %v3712 = vrot.slane %v3642, %v3711
    %v3713 = vmul.f32 %v3703, %v3708
    %v3714 = vmul.f32 %v3703, %v3712
    %v3715 = vadd.f32 %v3699, %v3713
    %v3716 = vadd.f32 %v3700, %v3714
    %3717 = vset.pattern.permute.xlu0 4
    %3718 = vperm.xlu0 %3717, %v3644
    %v3719 = vpop.permute.xlu0 %3718
    %v3721 = vlaneseq
    %v3722 = vshrl.u32 %v3721, 7
    %v3723 = vsub.s32 4, %v3722
    %v3724 = vrot.slane %v3641, %v3723
    %v3725 = vlaneseq
    %v3726 = vshrl.u32 %v3725, 7
    %v3727 = vsub.s32 4, %v3726
    %v3728 = vrot.slane %v3642, %v3727
    %v3729 = vmul.f32 %v3719, %v3724
    %v3730 = vmul.f32 %v3719, %v3728
    %v3731 = vadd.f32 %v3715, %v3729
    %v3732 = vadd.f32 %v3716, %v3730
    %3733 = vset.pattern.permute.xlu0 5
    %3734 = vperm.xlu0 %3733, %v3644
    %v3735 = vpop.permute.xlu0 %3734
    %v3737 = vlaneseq
    %v3738 = vshrl.u32 %v3737, 7
    %v3739 = vsub.s32 5, %v3738
    %v3740 = vrot.slane %v3641, %v3739
    %v3741 = vlaneseq
    %v3742 = vshrl.u32 %v3741, 7
    %v3743 = vsub.s32 5, %v3742
    %v3744 = vrot.slane %v3642, %v3743
    %v3745 = vmul.f32 %v3735, %v3740
    %v3746 = vmul.f32 %v3735, %v3744
    %v3747 = vadd.f32 %v3731, %v3745
    %v3748 = vadd.f32 %v3732, %v3746
    %3749 = vset.pattern.permute.xlu0 6
    %3750 = vperm.xlu0 %3749, %v3644
    %v3751 = vpop.permute.xlu0 %3750
    %v3753 = vlaneseq
    %v3754 = vshrl.u32 %v3753, 7
    %v3755 = vsub.s32 6, %v3754
    %v3756 = vrot.slane %v3641, %v3755
    %v3757 = vlaneseq
    %v3758 = vshrl.u32 %v3757, 7
    %v3759 = vsub.s32 6, %v3758
    %v3760 = vrot.slane %v3642, %v3759
    %v3761 = vmul.f32 %v3751, %v3756
    %v3762 = vmul.f32 %v3751, %v3760
    %v3763 = vadd.f32 %v3747, %v3761
    %v3764 = vadd.f32 %v3748, %v3762
    %3765 = vset.pattern.permute.xlu0 7
    %3766 = vperm.xlu0 %3765, %v3644
    %v3767 = vpop.permute.xlu0 %3766
    %v3769 = vlaneseq
    %v3770 = vshrl.u32 %v3769, 7
    %v3771 = vsub.s32 7, %v3770
    %v3772 = vrot.slane %v3641, %v3771
    %v3773 = vlaneseq
    %v3774 = vshrl.u32 %v3773, 7
    %v3775 = vsub.s32 7, %v3774
    %v3776 = vrot.slane %v3642, %v3775
    %v3777 = vmul.f32 %v3767, %v3772
    %v3778 = vmul.f32 %v3767, %v3776
    %v3779 = vadd.f32 %v3763, %v3777
    %v3780 = vadd.f32 %v3764, %v3778
    %3781 = vmatprep.subr.mxu0 %v206
    %3782 = vmatpush1.msra.mxu0 %v205
    %3783 = vmatprep.subr.mxu0 %v208
    %3784 = vmatpush1.msra.mxu0 %v207
    %3785 = vmatprep.subr.mxu0 %v210
    %3786 = vmatpush1.msra.mxu0 %v209
    %3787 = vmatprep.subr.mxu0 %v212
    %3788 = vmatpush1.msra.mxu0 %v211
    %3789 = vmatprep.subr.mxu0 %v214
    %3790 = vmatpush1.msra.mxu0 %v213
    %3791 = vmatprep.subr.mxu0 %v216
    %3792 = vmatpush1.msra.mxu0 %v215
    %3793 = vmatprep.subr.mxu0 %v218
    %3794 = vmatpush1.msra.mxu0 %v217
    %3795 = vmatprep.subr.mxu0 %v220
    %3796 = vmatpush1.msra.mxu0 %v219
    %3797 = vmatprep.subr.mxu0 %v222
    %3798 = vmatpush1.msra.mxu0 %v221
    %3799 = vmatprep.subr.mxu0 %v224
    %3800 = vmatpush1.msra.mxu0 %v223
    %3801 = vmatprep.subr.mxu0 %v226
    %3802 = vmatpush1.msra.mxu0 %v225
    %3803 = vmatprep.subr.mxu0 %v228
    %3804 = vmatpush1.msra.mxu0 %v227
    %3805 = vmatprep.subr.mxu0 %v230
    %3806 = vmatpush1.msra.mxu0 %v229
    %3807 = vmatprep.subr.mxu0 %v232
    %3808 = vmatpush1.msra.mxu0 %v231
    %3809 = vmatprep.subr.mxu0 %v234
    %3810 = vmatpush1.msra.mxu0 %v233
    %3811 = vmatprep.subr.mxu0 %v236
    %3812 = vmatpush1.msra.mxu0 %v235
    %3813 = vmatprep.subr.mxu0 %v238
    %3814 = vmatpush1.msra.mxu0 %v237
    %3815 = vmatprep.subr.mxu0 %v240
    %3816 = vmatpush1.msra.mxu0 %v239
    %3817 = vmatprep.subr.mxu0 %v242
    %3818 = vmatpush1.msra.mxu0 %v241
    %3819 = vmatprep.subr.mxu0 %v244
    %3820 = vmatpush1.msra.mxu0 %v243
    %3821 = vmatprep.subr.mxu0 %v246
    %3822 = vmatpush1.msra.mxu0 %v245
    %3823 = vmatprep.subr.mxu0 %v248
    %3824 = vmatpush1.msra.mxu0 %v247
    %3825 = vmatprep.subr.mxu0 %v250
    %3826 = vmatpush1.msra.mxu0 %v249
    %3827 = vmatprep.subr.mxu0 %v252
    %3828 = vmatpush1.msra.mxu0 %v251
    %3829 = vmatprep.subr.mxu0 %v254
    %3830 = vmatpush1.msra.mxu0 %v253
    %3831 = vmatprep.subr.mxu0 %v256
    %3832 = vmatpush1.msra.mxu0 %v255
    %3833 = vmatprep.subr.mxu0 %v258
    %3834 = vmatpush1.msra.mxu0 %v257
    %3835 = vmatprep.subr.mxu0 %v260
    %3836 = vmatpush1.msra.mxu0 %v259
    %3837 = vmatprep.subr.mxu0 %v262
    %3838 = vmatpush1.msra.mxu0 %v261
    %3839 = vmatprep.subr.mxu0 %v264
    %3840 = vmatpush1.msra.mxu0 %v263
    %3841 = vmatprep.subr.mxu0 %v266
    %3842 = vmatpush1.msra.mxu0 %v265
    %3843 = vmatprep.subr.mxu0 %v268
    %3844 = vmatpush1.msra.mxu0 %v267
    %3845 = vmatprep.mubr.f32.mxu0 %v3780
    %3846 = vmatmul.mubr.f32.gmra.mrb[0].mxu0 %v3779
    %v3847 = vpop.f32.mrb[0].mxu0
    %v3848 = vadd.f32 0.0, %v3847
    %v3849 = vpop.f32.mrb[0].mxu0
    %v3850 = vadd.f32 0.0, %v3849
    %3851 = vdwg.mxu0
    %3852 = vmatprep.subr.mxu0 %v341
    %3853 = vmatpush1.msra.mxu0 %v340
    %3854 = vmatprep.subr.mxu0 %v343
    %3855 = vmatpush1.msra.mxu0 %v342
    %3856 = vmatprep.subr.mxu0 %v345
    %3857 = vmatpush1.msra.mxu0 %v344
    %3858 = vmatprep.subr.mxu0 %v347
    %3859 = vmatpush1.msra.mxu0 %v346
    %3860 = vmatprep.subr.mxu0 %v349
    %3861 = vmatpush1.msra.mxu0 %v348
    %3862 = vmatprep.subr.mxu0 %v351
    %3863 = vmatpush1.msra.mxu0 %v350
    %3864 = vmatprep.subr.mxu0 %v353
    %3865 = vmatpush1.msra.mxu0 %v352
    %3866 = vmatprep.subr.mxu0 %v355
    %3867 = vmatpush1.msra.mxu0 %v354
    %3868 = vmatprep.subr.mxu0 %v357
    %3869 = vmatpush1.msra.mxu0 %v356
    %3870 = vmatprep.subr.mxu0 %v359
    %3871 = vmatpush1.msra.mxu0 %v358
    %3872 = vmatprep.subr.mxu0 %v361
    %3873 = vmatpush1.msra.mxu0 %v360
    %3874 = vmatprep.subr.mxu0 %v363
    %3875 = vmatpush1.msra.mxu0 %v362
    %3876 = vmatprep.subr.mxu0 %v365
    %3877 = vmatpush1.msra.mxu0 %v364
    %3878 = vmatprep.subr.mxu0 %v367
    %3879 = vmatpush1.msra.mxu0 %v366
    %3880 = vmatprep.subr.mxu0 %v369
    %3881 = vmatpush1.msra.mxu0 %v368
    %3882 = vmatprep.subr.mxu0 %v371
    %3883 = vmatpush1.msra.mxu0 %v370
    %3884 = vmatprep.subr.mxu0 %v373
    %3885 = vmatpush1.msra.mxu0 %v372
    %3886 = vmatprep.subr.mxu0 %v375
    %3887 = vmatpush1.msra.mxu0 %v374
    %3888 = vmatprep.subr.mxu0 %v377
    %3889 = vmatpush1.msra.mxu0 %v376
    %3890 = vmatprep.subr.mxu0 %v379
    %3891 = vmatpush1.msra.mxu0 %v378
    %3892 = vmatprep.subr.mxu0 %v381
    %3893 = vmatpush1.msra.mxu0 %v380
    %3894 = vmatprep.subr.mxu0 %v383
    %3895 = vmatpush1.msra.mxu0 %v382
    %3896 = vmatprep.subr.mxu0 %v385
    %3897 = vmatpush1.msra.mxu0 %v384
    %3898 = vmatprep.subr.mxu0 %v387
    %3899 = vmatpush1.msra.mxu0 %v386
    %3900 = vmatprep.subr.mxu0 %v389
    %3901 = vmatpush1.msra.mxu0 %v388
    %3902 = vmatprep.subr.mxu0 %v391
    %3903 = vmatpush1.msra.mxu0 %v390
    %3904 = vmatprep.subr.mxu0 %v393
    %3905 = vmatpush1.msra.mxu0 %v392
    %3906 = vmatprep.subr.mxu0 %v395
    %3907 = vmatpush1.msra.mxu0 %v394
    %3908 = vmatprep.subr.mxu0 %v397
    %3909 = vmatpush1.msra.mxu0 %v396
    %3910 = vmatprep.subr.mxu0 %v399
    %3911 = vmatpush1.msra.mxu0 %v398
    %3912 = vmatprep.subr.mxu0 %v401
    %3913 = vmatpush1.msra.mxu0 %v400
    %3914 = vmatprep.subr.mxu0 %v403
    %3915 = vmatpush1.msra.mxu0 %v402
    %3916 = vmatprep.mubr.f32.mxu0 %v3780
    %3917 = vmatmul.mubr.f32.gmra.mrb[0].mxu0 %v3779
    %v3918 = vpop.f32.mrb[0].mxu0
    %v3919 = vadd.f32 0.0, %v3918
    %v3920 = vpop.f32.mrb[0].mxu0
    %v3921 = vadd.f32 0.0, %v3920
    %3922 = vdwg.mxu0
    %v3923 = vmul.f32 %v3848, %v3848
    %v3924 = vmul.f32 %v3850, %v3850
    %v3925 = vmul.f32 %v3919, %v3919
    %v3926 = vmul.f32 %v3921, %v3921
    %v3927 = vadd.f32 %v3923, %v3925
    %v3928 = vadd.f32 %v3924, %v3926
    %v3929 = vrsqrt.pop %v3927
    %v3930 = vmul.f32 %v3927, %v3929
    %vm3931 = vcmp.eq.f32.partialorder %v3927, inf
    %v3932 = vsel %vm3931, %v3927, %v3930
    %vm3933 = vcmp.eq.f32.partialorder %v3927, 0.0
    %v3934 = vand.u32 %v3927, 2147483648
    %v3935 = vsel %vm3933, %v3934, %v3932
    %v3936 = vrsqrt.pop %v3928
    %v3937 = vmul.f32 %v3928, %v3936
    %vm3938 = vcmp.eq.f32.partialorder %v3928, inf
    %v3939 = vsel %vm3938, %v3928, %v3937
    %vm3940 = vcmp.eq.f32.partialorder %v3928, 0.0
    %v3941 = vand.u32 %v3928, 2147483648
    %v3942 = vsel %vm3940, %v3941, %v3939
    %v3943 = vand.u32 2147483647, %v3848
    %v3944 = vand.u32 2147483647, %v3919
    %v3945 = vmin.f32 %v3943, %v3944
    %v3946 = vmax.f32 %v3943, %v3944
    %v3947 = vrcp.pop %v3946
    %v3948 = vmul.f32 %v3945, %v3947
    %v3949 = vmul.f32 %v3948, %v3948
    %v3950 = vmul.f32 0.002785687, %v3949
    %v3951 = vadd.f32 %v3950, -0.015866
    %v3952 = vmul.f32 %v3951, %v3949
    %v3953 = vadd.f32 %v3952, 0.04247222
    %v3954 = vmul.f32 %v3953, %v3949
    %v3955 = vadd.f32 %v3954, -0.074975304
    %v3956 = vmul.f32 %v3955, %v3949
    %v3957 = vadd.f32 %v3956, 0.1064488
    %v3958 = vmul.f32 %v3957, %v3949
    %v3959 = vadd.f32 %v3958, -0.14207031
    %v3960 = vmul.f32 %v3959, %v3949
    %v3961 = vadd.f32 %v3960, 0.19993454
    %v3962 = vmul.f32 %v3961, %v3949
    %v3963 = vadd.f32 %v3962, -0.33333147
    %v3964 = vmul.f32 %v3963, %v3949
    %v3965 = vmul.f32 %v3964, %v3948
    %v3966 = vadd.f32 %v3965, %v3948
    %vm3967 = vcmp.gt.f32.partialorder %v3944, %v3943
    %v3968 = vsub.f32 1.5707964, %v3966
    %v3969 = vsel %vm3967, %v3968, %v3966
    %vm3970 = vcmp.lt.f32.partialorder %v3848, 0.0
    %v3971 = vsub.f32 3.1415927, %v3969
    %v3972 = vsel %vm3970, %v3971, %v3969
    %vm3973 = vcmp.lt.s32.totalorder %v3848, 0
    %v3974 = vsel %vm3973, 3.1415927, 0.0
    %vm3975 = vcmp.eq.f32.partialorder %v3919, 0.0
    %v3976 = vsel %vm3975, %v3974, %v3972
    %vm3977 = vcmp.ne.f32.partialorder %v3848, %v3848
    %vm3978 = vcmp.ne.f32.partialorder %v3919, %v3919
    %vm3979 = vmor %vm3977, %vm3978
    %v3980 = vsel %vm3979, nan, %v3976
    %vm3981 = vcmp.lt.f32.partialorder %v3848, 0.0
    %v3982 = vsel %vm3981, 2.3561945, 0.7853982
    %vm3983 = vcmp.eq.s32.totalorder %v3943, inf
    %vm3984 = vcmp.eq.s32.totalorder %v3944, inf
    %vm3985 = vmand %vm3983, %vm3984
    %v3986 = vsel %vm3985, %v3982, %v3980
    %v3987 = vand.u32 2147483647, %v3986
    %v3988 = vand.u32 %v3919, 2147483648
    %v3989 = vor.u32 %v3987, %v3988
    %v3990 = vand.u32 2147483647, %v3850
    %v3991 = vand.u32 2147483647, %v3921
    %v3992 = vmin.f32 %v3990, %v3991
    %v3993 = vmax.f32 %v3990, %v3991
    %v3994 = vrcp.pop %v3993
    %v3995 = vmul.f32 %v3992, %v3994
    %v3996 = vmul.f32 %v3995, %v3995
    %v3997 = vmul.f32 0.002785687, %v3996
    %v3998 = vadd.f32 %v3997, -0.015866
    %v3999 = vmul.f32 %v3998, %v3996
    %v4000 = vadd.f32 %v3999, 0.04247222
    %v4001 = vmul.f32 %v4000, %v3996
    %v4002 = vadd.f32 %v4001, -0.074975304
    %v4003 = vmul.f32 %v4002, %v3996
    %v4004 = vadd.f32 %v4003, 0.1064488
    %v4005 = vmul.f32 %v4004, %v3996
    %v4006 = vadd.f32 %v4005, -0.14207031
    %v4007 = vmul.f32 %v4006, %v3996
    %v4008 = vadd.f32 %v4007, 0.19993454
    %v4009 = vmul.f32 %v4008, %v3996
    %v4010 = vadd.f32 %v4009, -0.33333147
    %v4011 = vmul.f32 %v4010, %v3996
    %v4012 = vmul.f32 %v4011, %v3995
    %v4013 = vadd.f32 %v4012, %v3995
    %vm4014 = vcmp.gt.f32.partialorder %v3991, %v3990
    %v4015 = vsub.f32 1.5707964, %v4013
    %v4016 = vsel %vm4014, %v4015, %v4013
    %vm4017 = vcmp.lt.f32.partialorder %v3850, 0.0
    %v4018 = vsub.f32 3.1415927, %v4016
    %v4019 = vsel %vm4017, %v4018, %v4016
    %vm4020 = vcmp.lt.s32.totalorder %v3850, 0
    %v4021 = vsel %vm4020, 3.1415927, 0.0
    %vm4022 = vcmp.eq.f32.partialorder %v3921, 0.0
    %v4023 = vsel %vm4022, %v4021, %v4019
    %vm4024 = vcmp.ne.f32.partialorder %v3850, %v3850
    %vm4025 = vcmp.ne.f32.partialorder %v3921, %v3921
    %vm4026 = vmor %vm4024, %vm4025
    %v4027 = vsel %vm4026, nan, %v4023
    %vm4028 = vcmp.lt.f32.partialorder %v3850, 0.0
    %v4029 = vsel %vm4028, 2.3561945, 0.7853982
    %vm4030 = vcmp.eq.s32.totalorder %v3990, inf
    %vm4031 = vcmp.eq.s32.totalorder %v3991, inf
    %vm4032 = vmand %vm4030, %vm4031
    %v4033 = vsel %vm4032, %v4029, %v4027
    %v4034 = vand.u32 2147483647, %v4033
    %v4035 = vand.u32 %v3921, 2147483648
    %v4036 = vor.u32 %v4034, %v4035
    %s4037 = scalar_lea.vmem %s1, 104
    %v4038 = vld [vmem:[%s4037] sm:$0xff]
    %s4039 = scalar_lea.vmem %s2, 104
    %v4040 = vld [vmem:[%s4039] sm:$0xff]
    %4042 = vset.pattern.permute.xlu0 0
    %4043 = vperm.xlu0 %4042, %v4038
    %v4044 = vpop.permute.xlu0 %4043
    %v4046 = vlaneseq
    %v4047 = vshrl.u32 %v4046, 7
    %v4048 = vsub.s32 0, %v4047
    %v4049 = vrot.slane %v3935, %v4048
    %v4050 = vlaneseq
    %v4051 = vshrl.u32 %v4050, 7
    %v4052 = vsub.s32 0, %v4051
    %v4053 = vrot.slane %v3942, %v4052
    %v4054 = vmul.f32 %v4044, %v4049
    %v4055 = vmul.f32 %v4044, %v4053
    %4057 = vset.pattern.permute.xlu0 0
    %4058 = vperm.xlu0 %4057, %v4040
    %v4059 = vpop.permute.xlu0 %4058
    %v4061 = vadd.f32 %v4054, %v4059
    %v4062 = vadd.f32 %v4055, %v4059
    %4063 = vset.pattern.permute.xlu0 1
    %4064 = vperm.xlu0 %4063, %v4038
    %v4065 = vpop.permute.xlu0 %4064
    %v4067 = vlaneseq
    %v4068 = vshrl.u32 %v4067, 7
    %v4069 = vsub.s32 1, %v4068
    %v4070 = vrot.slane %v3935, %v4069
    %v4071 = vlaneseq
    %v4072 = vshrl.u32 %v4071, 7
    %v4073 = vsub.s32 1, %v4072
    %v4074 = vrot.slane %v3942, %v4073
    %v4075 = vmul.f32 %v4065, %v4070
    %v4076 = vmul.f32 %v4065, %v4074
    %v4077 = vadd.f32 %v4061, %v4075
    %v4078 = vadd.f32 %v4062, %v4076
    %4079 = vset.pattern.permute.xlu0 2
    %4080 = vperm.xlu0 %4079, %v4038
    %v4081 = vpop.permute.xlu0 %4080
    %v4083 = vlaneseq
    %v4084 = vshrl.u32 %v4083, 7
    %v4085 = vsub.s32 2, %v4084
    %v4086 = vrot.slane %v3935, %v4085
    %v4087 = vlaneseq
    %v4088 = vshrl.u32 %v4087, 7
    %v4089 = vsub.s32 2, %v4088
    %v4090 = vrot.slane %v3942, %v4089
    %v4091 = vmul.f32 %v4081, %v4086
    %v4092 = vmul.f32 %v4081, %v4090
    %v4093 = vadd.f32 %v4077, %v4091
    %v4094 = vadd.f32 %v4078, %v4092
    %4095 = vset.pattern.permute.xlu0 3
    %4096 = vperm.xlu0 %4095, %v4038
    %v4097 = vpop.permute.xlu0 %4096
    %v4099 = vlaneseq
    %v4100 = vshrl.u32 %v4099, 7
    %v4101 = vsub.s32 3, %v4100
    %v4102 = vrot.slane %v3935, %v4101
    %v4103 = vlaneseq
    %v4104 = vshrl.u32 %v4103, 7
    %v4105 = vsub.s32 3, %v4104
    %v4106 = vrot.slane %v3942, %v4105
    %v4107 = vmul.f32 %v4097, %v4102
    %v4108 = vmul.f32 %v4097, %v4106
    %v4109 = vadd.f32 %v4093, %v4107
    %v4110 = vadd.f32 %v4094, %v4108
    %4111 = vset.pattern.permute.xlu0 4
    %4112 = vperm.xlu0 %4111, %v4038
    %v4113 = vpop.permute.xlu0 %4112
    %v4115 = vlaneseq
    %v4116 = vshrl.u32 %v4115, 7
    %v4117 = vsub.s32 4, %v4116
    %v4118 = vrot.slane %v3935, %v4117
    %v4119 = vlaneseq
    %v4120 = vshrl.u32 %v4119, 7
    %v4121 = vsub.s32 4, %v4120
    %v4122 = vrot.slane %v3942, %v4121
    %v4123 = vmul.f32 %v4113, %v4118
    %v4124 = vmul.f32 %v4113, %v4122
    %v4125 = vadd.f32 %v4109, %v4123
    %v4126 = vadd.f32 %v4110, %v4124
    %4127 = vset.pattern.permute.xlu0 5
    %4128 = vperm.xlu0 %4127, %v4038
    %v4129 = vpop.permute.xlu0 %4128
    %v4131 = vlaneseq
    %v4132 = vshrl.u32 %v4131, 7
    %v4133 = vsub.s32 5, %v4132
    %v4134 = vrot.slane %v3935, %v4133
    %v4135 = vlaneseq
    %v4136 = vshrl.u32 %v4135, 7
    %v4137 = vsub.s32 5, %v4136
    %v4138 = vrot.slane %v3942, %v4137
    %v4139 = vmul.f32 %v4129, %v4134
    %v4140 = vmul.f32 %v4129, %v4138
    %v4141 = vadd.f32 %v4125, %v4139
    %v4142 = vadd.f32 %v4126, %v4140
    %4143 = vset.pattern.permute.xlu0 6
    %4144 = vperm.xlu0 %4143, %v4038
    %v4145 = vpop.permute.xlu0 %4144
    %v4147 = vlaneseq
    %v4148 = vshrl.u32 %v4147, 7
    %v4149 = vsub.s32 6, %v4148
    %v4150 = vrot.slane %v3935, %v4149
    %v4151 = vlaneseq
    %v4152 = vshrl.u32 %v4151, 7
    %v4153 = vsub.s32 6, %v4152
    %v4154 = vrot.slane %v3942, %v4153
    %v4155 = vmul.f32 %v4145, %v4150
    %v4156 = vmul.f32 %v4145, %v4154
    %v4157 = vadd.f32 %v4141, %v4155
    %v4158 = vadd.f32 %v4142, %v4156
    %4159 = vset.pattern.permute.xlu0 7
    %4160 = vperm.xlu0 %4159, %v4038
    %v4161 = vpop.permute.xlu0 %4160
    %v4163 = vlaneseq
    %v4164 = vshrl.u32 %v4163, 7
    %v4165 = vsub.s32 7, %v4164
    %v4166 = vrot.slane %v3935, %v4165
    %v4167 = vlaneseq
    %v4168 = vshrl.u32 %v4167, 7
    %v4169 = vsub.s32 7, %v4168
    %v4170 = vrot.slane %v3942, %v4169
    %v4171 = vmul.f32 %v4161, %v4166
    %v4172 = vmul.f32 %v4161, %v4170
    %v4173 = vadd.f32 %v4157, %v4171
    %v4174 = vadd.f32 %v4158, %v4172
    %vm4175 = vcmp.ge.f32.partialorder %v4173, 0.0
    %vm4176 = vcmp.ge.f32.partialorder %v4174, 0.0
    %v4177 = vmul.f32 %v4173, 0.1
    %v4178 = vmul.f32 %v4174, 0.1
    %v4179 = vsel %vm4175, %v4173, %v4177
    %v4180 = vsel %vm4176, %v4174, %v4178
    %s4181 = scalar_lea.vmem %s1, 112
    %v4182 = vld [vmem:[%s4181] sm:$0xff]
    %s4183 = scalar_lea.vmem %s2, 112
    %v4184 = vld [vmem:[%s4183] sm:$0xff]
    %4186 = vset.pattern.permute.xlu0 0
    %4187 = vperm.xlu0 %4186, %v4182
    %v4188 = vpop.permute.xlu0 %4187
    %v4190 = vlaneseq
    %v4191 = vshrl.u32 %v4190, 7
    %v4192 = vsub.s32 0, %v4191
    %v4193 = vrot.slane %v4179, %v4192
    %v4194 = vlaneseq
    %v4195 = vshrl.u32 %v4194, 7
    %v4196 = vsub.s32 0, %v4195
    %v4197 = vrot.slane %v4180, %v4196
    %v4198 = vmul.f32 %v4188, %v4193
    %v4199 = vmul.f32 %v4188, %v4197
    %4201 = vset.pattern.permute.xlu0 0
    %4202 = vperm.xlu0 %4201, %v4184
    %v4203 = vpop.permute.xlu0 %4202
    %v4205 = vadd.f32 %v4198, %v4203
    %v4206 = vadd.f32 %v4199, %v4203
    %4207 = vset.pattern.permute.xlu0 1
    %4208 = vperm.xlu0 %4207, %v4182
    %v4209 = vpop.permute.xlu0 %4208
    %v4211 = vlaneseq
    %v4212 = vshrl.u32 %v4211, 7
    %v4213 = vsub.s32 1, %v4212
    %v4214 = vrot.slane %v4179, %v4213
    %v4215 = vlaneseq
    %v4216 = vshrl.u32 %v4215, 7
    %v4217 = vsub.s32 1, %v4216
    %v4218 = vrot.slane %v4180, %v4217
    %v4219 = vmul.f32 %v4209, %v4214
    %v4220 = vmul.f32 %v4209, %v4218
    %v4221 = vadd.f32 %v4205, %v4219
    %v4222 = vadd.f32 %v4206, %v4220
    %4223 = vset.pattern.permute.xlu0 2
    %4224 = vperm.xlu0 %4223, %v4182
    %v4225 = vpop.permute.xlu0 %4224
    %v4227 = vlaneseq
    %v4228 = vshrl.u32 %v4227, 7
    %v4229 = vsub.s32 2, %v4228
    %v4230 = vrot.slane %v4179, %v4229
    %v4231 = vlaneseq
    %v4232 = vshrl.u32 %v4231, 7
    %v4233 = vsub.s32 2, %v4232
    %v4234 = vrot.slane %v4180, %v4233
    %v4235 = vmul.f32 %v4225, %v4230
    %v4236 = vmul.f32 %v4225, %v4234
    %v4237 = vadd.f32 %v4221, %v4235
    %v4238 = vadd.f32 %v4222, %v4236
    %4239 = vset.pattern.permute.xlu0 3
    %4240 = vperm.xlu0 %4239, %v4182
    %v4241 = vpop.permute.xlu0 %4240
    %v4243 = vlaneseq
    %v4244 = vshrl.u32 %v4243, 7
    %v4245 = vsub.s32 3, %v4244
    %v4246 = vrot.slane %v4179, %v4245
    %v4247 = vlaneseq
    %v4248 = vshrl.u32 %v4247, 7
    %v4249 = vsub.s32 3, %v4248
    %v4250 = vrot.slane %v4180, %v4249
    %v4251 = vmul.f32 %v4241, %v4246
    %v4252 = vmul.f32 %v4241, %v4250
    %v4253 = vadd.f32 %v4237, %v4251
    %v4254 = vadd.f32 %v4238, %v4252
    %4255 = vset.pattern.permute.xlu0 4
    %4256 = vperm.xlu0 %4255, %v4182
    %v4257 = vpop.permute.xlu0 %4256
    %v4259 = vlaneseq
    %v4260 = vshrl.u32 %v4259, 7
    %v4261 = vsub.s32 4, %v4260
    %v4262 = vrot.slane %v4179, %v4261
    %v4263 = vlaneseq
    %v4264 = vshrl.u32 %v4263, 7
    %v4265 = vsub.s32 4, %v4264
    %v4266 = vrot.slane %v4180, %v4265
    %v4267 = vmul.f32 %v4257, %v4262
    %v4268 = vmul.f32 %v4257, %v4266
    %v4269 = vadd.f32 %v4253, %v4267
    %v4270 = vadd.f32 %v4254, %v4268
    %4271 = vset.pattern.permute.xlu0 5
    %4272 = vperm.xlu0 %4271, %v4182
    %v4273 = vpop.permute.xlu0 %4272
    %v4275 = vlaneseq
    %v4276 = vshrl.u32 %v4275, 7
    %v4277 = vsub.s32 5, %v4276
    %v4278 = vrot.slane %v4179, %v4277
    %v4279 = vlaneseq
    %v4280 = vshrl.u32 %v4279, 7
    %v4281 = vsub.s32 5, %v4280
    %v4282 = vrot.slane %v4180, %v4281
    %v4283 = vmul.f32 %v4273, %v4278
    %v4284 = vmul.f32 %v4273, %v4282
    %v4285 = vadd.f32 %v4269, %v4283
    %v4286 = vadd.f32 %v4270, %v4284
    %4287 = vset.pattern.permute.xlu0 6
    %4288 = vperm.xlu0 %4287, %v4182
    %v4289 = vpop.permute.xlu0 %4288
    %v4291 = vlaneseq
    %v4292 = vshrl.u32 %v4291, 7
    %v4293 = vsub.s32 6, %v4292
    %v4294 = vrot.slane %v4179, %v4293
    %v4295 = vlaneseq
    %v4296 = vshrl.u32 %v4295, 7
    %v4297 = vsub.s32 6, %v4296
    %v4298 = vrot.slane %v4180, %v4297
    %v4299 = vmul.f32 %v4289, %v4294
    %v4300 = vmul.f32 %v4289, %v4298
    %v4301 = vadd.f32 %v4285, %v4299
    %v4302 = vadd.f32 %v4286, %v4300
    %4303 = vset.pattern.permute.xlu0 7
    %4304 = vperm.xlu0 %4303, %v4182
    %v4305 = vpop.permute.xlu0 %4304
    %v4307 = vlaneseq
    %v4308 = vshrl.u32 %v4307, 7
    %v4309 = vsub.s32 7, %v4308
    %v4310 = vrot.slane %v4179, %v4309
    %v4311 = vlaneseq
    %v4312 = vshrl.u32 %v4311, 7
    %v4313 = vsub.s32 7, %v4312
    %v4314 = vrot.slane %v4180, %v4313
    %v4315 = vmul.f32 %v4305, %v4310
    %v4316 = vmul.f32 %v4305, %v4314
    %v4317 = vadd.f32 %v4301, %v4315
    %v4318 = vadd.f32 %v4302, %v4316
    %s4319 = scalar_lea.vmem %s1, 120
    %v4320 = vld [vmem:[%s4319] sm:$0xff]
    %s4321 = scalar_lea.vmem %s2, 120
    %v4322 = vld [vmem:[%s4321] sm:$0xff]
    %4324 = vset.pattern.permute.xlu0 0
    %4325 = vperm.xlu0 %4324, %v4320
    %v4326 = vpop.permute.xlu0 %4325
    %v4328 = vlaneseq
    %v4329 = vshrl.u32 %v4328, 7
    %v4330 = vsub.s32 0, %v4329
    %v4331 = vrot.slane %v3989, %v4330
    %v4332 = vlaneseq
    %v4333 = vshrl.u32 %v4332, 7
    %v4334 = vsub.s32 0, %v4333
    %v4335 = vrot.slane %v4036, %v4334
    %v4336 = vmul.f32 %v4326, %v4331
    %v4337 = vmul.f32 %v4326, %v4335
    %4339 = vset.pattern.permute.xlu0 0
    %4340 = vperm.xlu0 %4339, %v4322
    %v4341 = vpop.permute.xlu0 %4340
    %v4343 = vadd.f32 %v4336, %v4341
    %v4344 = vadd.f32 %v4337, %v4341
    %4345 = vset.pattern.permute.xlu0 1
    %4346 = vperm.xlu0 %4345, %v4320
    %v4347 = vpop.permute.xlu0 %4346
    %v4349 = vlaneseq
    %v4350 = vshrl.u32 %v4349, 7
    %v4351 = vsub.s32 1, %v4350
    %v4352 = vrot.slane %v3989, %v4351
    %v4353 = vlaneseq
    %v4354 = vshrl.u32 %v4353, 7
    %v4355 = vsub.s32 1, %v4354
    %v4356 = vrot.slane %v4036, %v4355
    %v4357 = vmul.f32 %v4347, %v4352
    %v4358 = vmul.f32 %v4347, %v4356
    %v4359 = vadd.f32 %v4343, %v4357
    %v4360 = vadd.f32 %v4344, %v4358
    %4361 = vset.pattern.permute.xlu0 2
    %4362 = vperm.xlu0 %4361, %v4320
    %v4363 = vpop.permute.xlu0 %4362
    %v4365 = vlaneseq
    %v4366 = vshrl.u32 %v4365, 7
    %v4367 = vsub.s32 2, %v4366
    %v4368 = vrot.slane %v3989, %v4367
    %v4369 = vlaneseq
    %v4370 = vshrl.u32 %v4369, 7
    %v4371 = vsub.s32 2, %v4370
    %v4372 = vrot.slane %v4036, %v4371
    %v4373 = vmul.f32 %v4363, %v4368
    %v4374 = vmul.f32 %v4363, %v4372
    %v4375 = vadd.f32 %v4359, %v4373
    %v4376 = vadd.f32 %v4360, %v4374
    %4377 = vset.pattern.permute.xlu0 3
    %4378 = vperm.xlu0 %4377, %v4320
    %v4379 = vpop.permute.xlu0 %4378
    %v4381 = vlaneseq
    %v4382 = vshrl.u32 %v4381, 7
    %v4383 = vsub.s32 3, %v4382
    %v4384 = vrot.slane %v3989, %v4383
    %v4385 = vlaneseq
    %v4386 = vshrl.u32 %v4385, 7
    %v4387 = vsub.s32 3, %v4386
    %v4388 = vrot.slane %v4036, %v4387
    %v4389 = vmul.f32 %v4379, %v4384
    %v4390 = vmul.f32 %v4379, %v4388
    %v4391 = vadd.f32 %v4375, %v4389
    %v4392 = vadd.f32 %v4376, %v4390
    %4393 = vset.pattern.permute.xlu0 4
    %4394 = vperm.xlu0 %4393, %v4320
    %v4395 = vpop.permute.xlu0 %4394
    %v4397 = vlaneseq
    %v4398 = vshrl.u32 %v4397, 7
    %v4399 = vsub.s32 4, %v4398
    %v4400 = vrot.slane %v3989, %v4399
    %v4401 = vlaneseq
    %v4402 = vshrl.u32 %v4401, 7
    %v4403 = vsub.s32 4, %v4402
    %v4404 = vrot.slane %v4036, %v4403
    %v4405 = vmul.f32 %v4395, %v4400
    %v4406 = vmul.f32 %v4395, %v4404
    %v4407 = vadd.f32 %v4391, %v4405
    %v4408 = vadd.f32 %v4392, %v4406
    %4409 = vset.pattern.permute.xlu0 5
    %4410 = vperm.xlu0 %4409, %v4320
    %v4411 = vpop.permute.xlu0 %4410
    %v4413 = vlaneseq
    %v4414 = vshrl.u32 %v4413, 7
    %v4415 = vsub.s32 5, %v4414
    %v4416 = vrot.slane %v3989, %v4415
    %v4417 = vlaneseq
    %v4418 = vshrl.u32 %v4417, 7
    %v4419 = vsub.s32 5, %v4418
    %v4420 = vrot.slane %v4036, %v4419
    %v4421 = vmul.f32 %v4411, %v4416
    %v4422 = vmul.f32 %v4411, %v4420
    %v4423 = vadd.f32 %v4407, %v4421
    %v4424 = vadd.f32 %v4408, %v4422
    %4425 = vset.pattern.permute.xlu0 6
    %4426 = vperm.xlu0 %4425, %v4320
    %v4427 = vpop.permute.xlu0 %4426
    %v4429 = vlaneseq
    %v4430 = vshrl.u32 %v4429, 7
    %v4431 = vsub.s32 6, %v4430
    %v4432 = vrot.slane %v3989, %v4431
    %v4433 = vlaneseq
    %v4434 = vshrl.u32 %v4433, 7
    %v4435 = vsub.s32 6, %v4434
    %v4436 = vrot.slane %v4036, %v4435
    %v4437 = vmul.f32 %v4427, %v4432
    %v4438 = vmul.f32 %v4427, %v4436
    %v4439 = vadd.f32 %v4423, %v4437
    %v4440 = vadd.f32 %v4424, %v4438
    %4441 = vset.pattern.permute.xlu0 7
    %4442 = vperm.xlu0 %4441, %v4320
    %v4443 = vpop.permute.xlu0 %4442
    %v4445 = vlaneseq
    %v4446 = vshrl.u32 %v4445, 7
    %v4447 = vsub.s32 7, %v4446
    %v4448 = vrot.slane %v3989, %v4447
    %v4449 = vlaneseq
    %v4450 = vshrl.u32 %v4449, 7
    %v4451 = vsub.s32 7, %v4450
    %v4452 = vrot.slane %v4036, %v4451
    %v4453 = vmul.f32 %v4443, %v4448
    %v4454 = vmul.f32 %v4443, %v4452
    %v4455 = vadd.f32 %v4439, %v4453
    %v4456 = vadd.f32 %v4440, %v4454
    %vm4457 = vcmp.ge.f32.partialorder %v4455, 0.0
    %vm4458 = vcmp.ge.f32.partialorder %v4456, 0.0
    %v4459 = vmul.f32 %v4455, 0.1
    %v4460 = vmul.f32 %v4456, 0.1
    %v4461 = vsel %vm4457, %v4455, %v4459
    %v4462 = vsel %vm4458, %v4456, %v4460
    %s4463 = scalar_lea.vmem %s1, 128
    %v4464 = vld [vmem:[%s4463] sm:$0xff]
    %s4465 = scalar_lea.vmem %s2, 128
    %v4466 = vld [vmem:[%s4465] sm:$0xff]
    %4468 = vset.pattern.permute.xlu0 0
    %4469 = vperm.xlu0 %4468, %v4464
    %v4470 = vpop.permute.xlu0 %4469
    %v4472 = vlaneseq
    %v4473 = vshrl.u32 %v4472, 7
    %v4474 = vsub.s32 0, %v4473
    %v4475 = vrot.slane %v4461, %v4474
    %v4476 = vlaneseq
    %v4477 = vshrl.u32 %v4476, 7
    %v4478 = vsub.s32 0, %v4477
    %v4479 = vrot.slane %v4462, %v4478
    %v4480 = vmul.f32 %v4470, %v4475
    %v4481 = vmul.f32 %v4470, %v4479
    %4483 = vset.pattern.permute.xlu0 0
    %4484 = vperm.xlu0 %4483, %v4466
    %v4485 = vpop.permute.xlu0 %4484
    %v4487 = vadd.f32 %v4480, %v4485
    %v4488 = vadd.f32 %v4481, %v4485
    %4489 = vset.pattern.permute.xlu0 1
    %4490 = vperm.xlu0 %4489, %v4464
    %v4491 = vpop.permute.xlu0 %4490
    %v4493 = vlaneseq
    %v4494 = vshrl.u32 %v4493, 7
    %v4495 = vsub.s32 1, %v4494
    %v4496 = vrot.slane %v4461, %v4495
    %v4497 = vlaneseq
    %v4498 = vshrl.u32 %v4497, 7
    %v4499 = vsub.s32 1, %v4498
    %v4500 = vrot.slane %v4462, %v4499
    %v4501 = vmul.f32 %v4491, %v4496
    %v4502 = vmul.f32 %v4491, %v4500
    %v4503 = vadd.f32 %v4487, %v4501
    %v4504 = vadd.f32 %v4488, %v4502
    %4505 = vset.pattern.permute.xlu0 2
    %4506 = vperm.xlu0 %4505, %v4464
    %v4507 = vpop.permute.xlu0 %4506
    %v4509 = vlaneseq
    %v4510 = vshrl.u32 %v4509, 7
    %v4511 = vsub.s32 2, %v4510
    %v4512 = vrot.slane %v4461, %v4511
    %v4513 = vlaneseq
    %v4514 = vshrl.u32 %v4513, 7
    %v4515 = vsub.s32 2, %v4514
    %v4516 = vrot.slane %v4462, %v4515
    %v4517 = vmul.f32 %v4507, %v4512
    %v4518 = vmul.f32 %v4507, %v4516
    %v4519 = vadd.f32 %v4503, %v4517
    %v4520 = vadd.f32 %v4504, %v4518
    %4521 = vset.pattern.permute.xlu0 3
    %4522 = vperm.xlu0 %4521, %v4464
    %v4523 = vpop.permute.xlu0 %4522
    %v4525 = vlaneseq
    %v4526 = vshrl.u32 %v4525, 7
    %v4527 = vsub.s32 3, %v4526
    %v4528 = vrot.slane %v4461, %v4527
    %v4529 = vlaneseq
    %v4530 = vshrl.u32 %v4529, 7
    %v4531 = vsub.s32 3, %v4530
    %v4532 = vrot.slane %v4462, %v4531
    %v4533 = vmul.f32 %v4523, %v4528
    %v4534 = vmul.f32 %v4523, %v4532
    %v4535 = vadd.f32 %v4519, %v4533
    %v4536 = vadd.f32 %v4520, %v4534
    %4537 = vset.pattern.permute.xlu0 4
    %4538 = vperm.xlu0 %4537, %v4464
    %v4539 = vpop.permute.xlu0 %4538
    %v4541 = vlaneseq
    %v4542 = vshrl.u32 %v4541, 7
    %v4543 = vsub.s32 4, %v4542
    %v4544 = vrot.slane %v4461, %v4543
    %v4545 = vlaneseq
    %v4546 = vshrl.u32 %v4545, 7
    %v4547 = vsub.s32 4, %v4546
    %v4548 = vrot.slane %v4462, %v4547
    %v4549 = vmul.f32 %v4539, %v4544
    %v4550 = vmul.f32 %v4539, %v4548
    %v4551 = vadd.f32 %v4535, %v4549
    %v4552 = vadd.f32 %v4536, %v4550
    %4553 = vset.pattern.permute.xlu0 5
    %4554 = vperm.xlu0 %4553, %v4464
    %v4555 = vpop.permute.xlu0 %4554
    %v4557 = vlaneseq
    %v4558 = vshrl.u32 %v4557, 7
    %v4559 = vsub.s32 5, %v4558
    %v4560 = vrot.slane %v4461, %v4559
    %v4561 = vlaneseq
    %v4562 = vshrl.u32 %v4561, 7
    %v4563 = vsub.s32 5, %v4562
    %v4564 = vrot.slane %v4462, %v4563
    %v4565 = vmul.f32 %v4555, %v4560
    %v4566 = vmul.f32 %v4555, %v4564
    %v4567 = vadd.f32 %v4551, %v4565
    %v4568 = vadd.f32 %v4552, %v4566
    %4569 = vset.pattern.permute.xlu0 6
    %4570 = vperm.xlu0 %4569, %v4464
    %v4571 = vpop.permute.xlu0 %4570
    %v4573 = vlaneseq
    %v4574 = vshrl.u32 %v4573, 7
    %v4575 = vsub.s32 6, %v4574
    %v4576 = vrot.slane %v4461, %v4575
    %v4577 = vlaneseq
    %v4578 = vshrl.u32 %v4577, 7
    %v4579 = vsub.s32 6, %v4578
    %v4580 = vrot.slane %v4462, %v4579
    %v4581 = vmul.f32 %v4571, %v4576
    %v4582 = vmul.f32 %v4571, %v4580
    %v4583 = vadd.f32 %v4567, %v4581
    %v4584 = vadd.f32 %v4568, %v4582
    %4585 = vset.pattern.permute.xlu0 7
    %4586 = vperm.xlu0 %4585, %v4464
    %v4587 = vpop.permute.xlu0 %4586
    %v4589 = vlaneseq
    %v4590 = vshrl.u32 %v4589, 7
    %v4591 = vsub.s32 7, %v4590
    %v4592 = vrot.slane %v4461, %v4591
    %v4593 = vlaneseq
    %v4594 = vshrl.u32 %v4593, 7
    %v4595 = vsub.s32 7, %v4594
    %v4596 = vrot.slane %v4462, %v4595
    %v4597 = vmul.f32 %v4587, %v4592
    %v4598 = vmul.f32 %v4587, %v4596
    %v4599 = vadd.f32 %v4583, %v4597
    %v4600 = vadd.f32 %v4584, %v4598
    %v4601 = vand.u32 2147483647, %v4599
    %vm4602 = vcmp.le.f32.partialorder %v4601, 0.7853982
    %vm4603 = vcmp.lt.s32.totalorder %v4599, 0
    %v4604 = vand.u32 %v4599, 2139095040
    %v4605 = vshrl.u32 %v4604, 23
    %v4606 = vsub.s32 %v4605, 127
    %v4607 = vand.u32 2147483647, %v4599
    %v4608 = vand.u32 %v4607, 8388607
    %v4609 = vor.u32 %v4608, 8388608
    %v4610 = vsub.s32 0, %v4609
    %v4611 = vadd.s32 %v4606, 1
    %vm4612 = vcmp.gt.s32.totalorder %v4611, 0
    %v4613 = vsel %vm4612, %v4611, 0
    %v4614 = vshrl.u32 %v4613, 5
    %v4615 = vand.u32 %v4613, 31
    %v4616 = vsub.s32 32, %v4615
    %v4617 = vshrl.u32 683565275, %v4616
    %v4618 = vshll.u32 683565275, %v4615
    %v4619 = vshrl.u32 2475754826, %v4616
    %v4620 = vor.u32 %v4618, %v4619
    %v4621 = vshll.u32 2475754826, %v4615
    %v4622 = vshrl.u32 2131351028, %v4616
    %v4623 = vor.u32 %v4621, %v4622
    %v4624 = vshll.u32 2131351028, %v4615
    %v4625 = vshrl.u32 2102212464, %v4616
    %v4626 = vor.u32 %v4624, %v4625
    %v4627 = vshll.u32 2102212464, %v4615
    %v4628 = vshrl.u32 920167782, %v4616
    %v4629 = vor.u32 %v4627, %v4628
    %v4630 = vshll.u32 920167782, %v4615
    %v4631 = vshrl.u32 1326507024, %v4616
    %v4632 = vor.u32 %v4630, %v4631
    %vm4633 = vcmp.lt.s32.totalorder %v4614, 1
    %vm4634 = vcmp.lt.s32.totalorder %v4614, 2
    %vm4635 = vcmp.lt.s32.totalorder %v4614, 3
    %vm4636 = vcmp.lt.s32.totalorder %v4614, 4
    %v4637 = vsel %vm4633, %v4617, %v4620
    %v4638 = vsel %vm4636, %v4626, 2102212464
    %v4639 = vsel %vm4635, %v4623, %v4638
    %v4640 = vsel %vm4634, %v4637, %v4639
    %v4641 = vsel %vm4633, %v4620, %v4623
    %v4642 = vsel %vm4636, %v4629, 920167782
    %v4643 = vsel %vm4635, %v4626, %v4642
    %v4644 = vsel %vm4634, %v4641, %v4643
    %v4645 = vsel %vm4633, %v4623, %v4626
    %v4646 = vsel %vm4636, %v4632, 1326507024
    %v4647 = vsel %vm4635, %v4629, %v4646
    %v4648 = vsel %vm4634, %v4645, %v4647
    %v4649 = vshll.u32 %v4609, 8
    %v4650 = vmul.u32.u64.compose %v4649, %v4648
    %v4651 = vextract.low.u32 %v4650
    %v4652 = vextract.high.u32 %v4650
    %v4653 = vmul.u32.u64.compose %v4649, %v4644
    %v4654 = vextract.low.u32 %v4653
    %v4655 = vextract.high.u32 %v4653
    %v4656 = vmul.u32 %v4649, %v4640
    %v4657 = vadd.s32 %v4652, %v4654
    %vm4658 = vc.u32 %v4652, %v4654
    %v4659 = vadd.s32 %v4655, 1
    %v4660 = vsel %vm4658, %v4659, %v4655
    %v4661 = vadd.s32 %v4656, %v4660
    %v4662 = vadd.s32 %v4661, 536870912
    %v4663 = vshrl.u32 %v4662, 30
    %v4664 = vshll.u32 %v4663, 30
    %v4665 = vsub.s32 %v4661, %v4664
    %vm4666 = vcmp.lt.s32.totalorder %v4665, 0
    %v4667 = vsub.s32 0, %v4665
    %v4668 = vsel %vm4666, %v4667, %v4665
    %v4669 = vclz %v4668
    %v4670 = vsub.s32 %v4669, 2
    %vm4671 = vcmp.gt.s32.totalorder 0, %v4670
    %v4672 = vsel %vm4671, 0, %v4670
    %v4673 = vsub.s32 32, %v4672
    %v4674 = vshll.u32 %v4665, %v4672
    %v4675 = vshrl.u32 %v4657, %v4673
    %v4676 = vor.u32 %v4674, %v4675
    %v4677 = vsub.s32 4294967266, %v4672
    %v4678 = vadd.s32 %v4677, 127
    %v4679 = vshll.u32 %v4678, 23
    %v4680 = vor.u32 4788187, %v4679
    %v4681 = vand.u32 2147483647, %v4680
    %v4683 = vcvt.s32.f32 %v4676
    %v4684 = vmul.f32 %v4683, %v4681
    %v4685 = vxor.u32 %v4684, 2147483648
    %v4686 = vsel %vm4603, %v4685, %v4684
    %v4687 = vsub.s32 4, %v4663
    %v4688 = vsel %vm4603, %v4687, %v4663
    %v4689 = vsel %vm4602, %v4599, %v4686
    %v4690 = vsel %vm4602, 0, %v4688
    %v4691 = vcosq.f32.pop %v4689
    %v4692 = vsinq.f32.pop %v4689
    %vm4693 = vweird.f32 %v4599
    %v4694 = vand.u32 %v4690, 3
    %vm4695 = vcmp.lt.s32.totalorder %v4694, 2
    %vm4696 = vcmp.eq.s32.totalorder %v4694, 0
    %v4697 = vxor.u32 %v4692, 2147483648
    %v4698 = vsel %vm4696, %v4691, %v4697
    %vm4699 = vcmp.eq.s32.totalorder %v4694, 2
    %v4700 = vxor.u32 %v4691, 2147483648
    %v4701 = vsel %vm4699, %v4700, %v4692
    %v4702 = vsel %vm4695, %v4698, %v4701
    %v4703 = vsel %vm4693, nan, %v4702
    %v4704 = vand.u32 2147483647, %v4600
    %vm4705 = vcmp.le.f32.partialorder %v4704, 0.7853982
    %vm4706 = vcmp.lt.s32.totalorder %v4600, 0
    %v4707 = vand.u32 %v4600, 2139095040
    %v4708 = vshrl.u32 %v4707, 23
    %v4709 = vsub.s32 %v4708, 127
    %v4710 = vand.u32 2147483647, %v4600
    %v4711 = vand.u32 %v4710, 8388607
    %v4712 = vor.u32 %v4711, 8388608
    %v4713 = vsub.s32 0, %v4712
    %v4714 = vadd.s32 %v4709, 1
    %vm4715 = vcmp.gt.s32.totalorder %v4714, 0
    %v4716 = vsel %vm4715, %v4714, 0
    %v4717 = vshrl.u32 %v4716, 5
    %v4718 = vand.u32 %v4716, 31
    %v4719 = vsub.s32 32, %v4718
    %v4720 = vshrl.u32 683565275, %v4719
    %v4721 = vshll.u32 683565275, %v4718
    %v4722 = vshrl.u32 2475754826, %v4719
    %v4723 = vor.u32 %v4721, %v4722
    %v4724 = vshll.u32 2475754826, %v4718
    %v4725 = vshrl.u32 2131351028, %v4719
    %v4726 = vor.u32 %v4724, %v4725
    %v4727 = vshll.u32 2131351028, %v4718
    %v4728 = vshrl.u32 2102212464, %v4719
    %v4729 = vor.u32 %v4727, %v4728
    %v4730 = vshll.u32 2102212464, %v4718
    %v4731 = vshrl.u32 920167782, %v4719
    %v4732 = vor.u32 %v4730, %v4731
    %v4733 = vshll.u32 920167782, %v4718
    %v4734 = vshrl.u32 1326507024, %v4719
    %v4735 = vor.u32 %v4733, %v4734
    %vm4736 = vcmp.lt.s32.totalorder %v4717, 1
    %vm4737 = vcmp.lt.s32.totalorder %v4717, 2
    %vm4738 = vcmp.lt.s32.totalorder %v4717, 3
    %vm4739 = vcmp.lt.s32.totalorder %v4717, 4
    %v4740 = vsel %vm4736, %v4720, %v4723
    %v4741 = vsel %vm4739, %v4729, 2102212464
    %v4742 = vsel %vm4738, %v4726, %v4741
    %v4743 = vsel %vm4737, %v4740, %v4742
    %v4744 = vsel %vm4736, %v4723, %v4726
    %v4745 = vsel %vm4739, %v4732, 920167782
    %v4746 = vsel %vm4738, %v4729, %v4745
    %v4747 = vsel %vm4737, %v4744, %v4746
    %v4748 = vsel %vm4736, %v4726, %v4729
    %v4749 = vsel %vm4739, %v4735, 1326507024
    %v4750 = vsel %vm4738, %v4732, %v4749
    %v4751 = vsel %vm4737, %v4748, %v4750
    %v4752 = vshll.u32 %v4712, 8
    %v4753 = vmul.u32.u64.compose %v4752, %v4751
    %v4754 = vextract.low.u32 %v4753
    %v4755 = vextract.high.u32 %v4753
    %v4756 = vmul.u32.u64.compose %v4752, %v4747
    %v4757 = vextract.low.u32 %v4756
    %v4758 = vextract.high.u32 %v4756
    %v4759 = vmul.u32 %v4752, %v4743
    %v4760 = vadd.s32 %v4755, %v4757
    %vm4761 = vc.u32 %v4755, %v4757
    %v4762 = vadd.s32 %v4758, 1
    %v4763 = vsel %vm4761, %v4762, %v4758
    %v4764 = vadd.s32 %v4759, %v4763
    %v4765 = vadd.s32 %v4764, 536870912
    %v4766 = vshrl.u32 %v4765, 30
    %v4767 = vshll.u32 %v4766, 30
    %v4768 = vsub.s32 %v4764, %v4767
    %vm4769 = vcmp.lt.s32.totalorder %v4768, 0
    %v4770 = vsub.s32 0, %v4768
    %v4771 = vsel %vm4769, %v4770, %v4768
    %v4772 = vclz %v4771
    %v4773 = vsub.s32 %v4772, 2
    %vm4774 = vcmp.gt.s32.totalorder 0, %v4773
    %v4775 = vsel %vm4774, 0, %v4773
    %v4776 = vsub.s32 32, %v4775
    %v4777 = vshll.u32 %v4768, %v4775
    %v4778 = vshrl.u32 %v4760, %v4776
    %v4779 = vor.u32 %v4777, %v4778
    %v4780 = vsub.s32 4294967266, %v4775
    %v4781 = vadd.s32 %v4780, 127
    %v4782 = vshll.u32 %v4781, 23
    %v4783 = vor.u32 4788187, %v4782
    %v4784 = vand.u32 2147483647, %v4783
    %v4786 = vcvt.s32.f32 %v4779
    %v4787 = vmul.f32 %v4786, %v4784
    %v4788 = vxor.u32 %v4787, 2147483648
    %v4789 = vsel %vm4706, %v4788, %v4787
    %v4790 = vsub.s32 4, %v4766
    %v4791 = vsel %vm4706, %v4790, %v4766
    %v4792 = vsel %vm4705, %v4600, %v4789
    %v4793 = vsel %vm4705, 0, %v4791
    %v4794 = vcosq.f32.pop %v4792
    %v4795 = vsinq.f32.pop %v4792
    %vm4796 = vweird.f32 %v4600
    %v4797 = vand.u32 %v4793, 3
    %vm4798 = vcmp.lt.s32.totalorder %v4797, 2
    %vm4799 = vcmp.eq.s32.totalorder %v4797, 0
    %v4800 = vxor.u32 %v4795, 2147483648
    %v4801 = vsel %vm4799, %v4794, %v4800
    %vm4802 = vcmp.eq.s32.totalorder %v4797, 2
    %v4803 = vxor.u32 %v4794, 2147483648
    %v4804 = vsel %vm4802, %v4803, %v4795
    %v4805 = vsel %vm4798, %v4801, %v4804
    %v4806 = vsel %vm4796, nan, %v4805
    %v4807 = vmul.f32 %v4317, %v4703
    %v4808 = vmul.f32 %v4318, %v4806
    %v4809 = vand.u32 2147483647, %v4599
    %vm4810 = vcmp.le.f32.partialorder %v4809, 0.7853982
    %vm4811 = vcmp.lt.s32.totalorder %v4599, 0
    %v4812 = vand.u32 %v4599, 2139095040
    %v4813 = vshrl.u32 %v4812, 23
    %v4814 = vsub.s32 %v4813, 127
    %v4815 = vand.u32 2147483647, %v4599
    %v4816 = vand.u32 %v4815, 8388607
    %v4817 = vor.u32 %v4816, 8388608
    %v4818 = vsub.s32 0, %v4817
    %v4819 = vadd.s32 %v4814, 1
    %vm4820 = vcmp.gt.s32.totalorder %v4819, 0
    %v4821 = vsel %vm4820, %v4819, 0
    %v4822 = vshrl.u32 %v4821, 5
    %v4823 = vand.u32 %v4821, 31
    %v4824 = vsub.s32 32, %v4823
    %v4825 = vshrl.u32 683565275, %v4824
    %v4826 = vshll.u32 683565275, %v4823
    %v4827 = vshrl.u32 2475754826, %v4824
    %v4828 = vor.u32 %v4826, %v4827
    %v4829 = vshll.u32 2475754826, %v4823
    %v4830 = vshrl.u32 2131351028, %v4824
    %v4831 = vor.u32 %v4829, %v4830
    %v4832 = vshll.u32 2131351028, %v4823
    %v4833 = vshrl.u32 2102212464, %v4824
    %v4834 = vor.u32 %v4832, %v4833
    %v4835 = vshll.u32 2102212464, %v4823
    %v4836 = vshrl.u32 920167782, %v4824
    %v4837 = vor.u32 %v4835, %v4836
    %v4838 = vshll.u32 920167782, %v4823
    %v4839 = vshrl.u32 1326507024, %v4824
    %v4840 = vor.u32 %v4838, %v4839
    %vm4841 = vcmp.lt.s32.totalorder %v4822, 1
    %vm4842 = vcmp.lt.s32.totalorder %v4822, 2
    %vm4843 = vcmp.lt.s32.totalorder %v4822, 3
    %vm4844 = vcmp.lt.s32.totalorder %v4822, 4
    %v4845 = vsel %vm4841, %v4825, %v4828
    %v4846 = vsel %vm4844, %v4834, 2102212464
    %v4847 = vsel %vm4843, %v4831, %v4846
    %v4848 = vsel %vm4842, %v4845, %v4847
    %v4849 = vsel %vm4841, %v4828, %v4831
    %v4850 = vsel %vm4844, %v4837, 920167782
    %v4851 = vsel %vm4843, %v4834, %v4850
    %v4852 = vsel %vm4842, %v4849, %v4851
    %v4853 = vsel %vm4841, %v4831, %v4834
    %v4854 = vsel %vm4844, %v4840, 1326507024
    %v4855 = vsel %vm4843, %v4837, %v4854
    %v4856 = vsel %vm4842, %v4853, %v4855
    %v4857 = vshll.u32 %v4817, 8
    %v4858 = vmul.u32.u64.compose %v4857, %v4856
    %v4859 = vextract.low.u32 %v4858
    %v4860 = vextract.high.u32 %v4858
    %v4861 = vmul.u32.u64.compose %v4857, %v4852
    %v4862 = vextract.low.u32 %v4861
    %v4863 = vextract.high.u32 %v4861
    %v4864 = vmul.u32 %v4857, %v4848
    %v4865 = vadd.s32 %v4860, %v4862
    %vm4866 = vc.u32 %v4860, %v4862
    %v4867 = vadd.s32 %v4863, 1
    %v4868 = vsel %vm4866, %v4867, %v4863
    %v4869 = vadd.s32 %v4864, %v4868
    %v4870 = vadd.s32 %v4869, 536870912
    %v4871 = vshrl.u32 %v4870, 30
    %v4872 = vshll.u32 %v4871, 30
    %v4873 = vsub.s32 %v4869, %v4872
    %vm4874 = vcmp.lt.s32.totalorder %v4873, 0
    %v4875 = vsub.s32 0, %v4873
    %v4876 = vsel %vm4874, %v4875, %v4873
    %v4877 = vclz %v4876
    %v4878 = vsub.s32 %v4877, 2
    %vm4879 = vcmp.gt.s32.totalorder 0, %v4878
    %v4880 = vsel %vm4879, 0, %v4878
    %v4881 = vsub.s32 32, %v4880
    %v4882 = vshll.u32 %v4873, %v4880
    %v4883 = vshrl.u32 %v4865, %v4881
    %v4884 = vor.u32 %v4882, %v4883
    %v4885 = vsub.s32 4294967266, %v4880
    %v4886 = vadd.s32 %v4885, 127
    %v4887 = vshll.u32 %v4886, 23
    %v4888 = vor.u32 4788187, %v4887
    %v4889 = vand.u32 2147483647, %v4888
    %v4891 = vcvt.s32.f32 %v4884
    %v4892 = vmul.f32 %v4891, %v4889
    %v4893 = vxor.u32 %v4892, 2147483648
    %v4894 = vsel %vm4811, %v4893, %v4892
    %v4895 = vsub.s32 4, %v4871
    %v4896 = vsel %vm4811, %v4895, %v4871
    %v4897 = vsel %vm4810, %v4599, %v4894
    %v4898 = vsel %vm4810, 0, %v4896
    %v4899 = vcosq.f32.pop %v4897
    %v4900 = vsinq.f32.pop %v4897
    %vm4901 = vweird.f32 %v4599
    %v4902 = vadd.s32 %v4898, 3
    %v4903 = vand.u32 %v4902, 3
    %vm4904 = vcmp.lt.s32.totalorder %v4903, 2
    %vm4905 = vcmp.eq.s32.totalorder %v4903, 0
    %v4906 = vxor.u32 %v4900, 2147483648
    %v4907 = vsel %vm4905, %v4899, %v4906
    %vm4908 = vcmp.eq.s32.totalorder %v4903, 2
    %v4909 = vxor.u32 %v4899, 2147483648
    %v4910 = vsel %vm4908, %v4909, %v4900
    %v4911 = vsel %vm4904, %v4907, %v4910
    %v4912 = vsel %vm4901, nan, %v4911
    %v4913 = vand.u32 2147483647, %v4600
    %vm4914 = vcmp.le.f32.partialorder %v4913, 0.7853982
    %vm4915 = vcmp.lt.s32.totalorder %v4600, 0
    %v4916 = vand.u32 %v4600, 2139095040
    %v4917 = vshrl.u32 %v4916, 23
    %v4918 = vsub.s32 %v4917, 127
    %v4919 = vand.u32 2147483647, %v4600
    %v4920 = vand.u32 %v4919, 8388607
    %v4921 = vor.u32 %v4920, 8388608
    %v4922 = vsub.s32 0, %v4921
    %v4923 = vadd.s32 %v4918, 1
    %vm4924 = vcmp.gt.s32.totalorder %v4923, 0
    %v4925 = vsel %vm4924, %v4923, 0
    %v4926 = vshrl.u32 %v4925, 5
    %v4927 = vand.u32 %v4925, 31
    %v4928 = vsub.s32 32, %v4927
    %v4929 = vshrl.u32 683565275, %v4928
    %v4930 = vshll.u32 683565275, %v4927
    %v4931 = vshrl.u32 2475754826, %v4928
    %v4932 = vor.u32 %v4930, %v4931
    %v4933 = vshll.u32 2475754826, %v4927
    %v4934 = vshrl.u32 2131351028, %v4928
    %v4935 = vor.u32 %v4933, %v4934
    %v4936 = vshll.u32 2131351028, %v4927
    %v4937 = vshrl.u32 2102212464, %v4928
    %v4938 = vor.u32 %v4936, %v4937
    %v4939 = vshll.u32 2102212464, %v4927
    %v4940 = vshrl.u32 920167782, %v4928
    %v4941 = vor.u32 %v4939, %v4940
    %v4942 = vshll.u32 920167782, %v4927
    %v4943 = vshrl.u32 1326507024, %v4928
    %v4944 = vor.u32 %v4942, %v4943
    %vm4945 = vcmp.lt.s32.totalorder %v4926, 1
    %vm4946 = vcmp.lt.s32.totalorder %v4926, 2
    %vm4947 = vcmp.lt.s32.totalorder %v4926, 3
    %vm4948 = vcmp.lt.s32.totalorder %v4926, 4
    %v4949 = vsel %vm4945, %v4929, %v4932
    %v4950 = vsel %vm4948, %v4938, 2102212464
    %v4951 = vsel %vm4947, %v4935, %v4950
    %v4952 = vsel %vm4946, %v4949, %v4951
    %v4953 = vsel %vm4945, %v4932, %v4935
    %v4954 = vsel %vm4948, %v4941, 920167782
    %v4955 = vsel %vm4947, %v4938, %v4954
    %v4956 = vsel %vm4946, %v4953, %v4955
    %v4957 = vsel %vm4945, %v4935, %v4938
    %v4958 = vsel %vm4948, %v4944, 1326507024
    %v4959 = vsel %vm4947, %v4941, %v4958
    %v4960 = vsel %vm4946, %v4957, %v4959
    %v4961 = vshll.u32 %v4921, 8
    %v4962 = vmul.u32.u64.compose %v4961, %v4960
    %v4963 = vextract.low.u32 %v4962
    %v4964 = vextract.high.u32 %v4962
    %v4965 = vmul.u32.u64.compose %v4961, %v4956
    %v4966 = vextract.low.u32 %v4965
    %v4967 = vextract.high.u32 %v4965
    %v4968 = vmul.u32 %v4961, %v4952
    %v4969 = vadd.s32 %v4964, %v4966
    %vm4970 = vc.u32 %v4964, %v4966
    %v4971 = vadd.s32 %v4967, 1
    %v4972 = vsel %vm4970, %v4971, %v4967
    %v4973 = vadd.s32 %v4968, %v4972
    %v4974 = vadd.s32 %v4973, 536870912
    %v4975 = vshrl.u32 %v4974, 30
    %v4976 = vshll.u32 %v4975, 30
    %v4977 = vsub.s32 %v4973, %v4976
    %vm4978 = vcmp.lt.s32.totalorder %v4977, 0
    %v4979 = vsub.s32 0, %v4977
    %v4980 = vsel %vm4978, %v4979, %v4977
    %v4981 = vclz %v4980
    %v4982 = vsub.s32 %v4981, 2
    %vm4983 = vcmp.gt.s32.totalorder 0, %v4982
    %v4984 = vsel %vm4983, 0, %v4982
    %v4985 = vsub.s32 32, %v4984
    %v4986 = vshll.u32 %v4977, %v4984
    %v4987 = vshrl.u32 %v4969, %v4985
    %v4988 = vor.u32 %v4986, %v4987
    %v4989 = vsub.s32 4294967266, %v4984
    %v4990 = vadd.s32 %v4989, 127
    %v4991 = vshll.u32 %v4990, 23
    %v4992 = vor.u32 4788187, %v4991
    %v4993 = vand.u32 2147483647, %v4992
    %v4995 = vcvt.s32.f32 %v4988
    %v4996 = vmul.f32 %v4995, %v4993
    %v4997 = vxor.u32 %v4996, 2147483648
    %v4998 = vsel %vm4915, %v4997, %v4996
    %v4999 = vsub.s32 4, %v4975
    %v5000 = vsel %vm4915, %v4999, %v4975
    %v5001 = vsel %vm4914, %v4600, %v4998
    %v5002 = vsel %vm4914, 0, %v5000
    %v5003 = vcosq.f32.pop %v5001
    %v5004 = vsinq.f32.pop %v5001
    %vm5005 = vweird.f32 %v4600
    %v5006 = vadd.s32 %v5002, 3
    %v5007 = vand.u32 %v5006, 3
    %vm5008 = vcmp.lt.s32.totalorder %v5007, 2
    %vm5009 = vcmp.eq.s32.totalorder %v5007, 0
    %v5010 = vxor.u32 %v5004, 2147483648
    %v5011 = vsel %vm5009, %v5003, %v5010
    %vm5012 = vcmp.eq.s32.totalorder %v5007, 2
    %v5013 = vxor.u32 %v5003, 2147483648
    %v5014 = vsel %vm5012, %v5013, %v5004
    %v5015 = vsel %vm5008, %v5011, %v5014
    %v5016 = vsel %vm5005, nan, %v5015
    %v5017 = vmul.f32 %v4317, %v4912
    %v5018 = vmul.f32 %v4318, %v5016
    %5019 = vmatprep.subr.mxu0 %v1636
    %5020 = vmatpush1.msra.mxu0 %v1635
    %5021 = vmatprep.subr.mxu0 %v1638
    %5022 = vmatpush1.msra.mxu0 %v1637
    %5023 = vmatprep.subr.mxu0 %v1640
    %5024 = vmatpush1.msra.mxu0 %v1639
    %5025 = vmatprep.subr.mxu0 %v1642
    %5026 = vmatpush1.msra.mxu0 %v1641
    %5027 = vmatprep.subr.mxu0 %v1644
    %5028 = vmatpush1.msra.mxu0 %v1643
    %5029 = vmatprep.subr.mxu0 %v1646
    %5030 = vmatpush1.msra.mxu0 %v1645
    %5031 = vmatprep.subr.mxu0 %v1648
    %5032 = vmatpush1.msra.mxu0 %v1647
    %5033 = vmatprep.subr.mxu0 %v1650
    %5034 = vmatpush1.msra.mxu0 %v1649
    %5035 = vmatprep.subr.mxu0 %v1652
    %5036 = vmatpush1.msra.mxu0 %v1651
    %5037 = vmatprep.subr.mxu0 %v1654
    %5038 = vmatpush1.msra.mxu0 %v1653
    %5039 = vmatprep.subr.mxu0 %v1656
    %5040 = vmatpush1.msra.mxu0 %v1655
    %5041 = vmatprep.subr.mxu0 %v1658
    %5042 = vmatpush1.msra.mxu0 %v1657
    %5043 = vmatprep.subr.mxu0 %v1660
    %5044 = vmatpush1.msra.mxu0 %v1659
    %5045 = vmatprep.subr.mxu0 %v1662
    %5046 = vmatpush1.msra.mxu0 %v1661
    %5047 = vmatprep.subr.mxu0 %v1664
    %5048 = vmatpush1.msra.mxu0 %v1663
    %5049 = vmatprep.subr.mxu0 %v1666
    %5050 = vmatpush1.msra.mxu0 %v1665
    %5051 = vmatprep.subr.mxu0 %v1668
    %5052 = vmatpush1.msra.mxu0 %v1667
    %5053 = vmatprep.subr.mxu0 %v1670
    %5054 = vmatpush1.msra.mxu0 %v1669
    %5055 = vmatprep.subr.mxu0 %v1672
    %5056 = vmatpush1.msra.mxu0 %v1671
    %5057 = vmatprep.subr.mxu0 %v1674
    %5058 = vmatpush1.msra.mxu0 %v1673
    %5059 = vmatprep.subr.mxu0 %v1676
    %5060 = vmatpush1.msra.mxu0 %v1675
    %5061 = vmatprep.subr.mxu0 %v1678
    %5062 = vmatpush1.msra.mxu0 %v1677
    %5063 = vmatprep.subr.mxu0 %v1680
    %5064 = vmatpush1.msra.mxu0 %v1679
    %5065 = vmatprep.subr.mxu0 %v1682
    %5066 = vmatpush1.msra.mxu0 %v1681
    %5067 = vmatprep.subr.mxu0 %v1684
    %5068 = vmatpush1.msra.mxu0 %v1683
    %5069 = vmatprep.subr.mxu0 %v1686
    %5070 = vmatpush1.msra.mxu0 %v1685
    %5071 = vmatprep.subr.mxu0 %v1688
    %5072 = vmatpush1.msra.mxu0 %v1687
    %5073 = vmatprep.subr.mxu0 %v1690
    %5074 = vmatpush1.msra.mxu0 %v1689
    %5075 = vmatprep.subr.mxu0 %v1692
    %5076 = vmatpush1.msra.mxu0 %v1691
    %5077 = vmatprep.subr.mxu0 %v1694
    %5078 = vmatpush1.msra.mxu0 %v1693
    %5079 = vmatprep.subr.mxu0 %v1696
    %5080 = vmatpush1.msra.mxu0 %v1695
    %5081 = vmatprep.subr.mxu0 %v1698
    %5082 = vmatpush1.msra.mxu0 %v1697
    %5083 = vmatprep.mubr.f32.mxu0 %v5018
    %5084 = vmatmul.mubr.f32.gmra.mrb[0].mxu0 %v5017
    %v5085 = vpop.f32.mrb[0].mxu0
    %v5086 = vadd.f32 0.0, %v5085
    %v5087 = vpop.f32.mrb[0].mxu0
    %v5088 = vadd.f32 0.0, %v5087
    %5089 = vdwg.mxu0
    %5090 = vmatprep.subr.mxu0 %v1572
    %5091 = vmatpush1.msra.mxu0 %v1571
    %5092 = vmatprep.subr.mxu0 %v1574
    %5093 = vmatpush1.msra.mxu0 %v1573
    %5094 = vmatprep.subr.mxu0 %v1576
    %5095 = vmatpush1.msra.mxu0 %v1575
    %5096 = vmatprep.subr.mxu0 %v1578
    %5097 = vmatpush1.msra.mxu0 %v1577
    %5098 = vmatprep.subr.mxu0 %v1580
    %5099 = vmatpush1.msra.mxu0 %v1579
    %5100 = vmatprep.subr.mxu0 %v1582
    %5101 = vmatpush1.msra.mxu0 %v1581
    %5102 = vmatprep.subr.mxu0 %v1584
    %5103 = vmatpush1.msra.mxu0 %v1583
    %5104 = vmatprep.subr.mxu0 %v1586
    %5105 = vmatpush1.msra.mxu0 %v1585
    %5106 = vmatprep.subr.mxu0 %v1588
    %5107 = vmatpush1.msra.mxu0 %v1587
    %5108 = vmatprep.subr.mxu0 %v1590
    %5109 = vmatpush1.msra.mxu0 %v1589
    %5110 = vmatprep.subr.mxu0 %v1592
    %5111 = vmatpush1.msra.mxu0 %v1591
    %5112 = vmatprep.subr.mxu0 %v1594
    %5113 = vmatpush1.msra.mxu0 %v1593
    %5114 = vmatprep.subr.mxu0 %v1596
    %5115 = vmatpush1.msra.mxu0 %v1595
    %5116 = vmatprep.subr.mxu0 %v1598
    %5117 = vmatpush1.msra.mxu0 %v1597
    %5118 = vmatprep.subr.mxu0 %v1600
    %5119 = vmatpush1.msra.mxu0 %v1599
    %5120 = vmatprep.subr.mxu0 %v1602
    %5121 = vmatpush1.msra.mxu0 %v1601
    %5122 = vmatprep.subr.mxu0 %v1604
    %5123 = vmatpush1.msra.mxu0 %v1603
    %5124 = vmatprep.subr.mxu0 %v1606
    %5125 = vmatpush1.msra.mxu0 %v1605
    %5126 = vmatprep.subr.mxu0 %v1608
    %5127 = vmatpush1.msra.mxu0 %v1607
    %5128 = vmatprep.subr.mxu0 %v1610
    %5129 = vmatpush1.msra.mxu0 %v1609
    %5130 = vmatprep.subr.mxu0 %v1612
    %5131 = vmatpush1.msra.mxu0 %v1611
    %5132 = vmatprep.subr.mxu0 %v1614
    %5133 = vmatpush1.msra.mxu0 %v1613
    %5134 = vmatprep.subr.mxu0 %v1616
    %5135 = vmatpush1.msra.mxu0 %v1615
    %5136 = vmatprep.subr.mxu0 %v1618
    %5137 = vmatpush1.msra.mxu0 %v1617
    %5138 = vmatprep.subr.mxu0 %v1620
    %5139 = vmatpush1.msra.mxu0 %v1619
    %5140 = vmatprep.subr.mxu0 %v1622
    %5141 = vmatpush1.msra.mxu0 %v1621
    %5142 = vmatprep.subr.mxu0 %v1624
    %5143 = vmatpush1.msra.mxu0 %v1623
    %5144 = vmatprep.subr.mxu0 %v1626
    %5145 = vmatpush1.msra.mxu0 %v1625
    %5146 = vmatprep.subr.mxu0 %v1628
    %5147 = vmatpush1.msra.mxu0 %v1627
    %5148 = vmatprep.subr.mxu0 %v1630
    %5149 = vmatpush1.msra.mxu0 %v1629
    %5150 = vmatprep.subr.mxu0 %v1632
    %5151 = vmatpush1.msra.mxu0 %v1631
    %5152 = vmatprep.subr.mxu0 %v1634
    %5153 = vmatpush1.msra.mxu0 %v1633
    %5154 = vmatprep.mubr.f32.mxu0 %v4808
    %5155 = vmatmul.mubr.f32.gmra.mrb[0].mxu0 %v4807
    %v5156 = vpop.f32.mrb[0].mxu0
    %v5157 = vadd.f32 %v5086, %v5156
    %v5158 = vpop.f32.mrb[0].mxu0
    %v5159 = vadd.f32 %v5088, %v5158
    %5160 = vdwg.mxu0
    %v5161 = vadd.f32 %v5157, %v3641
    %v5162 = vadd.f32 %v5159, %v3642
    %s5163 = scalar_lea.vmem %s1, 136
    %v5164 = vld [vmem:[%s5163] sm:$0xff]
    %s5165 = scalar_lea.vmem %s2, 136
    %v5166 = vld [vmem:[%s5165] sm:$0xff]
    %5168 = vset.pattern.permute.xlu0 0
    %5169 = vperm.xlu0 %5168, %v5164
    %v5170 = vpop.permute.xlu0 %5169
    %v5172 = vlaneseq
    %v5173 = vshrl.u32 %v5172, 7
    %v5174 = vsub.s32 0, %v5173
    %v5175 = vrot.slane %v5161, %v5174
    %v5176 = vlaneseq
    %v5177 = vshrl.u32 %v5176, 7
    %v5178 = vsub.s32 0, %v5177
    %v5179 = vrot.slane %v5162, %v5178
    %v5180 = vmul.f32 %v5170, %v5175
    %v5181 = vmul.f32 %v5170, %v5179
    %5183 = vset.pattern.permute.xlu0 0
    %5184 = vperm.xlu0 %5183, %v5166
    %v5185 = vpop.permute.xlu0 %5184
    %v5187 = vadd.f32 %v5180, %v5185
    %v5188 = vadd.f32 %v5181, %v5185
    %5189 = vset.pattern.permute.xlu0 1
    %5190 = vperm.xlu0 %5189, %v5164
    %v5191 = vpop.permute.xlu0 %5190
    %v5193 = vlaneseq
    %v5194 = vshrl.u32 %v5193, 7
    %v5195 = vsub.s32 1, %v5194
    %v5196 = vrot.slane %v5161, %v5195
    %v5197 = vlaneseq
    %v5198 = vshrl.u32 %v5197, 7
    %v5199 = vsub.s32 1, %v5198
    %v5200 = vrot.slane %v5162, %v5199
    %v5201 = vmul.f32 %v5191, %v5196
    %v5202 = vmul.f32 %v5191, %v5200
    %v5203 = vadd.f32 %v5187, %v5201
    %v5204 = vadd.f32 %v5188, %v5202
    %5205 = vset.pattern.permute.xlu0 2
    %5206 = vperm.xlu0 %5205, %v5164
    %v5207 = vpop.permute.xlu0 %5206
    %v5209 = vlaneseq
    %v5210 = vshrl.u32 %v5209, 7
    %v5211 = vsub.s32 2, %v5210
    %v5212 = vrot.slane %v5161, %v5211
    %v5213 = vlaneseq
    %v5214 = vshrl.u32 %v5213, 7
    %v5215 = vsub.s32 2, %v5214
    %v5216 = vrot.slane %v5162, %v5215
    %v5217 = vmul.f32 %v5207, %v5212
    %v5218 = vmul.f32 %v5207, %v5216
    %v5219 = vadd.f32 %v5203, %v5217
    %v5220 = vadd.f32 %v5204, %v5218
    %5221 = vset.pattern.permute.xlu0 3
    %5222 = vperm.xlu0 %5221, %v5164
    %v5223 = vpop.permute.xlu0 %5222
    %v5225 = vlaneseq
    %v5226 = vshrl.u32 %v5225, 7
    %v5227 = vsub.s32 3, %v5226
    %v5228 = vrot.slane %v5161, %v5227
    %v5229 = vlaneseq
    %v5230 = vshrl.u32 %v5229, 7
    %v5231 = vsub.s32 3, %v5230
    %v5232 = vrot.slane %v5162, %v5231
    %v5233 = vmul.f32 %v5223, %v5228
    %v5234 = vmul.f32 %v5223, %v5232
    %v5235 = vadd.f32 %v5219, %v5233
    %v5236 = vadd.f32 %v5220, %v5234
    %5237 = vset.pattern.permute.xlu0 4
    %5238 = vperm.xlu0 %5237, %v5164
    %v5239 = vpop.permute.xlu0 %5238
    %v5241 = vlaneseq
    %v5242 = vshrl.u32 %v5241, 7
    %v5243 = vsub.s32 4, %v5242
    %v5244 = vrot.slane %v5161, %v5243
    %v5245 = vlaneseq
    %v5246 = vshrl.u32 %v5245, 7
    %v5247 = vsub.s32 4, %v5246
    %v5248 = vrot.slane %v5162, %v5247
    %v5249 = vmul.f32 %v5239, %v5244
    %v5250 = vmul.f32 %v5239, %v5248
    %v5251 = vadd.f32 %v5235, %v5249
    %v5252 = vadd.f32 %v5236, %v5250
    %5253 = vset.pattern.permute.xlu0 5
    %5254 = vperm.xlu0 %5253, %v5164
    %v5255 = vpop.permute.xlu0 %5254
    %v5257 = vlaneseq
    %v5258 = vshrl.u32 %v5257, 7
    %v5259 = vsub.s32 5, %v5258
    %v5260 = vrot.slane %v5161, %v5259
    %v5261 = vlaneseq
    %v5262 = vshrl.u32 %v5261, 7
    %v5263 = vsub.s32 5, %v5262
    %v5264 = vrot.slane %v5162, %v5263
    %v5265 = vmul.f32 %v5255, %v5260
    %v5266 = vmul.f32 %v5255, %v5264
    %v5267 = vadd.f32 %v5251, %v5265
    %v5268 = vadd.f32 %v5252, %v5266
    %5269 = vset.pattern.permute.xlu0 6
    %5270 = vperm.xlu0 %5269, %v5164
    %v5271 = vpop.permute.xlu0 %5270
    %v5273 = vlaneseq
    %v5274 = vshrl.u32 %v5273, 7
    %v5275 = vsub.s32 6, %v5274
    %v5276 = vrot.slane %v5161, %v5275
    %v5277 = vlaneseq
    %v5278 = vshrl.u32 %v5277, 7
    %v5279 = vsub.s32 6, %v5278
    %v5280 = vrot.slane %v5162, %v5279
    %v5281 = vmul.f32 %v5271, %v5276
    %v5282 = vmul.f32 %v5271, %v5280
    %v5283 = vadd.f32 %v5267, %v5281
    %v5284 = vadd.f32 %v5268, %v5282
    %5285 = vset.pattern.permute.xlu0 7
    %5286 = vperm.xlu0 %5285, %v5164
    %v5287 = vpop.permute.xlu0 %5286
    %v5289 = vlaneseq
    %v5290 = vshrl.u32 %v5289, 7
    %v5291 = vsub.s32 7, %v5290
    %v5292 = vrot.slane %v5161, %v5291
    %v5293 = vlaneseq
    %v5294 = vshrl.u32 %v5293, 7
    %v5295 = vsub.s32 7, %v5294
    %v5296 = vrot.slane %v5162, %v5295
    %v5297 = vmul.f32 %v5287, %v5292
    %v5298 = vmul.f32 %v5287, %v5296
    %v5299 = vadd.f32 %v5283, %v5297
    %v5300 = vadd.f32 %v5284, %v5298
    %v5301 = vadd.f32 %v5299, %v3641
    %v5302 = vadd.f32 %v5300, %v3642
    %s5303 = scalar_lea.vmem %s1, 144
    %v5304 = vld [vmem:[%s5303] sm:$0xff]
    %s5305 = scalar_lea.vmem %s2, 144
    %v5306 = vld [vmem:[%s5305] sm:$0xff]
    %5308 = vset.pattern.permute.xlu0 0
    %5309 = vperm.xlu0 %5308, %v5304
    %v5310 = vpop.permute.xlu0 %5309
    %v5312 = vlaneseq
    %v5313 = vshrl.u32 %v5312, 7
    %v5314 = vsub.s32 0, %v5313
    %v5315 = vrot.slane %v5301, %v5314
    %v5316 = vlaneseq
    %v5317 = vshrl.u32 %v5316, 7
    %v5318 = vsub.s32 0, %v5317
    %v5319 = vrot.slane %v5302, %v5318
    %v5320 = vmul.f32 %v5310, %v5315
    %v5321 = vmul.f32 %v5310, %v5319
    %5323 = vset.pattern.permute.xlu0 0
    %5324 = vperm.xlu0 %5323, %v5306
    %v5325 = vpop.permute.xlu0 %5324
    %v5327 = vadd.f32 %v5320, %v5325
    %v5328 = vadd.f32 %v5321, %v5325
    %5329 = vset.pattern.permute.xlu0 1
    %5330 = vperm.xlu0 %5329, %v5304
    %v5331 = vpop.permute.xlu0 %5330
    %v5333 = vlaneseq
    %v5334 = vshrl.u32 %v5333, 7
    %v5335 = vsub.s32 1, %v5334
    %v5336 = vrot.slane %v5301, %v5335
    %v5337 = vlaneseq
    %v5338 = vshrl.u32 %v5337, 7
    %v5339 = vsub.s32 1, %v5338
    %v5340 = vrot.slane %v5302, %v5339
    %v5341 = vmul.f32 %v5331, %v5336
    %v5342 = vmul.f32 %v5331, %v5340
    %v5343 = vadd.f32 %v5327, %v5341
    %v5344 = vadd.f32 %v5328, %v5342
    %5345 = vset.pattern.permute.xlu0 2
    %5346 = vperm.xlu0 %5345, %v5304
    %v5347 = vpop.permute.xlu0 %5346
    %v5349 = vlaneseq
    %v5350 = vshrl.u32 %v5349, 7
    %v5351 = vsub.s32 2, %v5350
    %v5352 = vrot.slane %v5301, %v5351
    %v5353 = vlaneseq
    %v5354 = vshrl.u32 %v5353, 7
    %v5355 = vsub.s32 2, %v5354
    %v5356 = vrot.slane %v5302, %v5355
    %v5357 = vmul.f32 %v5347, %v5352
    %v5358 = vmul.f32 %v5347, %v5356
    %v5359 = vadd.f32 %v5343, %v5357
    %v5360 = vadd.f32 %v5344, %v5358
    %5361 = vset.pattern.permute.xlu0 3
    %5362 = vperm.xlu0 %5361, %v5304
    %v5363 = vpop.permute.xlu0 %5362
    %v5365 = vlaneseq
    %v5366 = vshrl.u32 %v5365, 7
    %v5367 = vsub.s32 3, %v5366
    %v5368 = vrot.slane %v5301, %v5367
    %v5369 = vlaneseq
    %v5370 = vshrl.u32 %v5369, 7
    %v5371 = vsub.s32 3, %v5370
    %v5372 = vrot.slane %v5302, %v5371
    %v5373 = vmul.f32 %v5363, %v5368
    %v5374 = vmul.f32 %v5363, %v5372
    %v5375 = vadd.f32 %v5359, %v5373
    %v5376 = vadd.f32 %v5360, %v5374
    %5377 = vset.pattern.permute.xlu0 4
    %5378 = vperm.xlu0 %5377, %v5304
    %v5379 = vpop.permute.xlu0 %5378
    %v5381 = vlaneseq
    %v5382 = vshrl.u32 %v5381, 7
    %v5383 = vsub.s32 4, %v5382
    %v5384 = vrot.slane %v5301, %v5383
    %v5385 = vlaneseq
    %v5386 = vshrl.u32 %v5385, 7
    %v5387 = vsub.s32 4, %v5386
    %v5388 = vrot.slane %v5302, %v5387
    %v5389 = vmul.f32 %v5379, %v5384
    %v5390 = vmul.f32 %v5379, %v5388
    %v5391 = vadd.f32 %v5375, %v5389
    %v5392 = vadd.f32 %v5376, %v5390
    %5393 = vset.pattern.permute.xlu0 5
    %5394 = vperm.xlu0 %5393, %v5304
    %v5395 = vpop.permute.xlu0 %5394
    %v5397 = vlaneseq
    %v5398 = vshrl.u32 %v5397, 7
    %v5399 = vsub.s32 5, %v5398
    %v5400 = vrot.slane %v5301, %v5399
    %v5401 = vlaneseq
    %v5402 = vshrl.u32 %v5401, 7
    %v5403 = vsub.s32 5, %v5402
    %v5404 = vrot.slane %v5302, %v5403
    %v5405 = vmul.f32 %v5395, %v5400
    %v5406 = vmul.f32 %v5395, %v5404
    %v5407 = vadd.f32 %v5391, %v5405
    %v5408 = vadd.f32 %v5392, %v5406
    %5409 = vset.pattern.permute.xlu0 6
    %5410 = vperm.xlu0 %5409, %v5304
    %v5411 = vpop.permute.xlu0 %5410
    %v5413 = vlaneseq
    %v5414 = vshrl.u32 %v5413, 7
    %v5415 = vsub.s32 6, %v5414
    %v5416 = vrot.slane %v5301, %v5415
    %v5417 = vlaneseq
    %v5418 = vshrl.u32 %v5417, 7
    %v5419 = vsub.s32 6, %v5418
    %v5420 = vrot.slane %v5302, %v5419
    %v5421 = vmul.f32 %v5411, %v5416
    %v5422 = vmul.f32 %v5411, %v5420
    %v5423 = vadd.f32 %v5407, %v5421
    %v5424 = vadd.f32 %v5408, %v5422
    %5425 = vset.pattern.permute.xlu0 7
    %5426 = vperm.xlu0 %5425, %v5304
    %v5427 = vpop.permute.xlu0 %5426
    %v5429 = vlaneseq
    %v5430 = vshrl.u32 %v5429, 7
    %v5431 = vsub.s32 7, %v5430
    %v5432 = vrot.slane %v5301, %v5431
    %v5433 = vlaneseq
    %v5434 = vshrl.u32 %v5433, 7
    %v5435 = vsub.s32 7, %v5434
    %v5436 = vrot.slane %v5302, %v5435
    %v5437 = vmul.f32 %v5427, %v5432
    %v5438 = vmul.f32 %v5427, %v5436
    %v5439 = vadd.f32 %v5423, %v5437
    %v5440 = vadd.f32 %v5424, %v5438
    %5441 = vmatprep.subr.mxu0 %v206
    %5442 = vmatpush1.msra.mxu0 %v205
    %5443 = vmatprep.subr.mxu0 %v208
    %5444 = vmatpush1.msra.mxu0 %v207
    %5445 = vmatprep.subr.mxu0 %v210
    %5446 = vmatpush1.msra.mxu0 %v209
    %5447 = vmatprep.subr.mxu0 %v212
    %5448 = vmatpush1.msra.mxu0 %v211
    %5449 = vmatprep.subr.mxu0 %v214
    %5450 = vmatpush1.msra.mxu0 %v213
    %5451 = vmatprep.subr.mxu0 %v216
    %5452 = vmatpush1.msra.mxu0 %v215
    %5453 = vmatprep.subr.mxu0 %v218
    %5454 = vmatpush1.msra.mxu0 %v217
    %5455 = vmatprep.subr.mxu0 %v220
    %5456 = vmatpush1.msra.mxu0 %v219
    %5457 = vmatprep.subr.mxu0 %v222
    %5458 = vmatpush1.msra.mxu0 %v221
    %5459 = vmatprep.subr.mxu0 %v224
    %5460 = vmatpush1.msra.mxu0 %v223
    %5461 = vmatprep.subr.mxu0 %v226
    %5462 = vmatpush1.msra.mxu0 %v225
    %5463 = vmatprep.subr.mxu0 %v228
    %5464 = vmatpush1.msra.mxu0 %v227
    %5465 = vmatprep.subr.mxu0 %v230
    %5466 = vmatpush1.msra.mxu0 %v229
    %5467 = vmatprep.subr.mxu0 %v232
    %5468 = vmatpush1.msra.mxu0 %v231
    %5469 = vmatprep.subr.mxu0 %v234
    %5470 = vmatpush1.msra.mxu0 %v233
    %5471 = vmatprep.subr.mxu0 %v236
    %5472 = vmatpush1.msra.mxu0 %v235
    %5473 = vmatprep.subr.mxu0 %v238
    %5474 = vmatpush1.msra.mxu0 %v237
    %5475 = vmatprep.subr.mxu0 %v240
    %5476 = vmatpush1.msra.mxu0 %v239
    %5477 = vmatprep.subr.mxu0 %v242
    %5478 = vmatpush1.msra.mxu0 %v241
    %5479 = vmatprep.subr.mxu0 %v244
    %5480 = vmatpush1.msra.mxu0 %v243
    %5481 = vmatprep.subr.mxu0 %v246
    %5482 = vmatpush1.msra.mxu0 %v245
    %5483 = vmatprep.subr.mxu0 %v248
    %5484 = vmatpush1.msra.mxu0 %v247
    %5485 = vmatprep.subr.mxu0 %v250
    %5486 = vmatpush1.msra.mxu0 %v249
    %5487 = vmatprep.subr.mxu0 %v252
    %5488 = vmatpush1.msra.mxu0 %v251
    %5489 = vmatprep.subr.mxu0 %v254
    %5490 = vmatpush1.msra.mxu0 %v253
    %5491 = vmatprep.subr.mxu0 %v256
    %5492 = vmatpush1.msra.mxu0 %v255
    %5493 = vmatprep.subr.mxu0 %v258
    %5494 = vmatpush1.msra.mxu0 %v257
    %5495 = vmatprep.subr.mxu0 %v260
    %5496 = vmatpush1.msra.mxu0 %v259
    %5497 = vmatprep.subr.mxu0 %v262
    %5498 = vmatpush1.msra.mxu0 %v261
    %5499 = vmatprep.subr.mxu0 %v264
    %5500 = vmatpush1.msra.mxu0 %v263
    %5501 = vmatprep.subr.mxu0 %v266
    %5502 = vmatpush1.msra.mxu0 %v265
    %5503 = vmatprep.subr.mxu0 %v268
    %5504 = vmatpush1.msra.mxu0 %v267
    %5505 = vmatprep.mubr.f32.mxu0 %v5440
    %5506 = vmatmul.mubr.f32.gmra.mrb[0].mxu0 %v5439
    %v5507 = vpop.f32.mrb[0].mxu0
    %v5508 = vadd.f32 0.0, %v5507
    %v5509 = vpop.f32.mrb[0].mxu0
    %v5510 = vadd.f32 0.0, %v5509
    %5511 = vdwg.mxu0
    %5512 = vmatprep.subr.mxu0 %v341
    %5513 = vmatpush1.msra.mxu0 %v340
    %5514 = vmatprep.subr.mxu0 %v343
    %5515 = vmatpush1.msra.mxu0 %v342
    %5516 = vmatprep.subr.mxu0 %v345
    %5517 = vmatpush1.msra.mxu0 %v344
    %5518 = vmatprep.subr.mxu0 %v347
    %5519 = vmatpush1.msra.mxu0 %v346
    %5520 = vmatprep.subr.mxu0 %v349
    %5521 = vmatpush1.msra.mxu0 %v348
    %5522 = vmatprep.subr.mxu0 %v351
    %5523 = vmatpush1.msra.mxu0 %v350
    %5524 = vmatprep.subr.mxu0 %v353
    %5525 = vmatpush1.msra.mxu0 %v352
    %5526 = vmatprep.subr.mxu0 %v355
    %5527 = vmatpush1.msra.mxu0 %v354
    %5528 = vmatprep.subr.mxu0 %v357
    %5529 = vmatpush1.msra.mxu0 %v356
    %5530 = vmatprep.subr.mxu0 %v359
    %5531 = vmatpush1.msra.mxu0 %v358
    %5532 = vmatprep.subr.mxu0 %v361
    %5533 = vmatpush1.msra.mxu0 %v360
    %5534 = vmatprep.subr.mxu0 %v363
    %5535 = vmatpush1.msra.mxu0 %v362
    %5536 = vmatprep.subr.mxu0 %v365
    %5537 = vmatpush1.msra.mxu0 %v364
    %5538 = vmatprep.subr.mxu0 %v367
    %5539 = vmatpush1.msra.mxu0 %v366
    %5540 = vmatprep.subr.mxu0 %v369
    %5541 = vmatpush1.msra.mxu0 %v368
    %5542 = vmatprep.subr.mxu0 %v371
    %5543 = vmatpush1.msra.mxu0 %v370
    %5544 = vmatprep.subr.mxu0 %v373
    %5545 = vmatpush1.msra.mxu0 %v372
    %5546 = vmatprep.subr.mxu0 %v375
    %5547 = vmatpush1.msra.mxu0 %v374
    %5548 = vmatprep.subr.mxu0 %v377
    %5549 = vmatpush1.msra.mxu0 %v376
    %5550 = vmatprep.subr.mxu0 %v379
    %5551 = vmatpush1.msra.mxu0 %v378
    %5552 = vmatprep.subr.mxu0 %v381
    %5553 = vmatpush1.msra.mxu0 %v380
    %5554 = vmatprep.subr.mxu0 %v383
    %5555 = vmatpush1.msra.mxu0 %v382
    %5556 = vmatprep.subr.mxu0 %v385
    %5557 = vmatpush1.msra.mxu0 %v384
    %5558 = vmatprep.subr.mxu0 %v387
    %5559 = vmatpush1.msra.mxu0 %v386
    %5560 = vmatprep.subr.mxu0 %v389
    %5561 = vmatpush1.msra.mxu0 %v388
    %5562 = vmatprep.subr.mxu0 %v391
    %5563 = vmatpush1.msra.mxu0 %v390
    %5564 = vmatprep.subr.mxu0 %v393
    %5565 = vmatpush1.msra.mxu0 %v392
    %5566 = vmatprep.subr.mxu0 %v395
    %5567 = vmatpush1.msra.mxu0 %v394
    %5568 = vmatprep.subr.mxu0 %v397
    %5569 = vmatpush1.msra.mxu0 %v396
    %5570 = vmatprep.subr.mxu0 %v399
    %5571 = vmatpush1.msra.mxu0 %v398
    %5572 = vmatprep.subr.mxu0 %v401
    %5573 = vmatpush1.msra.mxu0 %v400
    %5574 = vmatprep.subr.mxu0 %v403
    %5575 = vmatpush1.msra.mxu0 %v402
    %5576 = vmatprep.mubr.f32.mxu0 %v5440
    %5577 = vmatmul.mubr.f32.gmra.mrb[0].mxu0 %v5439
    %v5578 = vpop.f32.mrb[0].mxu0
    %v5579 = vadd.f32 0.0, %v5578
    %v5580 = vpop.f32.mrb[0].mxu0
    %v5581 = vadd.f32 0.0, %v5580
    %5582 = vdwg.mxu0
    %v5583 = vmul.f32 %v5508, %v5508
    %v5584 = vmul.f32 %v5510, %v5510
    %v5585 = vmul.f32 %v5579, %v5579
    %v5586 = vmul.f32 %v5581, %v5581
    %v5587 = vadd.f32 %v5583, %v5585
    %v5588 = vadd.f32 %v5584, %v5586
    %v5589 = vrsqrt.pop %v5587
    %v5590 = vmul.f32 %v5587, %v5589
    %vm5591 = vcmp.eq.f32.partialorder %v5587, inf
    %v5592 = vsel %vm5591, %v5587, %v5590
    %vm5593 = vcmp.eq.f32.partialorder %v5587, 0.0
    %v5594 = vand.u32 %v5587, 2147483648
    %v5595 = vsel %vm5593, %v5594, %v5592
    %v5596 = vrsqrt.pop %v5588
    %v5597 = vmul.f32 %v5588, %v5596
    %vm5598 = vcmp.eq.f32.partialorder %v5588, inf
    %v5599 = vsel %vm5598, %v5588, %v5597
    %vm5600 = vcmp.eq.f32.partialorder %v5588, 0.0
    %v5601 = vand.u32 %v5588, 2147483648
    %v5602 = vsel %vm5600, %v5601, %v5599
    %v5603 = vand.u32 2147483647, %v5508
    %v5604 = vand.u32 2147483647, %v5579
    %v5605 = vmin.f32 %v5603, %v5604
    %v5606 = vmax.f32 %v5603, %v5604
    %v5607 = vrcp.pop %v5606
    %v5608 = vmul.f32 %v5605, %v5607
    %v5609 = vmul.f32 %v5608, %v5608
    %v5610 = vmul.f32 0.002785687, %v5609
    %v5611 = vadd.f32 %v5610, -0.015866
    %v5612 = vmul.f32 %v5611, %v5609
    %v5613 = vadd.f32 %v5612, 0.04247222
    %v5614 = vmul.f32 %v5613, %v5609
    %v5615 = vadd.f32 %v5614, -0.074975304
    %v5616 = vmul.f32 %v5615, %v5609
    %v5617 = vadd.f32 %v5616, 0.1064488
    %v5618 = vmul.f32 %v5617, %v5609
    %v5619 = vadd.f32 %v5618, -0.14207031
    %v5620 = vmul.f32 %v5619, %v5609
    %v5621 = vadd.f32 %v5620, 0.19993454
    %v5622 = vmul.f32 %v5621, %v5609
    %v5623 = vadd.f32 %v5622, -0.33333147
    %v5624 = vmul.f32 %v5623, %v5609
    %v5625 = vmul.f32 %v5624, %v5608
    %v5626 = vadd.f32 %v5625, %v5608
    %vm5627 = vcmp.gt.f32.partialorder %v5604, %v5603
    %v5628 = vsub.f32 1.5707964, %v5626
    %v5629 = vsel %vm5627, %v5628, %v5626
    %vm5630 = vcmp.lt.f32.partialorder %v5508, 0.0
    %v5631 = vsub.f32 3.1415927, %v5629
    %v5632 = vsel %vm5630, %v5631, %v5629
    %vm5633 = vcmp.lt.s32.totalorder %v5508, 0
    %v5634 = vsel %vm5633, 3.1415927, 0.0
    %vm5635 = vcmp.eq.f32.partialorder %v5579, 0.0
    %v5636 = vsel %vm5635, %v5634, %v5632
    %vm5637 = vcmp.ne.f32.partialorder %v5508, %v5508
    %vm5638 = vcmp.ne.f32.partialorder %v5579, %v5579
    %vm5639 = vmor %vm5637, %vm5638
    %v5640 = vsel %vm5639, nan, %v5636
    %vm5641 = vcmp.lt.f32.partialorder %v5508, 0.0
    %v5642 = vsel %vm5641, 2.3561945, 0.7853982
    %vm5643 = vcmp.eq.s32.totalorder %v5603, inf
    %vm5644 = vcmp.eq.s32.totalorder %v5604, inf
    %vm5645 = vmand %vm5643, %vm5644
    %v5646 = vsel %vm5645, %v5642, %v5640
    %v5647 = vand.u32 2147483647, %v5646
    %v5648 = vand.u32 %v5579, 2147483648
    %v5649 = vor.u32 %v5647, %v5648
    %v5650 = vand.u32 2147483647, %v5510
    %v5651 = vand.u32 2147483647, %v5581
    %v5652 = vmin.f32 %v5650, %v5651
    %v5653 = vmax.f32 %v5650, %v5651
    %v5654 = vrcp.pop %v5653
    %v5655 = vmul.f32 %v5652, %v5654
    %v5656 = vmul.f32 %v5655, %v5655
    %v5657 = vmul.f32 0.002785687, %v5656
    %v5658 = vadd.f32 %v5657, -0.015866
    %v5659 = vmul.f32 %v5658, %v5656
    %v5660 = vadd.f32 %v5659, 0.04247222
    %v5661 = vmul.f32 %v5660, %v5656
    %v5662 = vadd.f32 %v5661, -0.074975304
    %v5663 = vmul.f32 %v5662, %v5656
    %v5664 = vadd.f32 %v5663, 0.1064488
    %v5665 = vmul.f32 %v5664, %v5656
    %v5666 = vadd.f32 %v5665, -0.14207031
    %v5667 = vmul.f32 %v5666, %v5656
    %v5668 = vadd.f32 %v5667, 0.19993454
    %v5669 = vmul.f32 %v5668, %v5656
    %v5670 = vadd.f32 %v5669, -0.33333147
    %v5671 = vmul.f32 %v5670, %v5656
    %v5672 = vmul.f32 %v5671, %v5655
    %v5673 = vadd.f32 %v5672, %v5655
    %vm5674 = vcmp.gt.f32.partialorder %v5651, %v5650
    %v5675 = vsub.f32 1.5707964, %v5673
    %v5676 = vsel %vm5674, %v5675, %v5673
    %vm5677 = vcmp.lt.f32.partialorder %v5510, 0.0
    %v5678 = vsub.f32 3.1415927, %v5676
    %v5679 = vsel %vm5677, %v5678, %v5676
    %vm5680 = vcmp.lt.s32.totalorder %v5510, 0
    %v5681 = vsel %vm5680, 3.1415927, 0.0
    %vm5682 = vcmp.eq.f32.partialorder %v5581, 0.0
    %v5683 = vsel %vm5682, %v5681, %v5679
    %vm5684 = vcmp.ne.f32.partialorder %v5510, %v5510
    %vm5685 = vcmp.ne.f32.partialorder %v5581, %v5581
    %vm5686 = vmor %vm5684, %vm5685
    %v5687 = vsel %vm5686, nan, %v5683
    %vm5688 = vcmp.lt.f32.partialorder %v5510, 0.0
    %v5689 = vsel %vm5688, 2.3561945, 0.7853982
    %vm5690 = vcmp.eq.s32.totalorder %v5650, inf
    %vm5691 = vcmp.eq.s32.totalorder %v5651, inf
    %vm5692 = vmand %vm5690, %vm5691
    %v5693 = vsel %vm5692, %v5689, %v5687
    %v5694 = vand.u32 2147483647, %v5693
    %v5695 = vand.u32 %v5581, 2147483648
    %v5696 = vor.u32 %v5694, %v5695
    %s5697 = scalar_lea.vmem %s1, 152
    %v5698 = vld [vmem:[%s5697] sm:$0xff]
    %s5699 = scalar_lea.vmem %s2, 152
    %v5700 = vld [vmem:[%s5699] sm:$0xff]
    %5702 = vset.pattern.permute.xlu0 0
    %5703 = vperm.xlu0 %5702, %v5698
    %v5704 = vpop.permute.xlu0 %5703
    %v5706 = vlaneseq
    %v5707 = vshrl.u32 %v5706, 7
    %v5708 = vsub.s32 0, %v5707
    %v5709 = vrot.slane %v5595, %v5708
    %v5710 = vlaneseq
    %v5711 = vshrl.u32 %v5710, 7
    %v5712 = vsub.s32 0, %v5711
    %v5713 = vrot.slane %v5602, %v5712
    %v5714 = vmul.f32 %v5704, %v5709
    %v5715 = vmul.f32 %v5704, %v5713
    %5717 = vset.pattern.permute.xlu0 0
    %5718 = vperm.xlu0 %5717, %v5700
    %v5719 = vpop.permute.xlu0 %5718
    %v5721 = vadd.f32 %v5714, %v5719
    %v5722 = vadd.f32 %v5715, %v5719
    %5723 = vset.pattern.permute.xlu0 1
    %5724 = vperm.xlu0 %5723, %v5698
    %v5725 = vpop.permute.xlu0 %5724
    %v5727 = vlaneseq
    %v5728 = vshrl.u32 %v5727, 7
    %v5729 = vsub.s32 1, %v5728
    %v5730 = vrot.slane %v5595, %v5729
    %v5731 = vlaneseq
    %v5732 = vshrl.u32 %v5731, 7
    %v5733 = vsub.s32 1, %v5732
    %v5734 = vrot.slane %v5602, %v5733
    %v5735 = vmul.f32 %v5725, %v5730
    %v5736 = vmul.f32 %v5725, %v5734
    %v5737 = vadd.f32 %v5721, %v5735
    %v5738 = vadd.f32 %v5722, %v5736
    %5739 = vset.pattern.permute.xlu0 2
    %5740 = vperm.xlu0 %5739, %v5698
    %v5741 = vpop.permute.xlu0 %5740
    %v5743 = vlaneseq
    %v5744 = vshrl.u32 %v5743, 7
    %v5745 = vsub.s32 2, %v5744
    %v5746 = vrot.slane %v5595, %v5745
    %v5747 = vlaneseq
    %v5748 = vshrl.u32 %v5747, 7
    %v5749 = vsub.s32 2, %v5748
    %v5750 = vrot.slane %v5602, %v5749
    %v5751 = vmul.f32 %v5741, %v5746
    %v5752 = vmul.f32 %v5741, %v5750
    %v5753 = vadd.f32 %v5737, %v5751
    %v5754 = vadd.f32 %v5738, %v5752
    %5755 = vset.pattern.permute.xlu0 3
    %5756 = vperm.xlu0 %5755, %v5698
    %v5757 = vpop.permute.xlu0 %5756
    %v5759 = vlaneseq
    %v5760 = vshrl.u32 %v5759, 7
    %v5761 = vsub.s32 3, %v5760
    %v5762 = vrot.slane %v5595, %v5761
    %v5763 = vlaneseq
    %v5764 = vshrl.u32 %v5763, 7
    %v5765 = vsub.s32 3, %v5764
    %v5766 = vrot.slane %v5602, %v5765
    %v5767 = vmul.f32 %v5757, %v5762
    %v5768 = vmul.f32 %v5757, %v5766
    %v5769 = vadd.f32 %v5753, %v5767
    %v5770 = vadd.f32 %v5754, %v5768
    %5771 = vset.pattern.permute.xlu0 4
    %5772 = vperm.xlu0 %5771, %v5698
    %v5773 = vpop.permute.xlu0 %5772
    %v5775 = vlaneseq
    %v5776 = vshrl.u32 %v5775, 7
    %v5777 = vsub.s32 4, %v5776
    %v5778 = vrot.slane %v5595, %v5777
    %v5779 = vlaneseq
    %v5780 = vshrl.u32 %v5779, 7
    %v5781 = vsub.s32 4, %v5780
    %v5782 = vrot.slane %v5602, %v5781
    %v5783 = vmul.f32 %v5773, %v5778
    %v5784 = vmul.f32 %v5773, %v5782
    %v5785 = vadd.f32 %v5769, %v5783
    %v5786 = vadd.f32 %v5770, %v5784
    %5787 = vset.pattern.permute.xlu0 5
    %5788 = vperm.xlu0 %5787, %v5698
    %v5789 = vpop.permute.xlu0 %5788
    %v5791 = vlaneseq
    %v5792 = vshrl.u32 %v5791, 7
    %v5793 = vsub.s32 5, %v5792
    %v5794 = vrot.slane %v5595, %v5793
    %v5795 = vlaneseq
    %v5796 = vshrl.u32 %v5795, 7
    %v5797 = vsub.s32 5, %v5796
    %v5798 = vrot.slane %v5602, %v5797
    %v5799 = vmul.f32 %v5789, %v5794
    %v5800 = vmul.f32 %v5789, %v5798
    %v5801 = vadd.f32 %v5785, %v5799
    %v5802 = vadd.f32 %v5786, %v5800
    %5803 = vset.pattern.permute.xlu0 6
    %5804 = vperm.xlu0 %5803, %v5698
    %v5805 = vpop.permute.xlu0 %5804
    %v5807 = vlaneseq
    %v5808 = vshrl.u32 %v5807, 7
    %v5809 = vsub.s32 6, %v5808
    %v5810 = vrot.slane %v5595, %v5809
    %v5811 = vlaneseq
    %v5812 = vshrl.u32 %v5811, 7
    %v5813 = vsub.s32 6, %v5812
    %v5814 = vrot.slane %v5602, %v5813
    %v5815 = vmul.f32 %v5805, %v5810
    %v5816 = vmul.f32 %v5805, %v5814
    %v5817 = vadd.f32 %v5801, %v5815
    %v5818 = vadd.f32 %v5802, %v5816
    %5819 = vset.pattern.permute.xlu0 7
    %5820 = vperm.xlu0 %5819, %v5698
    %v5821 = vpop.permute.xlu0 %5820
    %v5823 = vlaneseq
    %v5824 = vshrl.u32 %v5823, 7
    %v5825 = vsub.s32 7, %v5824
    %v5826 = vrot.slane %v5595, %v5825
    %v5827 = vlaneseq
    %v5828 = vshrl.u32 %v5827, 7
    %v5829 = vsub.s32 7, %v5828
    %v5830 = vrot.slane %v5602, %v5829
    %v5831 = vmul.f32 %v5821, %v5826
    %v5832 = vmul.f32 %v5821, %v5830
    %v5833 = vadd.f32 %v5817, %v5831
    %v5834 = vadd.f32 %v5818, %v5832
    %vm5835 = vcmp.ge.f32.partialorder %v5833, 0.0
    %vm5836 = vcmp.ge.f32.partialorder %v5834, 0.0
    %v5837 = vmul.f32 %v5833, 0.1
    %v5838 = vmul.f32 %v5834, 0.1
    %v5839 = vsel %vm5835, %v5833, %v5837
    %v5840 = vsel %vm5836, %v5834, %v5838
    %s5841 = scalar_lea.vmem %s1, 160
    %v5842 = vld [vmem:[%s5841] sm:$0xff]
    %s5843 = scalar_lea.vmem %s2, 160
    %v5844 = vld [vmem:[%s5843] sm:$0xff]
    %5846 = vset.pattern.permute.xlu0 0
    %5847 = vperm.xlu0 %5846, %v5842
    %v5848 = vpop.permute.xlu0 %5847
    %v5850 = vlaneseq
    %v5851 = vshrl.u32 %v5850, 7
    %v5852 = vsub.s32 0, %v5851
    %v5853 = vrot.slane %v5839, %v5852
    %v5854 = vlaneseq
    %v5855 = vshrl.u32 %v5854, 7
    %v5856 = vsub.s32 0, %v5855
    %v5857 = vrot.slane %v5840, %v5856
    %v5858 = vmul.f32 %v5848, %v5853
    %v5859 = vmul.f32 %v5848, %v5857
    %5861 = vset.pattern.permute.xlu0 0
    %5862 = vperm.xlu0 %5861, %v5844
    %v5863 = vpop.permute.xlu0 %5862
    %v5865 = vadd.f32 %v5858, %v5863
    %v5866 = vadd.f32 %v5859, %v5863
    %5867 = vset.pattern.permute.xlu0 1
    %5868 = vperm.xlu0 %5867, %v5842
    %v5869 = vpop.permute.xlu0 %5868
    %v5871 = vlaneseq
    %v5872 = vshrl.u32 %v5871, 7
    %v5873 = vsub.s32 1, %v5872
    %v5874 = vrot.slane %v5839, %v5873
    %v5875 = vlaneseq
    %v5876 = vshrl.u32 %v5875, 7
    %v5877 = vsub.s32 1, %v5876
    %v5878 = vrot.slane %v5840, %v5877
    %v5879 = vmul.f32 %v5869, %v5874
    %v5880 = vmul.f32 %v5869, %v5878
    %v5881 = vadd.f32 %v5865, %v5879
    %v5882 = vadd.f32 %v5866, %v5880
    %5883 = vset.pattern.permute.xlu0 2
    %5884 = vperm.xlu0 %5883, %v5842
    %v5885 = vpop.permute.xlu0 %5884
    %v5887 = vlaneseq
    %v5888 = vshrl.u32 %v5887, 7
    %v5889 = vsub.s32 2, %v5888
    %v5890 = vrot.slane %v5839, %v5889
    %v5891 = vlaneseq
    %v5892 = vshrl.u32 %v5891, 7
    %v5893 = vsub.s32 2, %v5892
    %v5894 = vrot.slane %v5840, %v5893
    %v5895 = vmul.f32 %v5885, %v5890
    %v5896 = vmul.f32 %v5885, %v5894
    %v5897 = vadd.f32 %v5881, %v5895
    %v5898 = vadd.f32 %v5882, %v5896
    %5899 = vset.pattern.permute.xlu0 3
    %5900 = vperm.xlu0 %5899, %v5842
    %v5901 = vpop.permute.xlu0 %5900
    %v5903 = vlaneseq
    %v5904 = vshrl.u32 %v5903, 7
    %v5905 = vsub.s32 3, %v5904
    %v5906 = vrot.slane %v5839, %v5905
    %v5907 = vlaneseq
    %v5908 = vshrl.u32 %v5907, 7
    %v5909 = vsub.s32 3, %v5908
    %v5910 = vrot.slane %v5840, %v5909
    %v5911 = vmul.f32 %v5901, %v5906
    %v5912 = vmul.f32 %v5901, %v5910
    %v5913 = vadd.f32 %v5897, %v5911
    %v5914 = vadd.f32 %v5898, %v5912
    %5915 = vset.pattern.permute.xlu0 4
    %5916 = vperm.xlu0 %5915, %v5842
    %v5917 = vpop.permute.xlu0 %5916
    %v5919 = vlaneseq
    %v5920 = vshrl.u32 %v5919, 7
    %v5921 = vsub.s32 4, %v5920
    %v5922 = vrot.slane %v5839, %v5921
    %v5923 = vlaneseq
    %v5924 = vshrl.u32 %v5923, 7
    %v5925 = vsub.s32 4, %v5924
    %v5926 = vrot.slane %v5840, %v5925
    %v5927 = vmul.f32 %v5917, %v5922
    %v5928 = vmul.f32 %v5917, %v5926
    %v5929 = vadd.f32 %v5913, %v5927
    %v5930 = vadd.f32 %v5914, %v5928
    %5931 = vset.pattern.permute.xlu0 5
    %5932 = vperm.xlu0 %5931, %v5842
    %v5933 = vpop.permute.xlu0 %5932
    %v5935 = vlaneseq
    %v5936 = vshrl.u32 %v5935, 7
    %v5937 = vsub.s32 5, %v5936
    %v5938 = vrot.slane %v5839, %v5937
    %v5939 = vlaneseq
    %v5940 = vshrl.u32 %v5939, 7
    %v5941 = vsub.s32 5, %v5940
    %v5942 = vrot.slane %v5840, %v5941
    %v5943 = vmul.f32 %v5933, %v5938
    %v5944 = vmul.f32 %v5933, %v5942
    %v5945 = vadd.f32 %v5929, %v5943
    %v5946 = vadd.f32 %v5930, %v5944
    %5947 = vset.pattern.permute.xlu0 6
    %5948 = vperm.xlu0 %5947, %v5842
    %v5949 = vpop.permute.xlu0 %5948
    %v5951 = vlaneseq
    %v5952 = vshrl.u32 %v5951, 7
    %v5953 = vsub.s32 6, %v5952
    %v5954 = vrot.slane %v5839, %v5953
    %v5955 = vlaneseq
    %v5956 = vshrl.u32 %v5955, 7
    %v5957 = vsub.s32 6, %v5956
    %v5958 = vrot.slane %v5840, %v5957
    %v5959 = vmul.f32 %v5949, %v5954
    %v5960 = vmul.f32 %v5949, %v5958
    %v5961 = vadd.f32 %v5945, %v5959
    %v5962 = vadd.f32 %v5946, %v5960
    %5963 = vset.pattern.permute.xlu0 7
    %5964 = vperm.xlu0 %5963, %v5842
    %v5965 = vpop.permute.xlu0 %5964
    %v5967 = vlaneseq
    %v5968 = vshrl.u32 %v5967, 7
    %v5969 = vsub.s32 7, %v5968
    %v5970 = vrot.slane %v5839, %v5969
    %v5971 = vlaneseq
    %v5972 = vshrl.u32 %v5971, 7
    %v5973 = vsub.s32 7, %v5972
    %v5974 = vrot.slane %v5840, %v5973
    %v5975 = vmul.f32 %v5965, %v5970
    %v5976 = vmul.f32 %v5965, %v5974
    %v5977 = vadd.f32 %v5961, %v5975
    %v5978 = vadd.f32 %v5962, %v5976
    %s5979 = scalar_lea.vmem %s1, 168
    %v5980 = vld [vmem:[%s5979] sm:$0xff]
    %s5981 = scalar_lea.vmem %s2, 168
    %v5982 = vld [vmem:[%s5981] sm:$0xff]
    %5984 = vset.pattern.permute.xlu0 0
    %5985 = vperm.xlu0 %5984, %v5980
    %v5986 = vpop.permute.xlu0 %5985
    %v5988 = vlaneseq
    %v5989 = vshrl.u32 %v5988, 7
    %v5990 = vsub.s32 0, %v5989
    %v5991 = vrot.slane %v5649, %v5990
    %v5992 = vlaneseq
    %v5993 = vshrl.u32 %v5992, 7
    %v5994 = vsub.s32 0, %v5993
    %v5995 = vrot.slane %v5696, %v5994
    %v5996 = vmul.f32 %v5986, %v5991
    %v5997 = vmul.f32 %v5986, %v5995
    %5999 = vset.pattern.permute.xlu0 0
    %6000 = vperm.xlu0 %5999, %v5982
    %v6001 = vpop.permute.xlu0 %6000
    %v6003 = vadd.f32 %v5996, %v6001
    %v6004 = vadd.f32 %v5997, %v6001
    %6005 = vset.pattern.permute.xlu0 1
    %6006 = vperm.xlu0 %6005, %v5980
    %v6007 = vpop.permute.xlu0 %6006
    %v6009 = vlaneseq
    %v6010 = vshrl.u32 %v6009, 7
    %v6011 = vsub.s32 1, %v6010
    %v6012 = vrot.slane %v5649, %v6011
    %v6013 = vlaneseq
    %v6014 = vshrl.u32 %v6013, 7
    %v6015 = vsub.s32 1, %v6014
    %v6016 = vrot.slane %v5696, %v6015
    %v6017 = vmul.f32 %v6007, %v6012
    %v6018 = vmul.f32 %v6007, %v6016
    %v6019 = vadd.f32 %v6003, %v6017
    %v6020 = vadd.f32 %v6004, %v6018
    %6021 = vset.pattern.permute.xlu0 2
    %6022 = vperm.xlu0 %6021, %v5980
    %v6023 = vpop.permute.xlu0 %6022
    %v6025 = vlaneseq
    %v6026 = vshrl.u32 %v6025, 7
    %v6027 = vsub.s32 2, %v6026
    %v6028 = vrot.slane %v5649, %v6027
    %v6029 = vlaneseq
    %v6030 = vshrl.u32 %v6029, 7
    %v6031 = vsub.s32 2, %v6030
    %v6032 = vrot.slane %v5696, %v6031
    %v6033 = vmul.f32 %v6023, %v6028
    %v6034 = vmul.f32 %v6023, %v6032
    %v6035 = vadd.f32 %v6019, %v6033
    %v6036 = vadd.f32 %v6020, %v6034
    %6037 = vset.pattern.permute.xlu0 3
    %6038 = vperm.xlu0 %6037, %v5980
    %v6039 = vpop.permute.xlu0 %6038
    %v6041 = vlaneseq
    %v6042 = vshrl.u32 %v6041, 7
    %v6043 = vsub.s32 3, %v6042
    %v6044 = vrot.slane %v5649, %v6043
    %v6045 = vlaneseq
    %v6046 = vshrl.u32 %v6045, 7
    %v6047 = vsub.s32 3, %v6046
    %v6048 = vrot.slane %v5696, %v6047
    %v6049 = vmul.f32 %v6039, %v6044
    %v6050 = vmul.f32 %v6039, %v6048
    %v6051 = vadd.f32 %v6035, %v6049
    %v6052 = vadd.f32 %v6036, %v6050
    %6053 = vset.pattern.permute.xlu0 4
    %6054 = vperm.xlu0 %6053, %v5980
    %v6055 = vpop.permute.xlu0 %6054
    %v6057 = vlaneseq
    %v6058 = vshrl.u32 %v6057, 7
    %v6059 = vsub.s32 4, %v6058
    %v6060 = vrot.slane %v5649, %v6059
    %v6061 = vlaneseq
    %v6062 = vshrl.u32 %v6061, 7
    %v6063 = vsub.s32 4, %v6062
    %v6064 = vrot.slane %v5696, %v6063
    %v6065 = vmul.f32 %v6055, %v6060
    %v6066 = vmul.f32 %v6055, %v6064
    %v6067 = vadd.f32 %v6051, %v6065
    %v6068 = vadd.f32 %v6052, %v6066
    %6069 = vset.pattern.permute.xlu0 5
    %6070 = vperm.xlu0 %6069, %v5980
    %v6071 = vpop.permute.xlu0 %6070
    %v6073 = vlaneseq
    %v6074 = vshrl.u32 %v6073, 7
    %v6075 = vsub.s32 5, %v6074
    %v6076 = vrot.slane %v5649, %v6075
    %v6077 = vlaneseq
    %v6078 = vshrl.u32 %v6077, 7
    %v6079 = vsub.s32 5, %v6078
    %v6080 = vrot.slane %v5696, %v6079
    %v6081 = vmul.f32 %v6071, %v6076
    %v6082 = vmul.f32 %v6071, %v6080
    %v6083 = vadd.f32 %v6067, %v6081
    %v6084 = vadd.f32 %v6068, %v6082
    %6085 = vset.pattern.permute.xlu0 6
    %6086 = vperm.xlu0 %6085, %v5980
    %v6087 = vpop.permute.xlu0 %6086
    %v6089 = vlaneseq
    %v6090 = vshrl.u32 %v6089, 7
    %v6091 = vsub.s32 6, %v6090
    %v6092 = vrot.slane %v5649, %v6091
    %v6093 = vlaneseq
    %v6094 = vshrl.u32 %v6093, 7
    %v6095 = vsub.s32 6, %v6094
    %v6096 = vrot.slane %v5696, %v6095
    %v6097 = vmul.f32 %v6087, %v6092
    %v6098 = vmul.f32 %v6087, %v6096
    %v6099 = vadd.f32 %v6083, %v6097
    %v6100 = vadd.f32 %v6084, %v6098
    %6101 = vset.pattern.permute.xlu0 7
    %6102 = vperm.xlu0 %6101, %v5980
    %v6103 = vpop.permute.xlu0 %6102
    %v6105 = vlaneseq
    %v6106 = vshrl.u32 %v6105, 7
    %v6107 = vsub.s32 7, %v6106
    %v6108 = vrot.slane %v5649, %v6107
    %v6109 = vlaneseq
    %v6110 = vshrl.u32 %v6109, 7
    %v6111 = vsub.s32 7, %v6110
    %v6112 = vrot.slane %v5696, %v6111
    %v6113 = vmul.f32 %v6103, %v6108
    %v6114 = vmul.f32 %v6103, %v6112
    %v6115 = vadd.f32 %v6099, %v6113
    %v6116 = vadd.f32 %v6100, %v6114
    %vm6117 = vcmp.ge.f32.partialorder %v6115, 0.0
    %vm6118 = vcmp.ge.f32.partialorder %v6116, 0.0
    %v6119 = vmul.f32 %v6115, 0.1
    %v6120 = vmul.f32 %v6116, 0.1
    %v6121 = vsel %vm6117, %v6115, %v6119
    %v6122 = vsel %vm6118, %v6116, %v6120
    %s6123 = scalar_lea.vmem %s1, 176
    %v6124 = vld [vmem:[%s6123] sm:$0xff]
    %s6125 = scalar_lea.vmem %s2, 176
    %v6126 = vld [vmem:[%s6125] sm:$0xff]
    %6128 = vset.pattern.permute.xlu0 0
    %6129 = vperm.xlu0 %6128, %v6124
    %v6130 = vpop.permute.xlu0 %6129
    %v6132 = vlaneseq
    %v6133 = vshrl.u32 %v6132, 7
    %v6134 = vsub.s32 0, %v6133
    %v6135 = vrot.slane %v6121, %v6134
    %v6136 = vlaneseq
    %v6137 = vshrl.u32 %v6136, 7
    %v6138 = vsub.s32 0, %v6137
    %v6139 = vrot.slane %v6122, %v6138
    %v6140 = vmul.f32 %v6130, %v6135
    %v6141 = vmul.f32 %v6130, %v6139
    %6143 = vset.pattern.permute.xlu0 0
    %6144 = vperm.xlu0 %6143, %v6126
    %v6145 = vpop.permute.xlu0 %6144
    %v6147 = vadd.f32 %v6140, %v6145
    %v6148 = vadd.f32 %v6141, %v6145
    %6149 = vset.pattern.permute.xlu0 1
    %6150 = vperm.xlu0 %6149, %v6124
    %v6151 = vpop.permute.xlu0 %6150
    %v6153 = vlaneseq
    %v6154 = vshrl.u32 %v6153, 7
    %v6155 = vsub.s32 1, %v6154
    %v6156 = vrot.slane %v6121, %v6155
    %v6157 = vlaneseq
    %v6158 = vshrl.u32 %v6157, 7
    %v6159 = vsub.s32 1, %v6158
    %v6160 = vrot.slane %v6122, %v6159
    %v6161 = vmul.f32 %v6151, %v6156
    %v6162 = vmul.f32 %v6151, %v6160
    %v6163 = vadd.f32 %v6147, %v6161
    %v6164 = vadd.f32 %v6148, %v6162
    %6165 = vset.pattern.permute.xlu0 2
    %6166 = vperm.xlu0 %6165, %v6124
    %v6167 = vpop.permute.xlu0 %6166
    %v6169 = vlaneseq
    %v6170 = vshrl.u32 %v6169, 7
    %v6171 = vsub.s32 2, %v6170
    %v6172 = vrot.slane %v6121, %v6171
    %v6173 = vlaneseq
    %v6174 = vshrl.u32 %v6173, 7
    %v6175 = vsub.s32 2, %v6174
    %v6176 = vrot.slane %v6122, %v6175
    %v6177 = vmul.f32 %v6167, %v6172
    %v6178 = vmul.f32 %v6167, %v6176
    %v6179 = vadd.f32 %v6163, %v6177
    %v6180 = vadd.f32 %v6164, %v6178
    %6181 = vset.pattern.permute.xlu0 3
    %6182 = vperm.xlu0 %6181, %v6124
    %v6183 = vpop.permute.xlu0 %6182
    %v6185 = vlaneseq
    %v6186 = vshrl.u32 %v6185, 7
    %v6187 = vsub.s32 3, %v6186
    %v6188 = vrot.slane %v6121, %v6187
    %v6189 = vlaneseq
    %v6190 = vshrl.u32 %v6189, 7
    %v6191 = vsub.s32 3, %v6190
    %v6192 = vrot.slane %v6122, %v6191
    %v6193 = vmul.f32 %v6183, %v6188
    %v6194 = vmul.f32 %v6183, %v6192
    %v6195 = vadd.f32 %v6179, %v6193
    %v6196 = vadd.f32 %v6180, %v6194
    %6197 = vset.pattern.permute.xlu0 4
    %6198 = vperm.xlu0 %6197, %v6124
    %v6199 = vpop.permute.xlu0 %6198
    %v6201 = vlaneseq
    %v6202 = vshrl.u32 %v6201, 7
    %v6203 = vsub.s32 4, %v6202
    %v6204 = vrot.slane %v6121, %v6203
    %v6205 = vlaneseq
    %v6206 = vshrl.u32 %v6205, 7
    %v6207 = vsub.s32 4, %v6206
    %v6208 = vrot.slane %v6122, %v6207
    %v6209 = vmul.f32 %v6199, %v6204
    %v6210 = vmul.f32 %v6199, %v6208
    %v6211 = vadd.f32 %v6195, %v6209
    %v6212 = vadd.f32 %v6196, %v6210
    %6213 = vset.pattern.permute.xlu0 5
    %6214 = vperm.xlu0 %6213, %v6124
    %v6215 = vpop.permute.xlu0 %6214
    %v6217 = vlaneseq
    %v6218 = vshrl.u32 %v6217, 7
    %v6219 = vsub.s32 5, %v6218
    %v6220 = vrot.slane %v6121, %v6219
    %v6221 = vlaneseq
    %v6222 = vshrl.u32 %v6221, 7
    %v6223 = vsub.s32 5, %v6222
    %v6224 = vrot.slane %v6122, %v6223
    %v6225 = vmul.f32 %v6215, %v6220
    %v6226 = vmul.f32 %v6215, %v6224
    %v6227 = vadd.f32 %v6211, %v6225
    %v6228 = vadd.f32 %v6212, %v6226
    %6229 = vset.pattern.permute.xlu0 6
    %6230 = vperm.xlu0 %6229, %v6124
    %v6231 = vpop.permute.xlu0 %6230
    %v6233 = vlaneseq
    %v6234 = vshrl.u32 %v6233, 7
    %v6235 = vsub.s32 6, %v6234
    %v6236 = vrot.slane %v6121, %v6235
    %v6237 = vlaneseq
    %v6238 = vshrl.u32 %v6237, 7
    %v6239 = vsub.s32 6, %v6238
    %v6240 = vrot.slane %v6122, %v6239
    %v6241 = vmul.f32 %v6231, %v6236
    %v6242 = vmul.f32 %v6231, %v6240
    %v6243 = vadd.f32 %v6227, %v6241
    %v6244 = vadd.f32 %v6228, %v6242
    %6245 = vset.pattern.permute.xlu0 7
    %6246 = vperm.xlu0 %6245, %v6124
    %v6247 = vpop.permute.xlu0 %6246
    %v6249 = vlaneseq
    %v6250 = vshrl.u32 %v6249, 7
    %v6251 = vsub.s32 7, %v6250
    %v6252 = vrot.slane %v6121, %v6251
    %v6253 = vlaneseq
    %v6254 = vshrl.u32 %v6253, 7
    %v6255 = vsub.s32 7, %v6254
    %v6256 = vrot.slane %v6122, %v6255
    %v6257 = vmul.f32 %v6247, %v6252
    %v6258 = vmul.f32 %v6247, %v6256
    %v6259 = vadd.f32 %v6243, %v6257
    %v6260 = vadd.f32 %v6244, %v6258
    %v6261 = vand.u32 2147483647, %v6259
    %vm6262 = vcmp.le.f32.partialorder %v6261, 0.7853982
    %vm6263 = vcmp.lt.s32.totalorder %v6259, 0
    %v6264 = vand.u32 %v6259, 2139095040
    %v6265 = vshrl.u32 %v6264, 23
    %v6266 = vsub.s32 %v6265, 127
    %v6267 = vand.u32 2147483647, %v6259
    %v6268 = vand.u32 %v6267, 8388607
    %v6269 = vor.u32 %v6268, 8388608
    %v6270 = vsub.s32 0, %v6269
    %v6271 = vadd.s32 %v6266, 1
    %vm6272 = vcmp.gt.s32.totalorder %v6271, 0
    %v6273 = vsel %vm6272, %v6271, 0
    %v6274 = vshrl.u32 %v6273, 5
    %v6275 = vand.u32 %v6273, 31
    %v6276 = vsub.s32 32, %v6275
    %v6277 = vshrl.u32 683565275, %v6276
    %v6278 = vshll.u32 683565275, %v6275
    %v6279 = vshrl.u32 2475754826, %v6276
    %v6280 = vor.u32 %v6278, %v6279
    %v6281 = vshll.u32 2475754826, %v6275
    %v6282 = vshrl.u32 2131351028, %v6276
    %v6283 = vor.u32 %v6281, %v6282
    %v6284 = vshll.u32 2131351028, %v6275
    %v6285 = vshrl.u32 2102212464, %v6276
    %v6286 = vor.u32 %v6284, %v6285
    %v6287 = vshll.u32 2102212464, %v6275
    %v6288 = vshrl.u32 920167782, %v6276
    %v6289 = vor.u32 %v6287, %v6288
    %v6290 = vshll.u32 920167782, %v6275
    %v6291 = vshrl.u32 1326507024, %v6276
    %v6292 = vor.u32 %v6290, %v6291
    %vm6293 = vcmp.lt.s32.totalorder %v6274, 1
    %vm6294 = vcmp.lt.s32.totalorder %v6274, 2
    %vm6295 = vcmp.lt.s32.totalorder %v6274, 3
    %vm6296 = vcmp.lt.s32.totalorder %v6274, 4
    %v6297 = vsel %vm6293, %v6277, %v6280
    %v6298 = vsel %vm6296, %v6286, 2102212464
    %v6299 = vsel %vm6295, %v6283, %v6298
    %v6300 = vsel %vm6294, %v6297, %v6299
    %v6301 = vsel %vm6293, %v6280, %v6283
    %v6302 = vsel %vm6296, %v6289, 920167782
    %v6303 = vsel %vm6295, %v6286, %v6302
    %v6304 = vsel %vm6294, %v6301, %v6303
    %v6305 = vsel %vm6293, %v6283, %v6286
    %v6306 = vsel %vm6296, %v6292, 1326507024
    %v6307 = vsel %vm6295, %v6289, %v6306
    %v6308 = vsel %vm6294, %v6305, %v6307
    %v6309 = vshll.u32 %v6269, 8
    %v6310 = vmul.u32.u64.compose %v6309, %v6308
    %v6311 = vextract.low.u32 %v6310
    %v6312 = vextract.high.u32 %v6310
    %v6313 = vmul.u32.u64.compose %v6309, %v6304
    %v6314 = vextract.low.u32 %v6313
    %v6315 = vextract.high.u32 %v6313
    %v6316 = vmul.u32 %v6309, %v6300
    %v6317 = vadd.s32 %v6312, %v6314
    %vm6318 = vc.u32 %v6312, %v6314
    %v6319 = vadd.s32 %v6315, 1
    %v6320 = vsel %vm6318, %v6319, %v6315
    %v6321 = vadd.s32 %v6316, %v6320
    %v6322 = vadd.s32 %v6321, 536870912
    %v6323 = vshrl.u32 %v6322, 30
    %v6324 = vshll.u32 %v6323, 30
    %v6325 = vsub.s32 %v6321, %v6324
    %vm6326 = vcmp.lt.s32.totalorder %v6325, 0
    %v6327 = vsub.s32 0, %v6325
    %v6328 = vsel %vm6326, %v6327, %v6325
    %v6329 = vclz %v6328
    %v6330 = vsub.s32 %v6329, 2
    %vm6331 = vcmp.gt.s32.totalorder 0, %v6330
    %v6332 = vsel %vm6331, 0, %v6330
    %v6333 = vsub.s32 32, %v6332
    %v6334 = vshll.u32 %v6325, %v6332
    %v6335 = vshrl.u32 %v6317, %v6333
    %v6336 = vor.u32 %v6334, %v6335
    %v6337 = vsub.s32 4294967266, %v6332
    %v6338 = vadd.s32 %v6337, 127
    %v6339 = vshll.u32 %v6338, 23
    %v6340 = vor.u32 4788187, %v6339
    %v6341 = vand.u32 2147483647, %v6340
    %v6343 = vcvt.s32.f32 %v6336
    %v6344 = vmul.f32 %v6343, %v6341
    %v6345 = vxor.u32 %v6344, 2147483648
    %v6346 = vsel %vm6263, %v6345, %v6344
    %v6347 = vsub.s32 4, %v6323
    %v6348 = vsel %vm6263, %v6347, %v6323
    %v6349 = vsel %vm6262, %v6259, %v6346
    %v6350 = vsel %vm6262, 0, %v6348
    %v6351 = vcosq.f32.pop %v6349
    %v6352 = vsinq.f32.pop %v6349
    %vm6353 = vweird.f32 %v6259
    %v6354 = vand.u32 %v6350, 3
    %vm6355 = vcmp.lt.s32.totalorder %v6354, 2
    %vm6356 = vcmp.eq.s32.totalorder %v6354, 0
    %v6357 = vxor.u32 %v6352, 2147483648
    %v6358 = vsel %vm6356, %v6351, %v6357
    %vm6359 = vcmp.eq.s32.totalorder %v6354, 2
    %v6360 = vxor.u32 %v6351, 2147483648
    %v6361 = vsel %vm6359, %v6360, %v6352
    %v6362 = vsel %vm6355, %v6358, %v6361
    %v6363 = vsel %vm6353, nan, %v6362
    %v6364 = vand.u32 2147483647, %v6260
    %vm6365 = vcmp.le.f32.partialorder %v6364, 0.7853982
    %vm6366 = vcmp.lt.s32.totalorder %v6260, 0
    %v6367 = vand.u32 %v6260, 2139095040
    %v6368 = vshrl.u32 %v6367, 23
    %v6369 = vsub.s32 %v6368, 127
    %v6370 = vand.u32 2147483647, %v6260
    %v6371 = vand.u32 %v6370, 8388607
    %v6372 = vor.u32 %v6371, 8388608
    %v6373 = vsub.s32 0, %v6372
    %v6374 = vadd.s32 %v6369, 1
    %vm6375 = vcmp.gt.s32.totalorder %v6374, 0
    %v6376 = vsel %vm6375, %v6374, 0
    %v6377 = vshrl.u32 %v6376, 5
    %v6378 = vand.u32 %v6376, 31
    %v6379 = vsub.s32 32, %v6378
    %v6380 = vshrl.u32 683565275, %v6379
    %v6381 = vshll.u32 683565275, %v6378
    %v6382 = vshrl.u32 2475754826, %v6379
    %v6383 = vor.u32 %v6381, %v6382
    %v6384 = vshll.u32 2475754826, %v6378
    %v6385 = vshrl.u32 2131351028, %v6379
    %v6386 = vor.u32 %v6384, %v6385
    %v6387 = vshll.u32 2131351028, %v6378
    %v6388 = vshrl.u32 2102212464, %v6379
    %v6389 = vor.u32 %v6387, %v6388
    %v6390 = vshll.u32 2102212464, %v6378
    %v6391 = vshrl.u32 920167782, %v6379
    %v6392 = vor.u32 %v6390, %v6391
    %v6393 = vshll.u32 920167782, %v6378
    %v6394 = vshrl.u32 1326507024, %v6379
    %v6395 = vor.u32 %v6393, %v6394
    %vm6396 = vcmp.lt.s32.totalorder %v6377, 1
    %vm6397 = vcmp.lt.s32.totalorder %v6377, 2
    %vm6398 = vcmp.lt.s32.totalorder %v6377, 3
    %vm6399 = vcmp.lt.s32.totalorder %v6377, 4
    %v6400 = vsel %vm6396, %v6380, %v6383
    %v6401 = vsel %vm6399, %v6389, 2102212464
    %v6402 = vsel %vm6398, %v6386, %v6401
    %v6403 = vsel %vm6397, %v6400, %v6402
    %v6404 = vsel %vm6396, %v6383, %v6386
    %v6405 = vsel %vm6399, %v6392, 920167782
    %v6406 = vsel %vm6398, %v6389, %v6405
    %v6407 = vsel %vm6397, %v6404, %v6406
    %v6408 = vsel %vm6396, %v6386, %v6389
    %v6409 = vsel %vm6399, %v6395, 1326507024
    %v6410 = vsel %vm6398, %v6392, %v6409
    %v6411 = vsel %vm6397, %v6408, %v6410
    %v6412 = vshll.u32 %v6372, 8
    %v6413 = vmul.u32.u64.compose %v6412, %v6411
    %v6414 = vextract.low.u32 %v6413
    %v6415 = vextract.high.u32 %v6413
    %v6416 = vmul.u32.u64.compose %v6412, %v6407
    %v6417 = vextract.low.u32 %v6416
    %v6418 = vextract.high.u32 %v6416
    %v6419 = vmul.u32 %v6412, %v6403
    %v6420 = vadd.s32 %v6415, %v6417
    %vm6421 = vc.u32 %v6415, %v6417
    %v6422 = vadd.s32 %v6418, 1
    %v6423 = vsel %vm6421, %v6422, %v6418
    %v6424 = vadd.s32 %v6419, %v6423
    %v6425 = vadd.s32 %v6424, 536870912
    %v6426 = vshrl.u32 %v6425, 30
    %v6427 = vshll.u32 %v6426, 30
    %v6428 = vsub.s32 %v6424, %v6427
    %vm6429 = vcmp.lt.s32.totalorder %v6428, 0
    %v6430 = vsub.s32 0, %v6428
    %v6431 = vsel %vm6429, %v6430, %v6428
    %v6432 = vclz %v6431
    %v6433 = vsub.s32 %v6432, 2
    %vm6434 = vcmp.gt.s32.totalorder 0, %v6433
    %v6435 = vsel %vm6434, 0, %v6433
    %v6436 = vsub.s32 32, %v6435
    %v6437 = vshll.u32 %v6428, %v6435
    %v6438 = vshrl.u32 %v6420, %v6436
    %v6439 = vor.u32 %v6437, %v6438
    %v6440 = vsub.s32 4294967266, %v6435
    %v6441 = vadd.s32 %v6440, 127
    %v6442 = vshll.u32 %v6441, 23
    %v6443 = vor.u32 4788187, %v6442
    %v6444 = vand.u32 2147483647, %v6443
    %v6446 = vcvt.s32.f32 %v6439
    %v6447 = vmul.f32 %v6446, %v6444
    %v6448 = vxor.u32 %v6447, 2147483648
    %v6449 = vsel %vm6366, %v6448, %v6447
    %v6450 = vsub.s32 4, %v6426
    %v6451 = vsel %vm6366, %v6450, %v6426
    %v6452 = vsel %vm6365, %v6260, %v6449
    %v6453 = vsel %vm6365, 0, %v6451
    %v6454 = vcosq.f32.pop %v6452
    %v6455 = vsinq.f32.pop %v6452
    %vm6456 = vweird.f32 %v6260
    %v6457 = vand.u32 %v6453, 3
    %vm6458 = vcmp.lt.s32.totalorder %v6457, 2
    %vm6459 = vcmp.eq.s32.totalorder %v6457, 0
    %v6460 = vxor.u32 %v6455, 2147483648
    %v6461 = vsel %vm6459, %v6454, %v6460
    %vm6462 = vcmp.eq.s32.totalorder %v6457, 2
    %v6463 = vxor.u32 %v6454, 2147483648
    %v6464 = vsel %vm6462, %v6463, %v6455
    %v6465 = vsel %vm6458, %v6461, %v6464
    %v6466 = vsel %vm6456, nan, %v6465
    %v6467 = vmul.f32 %v5977, %v6363
    %v6468 = vmul.f32 %v5978, %v6466
    %v6469 = vand.u32 2147483647, %v6259
    %vm6470 = vcmp.le.f32.partialorder %v6469, 0.7853982
    %vm6471 = vcmp.lt.s32.totalorder %v6259, 0
    %v6472 = vand.u32 %v6259, 2139095040
    %v6473 = vshrl.u32 %v6472, 23
    %v6474 = vsub.s32 %v6473, 127
    %v6475 = vand.u32 2147483647, %v6259
    %v6476 = vand.u32 %v6475, 8388607
    %v6477 = vor.u32 %v6476, 8388608
    %v6478 = vsub.s32 0, %v6477
    %v6479 = vadd.s32 %v6474, 1
    %vm6480 = vcmp.gt.s32.totalorder %v6479, 0
    %v6481 = vsel %vm6480, %v6479, 0
    %v6482 = vshrl.u32 %v6481, 5
    %v6483 = vand.u32 %v6481, 31
    %v6484 = vsub.s32 32, %v6483
    %v6485 = vshrl.u32 683565275, %v6484
    %v6486 = vshll.u32 683565275, %v6483
    %v6487 = vshrl.u32 2475754826, %v6484
    %v6488 = vor.u32 %v6486, %v6487
    %v6489 = vshll.u32 2475754826, %v6483
    %v6490 = vshrl.u32 2131351028, %v6484
    %v6491 = vor.u32 %v6489, %v6490
    %v6492 = vshll.u32 2131351028, %v6483
    %v6493 = vshrl.u32 2102212464, %v6484
    %v6494 = vor.u32 %v6492, %v6493
    %v6495 = vshll.u32 2102212464, %v6483
    %v6496 = vshrl.u32 920167782, %v6484
    %v6497 = vor.u32 %v6495, %v6496
    %v6498 = vshll.u32 920167782, %v6483
    %v6499 = vshrl.u32 1326507024, %v6484
    %v6500 = vor.u32 %v6498, %v6499
    %vm6501 = vcmp.lt.s32.totalorder %v6482, 1
    %vm6502 = vcmp.lt.s32.totalorder %v6482, 2
    %vm6503 = vcmp.lt.s32.totalorder %v6482, 3
    %vm6504 = vcmp.lt.s32.totalorder %v6482, 4
    %v6505 = vsel %vm6501, %v6485, %v6488
    %v6506 = vsel %vm6504, %v6494, 2102212464
    %v6507 = vsel %vm6503, %v6491, %v6506
    %v6508 = vsel %vm6502, %v6505, %v6507
    %v6509 = vsel %vm6501, %v6488, %v6491
    %v6510 = vsel %vm6504, %v6497, 920167782
    %v6511 = vsel %vm6503, %v6494, %v6510
    %v6512 = vsel %vm6502, %v6509, %v6511
    %v6513 = vsel %vm6501, %v6491, %v6494
    %v6514 = vsel %vm6504, %v6500, 1326507024
    %v6515 = vsel %vm6503, %v6497, %v6514
    %v6516 = vsel %vm6502, %v6513, %v6515
    %v6517 = vshll.u32 %v6477, 8
    %v6518 = vmul.u32.u64.compose %v6517, %v6516
    %v6519 = vextract.low.u32 %v6518
    %v6520 = vextract.high.u32 %v6518
    %v6521 = vmul.u32.u64.compose %v6517, %v6512
    %v6522 = vextract.low.u32 %v6521
    %v6523 = vextract.high.u32 %v6521
    %v6524 = vmul.u32 %v6517, %v6508
    %v6525 = vadd.s32 %v6520, %v6522
    %vm6526 = vc.u32 %v6520, %v6522
    %v6527 = vadd.s32 %v6523, 1
    %v6528 = vsel %vm6526, %v6527, %v6523
    %v6529 = vadd.s32 %v6524, %v6528
    %v6530 = vadd.s32 %v6529, 536870912
    %v6531 = vshrl.u32 %v6530, 30
    %v6532 = vshll.u32 %v6531, 30
    %v6533 = vsub.s32 %v6529, %v6532
    %vm6534 = vcmp.lt.s32.totalorder %v6533, 0
    %v6535 = vsub.s32 0, %v6533
    %v6536 = vsel %vm6534, %v6535, %v6533
    %v6537 = vclz %v6536
    %v6538 = vsub.s32 %v6537, 2
    %vm6539 = vcmp.gt.s32.totalorder 0, %v6538
    %v6540 = vsel %vm6539, 0, %v6538
    %v6541 = vsub.s32 32, %v6540
    %v6542 = vshll.u32 %v6533, %v6540
    %v6543 = vshrl.u32 %v6525, %v6541
    %v6544 = vor.u32 %v6542, %v6543
    %v6545 = vsub.s32 4294967266, %v6540
    %v6546 = vadd.s32 %v6545, 127
    %v6547 = vshll.u32 %v6546, 23
    %v6548 = vor.u32 4788187, %v6547
    %v6549 = vand.u32 2147483647, %v6548
    %v6551 = vcvt.s32.f32 %v6544
    %v6552 = vmul.f32 %v6551, %v6549
    %v6553 = vxor.u32 %v6552, 2147483648
    %v6554 = vsel %vm6471, %v6553, %v6552
    %v6555 = vsub.s32 4, %v6531
    %v6556 = vsel %vm6471, %v6555, %v6531
    %v6557 = vsel %vm6470, %v6259, %v6554
    %v6558 = vsel %vm6470, 0, %v6556
    %v6559 = vcosq.f32.pop %v6557
    %v6560 = vsinq.f32.pop %v6557
    %vm6561 = vweird.f32 %v6259
    %v6562 = vadd.s32 %v6558, 3
    %v6563 = vand.u32 %v6562, 3
    %vm6564 = vcmp.lt.s32.totalorder %v6563, 2
    %vm6565 = vcmp.eq.s32.totalorder %v6563, 0
    %v6566 = vxor.u32 %v6560, 2147483648
    %v6567 = vsel %vm6565, %v6559, %v6566
    %vm6568 = vcmp.eq.s32.totalorder %v6563, 2
    %v6569 = vxor.u32 %v6559, 2147483648
    %v6570 = vsel %vm6568, %v6569, %v6560
    %v6571 = vsel %vm6564, %v6567, %v6570
    %v6572 = vsel %vm6561, nan, %v6571
    %v6573 = vand.u32 2147483647, %v6260
    %vm6574 = vcmp.le.f32.partialorder %v6573, 0.7853982
    %vm6575 = vcmp.lt.s32.totalorder %v6260, 0
    %v6576 = vand.u32 %v6260, 2139095040
    %v6577 = vshrl.u32 %v6576, 23
    %v6578 = vsub.s32 %v6577, 127
    %v6579 = vand.u32 2147483647, %v6260
    %v6580 = vand.u32 %v6579, 8388607
    %v6581 = vor.u32 %v6580, 8388608
    %v6582 = vsub.s32 0, %v6581
    %v6583 = vadd.s32 %v6578, 1
    %vm6584 = vcmp.gt.s32.totalorder %v6583, 0
    %v6585 = vsel %vm6584, %v6583, 0
    %v6586 = vshrl.u32 %v6585, 5
    %v6587 = vand.u32 %v6585, 31
    %v6588 = vsub.s32 32, %v6587
    %v6589 = vshrl.u32 683565275, %v6588
    %v6590 = vshll.u32 683565275, %v6587
    %v6591 = vshrl.u32 2475754826, %v6588
    %v6592 = vor.u32 %v6590, %v6591
    %v6593 = vshll.u32 2475754826, %v6587
    %v6594 = vshrl.u32 2131351028, %v6588
    %v6595 = vor.u32 %v6593, %v6594
    %v6596 = vshll.u32 2131351028, %v6587
    %v6597 = vshrl.u32 2102212464, %v6588
    %v6598 = vor.u32 %v6596, %v6597
    %v6599 = vshll.u32 2102212464, %v6587
    %v6600 = vshrl.u32 920167782, %v6588
    %v6601 = vor.u32 %v6599, %v6600
    %v6602 = vshll.u32 920167782, %v6587
    %v6603 = vshrl.u32 1326507024, %v6588
    %v6604 = vor.u32 %v6602, %v6603
    %vm6605 = vcmp.lt.s32.totalorder %v6586, 1
    %vm6606 = vcmp.lt.s32.totalorder %v6586, 2
    %vm6607 = vcmp.lt.s32.totalorder %v6586, 3
    %vm6608 = vcmp.lt.s32.totalorder %v6586, 4
    %v6609 = vsel %vm6605, %v6589, %v6592
    %v6610 = vsel %vm6608, %v6598, 2102212464
    %v6611 = vsel %vm6607, %v6595, %v6610
    %v6612 = vsel %vm6606, %v6609, %v6611
    %v6613 = vsel %vm6605, %v6592, %v6595
    %v6614 = vsel %vm6608, %v6601, 920167782
    %v6615 = vsel %vm6607, %v6598, %v6614
    %v6616 = vsel %vm6606, %v6613, %v6615
    %v6617 = vsel %vm6605, %v6595, %v6598
    %v6618 = vsel %vm6608, %v6604, 1326507024
    %v6619 = vsel %vm6607, %v6601, %v6618
    %v6620 = vsel %vm6606, %v6617, %v6619
    %v6621 = vshll.u32 %v6581, 8
    %v6622 = vmul.u32.u64.compose %v6621, %v6620
    %v6623 = vextract.low.u32 %v6622
    %v6624 = vextract.high.u32 %v6622
    %v6625 = vmul.u32.u64.compose %v6621, %v6616
    %v6626 = vextract.low.u32 %v6625
    %v6627 = vextract.high.u32 %v6625
    %v6628 = vmul.u32 %v6621, %v6612
    %v6629 = vadd.s32 %v6624, %v6626
    %vm6630 = vc.u32 %v6624, %v6626
    %v6631 = vadd.s32 %v6627, 1
    %v6632 = vsel %vm6630, %v6631, %v6627
    %v6633 = vadd.s32 %v6628, %v6632
    %v6634 = vadd.s32 %v6633, 536870912
    %v6635 = vshrl.u32 %v6634, 30
    %v6636 = vshll.u32 %v6635, 30
    %v6637 = vsub.s32 %v6633, %v6636
    %vm6638 = vcmp.lt.s32.totalorder %v6637, 0
    %v6639 = vsub.s32 0, %v6637
    %v6640 = vsel %vm6638, %v6639, %v6637
    %v6641 = vclz %v6640
    %v6642 = vsub.s32 %v6641, 2
    %vm6643 = vcmp.gt.s32.totalorder 0, %v6642
    %v6644 = vsel %vm6643, 0, %v6642
    %v6645 = vsub.s32 32, %v6644
    %v6646 = vshll.u32 %v6637, %v6644
    %v6647 = vshrl.u32 %v6629, %v6645
    %v6648 = vor.u32 %v6646, %v6647
    %v6649 = vsub.s32 4294967266, %v6644
    %v6650 = vadd.s32 %v6649, 127
    %v6651 = vshll.u32 %v6650, 23
    %v6652 = vor.u32 4788187, %v6651
    %v6653 = vand.u32 2147483647, %v6652
    %v6655 = vcvt.s32.f32 %v6648
    %v6656 = vmul.f32 %v6655, %v6653
    %v6657 = vxor.u32 %v6656, 2147483648
    %v6658 = vsel %vm6575, %v6657, %v6656
    %v6659 = vsub.s32 4, %v6635
    %v6660 = vsel %vm6575, %v6659, %v6635
    %v6661 = vsel %vm6574, %v6260, %v6658
    %v6662 = vsel %vm6574, 0, %v6660
    %v6663 = vcosq.f32.pop %v6661
    %v6664 = vsinq.f32.pop %v6661
    %vm6665 = vweird.f32 %v6260
    %v6666 = vadd.s32 %v6662, 3
    %v6667 = vand.u32 %v6666, 3
    %vm6668 = vcmp.lt.s32.totalorder %v6667, 2
    %vm6669 = vcmp.eq.s32.totalorder %v6667, 0
    %v6670 = vxor.u32 %v6664, 2147483648
    %v6671 = vsel %vm6669, %v6663, %v6670
    %vm6672 = vcmp.eq.s32.totalorder %v6667, 2
    %v6673 = vxor.u32 %v6663, 2147483648
    %v6674 = vsel %vm6672, %v6673, %v6664
    %v6675 = vsel %vm6668, %v6671, %v6674
    %v6676 = vsel %vm6665, nan, %v6675
    %v6677 = vmul.f32 %v5977, %v6572
    %v6678 = vmul.f32 %v5978, %v6676
    %6679 = vmatprep.subr.mxu0 %v1636
    %6680 = vmatpush1.msra.mxu0 %v1635
    %6681 = vmatprep.subr.mxu0 %v1638
    %6682 = vmatpush1.msra.mxu0 %v1637
    %6683 = vmatprep.subr.mxu0 %v1640
    %6684 = vmatpush1.msra.mxu0 %v1639
    %6685 = vmatprep.subr.mxu0 %v1642
    %6686 = vmatpush1.msra.mxu0 %v1641
    %6687 = vmatprep.subr.mxu0 %v1644
    %6688 = vmatpush1.msra.mxu0 %v1643
    %6689 = vmatprep.subr.mxu0 %v1646
    %6690 = vmatpush1.msra.mxu0 %v1645
    %6691 = vmatprep.subr.mxu0 %v1648
    %6692 = vmatpush1.msra.mxu0 %v1647
    %6693 = vmatprep.subr.mxu0 %v1650
    %6694 = vmatpush1.msra.mxu0 %v1649
    %6695 = vmatprep.subr.mxu0 %v1652
    %6696 = vmatpush1.msra.mxu0 %v1651
    %6697 = vmatprep.subr.mxu0 %v1654
    %6698 = vmatpush1.msra.mxu0 %v1653
    %6699 = vmatprep.subr.mxu0 %v1656
    %6700 = vmatpush1.msra.mxu0 %v1655
    %6701 = vmatprep.subr.mxu0 %v1658
    %6702 = vmatpush1.msra.mxu0 %v1657
    %6703 = vmatprep.subr.mxu0 %v1660
    %6704 = vmatpush1.msra.mxu0 %v1659
    %6705 = vmatprep.subr.mxu0 %v1662
    %6706 = vmatpush1.msra.mxu0 %v1661
    %6707 = vmatprep.subr.mxu0 %v1664
    %6708 = vmatpush1.msra.mxu0 %v1663
    %6709 = vmatprep.subr.mxu0 %v1666
    %6710 = vmatpush1.msra.mxu0 %v1665
    %6711 = vmatprep.subr.mxu0 %v1668
    %6712 = vmatpush1.msra.mxu0 %v1667
    %6713 = vmatprep.subr.mxu0 %v1670
    %6714 = vmatpush1.msra.mxu0 %v1669
    %6715 = vmatprep.subr.mxu0 %v1672
    %6716 = vmatpush1.msra.mxu0 %v1671
    %6717 = vmatprep.subr.mxu0 %v1674
    %6718 = vmatpush1.msra.mxu0 %v1673
    %6719 = vmatprep.subr.mxu0 %v1676
    %6720 = vmatpush1.msra.mxu0 %v1675
    %6721 = vmatprep.subr.mxu0 %v1678
    %6722 = vmatpush1.msra.mxu0 %v1677
    %6723 = vmatprep.subr.mxu0 %v1680
    %6724 = vmatpush1.msra.mxu0 %v1679
    %6725 = vmatprep.subr.mxu0 %v1682
    %6726 = vmatpush1.msra.mxu0 %v1681
    %6727 = vmatprep.subr.mxu0 %v1684
    %6728 = vmatpush1.msra.mxu0 %v1683
    %6729 = vmatprep.subr.mxu0 %v1686
    %6730 = vmatpush1.msra.mxu0 %v1685
    %6731 = vmatprep.subr.mxu0 %v1688
    %6732 = vmatpush1.msra.mxu0 %v1687
    %6733 = vmatprep.subr.mxu0 %v1690
    %6734 = vmatpush1.msra.mxu0 %v1689
    %6735 = vmatprep.subr.mxu0 %v1692
    %6736 = vmatpush1.msra.mxu0 %v1691
    %6737 = vmatprep.subr.mxu0 %v1694
    %6738 = vmatpush1.msra.mxu0 %v1693
    %6739 = vmatprep.subr.mxu0 %v1696
    %6740 = vmatpush1.msra.mxu0 %v1695
    %6741 = vmatprep.subr.mxu0 %v1698
    %6742 = vmatpush1.msra.mxu0 %v1697
    %6743 = vmatprep.mubr.f32.mxu0 %v6678
    %6744 = vmatmul.mubr.f32.gmra.mrb[0].mxu0 %v6677
    %v6745 = vpop.f32.mrb[0].mxu0
    %v6746 = vadd.f32 0.0, %v6745
    %v6747 = vpop.f32.mrb[0].mxu0
    %v6748 = vadd.f32 0.0, %v6747
    %6749 = vdwg.mxu0
    %6750 = vmatprep.subr.mxu0 %v1572
    %6751 = vmatpush1.msra.mxu0 %v1571
    %6752 = vmatprep.subr.mxu0 %v1574
    %6753 = vmatpush1.msra.mxu0 %v1573
    %6754 = vmatprep.subr.mxu0 %v1576
    %6755 = vmatpush1.msra.mxu0 %v1575
    %6756 = vmatprep.subr.mxu0 %v1578
    %6757 = vmatpush1.msra.mxu0 %v1577
    %6758 = vmatprep.subr.mxu0 %v1580
    %6759 = vmatpush1.msra.mxu0 %v1579
    %6760 = vmatprep.subr.mxu0 %v1582
    %6761 = vmatpush1.msra.mxu0 %v1581
    %6762 = vmatprep.subr.mxu0 %v1584
    %6763 = vmatpush1.msra.mxu0 %v1583
    %6764 = vmatprep.subr.mxu0 %v1586
    %6765 = vmatpush1.msra.mxu0 %v1585
    %6766 = vmatprep.subr.mxu0 %v1588
    %6767 = vmatpush1.msra.mxu0 %v1587
    %6768 = vmatprep.subr.mxu0 %v1590
    %6769 = vmatpush1.msra.mxu0 %v1589
    %6770 = vmatprep.subr.mxu0 %v1592
    %6771 = vmatpush1.msra.mxu0 %v1591
    %6772 = vmatprep.subr.mxu0 %v1594
    %6773 = vmatpush1.msra.mxu0 %v1593
    %6774 = vmatprep.subr.mxu0 %v1596
    %6775 = vmatpush1.msra.mxu0 %v1595
    %6776 = vmatprep.subr.mxu0 %v1598
    %6777 = vmatpush1.msra.mxu0 %v1597
    %6778 = vmatprep.subr.mxu0 %v1600
    %6779 = vmatpush1.msra.mxu0 %v1599
    %6780 = vmatprep.subr.mxu0 %v1602
    %6781 = vmatpush1.msra.mxu0 %v1601
    %6782 = vmatprep.subr.mxu0 %v1604
    %6783 = vmatpush1.msra.mxu0 %v1603
    %6784 = vmatprep.subr.mxu0 %v1606
    %6785 = vmatpush1.msra.mxu0 %v1605
    %6786 = vmatprep.subr.mxu0 %v1608
    %6787 = vmatpush1.msra.mxu0 %v1607
    %6788 = vmatprep.subr.mxu0 %v1610
    %6789 = vmatpush1.msra.mxu0 %v1609
    %6790 = vmatprep.subr.mxu0 %v1612
    %6791 = vmatpush1.msra.mxu0 %v1611
    %6792 = vmatprep.subr.mxu0 %v1614
    %6793 = vmatpush1.msra.mxu0 %v1613
    %6794 = vmatprep.subr.mxu0 %v1616
    %6795 = vmatpush1.msra.mxu0 %v1615
    %6796 = vmatprep.subr.mxu0 %v1618
    %6797 = vmatpush1.msra.mxu0 %v1617
    %6798 = vmatprep.subr.mxu0 %v1620
    %6799 = vmatpush1.msra.mxu0 %v1619
    %6800 = vmatprep.subr.mxu0 %v1622
    %6801 = vmatpush1.msra.mxu0 %v1621
    %6802 = vmatprep.subr.mxu0 %v1624
    %6803 = vmatpush1.msra.mxu0 %v1623
    %6804 = vmatprep.subr.mxu0 %v1626
    %6805 = vmatpush1.msra.mxu0 %v1625
    %6806 = vmatprep.subr.mxu0 %v1628
    %6807 = vmatpush1.msra.mxu0 %v1627
    %6808 = vmatprep.subr.mxu0 %v1630
    %6809 = vmatpush1.msra.mxu0 %v1629
    %6810 = vmatprep.subr.mxu0 %v1632
    %6811 = vmatpush1.msra.mxu0 %v1631
    %6812 = vmatprep.subr.mxu0 %v1634
    %6813 = vmatpush1.msra.mxu0 %v1633
    %6814 = vmatprep.mubr.f32.mxu0 %v6468
    %6815 = vmatmul.mubr.f32.gmra.mrb[0].mxu0 %v6467
    %v6816 = vpop.f32.mrb[0].mxu0
    %v6817 = vadd.f32 %v6746, %v6816
    %v6818 = vpop.f32.mrb[0].mxu0
    %v6819 = vadd.f32 %v6748, %v6818
    %6820 = vdwg.mxu0
    %v6821 = vadd.f32 %v6817, %v5301
    %v6822 = vadd.f32 %v6819, %v5302
    %s6823 = scalar_lea.vmem %s1, 184
    %v6824 = vld [vmem:[%s6823] sm:$0xff]
    %s6825 = scalar_lea.vmem %s2, 184
    %v6826 = vld [vmem:[%s6825] sm:$0xff]
    %6828 = vset.pattern.permute.xlu0 0
    %6829 = vperm.xlu0 %6828, %v6824
    %v6830 = vpop.permute.xlu0 %6829
    %v6832 = vlaneseq
    %v6833 = vshrl.u32 %v6832, 7
    %v6834 = vsub.s32 0, %v6833
    %v6835 = vrot.slane %v6821, %v6834
    %v6836 = vlaneseq
    %v6837 = vshrl.u32 %v6836, 7
    %v6838 = vsub.s32 0, %v6837
    %v6839 = vrot.slane %v6822, %v6838
    %v6840 = vmul.f32 %v6830, %v6835
    %v6841 = vmul.f32 %v6830, %v6839
    %6843 = vset.pattern.permute.xlu0 0
    %6844 = vperm.xlu0 %6843, %v6826
    %v6845 = vpop.permute.xlu0 %6844
    %v6847 = vadd.f32 %v6840, %v6845
    %v6848 = vadd.f32 %v6841, %v6845
    %6849 = vset.pattern.permute.xlu0 1
    %6850 = vperm.xlu0 %6849, %v6824
    %v6851 = vpop.permute.xlu0 %6850
    %v6853 = vlaneseq
    %v6854 = vshrl.u32 %v6853, 7
    %v6855 = vsub.s32 1, %v6854
    %v6856 = vrot.slane %v6821, %v6855
    %v6857 = vlaneseq
    %v6858 = vshrl.u32 %v6857, 7
    %v6859 = vsub.s32 1, %v6858
    %v6860 = vrot.slane %v6822, %v6859
    %v6861 = vmul.f32 %v6851, %v6856
    %v6862 = vmul.f32 %v6851, %v6860
    %v6863 = vadd.f32 %v6847, %v6861
    %v6864 = vadd.f32 %v6848, %v6862
    %6865 = vset.pattern.permute.xlu0 2
    %6866 = vperm.xlu0 %6865, %v6824
    %v6867 = vpop.permute.xlu0 %6866
    %v6869 = vlaneseq
    %v6870 = vshrl.u32 %v6869, 7
    %v6871 = vsub.s32 2, %v6870
    %v6872 = vrot.slane %v6821, %v6871
    %v6873 = vlaneseq
    %v6874 = vshrl.u32 %v6873, 7
    %v6875 = vsub.s32 2, %v6874
    %v6876 = vrot.slane %v6822, %v6875
    %v6877 = vmul.f32 %v6867, %v6872
    %v6878 = vmul.f32 %v6867, %v6876
    %v6879 = vadd.f32 %v6863, %v6877
    %v6880 = vadd.f32 %v6864, %v6878
    %6881 = vset.pattern.permute.xlu0 3
    %6882 = vperm.xlu0 %6881, %v6824
    %v6883 = vpop.permute.xlu0 %6882
    %v6885 = vlaneseq
    %v6886 = vshrl.u32 %v6885, 7
    %v6887 = vsub.s32 3, %v6886
    %v6888 = vrot.slane %v6821, %v6887
    %v6889 = vlaneseq
    %v6890 = vshrl.u32 %v6889, 7
    %v6891 = vsub.s32 3, %v6890
    %v6892 = vrot.slane %v6822, %v6891
    %v6893 = vmul.f32 %v6883, %v6888
    %v6894 = vmul.f32 %v6883, %v6892
    %v6895 = vadd.f32 %v6879, %v6893
    %v6896 = vadd.f32 %v6880, %v6894
    %6897 = vset.pattern.permute.xlu0 4
    %6898 = vperm.xlu0 %6897, %v6824
    %v6899 = vpop.permute.xlu0 %6898
    %v6901 = vlaneseq
    %v6902 = vshrl.u32 %v6901, 7
    %v6903 = vsub.s32 4, %v6902
    %v6904 = vrot.slane %v6821, %v6903
    %v6905 = vlaneseq
    %v6906 = vshrl.u32 %v6905, 7
    %v6907 = vsub.s32 4, %v6906
    %v6908 = vrot.slane %v6822, %v6907
    %v6909 = vmul.f32 %v6899, %v6904
    %v6910 = vmul.f32 %v6899, %v6908
    %v6911 = vadd.f32 %v6895, %v6909
    %v6912 = vadd.f32 %v6896, %v6910
    %6913 = vset.pattern.permute.xlu0 5
    %6914 = vperm.xlu0 %6913, %v6824
    %v6915 = vpop.permute.xlu0 %6914
    %v6917 = vlaneseq
    %v6918 = vshrl.u32 %v6917, 7
    %v6919 = vsub.s32 5, %v6918
    %v6920 = vrot.slane %v6821, %v6919
    %v6921 = vlaneseq
    %v6922 = vshrl.u32 %v6921, 7
    %v6923 = vsub.s32 5, %v6922
    %v6924 = vrot.slane %v6822, %v6923
    %v6925 = vmul.f32 %v6915, %v6920
    %v6926 = vmul.f32 %v6915, %v6924
    %v6927 = vadd.f32 %v6911, %v6925
    %v6928 = vadd.f32 %v6912, %v6926
    %6929 = vset.pattern.permute.xlu0 6
    %6930 = vperm.xlu0 %6929, %v6824
    %v6931 = vpop.permute.xlu0 %6930
    %v6933 = vlaneseq
    %v6934 = vshrl.u32 %v6933, 7
    %v6935 = vsub.s32 6, %v6934
    %v6936 = vrot.slane %v6821, %v6935
    %v6937 = vlaneseq
    %v6938 = vshrl.u32 %v6937, 7
    %v6939 = vsub.s32 6, %v6938
    %v6940 = vrot.slane %v6822, %v6939
    %v6941 = vmul.f32 %v6931, %v6936
    %v6942 = vmul.f32 %v6931, %v6940
    %v6943 = vadd.f32 %v6927, %v6941
    %v6944 = vadd.f32 %v6928, %v6942
    %6945 = vset.pattern.permute.xlu0 7
    %6946 = vperm.xlu0 %6945, %v6824
    %v6947 = vpop.permute.xlu0 %6946
    %v6949 = vlaneseq
    %v6950 = vshrl.u32 %v6949, 7
    %v6951 = vsub.s32 7, %v6950
    %v6952 = vrot.slane %v6821, %v6951
    %v6953 = vlaneseq
    %v6954 = vshrl.u32 %v6953, 7
    %v6955 = vsub.s32 7, %v6954
    %v6956 = vrot.slane %v6822, %v6955
    %v6957 = vmul.f32 %v6947, %v6952
    %v6958 = vmul.f32 %v6947, %v6956
    %v6959 = vadd.f32 %v6943, %v6957
    %v6960 = vadd.f32 %v6944, %v6958
    %v6961 = vadd.f32 %v6959, %v5301
    %v6962 = vadd.f32 %v6960, %v5302
    %s6963 = scalar_lea.vmem %s1, 192
    %v6964 = vld [vmem:[%s6963] sm:$0xff]
    %s6965 = scalar_lea.vmem %s2, 192
    %v6966 = vld [vmem:[%s6965] sm:$0xff]
    %6968 = vset.pattern.permute.xlu0 0
    %6969 = vperm.xlu0 %6968, %v6964
    %v6970 = vpop.permute.xlu0 %6969
    %v6972 = vlaneseq
    %v6973 = vshrl.u32 %v6972, 7
    %v6974 = vsub.s32 0, %v6973
    %v6975 = vrot.slane %v6961, %v6974
    %v6976 = vlaneseq
    %v6977 = vshrl.u32 %v6976, 7
    %v6978 = vsub.s32 0, %v6977
    %v6979 = vrot.slane %v6962, %v6978
    %v6980 = vmul.f32 %v6970, %v6975
    %v6981 = vmul.f32 %v6970, %v6979
    %6983 = vset.pattern.permute.xlu0 0
    %6984 = vperm.xlu0 %6983, %v6966
    %v6985 = vpop.permute.xlu0 %6984
    %v6987 = vadd.f32 %v6980, %v6985
    %v6988 = vadd.f32 %v6981, %v6985
    %6989 = vset.pattern.permute.xlu0 1
    %6990 = vperm.xlu0 %6989, %v6964
    %v6991 = vpop.permute.xlu0 %6990
    %v6993 = vlaneseq
    %v6994 = vshrl.u32 %v6993, 7
    %v6995 = vsub.s32 1, %v6994
    %v6996 = vrot.slane %v6961, %v6995
    %v6997 = vlaneseq
    %v6998 = vshrl.u32 %v6997, 7
    %v6999 = vsub.s32 1, %v6998
    %v7000 = vrot.slane %v6962, %v6999
    %v7001 = vmul.f32 %v6991, %v6996
    %v7002 = vmul.f32 %v6991, %v7000
    %v7003 = vadd.f32 %v6987, %v7001
    %v7004 = vadd.f32 %v6988, %v7002
    %7005 = vset.pattern.permute.xlu0 2
    %7006 = vperm.xlu0 %7005, %v6964
    %v7007 = vpop.permute.xlu0 %7006
    %v7009 = vlaneseq
    %v7010 = vshrl.u32 %v7009, 7
    %v7011 = vsub.s32 2, %v7010
    %v7012 = vrot.slane %v6961, %v7011
    %v7013 = vlaneseq
    %v7014 = vshrl.u32 %v7013, 7
    %v7015 = vsub.s32 2, %v7014
    %v7016 = vrot.slane %v6962, %v7015
    %v7017 = vmul.f32 %v7007, %v7012
    %v7018 = vmul.f32 %v7007, %v7016
    %v7019 = vadd.f32 %v7003, %v7017
    %v7020 = vadd.f32 %v7004, %v7018
    %7021 = vset.pattern.permute.xlu0 3
    %7022 = vperm.xlu0 %7021, %v6964
    %v7023 = vpop.permute.xlu0 %7022
    %v7025 = vlaneseq
    %v7026 = vshrl.u32 %v7025, 7
    %v7027 = vsub.s32 3, %v7026
    %v7028 = vrot.slane %v6961, %v7027
    %v7029 = vlaneseq
    %v7030 = vshrl.u32 %v7029, 7
    %v7031 = vsub.s32 3, %v7030
    %v7032 = vrot.slane %v6962, %v7031
    %v7033 = vmul.f32 %v7023, %v7028
    %v7034 = vmul.f32 %v7023, %v7032
    %v7035 = vadd.f32 %v7019, %v7033
    %v7036 = vadd.f32 %v7020, %v7034
    %7037 = vset.pattern.permute.xlu0 4
    %7038 = vperm.xlu0 %7037, %v6964
    %v7039 = vpop.permute.xlu0 %7038
    %v7041 = vlaneseq
    %v7042 = vshrl.u32 %v7041, 7
    %v7043 = vsub.s32 4, %v7042
    %v7044 = vrot.slane %v6961, %v7043
    %v7045 = vlaneseq
    %v7046 = vshrl.u32 %v7045, 7
    %v7047 = vsub.s32 4, %v7046
    %v7048 = vrot.slane %v6962, %v7047
    %v7049 = vmul.f32 %v7039, %v7044
    %v7050 = vmul.f32 %v7039, %v7048
    %v7051 = vadd.f32 %v7035, %v7049
    %v7052 = vadd.f32 %v7036, %v7050
    %7053 = vset.pattern.permute.xlu0 5
    %7054 = vperm.xlu0 %7053, %v6964
    %v7055 = vpop.permute.xlu0 %7054
    %v7057 = vlaneseq
    %v7058 = vshrl.u32 %v7057, 7
    %v7059 = vsub.s32 5, %v7058
    %v7060 = vrot.slane %v6961, %v7059
    %v7061 = vlaneseq
    %v7062 = vshrl.u32 %v7061, 7
    %v7063 = vsub.s32 5, %v7062
    %v7064 = vrot.slane %v6962, %v7063
    %v7065 = vmul.f32 %v7055, %v7060
    %v7066 = vmul.f32 %v7055, %v7064
    %v7067 = vadd.f32 %v7051, %v7065
    %v7068 = vadd.f32 %v7052, %v7066
    %7069 = vset.pattern.permute.xlu0 6
    %7070 = vperm.xlu0 %7069, %v6964
    %v7071 = vpop.permute.xlu0 %7070
    %v7073 = vlaneseq
    %v7074 = vshrl.u32 %v7073, 7
    %v7075 = vsub.s32 6, %v7074
    %v7076 = vrot.slane %v6961, %v7075
    %v7077 = vlaneseq
    %v7078 = vshrl.u32 %v7077, 7
    %v7079 = vsub.s32 6, %v7078
    %v7080 = vrot.slane %v6962, %v7079
    %v7081 = vmul.f32 %v7071, %v7076
    %v7082 = vmul.f32 %v7071, %v7080
    %v7083 = vadd.f32 %v7067, %v7081
    %v7084 = vadd.f32 %v7068, %v7082
    %7085 = vset.pattern.permute.xlu0 7
    %7086 = vperm.xlu0 %7085, %v6964
    %v7087 = vpop.permute.xlu0 %7086
    %v7089 = vlaneseq
    %v7090 = vshrl.u32 %v7089, 7
    %v7091 = vsub.s32 7, %v7090
    %v7092 = vrot.slane %v6961, %v7091
    %v7093 = vlaneseq
    %v7094 = vshrl.u32 %v7093, 7
    %v7095 = vsub.s32 7, %v7094
    %v7096 = vrot.slane %v6962, %v7095
    %v7097 = vmul.f32 %v7087, %v7092
    %v7098 = vmul.f32 %v7087, %v7096
    %v7099 = vadd.f32 %v7083, %v7097
    %v7100 = vadd.f32 %v7084, %v7098
    %7101 = vmatprep.subr.mxu0 %v206
    %7102 = vmatpush1.msra.mxu0 %v205
    %7103 = vmatprep.subr.mxu0 %v208
    %7104 = vmatpush1.msra.mxu0 %v207
    %7105 = vmatprep.subr.mxu0 %v210
    %7106 = vmatpush1.msra.mxu0 %v209
    %7107 = vmatprep.subr.mxu0 %v212
    %7108 = vmatpush1.msra.mxu0 %v211
    %7109 = vmatprep.subr.mxu0 %v214
    %7110 = vmatpush1.msra.mxu0 %v213
    %7111 = vmatprep.subr.mxu0 %v216
    %7112 = vmatpush1.msra.mxu0 %v215
    %7113 = vmatprep.subr.mxu0 %v218
    %7114 = vmatpush1.msra.mxu0 %v217
    %7115 = vmatprep.subr.mxu0 %v220
    %7116 = vmatpush1.msra.mxu0 %v219
    %7117 = vmatprep.subr.mxu0 %v222
    %7118 = vmatpush1.msra.mxu0 %v221
    %7119 = vmatprep.subr.mxu0 %v224
    %7120 = vmatpush1.msra.mxu0 %v223
    %7121 = vmatprep.subr.mxu0 %v226
    %7122 = vmatpush1.msra.mxu0 %v225
    %7123 = vmatprep.subr.mxu0 %v228
    %7124 = vmatpush1.msra.mxu0 %v227
    %7125 = vmatprep.subr.mxu0 %v230
    %7126 = vmatpush1.msra.mxu0 %v229
    %7127 = vmatprep.subr.mxu0 %v232
    %7128 = vmatpush1.msra.mxu0 %v231
    %7129 = vmatprep.subr.mxu0 %v234
    %7130 = vmatpush1.msra.mxu0 %v233
    %7131 = vmatprep.subr.mxu0 %v236
    %7132 = vmatpush1.msra.mxu0 %v235
    %7133 = vmatprep.subr.mxu0 %v238
    %7134 = vmatpush1.msra.mxu0 %v237
    %7135 = vmatprep.subr.mxu0 %v240
    %7136 = vmatpush1.msra.mxu0 %v239
    %7137 = vmatprep.subr.mxu0 %v242
    %7138 = vmatpush1.msra.mxu0 %v241
    %7139 = vmatprep.subr.mxu0 %v244
    %7140 = vmatpush1.msra.mxu0 %v243
    %7141 = vmatprep.subr.mxu0 %v246
    %7142 = vmatpush1.msra.mxu0 %v245
    %7143 = vmatprep.subr.mxu0 %v248
    %7144 = vmatpush1.msra.mxu0 %v247
    %7145 = vmatprep.subr.mxu0 %v250
    %7146 = vmatpush1.msra.mxu0 %v249
    %7147 = vmatprep.subr.mxu0 %v252
    %7148 = vmatpush1.msra.mxu0 %v251
    %7149 = vmatprep.subr.mxu0 %v254
    %7150 = vmatpush1.msra.mxu0 %v253
    %7151 = vmatprep.subr.mxu0 %v256
    %7152 = vmatpush1.msra.mxu0 %v255
    %7153 = vmatprep.subr.mxu0 %v258
    %7154 = vmatpush1.msra.mxu0 %v257
    %7155 = vmatprep.subr.mxu0 %v260
    %7156 = vmatpush1.msra.mxu0 %v259
    %7157 = vmatprep.subr.mxu0 %v262
    %7158 = vmatpush1.msra.mxu0 %v261
    %7159 = vmatprep.subr.mxu0 %v264
    %7160 = vmatpush1.msra.mxu0 %v263
    %7161 = vmatprep.subr.mxu0 %v266
    %7162 = vmatpush1.msra.mxu0 %v265
    %7163 = vmatprep.subr.mxu0 %v268
    %7164 = vmatpush1.msra.mxu0 %v267
    %7165 = vmatprep.mubr.f32.mxu0 %v7100
    %7166 = vmatmul.mubr.f32.gmra.mrb[0].mxu0 %v7099
    %v7167 = vpop.f32.mrb[0].mxu0
    %v7168 = vadd.f32 0.0, %v7167
    %v7169 = vpop.f32.mrb[0].mxu0
    %v7170 = vadd.f32 0.0, %v7169
    %7171 = vdwg.mxu0
    %7172 = vmatprep.subr.mxu0 %v341
    %7173 = vmatpush1.msra.mxu0 %v340
    %7174 = vmatprep.subr.mxu0 %v343
    %7175 = vmatpush1.msra.mxu0 %v342
    %7176 = vmatprep.subr.mxu0 %v345
    %7177 = vmatpush1.msra.mxu0 %v344
    %7178 = vmatprep.subr.mxu0 %v347
    %7179 = vmatpush1.msra.mxu0 %v346
    %7180 = vmatprep.subr.mxu0 %v349
    %7181 = vmatpush1.msra.mxu0 %v348
    %7182 = vmatprep.subr.mxu0 %v351
    %7183 = vmatpush1.msra.mxu0 %v350
    %7184 = vmatprep.subr.mxu0 %v353
    %7185 = vmatpush1.msra.mxu0 %v352
    %7186 = vmatprep.subr.mxu0 %v355
    %7187 = vmatpush1.msra.mxu0 %v354
    %7188 = vmatprep.subr.mxu0 %v357
    %7189 = vmatpush1.msra.mxu0 %v356
    %7190 = vmatprep.subr.mxu0 %v359
    %7191 = vmatpush1.msra.mxu0 %v358
    %7192 = vmatprep.subr.mxu0 %v361
    %7193 = vmatpush1.msra.mxu0 %v360
    %7194 = vmatprep.subr.mxu0 %v363
    %7195 = vmatpush1.msra.mxu0 %v362
    %7196 = vmatprep.subr.mxu0 %v365
    %7197 = vmatpush1.msra.mxu0 %v364
    %7198 = vmatprep.subr.mxu0 %v367
    %7199 = vmatpush1.msra.mxu0 %v366
    %7200 = vmatprep.subr.mxu0 %v369
    %7201 = vmatpush1.msra.mxu0 %v368
    %7202 = vmatprep.subr.mxu0 %v371
    %7203 = vmatpush1.msra.mxu0 %v370
    %7204 = vmatprep.subr.mxu0 %v373
    %7205 = vmatpush1.msra.mxu0 %v372
    %7206 = vmatprep.subr.mxu0 %v375
    %7207 = vmatpush1.msra.mxu0 %v374
    %7208 = vmatprep.subr.mxu0 %v377
    %7209 = vmatpush1.msra.mxu0 %v376
    %7210 = vmatprep.subr.mxu0 %v379
    %7211 = vmatpush1.msra.mxu0 %v378
    %7212 = vmatprep.subr.mxu0 %v381
    %7213 = vmatpush1.msra.mxu0 %v380
    %7214 = vmatprep.subr.mxu0 %v383
    %7215 = vmatpush1.msra.mxu0 %v382
    %7216 = vmatprep.subr.mxu0 %v385
    %7217 = vmatpush1.msra.mxu0 %v384
    %7218 = vmatprep.subr.mxu0 %v387
    %7219 = vmatpush1.msra.mxu0 %v386
    %7220 = vmatprep.subr.mxu0 %v389
    %7221 = vmatpush1.msra.mxu0 %v388
    %7222 = vmatprep.subr.mxu0 %v391
    %7223 = vmatpush1.msra.mxu0 %v390
    %7224 = vmatprep.subr.mxu0 %v393
    %7225 = vmatpush1.msra.mxu0 %v392
    %7226 = vmatprep.subr.mxu0 %v395
    %7227 = vmatpush1.msra.mxu0 %v394
    %7228 = vmatprep.subr.mxu0 %v397
    %7229 = vmatpush1.msra.mxu0 %v396
    %7230 = vmatprep.subr.mxu0 %v399
    %7231 = vmatpush1.msra.mxu0 %v398
    %7232 = vmatprep.subr.mxu0 %v401
    %7233 = vmatpush1.msra.mxu0 %v400
    %7234 = vmatprep.subr.mxu0 %v403
    %7235 = vmatpush1.msra.mxu0 %v402
    %7236 = vmatprep.mubr.f32.mxu0 %v7100
    %7237 = vmatmul.mubr.f32.gmra.mrb[0].mxu0 %v7099
    %v7238 = vpop.f32.mrb[0].mxu0
    %v7239 = vadd.f32 0.0, %v7238
    %v7240 = vpop.f32.mrb[0].mxu0
    %v7241 = vadd.f32 0.0, %v7240
    %7242 = vdwg.mxu0
    %v7243 = vmul.f32 %v7168, %v7168
    %v7244 = vmul.f32 %v7170, %v7170
    %v7245 = vmul.f32 %v7239, %v7239
    %v7246 = vmul.f32 %v7241, %v7241
    %v7247 = vadd.f32 %v7243, %v7245
    %v7248 = vadd.f32 %v7244, %v7246
    %v7249 = vrsqrt.pop %v7247
    %v7250 = vmul.f32 %v7247, %v7249
    %vm7251 = vcmp.eq.f32.partialorder %v7247, inf
    %v7252 = vsel %vm7251, %v7247, %v7250
    %vm7253 = vcmp.eq.f32.partialorder %v7247, 0.0
    %v7254 = vand.u32 %v7247, 2147483648
    %v7255 = vsel %vm7253, %v7254, %v7252
    %v7256 = vrsqrt.pop %v7248
    %v7257 = vmul.f32 %v7248, %v7256
    %vm7258 = vcmp.eq.f32.partialorder %v7248, inf
    %v7259 = vsel %vm7258, %v7248, %v7257
    %vm7260 = vcmp.eq.f32.partialorder %v7248, 0.0
    %v7261 = vand.u32 %v7248, 2147483648
    %v7262 = vsel %vm7260, %v7261, %v7259
    %v7263 = vand.u32 2147483647, %v7168
    %v7264 = vand.u32 2147483647, %v7239
    %v7265 = vmin.f32 %v7263, %v7264
    %v7266 = vmax.f32 %v7263, %v7264
    %v7267 = vrcp.pop %v7266
    %v7268 = vmul.f32 %v7265, %v7267
    %v7269 = vmul.f32 %v7268, %v7268
    %v7270 = vmul.f32 0.002785687, %v7269
    %v7271 = vadd.f32 %v7270, -0.015866
    %v7272 = vmul.f32 %v7271, %v7269
    %v7273 = vadd.f32 %v7272, 0.04247222
    %v7274 = vmul.f32 %v7273, %v7269
    %v7275 = vadd.f32 %v7274, -0.074975304
    %v7276 = vmul.f32 %v7275, %v7269
    %v7277 = vadd.f32 %v7276, 0.1064488
    %v7278 = vmul.f32 %v7277, %v7269
    %v7279 = vadd.f32 %v7278, -0.14207031
    %v7280 = vmul.f32 %v7279, %v7269
    %v7281 = vadd.f32 %v7280, 0.19993454
    %v7282 = vmul.f32 %v7281, %v7269
    %v7283 = vadd.f32 %v7282, -0.33333147
    %v7284 = vmul.f32 %v7283, %v7269
    %v7285 = vmul.f32 %v7284, %v7268
    %v7286 = vadd.f32 %v7285, %v7268
    %vm7287 = vcmp.gt.f32.partialorder %v7264, %v7263
    %v7288 = vsub.f32 1.5707964, %v7286
    %v7289 = vsel %vm7287, %v7288, %v7286
    %vm7290 = vcmp.lt.f32.partialorder %v7168, 0.0
    %v7291 = vsub.f32 3.1415927, %v7289
    %v7292 = vsel %vm7290, %v7291, %v7289
    %vm7293 = vcmp.lt.s32.totalorder %v7168, 0
    %v7294 = vsel %vm7293, 3.1415927, 0.0
    %vm7295 = vcmp.eq.f32.partialorder %v7239, 0.0
    %v7296 = vsel %vm7295, %v7294, %v7292
    %vm7297 = vcmp.ne.f32.partialorder %v7168, %v7168
    %vm7298 = vcmp.ne.f32.partialorder %v7239, %v7239
    %vm7299 = vmor %vm7297, %vm7298
    %v7300 = vsel %vm7299, nan, %v7296
    %vm7301 = vcmp.lt.f32.partialorder %v7168, 0.0
    %v7302 = vsel %vm7301, 2.3561945, 0.7853982
    %vm7303 = vcmp.eq.s32.totalorder %v7263, inf
    %vm7304 = vcmp.eq.s32.totalorder %v7264, inf
    %vm7305 = vmand %vm7303, %vm7304
    %v7306 = vsel %vm7305, %v7302, %v7300
    %v7307 = vand.u32 2147483647, %v7306
    %v7308 = vand.u32 %v7239, 2147483648
    %v7309 = vor.u32 %v7307, %v7308
    %v7310 = vand.u32 2147483647, %v7170
    %v7311 = vand.u32 2147483647, %v7241
    %v7312 = vmin.f32 %v7310, %v7311
    %v7313 = vmax.f32 %v7310, %v7311
    %v7314 = vrcp.pop %v7313
    %v7315 = vmul.f32 %v7312, %v7314
    %v7316 = vmul.f32 %v7315, %v7315
    %v7317 = vmul.f32 0.002785687, %v7316
    %v7318 = vadd.f32 %v7317, -0.015866
    %v7319 = vmul.f32 %v7318, %v7316
    %v7320 = vadd.f32 %v7319, 0.04247222
    %v7321 = vmul.f32 %v7320, %v7316
    %v7322 = vadd.f32 %v7321, -0.074975304
    %v7323 = vmul.f32 %v7322, %v7316
    %v7324 = vadd.f32 %v7323, 0.1064488
    %v7325 = vmul.f32 %v7324, %v7316
    %v7326 = vadd.f32 %v7325, -0.14207031
    %v7327 = vmul.f32 %v7326, %v7316
    %v7328 = vadd.f32 %v7327, 0.19993454
    %v7329 = vmul.f32 %v7328, %v7316
    %v7330 = vadd.f32 %v7329, -0.33333147
    %v7331 = vmul.f32 %v7330, %v7316
    %v7332 = vmul.f32 %v7331, %v7315
    %v7333 = vadd.f32 %v7332, %v7315
    %vm7334 = vcmp.gt.f32.partialorder %v7311, %v7310
    %v7335 = vsub.f32 1.5707964, %v7333
    %v7336 = vsel %vm7334, %v7335, %v7333
    %vm7337 = vcmp.lt.f32.partialorder %v7170, 0.0
    %v7338 = vsub.f32 3.1415927, %v7336
    %v7339 = vsel %vm7337, %v7338, %v7336
    %vm7340 = vcmp.lt.s32.totalorder %v7170, 0
    %v7341 = vsel %vm7340, 3.1415927, 0.0
    %vm7342 = vcmp.eq.f32.partialorder %v7241, 0.0
    %v7343 = vsel %vm7342, %v7341, %v7339
    %vm7344 = vcmp.ne.f32.partialorder %v7170, %v7170
    %vm7345 = vcmp.ne.f32.partialorder %v7241, %v7241
    %vm7346 = vmor %vm7344, %vm7345
    %v7347 = vsel %vm7346, nan, %v7343
    %vm7348 = vcmp.lt.f32.partialorder %v7170, 0.0
    %v7349 = vsel %vm7348, 2.3561945, 0.7853982
    %vm7350 = vcmp.eq.s32.totalorder %v7310, inf
    %vm7351 = vcmp.eq.s32.totalorder %v7311, inf
    %vm7352 = vmand %vm7350, %vm7351
    %v7353 = vsel %vm7352, %v7349, %v7347
    %v7354 = vand.u32 2147483647, %v7353
    %v7355 = vand.u32 %v7241, 2147483648
    %v7356 = vor.u32 %v7354, %v7355
    %s7357 = scalar_lea.vmem %s1, 200
    %v7358 = vld [vmem:[%s7357] sm:$0xff]
    %s7359 = scalar_lea.vmem %s2, 200
    %v7360 = vld [vmem:[%s7359] sm:$0xff]
    %7362 = vset.pattern.permute.xlu0 0
    %7363 = vperm.xlu0 %7362, %v7358
    %v7364 = vpop.permute.xlu0 %7363
    %v7366 = vlaneseq
    %v7367 = vshrl.u32 %v7366, 7
    %v7368 = vsub.s32 0, %v7367
    %v7369 = vrot.slane %v7255, %v7368
    %v7370 = vlaneseq
    %v7371 = vshrl.u32 %v7370, 7
    %v7372 = vsub.s32 0, %v7371
    %v7373 = vrot.slane %v7262, %v7372
    %v7374 = vmul.f32 %v7364, %v7369
    %v7375 = vmul.f32 %v7364, %v7373
    %7377 = vset.pattern.permute.xlu0 0
    %7378 = vperm.xlu0 %7377, %v7360
    %v7379 = vpop.permute.xlu0 %7378
    %v7381 = vadd.f32 %v7374, %v7379
    %v7382 = vadd.f32 %v7375, %v7379
    %7383 = vset.pattern.permute.xlu0 1
    %7384 = vperm.xlu0 %7383, %v7358
    %v7385 = vpop.permute.xlu0 %7384
    %v7387 = vlaneseq
    %v7388 = vshrl.u32 %v7387, 7
    %v7389 = vsub.s32 1, %v7388
    %v7390 = vrot.slane %v7255, %v7389
    %v7391 = vlaneseq
    %v7392 = vshrl.u32 %v7391, 7
    %v7393 = vsub.s32 1, %v7392
    %v7394 = vrot.slane %v7262, %v7393
    %v7395 = vmul.f32 %v7385, %v7390
    %v7396 = vmul.f32 %v7385, %v7394
    %v7397 = vadd.f32 %v7381, %v7395
    %v7398 = vadd.f32 %v7382, %v7396
    %7399 = vset.pattern.permute.xlu0 2
    %7400 = vperm.xlu0 %7399, %v7358
    %v7401 = vpop.permute.xlu0 %7400
    %v7403 = vlaneseq
    %v7404 = vshrl.u32 %v7403, 7
    %v7405 = vsub.s32 2, %v7404
    %v7406 = vrot.slane %v7255, %v7405
    %v7407 = vlaneseq
    %v7408 = vshrl.u32 %v7407, 7
    %v7409 = vsub.s32 2, %v7408
    %v7410 = vrot.slane %v7262, %v7409
    %v7411 = vmul.f32 %v7401, %v7406
    %v7412 = vmul.f32 %v7401, %v7410
    %v7413 = vadd.f32 %v7397, %v7411
    %v7414 = vadd.f32 %v7398, %v7412
    %7415 = vset.pattern.permute.xlu0 3
    %7416 = vperm.xlu0 %7415, %v7358
    %v7417 = vpop.permute.xlu0 %7416
    %v7419 = vlaneseq
    %v7420 = vshrl.u32 %v7419, 7
    %v7421 = vsub.s32 3, %v7420
    %v7422 = vrot.slane %v7255, %v7421
    %v7423 = vlaneseq
    %v7424 = vshrl.u32 %v7423, 7
    %v7425 = vsub.s32 3, %v7424
    %v7426 = vrot.slane %v7262, %v7425
    %v7427 = vmul.f32 %v7417, %v7422
    %v7428 = vmul.f32 %v7417, %v7426
    %v7429 = vadd.f32 %v7413, %v7427
    %v7430 = vadd.f32 %v7414, %v7428
    %7431 = vset.pattern.permute.xlu0 4
    %7432 = vperm.xlu0 %7431, %v7358
    %v7433 = vpop.permute.xlu0 %7432
    %v7435 = vlaneseq
    %v7436 = vshrl.u32 %v7435, 7
    %v7437 = vsub.s32 4, %v7436
    %v7438 = vrot.slane %v7255, %v7437
    %v7439 = vlaneseq
    %v7440 = vshrl.u32 %v7439, 7
    %v7441 = vsub.s32 4, %v7440
    %v7442 = vrot.slane %v7262, %v7441
    %v7443 = vmul.f32 %v7433, %v7438
    %v7444 = vmul.f32 %v7433, %v7442
    %v7445 = vadd.f32 %v7429, %v7443
    %v7446 = vadd.f32 %v7430, %v7444
    %7447 = vset.pattern.permute.xlu0 5
    %7448 = vperm.xlu0 %7447, %v7358
    %v7449 = vpop.permute.xlu0 %7448
    %v7451 = vlaneseq
    %v7452 = vshrl.u32 %v7451, 7
    %v7453 = vsub.s32 5, %v7452
    %v7454 = vrot.slane %v7255, %v7453
    %v7455 = vlaneseq
    %v7456 = vshrl.u32 %v7455, 7
    %v7457 = vsub.s32 5, %v7456
    %v7458 = vrot.slane %v7262, %v7457
    %v7459 = vmul.f32 %v7449, %v7454
    %v7460 = vmul.f32 %v7449, %v7458
    %v7461 = vadd.f32 %v7445, %v7459
    %v7462 = vadd.f32 %v7446, %v7460
    %7463 = vset.pattern.permute.xlu0 6
    %7464 = vperm.xlu0 %7463, %v7358
    %v7465 = vpop.permute.xlu0 %7464
    %v7467 = vlaneseq
    %v7468 = vshrl.u32 %v7467, 7
    %v7469 = vsub.s32 6, %v7468
    %v7470 = vrot.slane %v7255, %v7469
    %v7471 = vlaneseq
    %v7472 = vshrl.u32 %v7471, 7
    %v7473 = vsub.s32 6, %v7472
    %v7474 = vrot.slane %v7262, %v7473
    %v7475 = vmul.f32 %v7465, %v7470
    %v7476 = vmul.f32 %v7465, %v7474
    %v7477 = vadd.f32 %v7461, %v7475
    %v7478 = vadd.f32 %v7462, %v7476
    %7479 = vset.pattern.permute.xlu0 7
    %7480 = vperm.xlu0 %7479, %v7358
    %v7481 = vpop.permute.xlu0 %7480
    %v7483 = vlaneseq
    %v7484 = vshrl.u32 %v7483, 7
    %v7485 = vsub.s32 7, %v7484
    %v7486 = vrot.slane %v7255, %v7485
    %v7487 = vlaneseq
    %v7488 = vshrl.u32 %v7487, 7
    %v7489 = vsub.s32 7, %v7488
    %v7490 = vrot.slane %v7262, %v7489
    %v7491 = vmul.f32 %v7481, %v7486
    %v7492 = vmul.f32 %v7481, %v7490
    %v7493 = vadd.f32 %v7477, %v7491
    %v7494 = vadd.f32 %v7478, %v7492
    %vm7495 = vcmp.ge.f32.partialorder %v7493, 0.0
    %vm7496 = vcmp.ge.f32.partialorder %v7494, 0.0
    %v7497 = vmul.f32 %v7493, 0.1
    %v7498 = vmul.f32 %v7494, 0.1
    %v7499 = vsel %vm7495, %v7493, %v7497
    %v7500 = vsel %vm7496, %v7494, %v7498
    %s7501 = scalar_lea.vmem %s1, 208
    %v7502 = vld [vmem:[%s7501] sm:$0xff]
    %s7503 = scalar_lea.vmem %s2, 208
    %v7504 = vld [vmem:[%s7503] sm:$0xff]
    %7506 = vset.pattern.permute.xlu0 0
    %7507 = vperm.xlu0 %7506, %v7502
    %v7508 = vpop.permute.xlu0 %7507
    %v7510 = vlaneseq
    %v7511 = vshrl.u32 %v7510, 7
    %v7512 = vsub.s32 0, %v7511
    %v7513 = vrot.slane %v7499, %v7512
    %v7514 = vlaneseq
    %v7515 = vshrl.u32 %v7514, 7
    %v7516 = vsub.s32 0, %v7515
    %v7517 = vrot.slane %v7500, %v7516
    %v7518 = vmul.f32 %v7508, %v7513
    %v7519 = vmul.f32 %v7508, %v7517
    %7521 = vset.pattern.permute.xlu0 0
    %7522 = vperm.xlu0 %7521, %v7504
    %v7523 = vpop.permute.xlu0 %7522
    %v7525 = vadd.f32 %v7518, %v7523
    %v7526 = vadd.f32 %v7519, %v7523
    %7527 = vset.pattern.permute.xlu0 1
    %7528 = vperm.xlu0 %7527, %v7502
    %v7529 = vpop.permute.xlu0 %7528
    %v7531 = vlaneseq
    %v7532 = vshrl.u32 %v7531, 7
    %v7533 = vsub.s32 1, %v7532
    %v7534 = vrot.slane %v7499, %v7533
    %v7535 = vlaneseq
    %v7536 = vshrl.u32 %v7535, 7
    %v7537 = vsub.s32 1, %v7536
    %v7538 = vrot.slane %v7500, %v7537
    %v7539 = vmul.f32 %v7529, %v7534
    %v7540 = vmul.f32 %v7529, %v7538
    %v7541 = vadd.f32 %v7525, %v7539
    %v7542 = vadd.f32 %v7526, %v7540
    %7543 = vset.pattern.permute.xlu0 2
    %7544 = vperm.xlu0 %7543, %v7502
    %v7545 = vpop.permute.xlu0 %7544
    %v7547 = vlaneseq
    %v7548 = vshrl.u32 %v7547, 7
    %v7549 = vsub.s32 2, %v7548
    %v7550 = vrot.slane %v7499, %v7549
    %v7551 = vlaneseq
    %v7552 = vshrl.u32 %v7551, 7
    %v7553 = vsub.s32 2, %v7552
    %v7554 = vrot.slane %v7500, %v7553
    %v7555 = vmul.f32 %v7545, %v7550
    %v7556 = vmul.f32 %v7545, %v7554
    %v7557 = vadd.f32 %v7541, %v7555
    %v7558 = vadd.f32 %v7542, %v7556
    %7559 = vset.pattern.permute.xlu0 3
    %7560 = vperm.xlu0 %7559, %v7502
    %v7561 = vpop.permute.xlu0 %7560
    %v7563 = vlaneseq
    %v7564 = vshrl.u32 %v7563, 7
    %v7565 = vsub.s32 3, %v7564
    %v7566 = vrot.slane %v7499, %v7565
    %v7567 = vlaneseq
    %v7568 = vshrl.u32 %v7567, 7
    %v7569 = vsub.s32 3, %v7568
    %v7570 = vrot.slane %v7500, %v7569
    %v7571 = vmul.f32 %v7561, %v7566
    %v7572 = vmul.f32 %v7561, %v7570
    %v7573 = vadd.f32 %v7557, %v7571
    %v7574 = vadd.f32 %v7558, %v7572
    %7575 = vset.pattern.permute.xlu0 4
    %7576 = vperm.xlu0 %7575, %v7502
    %v7577 = vpop.permute.xlu0 %7576
    %v7579 = vlaneseq
    %v7580 = vshrl.u32 %v7579, 7
    %v7581 = vsub.s32 4, %v7580
    %v7582 = vrot.slane %v7499, %v7581
    %v7583 = vlaneseq
    %v7584 = vshrl.u32 %v7583, 7
    %v7585 = vsub.s32 4, %v7584
    %v7586 = vrot.slane %v7500, %v7585
    %v7587 = vmul.f32 %v7577, %v7582
    %v7588 = vmul.f32 %v7577, %v7586
    %v7589 = vadd.f32 %v7573, %v7587
    %v7590 = vadd.f32 %v7574, %v7588
    %7591 = vset.pattern.permute.xlu0 5
    %7592 = vperm.xlu0 %7591, %v7502
    %v7593 = vpop.permute.xlu0 %7592
    %v7595 = vlaneseq
    %v7596 = vshrl.u32 %v7595, 7
    %v7597 = vsub.s32 5, %v7596
    %v7598 = vrot.slane %v7499, %v7597
    %v7599 = vlaneseq
    %v7600 = vshrl.u32 %v7599, 7
    %v7601 = vsub.s32 5, %v7600
    %v7602 = vrot.slane %v7500, %v7601
    %v7603 = vmul.f32 %v7593, %v7598
    %v7604 = vmul.f32 %v7593, %v7602
    %v7605 = vadd.f32 %v7589, %v7603
    %v7606 = vadd.f32 %v7590, %v7604
    %7607 = vset.pattern.permute.xlu0 6
    %7608 = vperm.xlu0 %7607, %v7502
    %v7609 = vpop.permute.xlu0 %7608
    %v7611 = vlaneseq
    %v7612 = vshrl.u32 %v7611, 7
    %v7613 = vsub.s32 6, %v7612
    %v7614 = vrot.slane %v7499, %v7613
    %v7615 = vlaneseq
    %v7616 = vshrl.u32 %v7615, 7
    %v7617 = vsub.s32 6, %v7616
    %v7618 = vrot.slane %v7500, %v7617
    %v7619 = vmul.f32 %v7609, %v7614
    %v7620 = vmul.f32 %v7609, %v7618
    %v7621 = vadd.f32 %v7605, %v7619
    %v7622 = vadd.f32 %v7606, %v7620
    %7623 = vset.pattern.permute.xlu0 7
    %7624 = vperm.xlu0 %7623, %v7502
    %v7625 = vpop.permute.xlu0 %7624
    %v7627 = vlaneseq
    %v7628 = vshrl.u32 %v7627, 7
    %v7629 = vsub.s32 7, %v7628
    %v7630 = vrot.slane %v7499, %v7629
    %v7631 = vlaneseq
    %v7632 = vshrl.u32 %v7631, 7
    %v7633 = vsub.s32 7, %v7632
    %v7634 = vrot.slane %v7500, %v7633
    %v7635 = vmul.f32 %v7625, %v7630
    %v7636 = vmul.f32 %v7625, %v7634
    %v7637 = vadd.f32 %v7621, %v7635
    %v7638 = vadd.f32 %v7622, %v7636
    %s7639 = scalar_lea.vmem %s1, 216
    %v7640 = vld [vmem:[%s7639] sm:$0xff]
    %s7641 = scalar_lea.vmem %s2, 216
    %v7642 = vld [vmem:[%s7641] sm:$0xff]
    %7644 = vset.pattern.permute.xlu0 0
    %7645 = vperm.xlu0 %7644, %v7640
    %v7646 = vpop.permute.xlu0 %7645
    %v7648 = vlaneseq
    %v7649 = vshrl.u32 %v7648, 7
    %v7650 = vsub.s32 0, %v7649
    %v7651 = vrot.slane %v7309, %v7650
    %v7652 = vlaneseq
    %v7653 = vshrl.u32 %v7652, 7
    %v7654 = vsub.s32 0, %v7653
    %v7655 = vrot.slane %v7356, %v7654
    %v7656 = vmul.f32 %v7646, %v7651
    %v7657 = vmul.f32 %v7646, %v7655
    %7659 = vset.pattern.permute.xlu0 0
    %7660 = vperm.xlu0 %7659, %v7642
    %v7661 = vpop.permute.xlu0 %7660
    %v7663 = vadd.f32 %v7656, %v7661
    %v7664 = vadd.f32 %v7657, %v7661
    %7665 = vset.pattern.permute.xlu0 1
    %7666 = vperm.xlu0 %7665, %v7640
    %v7667 = vpop.permute.xlu0 %7666
    %v7669 = vlaneseq
    %v7670 = vshrl.u32 %v7669, 7
    %v7671 = vsub.s32 1, %v7670
    %v7672 = vrot.slane %v7309, %v7671
    %v7673 = vlaneseq
    %v7674 = vshrl.u32 %v7673, 7
    %v7675 = vsub.s32 1, %v7674
    %v7676 = vrot.slane %v7356, %v7675
    %v7677 = vmul.f32 %v7667, %v7672
    %v7678 = vmul.f32 %v7667, %v7676
    %v7679 = vadd.f32 %v7663, %v7677
    %v7680 = vadd.f32 %v7664, %v7678
    %7681 = vset.pattern.permute.xlu0 2
    %7682 = vperm.xlu0 %7681, %v7640
    %v7683 = vpop.permute.xlu0 %7682
    %v7685 = vlaneseq
    %v7686 = vshrl.u32 %v7685, 7
    %v7687 = vsub.s32 2, %v7686
    %v7688 = vrot.slane %v7309, %v7687
    %v7689 = vlaneseq
    %v7690 = vshrl.u32 %v7689, 7
    %v7691 = vsub.s32 2, %v7690
    %v7692 = vrot.slane %v7356, %v7691
    %v7693 = vmul.f32 %v7683, %v7688
    %v7694 = vmul.f32 %v7683, %v7692
    %v7695 = vadd.f32 %v7679, %v7693
    %v7696 = vadd.f32 %v7680, %v7694
    %7697 = vset.pattern.permute.xlu0 3
    %7698 = vperm.xlu0 %7697, %v7640
    %v7699 = vpop.permute.xlu0 %7698
    %v7701 = vlaneseq
    %v7702 = vshrl.u32 %v7701, 7
    %v7703 = vsub.s32 3, %v7702
    %v7704 = vrot.slane %v7309, %v7703
    %v7705 = vlaneseq
    %v7706 = vshrl.u32 %v7705, 7
    %v7707 = vsub.s32 3, %v7706
    %v7708 = vrot.slane %v7356, %v7707
    %v7709 = vmul.f32 %v7699, %v7704
    %v7710 = vmul.f32 %v7699, %v7708
    %v7711 = vadd.f32 %v7695, %v7709
    %v7712 = vadd.f32 %v7696, %v7710
    %7713 = vset.pattern.permute.xlu0 4
    %7714 = vperm.xlu0 %7713, %v7640
    %v7715 = vpop.permute.xlu0 %7714
    %v7717 = vlaneseq
    %v7718 = vshrl.u32 %v7717, 7
    %v7719 = vsub.s32 4, %v7718
    %v7720 = vrot.slane %v7309, %v7719
    %v7721 = vlaneseq
    %v7722 = vshrl.u32 %v7721, 7
    %v7723 = vsub.s32 4, %v7722
    %v7724 = vrot.slane %v7356, %v7723
    %v7725 = vmul.f32 %v7715, %v7720
    %v7726 = vmul.f32 %v7715, %v7724
    %v7727 = vadd.f32 %v7711, %v7725
    %v7728 = vadd.f32 %v7712, %v7726
    %7729 = vset.pattern.permute.xlu0 5
    %7730 = vperm.xlu0 %7729, %v7640
    %v7731 = vpop.permute.xlu0 %7730
    %v7733 = vlaneseq
    %v7734 = vshrl.u32 %v7733, 7
    %v7735 = vsub.s32 5, %v7734
    %v7736 = vrot.slane %v7309, %v7735
    %v7737 = vlaneseq
    %v7738 = vshrl.u32 %v7737, 7
    %v7739 = vsub.s32 5, %v7738
    %v7740 = vrot.slane %v7356, %v7739
    %v7741 = vmul.f32 %v7731, %v7736
    %v7742 = vmul.f32 %v7731, %v7740
    %v7743 = vadd.f32 %v7727, %v7741
    %v7744 = vadd.f32 %v7728, %v7742
    %7745 = vset.pattern.permute.xlu0 6
    %7746 = vperm.xlu0 %7745, %v7640
    %v7747 = vpop.permute.xlu0 %7746
    %v7749 = vlaneseq
    %v7750 = vshrl.u32 %v7749, 7
    %v7751 = vsub.s32 6, %v7750
    %v7752 = vrot.slane %v7309, %v7751
    %v7753 = vlaneseq
    %v7754 = vshrl.u32 %v7753, 7
    %v7755 = vsub.s32 6, %v7754
    %v7756 = vrot.slane %v7356, %v7755
    %v7757 = vmul.f32 %v7747, %v7752
    %v7758 = vmul.f32 %v7747, %v7756
    %v7759 = vadd.f32 %v7743, %v7757
    %v7760 = vadd.f32 %v7744, %v7758
    %7761 = vset.pattern.permute.xlu0 7
    %7762 = vperm.xlu0 %7761, %v7640
    %v7763 = vpop.permute.xlu0 %7762
    %v7765 = vlaneseq
    %v7766 = vshrl.u32 %v7765, 7
    %v7767 = vsub.s32 7, %v7766
    %v7768 = vrot.slane %v7309, %v7767
    %v7769 = vlaneseq
    %v7770 = vshrl.u32 %v7769, 7
    %v7771 = vsub.s32 7, %v7770
    %v7772 = vrot.slane %v7356, %v7771
    %v7773 = vmul.f32 %v7763, %v7768
    %v7774 = vmul.f32 %v7763, %v7772
    %v7775 = vadd.f32 %v7759, %v7773
    %v7776 = vadd.f32 %v7760, %v7774
    %vm7777 = vcmp.ge.f32.partialorder %v7775, 0.0
    %vm7778 = vcmp.ge.f32.partialorder %v7776, 0.0
    %v7779 = vmul.f32 %v7775, 0.1
    %v7780 = vmul.f32 %v7776, 0.1
    %v7781 = vsel %vm7777, %v7775, %v7779
    %v7782 = vsel %vm7778, %v7776, %v7780
    %s7783 = scalar_lea.vmem %s1, 224
    %v7784 = vld [vmem:[%s7783] sm:$0xff]
    %s7785 = scalar_lea.vmem %s2, 224
    %v7786 = vld [vmem:[%s7785] sm:$0xff]
    %7788 = vset.pattern.permute.xlu0 0
    %7789 = vperm.xlu0 %7788, %v7784
    %v7790 = vpop.permute.xlu0 %7789
    %v7792 = vlaneseq
    %v7793 = vshrl.u32 %v7792, 7
    %v7794 = vsub.s32 0, %v7793
    %v7795 = vrot.slane %v7781, %v7794
    %v7796 = vlaneseq
    %v7797 = vshrl.u32 %v7796, 7
    %v7798 = vsub.s32 0, %v7797
    %v7799 = vrot.slane %v7782, %v7798
    %v7800 = vmul.f32 %v7790, %v7795
    %v7801 = vmul.f32 %v7790, %v7799
    %7803 = vset.pattern.permute.xlu0 0
    %7804 = vperm.xlu0 %7803, %v7786
    %v7805 = vpop.permute.xlu0 %7804
    %v7807 = vadd.f32 %v7800, %v7805
    %v7808 = vadd.f32 %v7801, %v7805
    %7809 = vset.pattern.permute.xlu0 1
    %7810 = vperm.xlu0 %7809, %v7784
    %v7811 = vpop.permute.xlu0 %7810
    %v7813 = vlaneseq
    %v7814 = vshrl.u32 %v7813, 7
    %v7815 = vsub.s32 1, %v7814
    %v7816 = vrot.slane %v7781, %v7815
    %v7817 = vlaneseq
    %v7818 = vshrl.u32 %v7817, 7
    %v7819 = vsub.s32 1, %v7818
    %v7820 = vrot.slane %v7782, %v7819
    %v7821 = vmul.f32 %v7811, %v7816
    %v7822 = vmul.f32 %v7811, %v7820
    %v7823 = vadd.f32 %v7807, %v7821
    %v7824 = vadd.f32 %v7808, %v7822
    %7825 = vset.pattern.permute.xlu0 2
    %7826 = vperm.xlu0 %7825, %v7784
    %v7827 = vpop.permute.xlu0 %7826
    %v7829 = vlaneseq
    %v7830 = vshrl.u32 %v7829, 7
    %v7831 = vsub.s32 2, %v7830
    %v7832 = vrot.slane %v7781, %v7831
    %v7833 = vlaneseq
    %v7834 = vshrl.u32 %v7833, 7
    %v7835 = vsub.s32 2, %v7834
    %v7836 = vrot.slane %v7782, %v7835
    %v7837 = vmul.f32 %v7827, %v7832
    %v7838 = vmul.f32 %v7827, %v7836
    %v7839 = vadd.f32 %v7823, %v7837
    %v7840 = vadd.f32 %v7824, %v7838
    %7841 = vset.pattern.permute.xlu0 3
    %7842 = vperm.xlu0 %7841, %v7784
    %v7843 = vpop.permute.xlu0 %7842
    %v7845 = vlaneseq
    %v7846 = vshrl.u32 %v7845, 7
    %v7847 = vsub.s32 3, %v7846
    %v7848 = vrot.slane %v7781, %v7847
    %v7849 = vlaneseq
    %v7850 = vshrl.u32 %v7849, 7
    %v7851 = vsub.s32 3, %v7850
    %v7852 = vrot.slane %v7782, %v7851
    %v7853 = vmul.f32 %v7843, %v7848
    %v7854 = vmul.f32 %v7843, %v7852
    %v7855 = vadd.f32 %v7839, %v7853
    %v7856 = vadd.f32 %v7840, %v7854
    %7857 = vset.pattern.permute.xlu0 4
    %7858 = vperm.xlu0 %7857, %v7784
    %v7859 = vpop.permute.xlu0 %7858
    %v7861 = vlaneseq
    %v7862 = vshrl.u32 %v7861, 7
    %v7863 = vsub.s32 4, %v7862
    %v7864 = vrot.slane %v7781, %v7863
    %v7865 = vlaneseq
    %v7866 = vshrl.u32 %v7865, 7
    %v7867 = vsub.s32 4, %v7866
    %v7868 = vrot.slane %v7782, %v7867
    %v7869 = vmul.f32 %v7859, %v7864
    %v7870 = vmul.f32 %v7859, %v7868
    %v7871 = vadd.f32 %v7855, %v7869
    %v7872 = vadd.f32 %v7856, %v7870
    %7873 = vset.pattern.permute.xlu0 5
    %7874 = vperm.xlu0 %7873, %v7784
    %v7875 = vpop.permute.xlu0 %7874
    %v7877 = vlaneseq
    %v7878 = vshrl.u32 %v7877, 7
    %v7879 = vsub.s32 5, %v7878
    %v7880 = vrot.slane %v7781, %v7879
    %v7881 = vlaneseq
    %v7882 = vshrl.u32 %v7881, 7
    %v7883 = vsub.s32 5, %v7882
    %v7884 = vrot.slane %v7782, %v7883
    %v7885 = vmul.f32 %v7875, %v7880
    %v7886 = vmul.f32 %v7875, %v7884
    %v7887 = vadd.f32 %v7871, %v7885
    %v7888 = vadd.f32 %v7872, %v7886
    %7889 = vset.pattern.permute.xlu0 6
    %7890 = vperm.xlu0 %7889, %v7784
    %v7891 = vpop.permute.xlu0 %7890
    %v7893 = vlaneseq
    %v7894 = vshrl.u32 %v7893, 7
    %v7895 = vsub.s32 6, %v7894
    %v7896 = vrot.slane %v7781, %v7895
    %v7897 = vlaneseq
    %v7898 = vshrl.u32 %v7897, 7
    %v7899 = vsub.s32 6, %v7898
    %v7900 = vrot.slane %v7782, %v7899
    %v7901 = vmul.f32 %v7891, %v7896
    %v7902 = vmul.f32 %v7891, %v7900
    %v7903 = vadd.f32 %v7887, %v7901
    %v7904 = vadd.f32 %v7888, %v7902
    %7905 = vset.pattern.permute.xlu0 7
    %7906 = vperm.xlu0 %7905, %v7784
    %v7907 = vpop.permute.xlu0 %7906
    %v7909 = vlaneseq
    %v7910 = vshrl.u32 %v7909, 7
    %v7911 = vsub.s32 7, %v7910
    %v7912 = vrot.slane %v7781, %v7911
    %v7913 = vlaneseq
    %v7914 = vshrl.u32 %v7913, 7
    %v7915 = vsub.s32 7, %v7914
    %v7916 = vrot.slane %v7782, %v7915
    %v7917 = vmul.f32 %v7907, %v7912
    %v7918 = vmul.f32 %v7907, %v7916
    %v7919 = vadd.f32 %v7903, %v7917
    %v7920 = vadd.f32 %v7904, %v7918
    %v7921 = vand.u32 2147483647, %v7919
    %vm7922 = vcmp.le.f32.partialorder %v7921, 0.7853982
    %vm7923 = vcmp.lt.s32.totalorder %v7919, 0
    %v7924 = vand.u32 %v7919, 2139095040
    %v7925 = vshrl.u32 %v7924, 23
    %v7926 = vsub.s32 %v7925, 127
    %v7927 = vand.u32 2147483647, %v7919
    %v7928 = vand.u32 %v7927, 8388607
    %v7929 = vor.u32 %v7928, 8388608
    %v7930 = vsub.s32 0, %v7929
    %v7931 = vadd.s32 %v7926, 1
    %vm7932 = vcmp.gt.s32.totalorder %v7931, 0
    %v7933 = vsel %vm7932, %v7931, 0
    %v7934 = vshrl.u32 %v7933, 5
    %v7935 = vand.u32 %v7933, 31
    %v7936 = vsub.s32 32, %v7935
    %v7937 = vshrl.u32 683565275, %v7936
    %v7938 = vshll.u32 683565275, %v7935
    %v7939 = vshrl.u32 2475754826, %v7936
    %v7940 = vor.u32 %v7938, %v7939
    %v7941 = vshll.u32 2475754826, %v7935
    %v7942 = vshrl.u32 2131351028, %v7936
    %v7943 = vor.u32 %v7941, %v7942
    %v7944 = vshll.u32 2131351028, %v7935
    %v7945 = vshrl.u32 2102212464, %v7936
    %v7946 = vor.u32 %v7944, %v7945
    %v7947 = vshll.u32 2102212464, %v7935
    %v7948 = vshrl.u32 920167782, %v7936
    %v7949 = vor.u32 %v7947, %v7948
    %v7950 = vshll.u32 920167782, %v7935
    %v7951 = vshrl.u32 1326507024, %v7936
    %v7952 = vor.u32 %v7950, %v7951
    %vm7953 = vcmp.lt.s32.totalorder %v7934, 1
    %vm7954 = vcmp.lt.s32.totalorder %v7934, 2
    %vm7955 = vcmp.lt.s32.totalorder %v7934, 3
    %vm7956 = vcmp.lt.s32.totalorder %v7934, 4
    %v7957 = vsel %vm7953, %v7937, %v7940
    %v7958 = vsel %vm7956, %v7946, 2102212464
    %v7959 = vsel %vm7955, %v7943, %v7958
    %v7960 = vsel %vm7954, %v7957, %v7959
    %v7961 = vsel %vm7953, %v7940, %v7943
    %v7962 = vsel %vm7956, %v7949, 920167782
    %v7963 = vsel %vm7955, %v7946, %v7962
    %v7964 = vsel %vm7954, %v7961, %v7963
    %v7965 = vsel %vm7953, %v7943, %v7946
    %v7966 = vsel %vm7956, %v7952, 1326507024
    %v7967 = vsel %vm7955, %v7949, %v7966
    %v7968 = vsel %vm7954, %v7965, %v7967
    %v7969 = vshll.u32 %v7929, 8
    %v7970 = vmul.u32.u64.compose %v7969, %v7968
    %v7971 = vextract.low.u32 %v7970
    %v7972 = vextract.high.u32 %v7970
    %v7973 = vmul.u32.u64.compose %v7969, %v7964
    %v7974 = vextract.low.u32 %v7973
    %v7975 = vextract.high.u32 %v7973
    %v7976 = vmul.u32 %v7969, %v7960
    %v7977 = vadd.s32 %v7972, %v7974
    %vm7978 = vc.u32 %v7972, %v7974
    %v7979 = vadd.s32 %v7975, 1
    %v7980 = vsel %vm7978, %v7979, %v7975
    %v7981 = vadd.s32 %v7976, %v7980
    %v7982 = vadd.s32 %v7981, 536870912
    %v7983 = vshrl.u32 %v7982, 30
    %v7984 = vshll.u32 %v7983, 30
    %v7985 = vsub.s32 %v7981, %v7984
    %vm7986 = vcmp.lt.s32.totalorder %v7985, 0
    %v7987 = vsub.s32 0, %v7985
    %v7988 = vsel %vm7986, %v7987, %v7985
    %v7989 = vclz %v7988
    %v7990 = vsub.s32 %v7989, 2
    %vm7991 = vcmp.gt.s32.totalorder 0, %v7990
    %v7992 = vsel %vm7991, 0, %v7990
    %v7993 = vsub.s32 32, %v7992
    %v7994 = vshll.u32 %v7985, %v7992
    %v7995 = vshrl.u32 %v7977, %v7993
    %v7996 = vor.u32 %v7994, %v7995
    %v7997 = vsub.s32 4294967266, %v7992
    %v7998 = vadd.s32 %v7997, 127
    %v7999 = vshll.u32 %v7998, 23
    %v8000 = vor.u32 4788187, %v7999
    %v8001 = vand.u32 2147483647, %v8000
    %v8003 = vcvt.s32.f32 %v7996
    %v8004 = vmul.f32 %v8003, %v8001
    %v8005 = vxor.u32 %v8004, 2147483648
    %v8006 = vsel %vm7923, %v8005, %v8004
    %v8007 = vsub.s32 4, %v7983
    %v8008 = vsel %vm7923, %v8007, %v7983
    %v8009 = vsel %vm7922, %v7919, %v8006
    %v8010 = vsel %vm7922, 0, %v8008
    %v8011 = vcosq.f32.pop %v8009
    %v8012 = vsinq.f32.pop %v8009
    %vm8013 = vweird.f32 %v7919
    %v8014 = vand.u32 %v8010, 3
    %vm8015 = vcmp.lt.s32.totalorder %v8014, 2
    %vm8016 = vcmp.eq.s32.totalorder %v8014, 0
    %v8017 = vxor.u32 %v8012, 2147483648
    %v8018 = vsel %vm8016, %v8011, %v8017
    %vm8019 = vcmp.eq.s32.totalorder %v8014, 2
    %v8020 = vxor.u32 %v8011, 2147483648
    %v8021 = vsel %vm8019, %v8020, %v8012
    %v8022 = vsel %vm8015, %v8018, %v8021
    %v8023 = vsel %vm8013, nan, %v8022
    %v8024 = vand.u32 2147483647, %v7920
    %vm8025 = vcmp.le.f32.partialorder %v8024, 0.7853982
    %vm8026 = vcmp.lt.s32.totalorder %v7920, 0
    %v8027 = vand.u32 %v7920, 2139095040
    %v8028 = vshrl.u32 %v8027, 23
    %v8029 = vsub.s32 %v8028, 127
    %v8030 = vand.u32 2147483647, %v7920
    %v8031 = vand.u32 %v8030, 8388607
    %v8032 = vor.u32 %v8031, 8388608
    %v8033 = vsub.s32 0, %v8032
    %v8034 = vadd.s32 %v8029, 1
    %vm8035 = vcmp.gt.s32.totalorder %v8034, 0
    %v8036 = vsel %vm8035, %v8034, 0
    %v8037 = vshrl.u32 %v8036, 5
    %v8038 = vand.u32 %v8036, 31
    %v8039 = vsub.s32 32, %v8038
    %v8040 = vshrl.u32 683565275, %v8039
    %v8041 = vshll.u32 683565275, %v8038
    %v8042 = vshrl.u32 2475754826, %v8039
    %v8043 = vor.u32 %v8041, %v8042
    %v8044 = vshll.u32 2475754826, %v8038
    %v8045 = vshrl.u32 2131351028, %v8039
    %v8046 = vor.u32 %v8044, %v8045
    %v8047 = vshll.u32 2131351028, %v8038
    %v8048 = vshrl.u32 2102212464, %v8039
    %v8049 = vor.u32 %v8047, %v8048
    %v8050 = vshll.u32 2102212464, %v8038
    %v8051 = vshrl.u32 920167782, %v8039
    %v8052 = vor.u32 %v8050, %v8051
    %v8053 = vshll.u32 920167782, %v8038
    %v8054 = vshrl.u32 1326507024, %v8039
    %v8055 = vor.u32 %v8053, %v8054
    %vm8056 = vcmp.lt.s32.totalorder %v8037, 1
    %vm8057 = vcmp.lt.s32.totalorder %v8037, 2
    %vm8058 = vcmp.lt.s32.totalorder %v8037, 3
    %vm8059 = vcmp.lt.s32.totalorder %v8037, 4
    %v8060 = vsel %vm8056, %v8040, %v8043
    %v8061 = vsel %vm8059, %v8049, 2102212464
    %v8062 = vsel %vm8058, %v8046, %v8061
    %v8063 = vsel %vm8057, %v8060, %v8062
    %v8064 = vsel %vm8056, %v8043, %v8046
    %v8065 = vsel %vm8059, %v8052, 920167782
    %v8066 = vsel %vm8058, %v8049, %v8065
    %v8067 = vsel %vm8057, %v8064, %v8066
    %v8068 = vsel %vm8056, %v8046, %v8049
    %v8069 = vsel %vm8059, %v8055, 1326507024
    %v8070 = vsel %vm8058, %v8052, %v8069
    %v8071 = vsel %vm8057, %v8068, %v8070
    %v8072 = vshll.u32 %v8032, 8
    %v8073 = vmul.u32.u64.compose %v8072, %v8071
    %v8074 = vextract.low.u32 %v8073
    %v8075 = vextract.high.u32 %v8073
    %v8076 = vmul.u32.u64.compose %v8072, %v8067
    %v8077 = vextract.low.u32 %v8076
    %v8078 = vextract.high.u32 %v8076
    %v8079 = vmul.u32 %v8072, %v8063
    %v8080 = vadd.s32 %v8075, %v8077
    %vm8081 = vc.u32 %v8075, %v8077
    %v8082 = vadd.s32 %v8078, 1
    %v8083 = vsel %vm8081, %v8082, %v8078
    %v8084 = vadd.s32 %v8079, %v8083
    %v8085 = vadd.s32 %v8084, 536870912
    %v8086 = vshrl.u32 %v8085, 30
    %v8087 = vshll.u32 %v8086, 30
    %v8088 = vsub.s32 %v8084, %v8087
    %vm8089 = vcmp.lt.s32.totalorder %v8088, 0
    %v8090 = vsub.s32 0, %v8088
    %v8091 = vsel %vm8089, %v8090, %v8088
    %v8092 = vclz %v8091
    %v8093 = vsub.s32 %v8092, 2
    %vm8094 = vcmp.gt.s32.totalorder 0, %v8093
    %v8095 = vsel %vm8094, 0, %v8093
    %v8096 = vsub.s32 32, %v8095
    %v8097 = vshll.u32 %v8088, %v8095
    %v8098 = vshrl.u32 %v8080, %v8096
    %v8099 = vor.u32 %v8097, %v8098
    %v8100 = vsub.s32 4294967266, %v8095
    %v8101 = vadd.s32 %v8100, 127
    %v8102 = vshll.u32 %v8101, 23
    %v8103 = vor.u32 4788187, %v8102
    %v8104 = vand.u32 2147483647, %v8103
    %v8106 = vcvt.s32.f32 %v8099
    %v8107 = vmul.f32 %v8106, %v8104
    %v8108 = vxor.u32 %v8107, 2147483648
    %v8109 = vsel %vm8026, %v8108, %v8107
    %v8110 = vsub.s32 4, %v8086
    %v8111 = vsel %vm8026, %v8110, %v8086
    %v8112 = vsel %vm8025, %v7920, %v8109
    %v8113 = vsel %vm8025, 0, %v8111
    %v8114 = vcosq.f32.pop %v8112
    %v8115 = vsinq.f32.pop %v8112
    %vm8116 = vweird.f32 %v7920
    %v8117 = vand.u32 %v8113, 3
    %vm8118 = vcmp.lt.s32.totalorder %v8117, 2
    %vm8119 = vcmp.eq.s32.totalorder %v8117, 0
    %v8120 = vxor.u32 %v8115, 2147483648
    %v8121 = vsel %vm8119, %v8114, %v8120
    %vm8122 = vcmp.eq.s32.totalorder %v8117, 2
    %v8123 = vxor.u32 %v8114, 2147483648
    %v8124 = vsel %vm8122, %v8123, %v8115
    %v8125 = vsel %vm8118, %v8121, %v8124
    %v8126 = vsel %vm8116, nan, %v8125
    %v8127 = vmul.f32 %v7637, %v8023
    %v8128 = vmul.f32 %v7638, %v8126
    %v8129 = vand.u32 2147483647, %v7919
    %vm8130 = vcmp.le.f32.partialorder %v8129, 0.7853982
    %vm8131 = vcmp.lt.s32.totalorder %v7919, 0
    %v8132 = vand.u32 %v7919, 2139095040
    %v8133 = vshrl.u32 %v8132, 23
    %v8134 = vsub.s32 %v8133, 127
    %v8135 = vand.u32 2147483647, %v7919
    %v8136 = vand.u32 %v8135, 8388607
    %v8137 = vor.u32 %v8136, 8388608
    %v8138 = vsub.s32 0, %v8137
    %v8139 = vadd.s32 %v8134, 1
    %vm8140 = vcmp.gt.s32.totalorder %v8139, 0
    %v8141 = vsel %vm8140, %v8139, 0
    %v8142 = vshrl.u32 %v8141, 5
    %v8143 = vand.u32 %v8141, 31
    %v8144 = vsub.s32 32, %v8143
    %v8145 = vshrl.u32 683565275, %v8144
    %v8146 = vshll.u32 683565275, %v8143
    %v8147 = vshrl.u32 2475754826, %v8144
    %v8148 = vor.u32 %v8146, %v8147
    %v8149 = vshll.u32 2475754826, %v8143
    %v8150 = vshrl.u32 2131351028, %v8144
    %v8151 = vor.u32 %v8149, %v8150
    %v8152 = vshll.u32 2131351028, %v8143
    %v8153 = vshrl.u32 2102212464, %v8144
    %v8154 = vor.u32 %v8152, %v8153
    %v8155 = vshll.u32 2102212464, %v8143
    %v8156 = vshrl.u32 920167782, %v8144
    %v8157 = vor.u32 %v8155, %v8156
    %v8158 = vshll.u32 920167782, %v8143
    %v8159 = vshrl.u32 1326507024, %v8144
    %v8160 = vor.u32 %v8158, %v8159
    %vm8161 = vcmp.lt.s32.totalorder %v8142, 1
    %vm8162 = vcmp.lt.s32.totalorder %v8142, 2
    %vm8163 = vcmp.lt.s32.totalorder %v8142, 3
    %vm8164 = vcmp.lt.s32.totalorder %v8142, 4
    %v8165 = vsel %vm8161, %v8145, %v8148
    %v8166 = vsel %vm8164, %v8154, 2102212464
    %v8167 = vsel %vm8163, %v8151, %v8166
    %v8168 = vsel %vm8162, %v8165, %v8167
    %v8169 = vsel %vm8161, %v8148, %v8151
    %v8170 = vsel %vm8164, %v8157, 920167782
    %v8171 = vsel %vm8163, %v8154, %v8170
    %v8172 = vsel %vm8162, %v8169, %v8171
    %v8173 = vsel %vm8161, %v8151, %v8154
    %v8174 = vsel %vm8164, %v8160, 1326507024
    %v8175 = vsel %vm8163, %v8157, %v8174
    %v8176 = vsel %vm8162, %v8173, %v8175
    %v8177 = vshll.u32 %v8137, 8
    %v8178 = vmul.u32.u64.compose %v8177, %v8176
    %v8179 = vextract.low.u32 %v8178
    %v8180 = vextract.high.u32 %v8178
    %v8181 = vmul.u32.u64.compose %v8177, %v8172
    %v8182 = vextract.low.u32 %v8181
    %v8183 = vextract.high.u32 %v8181
    %v8184 = vmul.u32 %v8177, %v8168
    %v8185 = vadd.s32 %v8180, %v8182
    %vm8186 = vc.u32 %v8180, %v8182
    %v8187 = vadd.s32 %v8183, 1
    %v8188 = vsel %vm8186, %v8187, %v8183
    %v8189 = vadd.s32 %v8184, %v8188
    %v8190 = vadd.s32 %v8189, 536870912
    %v8191 = vshrl.u32 %v8190, 30
    %v8192 = vshll.u32 %v8191, 30
    %v8193 = vsub.s32 %v8189, %v8192
    %vm8194 = vcmp.lt.s32.totalorder %v8193, 0
    %v8195 = vsub.s32 0, %v8193
    %v8196 = vsel %vm8194, %v8195, %v8193
    %v8197 = vclz %v8196
    %v8198 = vsub.s32 %v8197, 2
    %vm8199 = vcmp.gt.s32.totalorder 0, %v8198
    %v8200 = vsel %vm8199, 0, %v8198
    %v8201 = vsub.s32 32, %v8200
    %v8202 = vshll.u32 %v8193, %v8200
    %v8203 = vshrl.u32 %v8185, %v8201
    %v8204 = vor.u32 %v8202, %v8203
    %v8205 = vsub.s32 4294967266, %v8200
    %v8206 = vadd.s32 %v8205, 127
    %v8207 = vshll.u32 %v8206, 23
    %v8208 = vor.u32 4788187, %v8207
    %v8209 = vand.u32 2147483647, %v8208
    %v8211 = vcvt.s32.f32 %v8204
    %v8212 = vmul.f32 %v8211, %v8209
    %v8213 = vxor.u32 %v8212, 2147483648
    %v8214 = vsel %vm8131, %v8213, %v8212
    %v8215 = vsub.s32 4, %v8191
    %v8216 = vsel %vm8131, %v8215, %v8191
    %v8217 = vsel %vm8130, %v7919, %v8214
    %v8218 = vsel %vm8130, 0, %v8216
    %v8219 = vcosq.f32.pop %v8217
    %v8220 = vsinq.f32.pop %v8217
    %vm8221 = vweird.f32 %v7919
    %v8222 = vadd.s32 %v8218, 3
    %v8223 = vand.u32 %v8222, 3
    %vm8224 = vcmp.lt.s32.totalorder %v8223, 2
    %vm8225 = vcmp.eq.s32.totalorder %v8223, 0
    %v8226 = vxor.u32 %v8220, 2147483648
    %v8227 = vsel %vm8225, %v8219, %v8226
    %vm8228 = vcmp.eq.s32.totalorder %v8223, 2
    %v8229 = vxor.u32 %v8219, 2147483648
    %v8230 = vsel %vm8228, %v8229, %v8220
    %v8231 = vsel %vm8224, %v8227, %v8230
    %v8232 = vsel %vm8221, nan, %v8231
    %v8233 = vand.u32 2147483647, %v7920
    %vm8234 = vcmp.le.f32.partialorder %v8233, 0.7853982
    %vm8235 = vcmp.lt.s32.totalorder %v7920, 0
    %v8236 = vand.u32 %v7920, 2139095040
    %v8237 = vshrl.u32 %v8236, 23
    %v8238 = vsub.s32 %v8237, 127
    %v8239 = vand.u32 2147483647, %v7920
    %v8240 = vand.u32 %v8239, 8388607
    %v8241 = vor.u32 %v8240, 8388608
    %v8242 = vsub.s32 0, %v8241
    %v8243 = vadd.s32 %v8238, 1
    %vm8244 = vcmp.gt.s32.totalorder %v8243, 0
    %v8245 = vsel %vm8244, %v8243, 0
    %v8246 = vshrl.u32 %v8245, 5
    %v8247 = vand.u32 %v8245, 31
    %v8248 = vsub.s32 32, %v8247
    %v8249 = vshrl.u32 683565275, %v8248
    %v8250 = vshll.u32 683565275, %v8247
    %v8251 = vshrl.u32 2475754826, %v8248
    %v8252 = vor.u32 %v8250, %v8251
    %v8253 = vshll.u32 2475754826, %v8247
    %v8254 = vshrl.u32 2131351028, %v8248
    %v8255 = vor.u32 %v8253, %v8254
    %v8256 = vshll.u32 2131351028, %v8247
    %v8257 = vshrl.u32 2102212464, %v8248
    %v8258 = vor.u32 %v8256, %v8257
    %v8259 = vshll.u32 2102212464, %v8247
    %v8260 = vshrl.u32 920167782, %v8248
    %v8261 = vor.u32 %v8259, %v8260
    %v8262 = vshll.u32 920167782, %v8247
    %v8263 = vshrl.u32 1326507024, %v8248
    %v8264 = vor.u32 %v8262, %v8263
    %vm8265 = vcmp.lt.s32.totalorder %v8246, 1
    %vm8266 = vcmp.lt.s32.totalorder %v8246, 2
    %vm8267 = vcmp.lt.s32.totalorder %v8246, 3
    %vm8268 = vcmp.lt.s32.totalorder %v8246, 4
    %v8269 = vsel %vm8265, %v8249, %v8252
    %v8270 = vsel %vm8268, %v8258, 2102212464
    %v8271 = vsel %vm8267, %v8255, %v8270
    %v8272 = vsel %vm8266, %v8269, %v8271
    %v8273 = vsel %vm8265, %v8252, %v8255
    %v8274 = vsel %vm8268, %v8261, 920167782
    %v8275 = vsel %vm8267, %v8258, %v8274
    %v8276 = vsel %vm8266, %v8273, %v8275
    %v8277 = vsel %vm8265, %v8255, %v8258
    %v8278 = vsel %vm8268, %v8264, 1326507024
    %v8279 = vsel %vm8267, %v8261, %v8278
    %v8280 = vsel %vm8266, %v8277, %v8279
    %v8281 = vshll.u32 %v8241, 8
    %v8282 = vmul.u32.u64.compose %v8281, %v8280
    %v8283 = vextract.low.u32 %v8282
    %v8284 = vextract.high.u32 %v8282
    %v8285 = vmul.u32.u64.compose %v8281, %v8276
    %v8286 = vextract.low.u32 %v8285
    %v8287 = vextract.high.u32 %v8285
    %v8288 = vmul.u32 %v8281, %v8272
    %v8289 = vadd.s32 %v8284, %v8286
    %vm8290 = vc.u32 %v8284, %v8286
    %v8291 = vadd.s32 %v8287, 1
    %v8292 = vsel %vm8290, %v8291, %v8287
    %v8293 = vadd.s32 %v8288, %v8292
    %v8294 = vadd.s32 %v8293, 536870912
    %v8295 = vshrl.u32 %v8294, 30
    %v8296 = vshll.u32 %v8295, 30
    %v8297 = vsub.s32 %v8293, %v8296
    %vm8298 = vcmp.lt.s32.totalorder %v8297, 0
    %v8299 = vsub.s32 0, %v8297
    %v8300 = vsel %vm8298, %v8299, %v8297
    %v8301 = vclz %v8300
    %v8302 = vsub.s32 %v8301, 2
    %vm8303 = vcmp.gt.s32.totalorder 0, %v8302
    %v8304 = vsel %vm8303, 0, %v8302
    %v8305 = vsub.s32 32, %v8304
    %v8306 = vshll.u32 %v8297, %v8304
    %v8307 = vshrl.u32 %v8289, %v8305
    %v8308 = vor.u32 %v8306, %v8307
    %v8309 = vsub.s32 4294967266, %v8304
    %v8310 = vadd.s32 %v8309, 127
    %v8311 = vshll.u32 %v8310, 23
    %v8312 = vor.u32 4788187, %v8311
    %v8313 = vand.u32 2147483647, %v8312
    %v8315 = vcvt.s32.f32 %v8308
    %v8316 = vmul.f32 %v8315, %v8313
    %v8317 = vxor.u32 %v8316, 2147483648
    %v8318 = vsel %vm8235, %v8317, %v8316
    %v8319 = vsub.s32 4, %v8295
    %v8320 = vsel %vm8235, %v8319, %v8295
    %v8321 = vsel %vm8234, %v7920, %v8318
    %v8322 = vsel %vm8234, 0, %v8320
    %v8323 = vcosq.f32.pop %v8321
    %v8324 = vsinq.f32.pop %v8321
    %vm8325 = vweird.f32 %v7920
    %v8326 = vadd.s32 %v8322, 3
    %v8327 = vand.u32 %v8326, 3
    %vm8328 = vcmp.lt.s32.totalorder %v8327, 2
    %vm8329 = vcmp.eq.s32.totalorder %v8327, 0
    %v8330 = vxor.u32 %v8324, 2147483648
    %v8331 = vsel %vm8329, %v8323, %v8330
    %vm8332 = vcmp.eq.s32.totalorder %v8327, 2
    %v8333 = vxor.u32 %v8323, 2147483648
    %v8334 = vsel %vm8332, %v8333, %v8324
    %v8335 = vsel %vm8328, %v8331, %v8334
    %v8336 = vsel %vm8325, nan, %v8335
    %v8337 = vmul.f32 %v7637, %v8232
    %v8338 = vmul.f32 %v7638, %v8336
    %8339 = vmatprep.subr.mxu0 %v1636
    %8340 = vmatpush1.msra.mxu0 %v1635
    %8341 = vmatprep.subr.mxu0 %v1638
    %8342 = vmatpush1.msra.mxu0 %v1637
    %8343 = vmatprep.subr.mxu0 %v1640
    %8344 = vmatpush1.msra.mxu0 %v1639
    %8345 = vmatprep.subr.mxu0 %v1642
    %8346 = vmatpush1.msra.mxu0 %v1641
    %8347 = vmatprep.subr.mxu0 %v1644
    %8348 = vmatpush1.msra.mxu0 %v1643
    %8349 = vmatprep.subr.mxu0 %v1646
    %8350 = vmatpush1.msra.mxu0 %v1645
    %8351 = vmatprep.subr.mxu0 %v1648
    %8352 = vmatpush1.msra.mxu0 %v1647
    %8353 = vmatprep.subr.mxu0 %v1650
    %8354 = vmatpush1.msra.mxu0 %v1649
    %8355 = vmatprep.subr.mxu0 %v1652
    %8356 = vmatpush1.msra.mxu0 %v1651
    %8357 = vmatprep.subr.mxu0 %v1654
    %8358 = vmatpush1.msra.mxu0 %v1653
    %8359 = vmatprep.subr.mxu0 %v1656
    %8360 = vmatpush1.msra.mxu0 %v1655
    %8361 = vmatprep.subr.mxu0 %v1658
    %8362 = vmatpush1.msra.mxu0 %v1657
    %8363 = vmatprep.subr.mxu0 %v1660
    %8364 = vmatpush1.msra.mxu0 %v1659
    %8365 = vmatprep.subr.mxu0 %v1662
    %8366 = vmatpush1.msra.mxu0 %v1661
    %8367 = vmatprep.subr.mxu0 %v1664
    %8368 = vmatpush1.msra.mxu0 %v1663
    %8369 = vmatprep.subr.mxu0 %v1666
    %8370 = vmatpush1.msra.mxu0 %v1665
    %8371 = vmatprep.subr.mxu0 %v1668
    %8372 = vmatpush1.msra.mxu0 %v1667
    %8373 = vmatprep.subr.mxu0 %v1670
    %8374 = vmatpush1.msra.mxu0 %v1669
    %8375 = vmatprep.subr.mxu0 %v1672
    %8376 = vmatpush1.msra.mxu0 %v1671
    %8377 = vmatprep.subr.mxu0 %v1674
    %8378 = vmatpush1.msra.mxu0 %v1673
    %8379 = vmatprep.subr.mxu0 %v1676
    %8380 = vmatpush1.msra.mxu0 %v1675
    %8381 = vmatprep.subr.mxu0 %v1678
    %8382 = vmatpush1.msra.mxu0 %v1677
    %8383 = vmatprep.subr.mxu0 %v1680
    %8384 = vmatpush1.msra.mxu0 %v1679
    %8385 = vmatprep.subr.mxu0 %v1682
    %8386 = vmatpush1.msra.mxu0 %v1681
    %8387 = vmatprep.subr.mxu0 %v1684
    %8388 = vmatpush1.msra.mxu0 %v1683
    %8389 = vmatprep.subr.mxu0 %v1686
    %8390 = vmatpush1.msra.mxu0 %v1685
    %8391 = vmatprep.subr.mxu0 %v1688
    %8392 = vmatpush1.msra.mxu0 %v1687
    %8393 = vmatprep.subr.mxu0 %v1690
    %8394 = vmatpush1.msra.mxu0 %v1689
    %8395 = vmatprep.subr.mxu0 %v1692
    %8396 = vmatpush1.msra.mxu0 %v1691
    %8397 = vmatprep.subr.mxu0 %v1694
    %8398 = vmatpush1.msra.mxu0 %v1693
    %8399 = vmatprep.subr.mxu0 %v1696
    %8400 = vmatpush1.msra.mxu0 %v1695
    %8401 = vmatprep.subr.mxu0 %v1698
    %8402 = vmatpush1.msra.mxu0 %v1697
    %8403 = vmatprep.mubr.f32.mxu0 %v8338
    %8404 = vmatmul.mubr.f32.gmra.mrb[0].mxu0 %v8337
    %v8405 = vpop.f32.mrb[0].mxu0
    %v8406 = vadd.f32 0.0, %v8405
    %v8407 = vpop.f32.mrb[0].mxu0
    %v8408 = vadd.f32 0.0, %v8407
    %8409 = vdwg.mxu0
    %8410 = vmatprep.subr.mxu0 %v1572
    %8411 = vmatpush1.msra.mxu0 %v1571
    %8412 = vmatprep.subr.mxu0 %v1574
    %8413 = vmatpush1.msra.mxu0 %v1573
    %8414 = vmatprep.subr.mxu0 %v1576
    %8415 = vmatpush1.msra.mxu0 %v1575
    %8416 = vmatprep.subr.mxu0 %v1578
    %8417 = vmatpush1.msra.mxu0 %v1577
    %8418 = vmatprep.subr.mxu0 %v1580
    %8419 = vmatpush1.msra.mxu0 %v1579
    %8420 = vmatprep.subr.mxu0 %v1582
    %8421 = vmatpush1.msra.mxu0 %v1581
    %8422 = vmatprep.subr.mxu0 %v1584
    %8423 = vmatpush1.msra.mxu0 %v1583
    %8424 = vmatprep.subr.mxu0 %v1586
    %8425 = vmatpush1.msra.mxu0 %v1585
    %8426 = vmatprep.subr.mxu0 %v1588
    %8427 = vmatpush1.msra.mxu0 %v1587
    %8428 = vmatprep.subr.mxu0 %v1590
    %8429 = vmatpush1.msra.mxu0 %v1589
    %8430 = vmatprep.subr.mxu0 %v1592
    %8431 = vmatpush1.msra.mxu0 %v1591
    %8432 = vmatprep.subr.mxu0 %v1594
    %8433 = vmatpush1.msra.mxu0 %v1593
    %8434 = vmatprep.subr.mxu0 %v1596
    %8435 = vmatpush1.msra.mxu0 %v1595
    %8436 = vmatprep.subr.mxu0 %v1598
    %8437 = vmatpush1.msra.mxu0 %v1597
    %8438 = vmatprep.subr.mxu0 %v1600
    %8439 = vmatpush1.msra.mxu0 %v1599
    %8440 = vmatprep.subr.mxu0 %v1602
    %8441 = vmatpush1.msra.mxu0 %v1601
    %8442 = vmatprep.subr.mxu0 %v1604
    %8443 = vmatpush1.msra.mxu0 %v1603
    %8444 = vmatprep.subr.mxu0 %v1606
    %8445 = vmatpush1.msra.mxu0 %v1605
    %8446 = vmatprep.subr.mxu0 %v1608
    %8447 = vmatpush1.msra.mxu0 %v1607
    %8448 = vmatprep.subr.mxu0 %v1610
    %8449 = vmatpush1.msra.mxu0 %v1609
    %8450 = vmatprep.subr.mxu0 %v1612
    %8451 = vmatpush1.msra.mxu0 %v1611
    %8452 = vmatprep.subr.mxu0 %v1614
    %8453 = vmatpush1.msra.mxu0 %v1613
    %8454 = vmatprep.subr.mxu0 %v1616
    %8455 = vmatpush1.msra.mxu0 %v1615
    %8456 = vmatprep.subr.mxu0 %v1618
    %8457 = vmatpush1.msra.mxu0 %v1617
    %8458 = vmatprep.subr.mxu0 %v1620
    %8459 = vmatpush1.msra.mxu0 %v1619
    %8460 = vmatprep.subr.mxu0 %v1622
    %8461 = vmatpush1.msra.mxu0 %v1621
    %8462 = vmatprep.subr.mxu0 %v1624
    %8463 = vmatpush1.msra.mxu0 %v1623
    %8464 = vmatprep.subr.mxu0 %v1626
    %8465 = vmatpush1.msra.mxu0 %v1625
    %8466 = vmatprep.subr.mxu0 %v1628
    %8467 = vmatpush1.msra.mxu0 %v1627
    %8468 = vmatprep.subr.mxu0 %v1630
    %8469 = vmatpush1.msra.mxu0 %v1629
    %8470 = vmatprep.subr.mxu0 %v1632
    %8471 = vmatpush1.msra.mxu0 %v1631
    %8472 = vmatprep.subr.mxu0 %v1634
    %8473 = vmatpush1.msra.mxu0 %v1633
    %8474 = vmatprep.mubr.f32.mxu0 %v8128
    %8475 = vmatmul.mubr.f32.gmra.mrb[0].mxu0 %v8127
    %v8476 = vpop.f32.mrb[0].mxu0
    %v8477 = vadd.f32 %v8406, %v8476
    %v8478 = vpop.f32.mrb[0].mxu0
    %v8479 = vadd.f32 %v8408, %v8478
    %8480 = vdwg.mxu0
    %v8481 = vadd.f32 %v8477, %v6961
    %v8482 = vadd.f32 %v8479, %v6962
    %s8483 = scalar_lea.vmem %s1, 232
    %v8484 = vld [vmem:[%s8483] sm:$0xff]
    %s8485 = scalar_lea.vmem %s2, 232
    %v8486 = vld [vmem:[%s8485] sm:$0xff]
    %8488 = vset.pattern.permute.xlu0 0
    %8489 = vperm.xlu0 %8488, %v8484
    %v8490 = vpop.permute.xlu0 %8489
    %v8492 = vlaneseq
    %v8493 = vshrl.u32 %v8492, 7
    %v8494 = vsub.s32 0, %v8493
    %v8495 = vrot.slane %v8481, %v8494
    %v8496 = vlaneseq
    %v8497 = vshrl.u32 %v8496, 7
    %v8498 = vsub.s32 0, %v8497
    %v8499 = vrot.slane %v8482, %v8498
    %v8500 = vmul.f32 %v8490, %v8495
    %v8501 = vmul.f32 %v8490, %v8499
    %8503 = vset.pattern.permute.xlu0 0
    %8504 = vperm.xlu0 %8503, %v8486
    %v8505 = vpop.permute.xlu0 %8504
    %v8507 = vadd.f32 %v8500, %v8505
    %v8508 = vadd.f32 %v8501, %v8505
    %8509 = vset.pattern.permute.xlu0 1
    %8510 = vperm.xlu0 %8509, %v8484
    %v8511 = vpop.permute.xlu0 %8510
    %v8513 = vlaneseq
    %v8514 = vshrl.u32 %v8513, 7
    %v8515 = vsub.s32 1, %v8514
    %v8516 = vrot.slane %v8481, %v8515
    %v8517 = vlaneseq
    %v8518 = vshrl.u32 %v8517, 7
    %v8519 = vsub.s32 1, %v8518
    %v8520 = vrot.slane %v8482, %v8519
    %v8521 = vmul.f32 %v8511, %v8516
    %v8522 = vmul.f32 %v8511, %v8520
    %v8523 = vadd.f32 %v8507, %v8521
    %v8524 = vadd.f32 %v8508, %v8522
    %8525 = vset.pattern.permute.xlu0 2
    %8526 = vperm.xlu0 %8525, %v8484
    %v8527 = vpop.permute.xlu0 %8526
    %v8529 = vlaneseq
    %v8530 = vshrl.u32 %v8529, 7
    %v8531 = vsub.s32 2, %v8530
    %v8532 = vrot.slane %v8481, %v8531
    %v8533 = vlaneseq
    %v8534 = vshrl.u32 %v8533, 7
    %v8535 = vsub.s32 2, %v8534
    %v8536 = vrot.slane %v8482, %v8535
    %v8537 = vmul.f32 %v8527, %v8532
    %v8538 = vmul.f32 %v8527, %v8536
    %v8539 = vadd.f32 %v8523, %v8537
    %v8540 = vadd.f32 %v8524, %v8538
    %8541 = vset.pattern.permute.xlu0 3
    %8542 = vperm.xlu0 %8541, %v8484
    %v8543 = vpop.permute.xlu0 %8542
    %v8545 = vlaneseq
    %v8546 = vshrl.u32 %v8545, 7
    %v8547 = vsub.s32 3, %v8546
    %v8548 = vrot.slane %v8481, %v8547
    %v8549 = vlaneseq
    %v8550 = vshrl.u32 %v8549, 7
    %v8551 = vsub.s32 3, %v8550
    %v8552 = vrot.slane %v8482, %v8551
    %v8553 = vmul.f32 %v8543, %v8548
    %v8554 = vmul.f32 %v8543, %v8552
    %v8555 = vadd.f32 %v8539, %v8553
    %v8556 = vadd.f32 %v8540, %v8554
    %8557 = vset.pattern.permute.xlu0 4
    %8558 = vperm.xlu0 %8557, %v8484
    %v8559 = vpop.permute.xlu0 %8558
    %v8561 = vlaneseq
    %v8562 = vshrl.u32 %v8561, 7
    %v8563 = vsub.s32 4, %v8562
    %v8564 = vrot.slane %v8481, %v8563
    %v8565 = vlaneseq
    %v8566 = vshrl.u32 %v8565, 7
    %v8567 = vsub.s32 4, %v8566
    %v8568 = vrot.slane %v8482, %v8567
    %v8569 = vmul.f32 %v8559, %v8564
    %v8570 = vmul.f32 %v8559, %v8568
    %v8571 = vadd.f32 %v8555, %v8569
    %v8572 = vadd.f32 %v8556, %v8570
    %8573 = vset.pattern.permute.xlu0 5
    %8574 = vperm.xlu0 %8573, %v8484
    %v8575 = vpop.permute.xlu0 %8574
    %v8577 = vlaneseq
    %v8578 = vshrl.u32 %v8577, 7
    %v8579 = vsub.s32 5, %v8578
    %v8580 = vrot.slane %v8481, %v8579
    %v8581 = vlaneseq
    %v8582 = vshrl.u32 %v8581, 7
    %v8583 = vsub.s32 5, %v8582
    %v8584 = vrot.slane %v8482, %v8583
    %v8585 = vmul.f32 %v8575, %v8580
    %v8586 = vmul.f32 %v8575, %v8584
    %v8587 = vadd.f32 %v8571, %v8585
    %v8588 = vadd.f32 %v8572, %v8586
    %8589 = vset.pattern.permute.xlu0 6
    %8590 = vperm.xlu0 %8589, %v8484
    %v8591 = vpop.permute.xlu0 %8590
    %v8593 = vlaneseq
    %v8594 = vshrl.u32 %v8593, 7
    %v8595 = vsub.s32 6, %v8594
    %v8596 = vrot.slane %v8481, %v8595
    %v8597 = vlaneseq
    %v8598 = vshrl.u32 %v8597, 7
    %v8599 = vsub.s32 6, %v8598
    %v8600 = vrot.slane %v8482, %v8599
    %v8601 = vmul.f32 %v8591, %v8596
    %v8602 = vmul.f32 %v8591, %v8600
    %v8603 = vadd.f32 %v8587, %v8601
    %v8604 = vadd.f32 %v8588, %v8602
    %8605 = vset.pattern.permute.xlu0 7
    %8606 = vperm.xlu0 %8605, %v8484
    %v8607 = vpop.permute.xlu0 %8606
    %v8609 = vlaneseq
    %v8610 = vshrl.u32 %v8609, 7
    %v8611 = vsub.s32 7, %v8610
    %v8612 = vrot.slane %v8481, %v8611
    %v8613 = vlaneseq
    %v8614 = vshrl.u32 %v8613, 7
    %v8615 = vsub.s32 7, %v8614
    %v8616 = vrot.slane %v8482, %v8615
    %v8617 = vmul.f32 %v8607, %v8612
    %v8618 = vmul.f32 %v8607, %v8616
    %v8619 = vadd.f32 %v8603, %v8617
    %v8620 = vadd.f32 %v8604, %v8618
    %v8621 = vadd.f32 %v8619, %v6961
    %v8622 = vadd.f32 %v8620, %v6962
    %v8623 = vadd.f32 %v8621, %v67
    %v8624 = vadd.f32 %v8622, %v68
    %8625 = vst [vmem:[%s7] sm:$0xff] %v8623
    %8626 = vst [vmem:[%s7 + $0x8] sm:$0xff] %v8624
    // Predicated region
    $region42: #{sfnet_forward.1} parent=1 // pred_check
      _
    $region43: #{sfnet_forward.1} parent=1 // pred_check_branch
      %8628 = sbr.rel (0) target = $region45
    $region44: #{sfnet_forward.1} parent=1 // pred_region
      _
    $region45: #{sfnet_forward.1} parent=1 // pred_fallthru
      _
    // Predicated region
    $region46: #{sfnet_forward.1} parent=1 // pred_check
      _
    $region47: #{sfnet_forward.1} parent=1 // pred_check_branch
      %8630 = sbr.rel (0) target = $region49
    $region48: #{sfnet_forward.1} parent=1 // pred_region
      _
    $region49: #{sfnet_forward.1} parent=1 // pred_fallthru
      _
    %8631 = vsyncpa [#allocation3], 1
    %8632 = vsyncpa [#allocation5], 1

</llo_original>
